<compile_context>
chip_gen: v7x
topology: tpu7x:2x2x1
jax: 0.10.0
libtpu: 0.0.40
codegen_flags: <defaults>
</compile_context>

<pallas_src>
import functools

import jax
import jax.numpy as jnp
from jax.experimental import pallas as pl
from jax.experimental.pallas import tpu as pltpu

LEAKY_SLOPE = 0.2


def _round_up(x, m):
    return ((x + m - 1) // m) * m


# ----------------------------- Pallas kernels -------------------------------
def _conv_gemm_kernel(a_ref, w_ref, b_ref, o_ref, *, slope):
    # A tile (bm, K) bf16 @ W (K, Np) bf16 -> f32 acc; bias + LeakyReLU fused.
    acc = jnp.dot(a_ref[...], w_ref[...], preferred_element_type=jnp.float32)
    acc = acc + b_ref[...]
    if slope is not None:
        acc = jnp.where(acc >= 0.0, acc, acc * slope)
    o_ref[...] = acc.astype(o_ref.dtype)


def conv_gemm(a, w_mat, bias2d, *, slope, out_dtype=jnp.bfloat16):
    """(M,K)@(K,Np) + bias (+ LeakyReLU), lane-dense Np, whole-M/2 tiles."""
    M, K = a.shape
    K2, Np = w_mat.shape
    assert K == K2
    # 2 parallel grid steps so v7x megacore uses both TensorCores; on v5e/v6e
    # this is still effectively a collapsed grid (per-step overhead ~0.35us).
    g = 2 if (M % 16 == 0 and M >= 16) else 1
    bm = M // g
    return pl.pallas_call(
        functools.partial(_conv_gemm_kernel, slope=slope),
        out_shape=jax.ShapeDtypeStruct((M, Np), out_dtype),
        grid=(g,),
        in_specs=[
            pl.BlockSpec((bm, K), lambda i: (i, 0)),
            pl.BlockSpec((K, Np), lambda i: (0, 0)),
            pl.BlockSpec((1, Np), lambda i: (0, 0)),
        ],
        out_specs=pl.BlockSpec((bm, Np), lambda i: (i, 0)),
        compiler_params=pltpu.CompilerParams(
            dimension_semantics=("parallel",)),
    )(a, w_mat, bias2d)


def _tail_kernel(a3_ref, w3_ref, b3_ref, s_ref, w4_ref, b4_ref,
                 w5_ref, sel_ref, b5_ref, o_ref, *, slope, n_offsets):
    """Fused layers 3-5: GEMM -> in-VMEM implicit-GEMM conv -> reduction."""
    # ---- layer 3: GEMM + bias + LeakyReLU (activation stays on-chip) ----
    h3 = jnp.dot(a3_ref[...], w3_ref[...], preferred_element_type=jnp.float32)
    h3 = h3 + b3_ref[...]
    h3 = jnp.where(h3 >= 0.0, h3, h3 * slope)
    h3 = h3.astype(jnp.bfloat16)

    # ---- layer 4: implicit GEMM over the 16 kernel offsets -----------------
    # For each offset k, S[k] is a 0/1 matrix gathering the stride-2 window
    # rows (zero rows model the conv padding); accumulate in f32.
    m4 = sel_ref.shape[1]
    c4 = w4_ref.shape[2]
    acc4 = jnp.zeros((m4, c4), jnp.float32)
    for k in range(n_offsets):
        gath = jnp.dot(s_ref[k], h3,
                       preferred_element_type=jnp.float32).astype(jnp.bfloat16)
        acc4 = acc4 + jnp.dot(gath, w4_ref[k],
                              preferred_element_type=jnp.float32)
    h4 = acc4 + b4_ref[...]
    h4 = jnp.where(h4 >= 0.0, h4, h4 * slope)

    # ---- layer 5: full-extent 4x4 conv == per-image weighted sum (epilogue) --
    prod = h4 * w5_ref[...]                                      # (m4, c4) f32
    t = jnp.dot(sel_ref[...], prod,
                preferred_element_type=jnp.float32)              # (B, c4)
    o_ref[...] = jnp.sum(t, axis=1, keepdims=True) + b5_ref[...]


# ------------------------------- conv glue ----------------------------------
def extract_patches(x, k, stride, pad):
    # x: (N, H, W, C) -> patches (N, Ho, Wo, k*k*C), K ordered as (kh, kw, cin)
    n, h, w, c = x.shape
    xp = jnp.pad(x, ((0, 0), (pad, pad), (pad, pad), (0, 0)))
    ho = (h + 2 * pad - k) // stride + 1
    wo = (w + 2 * pad - k) // stride + 1
    cols = []
    for i in range(k):
        for j in range(k):
            cols.append(xp[:, i:i + stride * ho:stride,
                           j:j + stride * wo:stride, :])
    return jnp.concatenate(cols, axis=-1), ho, wo


def _weight_matrix(w, cout_pad):
    # (Cout, Cin, kh, kw) -> (kh*kw*Cin, cout_pad) bf16, zero-padded lanes.
    cout, cin, kh, kw = w.shape
    w_mat = jnp.transpose(w, (2, 3, 1, 0)).reshape(kh * kw * cin, cout)
    return jnp.pad(w_mat, ((0, 0), (0, cout_pad - cout))).astype(jnp.bfloat16)


def _bias_row(b, cout_pad):
    return jnp.pad(b, (0, cout_pad - b.shape[0])).reshape(
        1, cout_pad).astype(jnp.float32)


def conv2d_pallas(x, w, b, *, stride, pad, slope):
    # x: (N, H, W, Cin) NHWC bf16;  w: (Cout, Cin, kh, kw) (PyTorch layout)
    cout = w.shape[0]
    kh = w.shape[2]
    patches, ho, wo = extract_patches(x, kh, stride, pad)
    n = x.shape[0]
    a = patches.reshape(n * ho * wo, -1)
    cout_pad = _round_up(cout, 128)
    out = conv_gemm(a, _weight_matrix(w, cout_pad), _bias_row(b, cout_pad),
                    slope=slope)
    # keep only the true channels for the next layer's im2col
    return out.reshape(n, ho, wo, cout_pad)[..., :cout]


def _gather_matrices(batch, hin, win, hout, wout, ksize, stride, pad, dtype):
    # (k*k, batch*hout*wout, batch*hin*win) 0/1 matrices: row gather for the
    # stride-`stride` conv window at each kernel offset; zero rows == padding.
    r_out = jnp.arange(batch * hout * wout)
    n_out = r_out // (hout * wout)
    rem = r_out % (hout * wout)
    oi, oj = rem // wout, rem % wout
    r_in = jnp.arange(batch * hin * win)
    mats = []
    for di in range(ksize):
        for dj in range(ksize):
            y = stride * oi - pad + di
            x = stride * oj - pad + dj
            valid = (y >= 0) & (y < hin) & (x >= 0) & (x < win)
            tgt = n_out * (hin * win) + y * win + x
            m = (r_in[None, :] == tgt[:, None]) & valid[:, None]
            mats.append(m.astype(dtype))
    return jnp.stack(mats, axis=0)


def tail_forward(x2, p3, p4, p5):
    # x2: (N, 16, 16, 2*ch) bf16 activation after layer 2 (true channels).
    n = x2.shape[0]
    w3, b3 = p3
    w4, b4 = p4
    w5, b5 = p5
    c3, c4 = w3.shape[0], w4.shape[0]
    c3p, c4p = _round_up(c3, 128), _round_up(c4, 128)

    # layer-3 im2col (last XLA-side im2col): (N*8*8, 4*4*2ch)
    patches, h3s, w3s = extract_patches(x2, 4, 2, 1)           # 16x16 -> 8x8
    a3 = patches.reshape(n * h3s * w3s, -1)

    w3m = _weight_matrix(w3, c3p)
    b3r = _bias_row(b3, c3p)

    # layer-4 per-offset weights (16, c3p, c4p); padded rows/cols are zero.
    w4t = jnp.transpose(w4, (2, 3, 1, 0))                      # (4,4,c3,c4)
    w4t = jnp.pad(w4t, ((0, 0), (0, 0), (0, c3p - c3), (0, c4p - c4)))
    w4k = w4t.reshape(16, c3p, c4p).astype(jnp.bfloat16)
    b4r = _bias_row(b4, c4p)

    # layer-4 gather matrices over the 8x8 -> 4x4 stride-2 window.
    s_mats = _gather_matrices(n, h3s, w3s, 4, 4, 4, 2, 1, jnp.bfloat16)

    # layer-5 weight in (ho, wo, cin) order, tiled per batch row group.
    w5r = jnp.transpose(w5, (2, 3, 1, 0)).reshape(16, c4)
    w5r = jnp.pad(w5r, ((0, 0), (0, c4p - c4))).astype(jnp.float32)
    w5t = jnp.tile(w5r, (n, 1))                                # (n*16, c4p)
    sel = (jnp.arange(n * 16)[None, :] // 16
           == jnp.arange(n)[:, None]).astype(jnp.float32)      # (n, n*16)
    b5r = b5.reshape(1, 1).astype(jnp.float32)

    out = pl.pallas_call(
        functools.partial(_tail_kernel, slope=LEAKY_SLOPE, n_offsets=16),
        out_shape=jax.ShapeDtypeStruct((n, 1), jnp.float32),
        grid=(1,),
        in_specs=[
            pl.BlockSpec(a3.shape, lambda i: (0, 0)),
            pl.BlockSpec(w3m.shape, lambda i: (0, 0)),
            pl.BlockSpec(b3r.shape, lambda i: (0, 0)),
            pl.BlockSpec(s_mats.shape, lambda i: (0, 0, 0)),
            pl.BlockSpec(w4k.shape, lambda i: (0, 0, 0)),
            pl.BlockSpec(b4r.shape, lambda i: (0, 0)),
            pl.BlockSpec(w5t.shape, lambda i: (0, 0)),
            pl.BlockSpec(sel.shape, lambda i: (0, 0)),
            pl.BlockSpec(b5r.shape, lambda i: (0, 0)),
        ],
        out_specs=pl.BlockSpec((n, 1), lambda i: (0, 0)),
        compiler_params=pltpu.CompilerParams(
            dimension_semantics=("arbitrary",)),
    )(a3, w3m, b3r, s_mats, w4k, b4r, w5t, sel, b5r)
    return out.reshape(n)


# --------------------------- parameters (synthetic) --------------------------
def spectral_norm_weight(w, key, n_power_iterations=1, eps=1e-12):
    # Matches torch.nn.utils.spectral_norm forward (dim=0, 1 power iter).
    w_mat = w.reshape(w.shape[0], -1)
    u = jax.random.normal(key, (w.shape[0],), dtype=jnp.float32)
    u = u / (jnp.linalg.norm(u) + eps)
    v = None
    for _ in range(n_power_iterations):
        v = w_mat.T @ u
        v = v / (jnp.linalg.norm(v) + eps)
        u = w_mat @ v
        u = u / (jnp.linalg.norm(u) + eps)
    sigma = jnp.dot(u, w_mat @ v)
    return w / sigma


def init_params(key, ch=16):
    layer_defs = [(3, ch), (ch, ch * 2), (ch * 2, ch * 4),
                  (ch * 4, ch * 8), (ch * 8, 1)]
    params = []
    for cin, cout in layer_defs:
        key, kw_, kb_, ku_ = jax.random.split(key, 4)
        w = 0.02 * jax.random.normal(kw_, (cout, cin, 4, 4), dtype=jnp.float32)
        b = 0.01 * jax.random.normal(kb_, (cout,), dtype=jnp.float32)
        params.append((spectral_norm_weight(w, ku_), b))
    return params


# -------------------------------- forward -----------------------------------
def image_discriminator_forward(x_nchw, params):
    x = jnp.transpose(x_nchw, (0, 2, 3, 1)).astype(jnp.bfloat16)  # NCHW -> NHWC
    # layers 1-2: per-layer fused GEMM + bias + LeakyReLU kernels (64->32->16)
    x = conv2d_pallas(x, *params[0], stride=2, pad=1, slope=LEAKY_SLOPE)
    x = conv2d_pallas(x, *params[1], stride=2, pad=1, slope=LEAKY_SLOPE)
    # layers 3-5 fused into one kernel (16->8->4->1); returns (N,) logits
    return tail_forward(x, params[2], params[3], params[4])


if __name__ == "__main__":
    key = jax.random.PRNGKey(0)
    kx, kp = jax.random.split(key)
    # 64x64 input is required so the final 4x4/stride-1 conv yields (N,1,1,1);
    # ch=16 keeps the synthetic model small (real module uses ch=64).
    x = jax.random.normal(kx, (2, 3, 64, 64), dtype=jnp.float32)
    params = init_params(kp, ch=16)

    fwd = jax.jit(lambda inp: image_discriminator_forward(inp, params))
    out = fwd(x)
    jax.block_until_ready(out)
    assert out.shape == (2,) and out.dtype == jnp.float32
    print("KERNEL_OK")
</pallas_src>

<mosaic_0001>
module attributes {stable_mosaic.version = 11 : i64} {
  func.func @_conv_gemm_kernel(%arg0: i32, %arg1: memref<1024x48xbf16, #tpu.memory_space<vmem>>, %arg2: memref<48x128xbf16, #tpu.memory_space<vmem>>, %arg3: memref<1x128xf32, #tpu.memory_space<vmem>>, %arg4: memref<1024x128xbf16, #tpu.memory_space<vmem>>) attributes {dimension_semantics = [#tpu.dimension_semantics<parallel>], iteration_bounds = array<i64: 2>, scalar_prefetch = 0 : i64, scratch_operands = 0 : i64, tpu.core_type = #tpu.core_type<tc>, window_params = [{transform_indices = @transform_0, window_bounds = array<i64: 1024, 48>}, {pipeline_mode = #tpu.pipeline_mode<synchronous>, transform_indices = @transform_1, window_bounds = array<i64: 48, 128>}, {pipeline_mode = #tpu.pipeline_mode<synchronous>, transform_indices = @transform_2, window_bounds = array<i64: 1, 128>}, {transform_indices = @transform_3, window_bounds = array<i64: 1024, 128>}]} {
    %c0 = arith.constant 0 : index
    %c0_0 = arith.constant 0 : index
    %0 = vector.load %arg1[%c0, %c0_0] : memref<1024x48xbf16, #tpu.memory_space<vmem>>, vector<1024x48xbf16>
    %c0_1 = arith.constant 0 : index
    %c0_2 = arith.constant 0 : index
    %1 = vector.load %arg2[%c0_1, %c0_2] : memref<48x128xbf16, #tpu.memory_space<vmem>>, vector<48x128xbf16>
    %cst = arith.constant dense<0.000000e+00> : vector<1024x128xf32>
    %2 = tpu.matmul %0, %1, %cst {dimension_numbers = #tpu.dot_dimension_numbers<[1], [0], [0], [1], [0, 0, 1, 1], [], []>} : vector<1024x48xbf16>, vector<48x128xbf16>, vector<1024x128xf32> -> vector<1024x128xf32>
    %c0_3 = arith.constant 0 : index
    %c0_4 = arith.constant 0 : index
    %3 = vector.load %arg3[%c0_3, %c0_4] : memref<1x128xf32, #tpu.memory_space<vmem>>, vector<1x128xf32>
    %4 = vector.broadcast %3 : vector<1x128xf32> to vector<1024x128xf32>
    %5 = arith.addf %2, %4 : vector<1024x128xf32>
    %cst_5 = arith.constant 0.000000e+00 : f32
    %6 = vector.broadcast %cst_5 : f32 to vector<1024x128xf32>
    %7 = arith.cmpf oge, %5, %6 : vector<1024x128xf32>
    %cst_6 = arith.constant 2.000000e-01 : f32
    %8 = vector.broadcast %cst_6 : f32 to vector<1024x128xf32>
    %9 = arith.mulf %5, %8 : vector<1024x128xf32>
    %10 = arith.select %7, %5, %9 : vector<1024x128xi1>, vector<1024x128xf32>
    %11 = arith.truncf %10 : vector<1024x128xf32> to vector<1024x128xbf16>
    %c0_7 = arith.constant 0 : index
    %c0_8 = arith.constant 0 : index
    %12 = vector.load %arg4[%c0_7, %c0_8] : memref<1024x128xbf16, #tpu.memory_space<vmem>>, vector<1024x128xbf16>
    tpu.vector_store %arg4[%c0_7, %c0_8], %11 {strides = array<i32>} : memref<1024x128xbf16, #tpu.memory_space<vmem>>, vector<1024x128xbf16>,
    return
  }
  func.func @transform_0(%arg0: i32) -> (i32, i32) {
    %c0_i32 = arith.constant 0 : i32
    %c0_i32_0 = arith.constant 0 : i32
    return %arg0, %c0_i32 : i32, i32
  }
  func.func @transform_1(%arg0: i32) -> (i32, i32) {
    %c0_i32 = arith.constant 0 : i32
    %c0_i32_0 = arith.constant 0 : i32
    %c0_i32_1 = arith.constant 0 : i32
    return %c0_i32, %c0_i32_0 : i32, i32
  }
  func.func @transform_2(%arg0: i32) -> (i32, i32) {
    %c0_i32 = arith.constant 0 : i32
    %c0_i32_0 = arith.constant 0 : i32
    %c0_i32_1 = arith.constant 0 : i32
    return %c0_i32, %c0_i32_0 : i32, i32
  }
  func.func @transform_3(%arg0: i32) -> (i32, i32) {
    %c0_i32 = arith.constant 0 : i32
    %c0_i32_0 = arith.constant 0 : i32
    return %arg0, %c0_i32 : i32, i32
  }
}

module attributes {stable_mosaic.version = 11 : i64} {
  func.func @_conv_gemm_kernel(%arg0: i32, %arg1: memref<256x256xbf16, #tpu.memory_space<vmem>>, %arg2: memref<256x128xbf16, #tpu.memory_space<vmem>>, %arg3: memref<1x128xf32, #tpu.memory_space<vmem>>, %arg4: memref<256x128xbf16, #tpu.memory_space<vmem>>) attributes {dimension_semantics = [#tpu.dimension_semantics<parallel>], iteration_bounds = array<i64: 2>, scalar_prefetch = 0 : i64, scratch_operands = 0 : i64, tpu.core_type = #tpu.core_type<tc>, window_params = [{transform_indices = @transform_0, window_bounds = array<i64: 256, 256>}, {pipeline_mode = #tpu.pipeline_mode<synchronous>, transform_indices = @transform_1, window_bounds = array<i64: 256, 128>}, {pipeline_mode = #tpu.pipeline_mode<synchronous>, transform_indices = @transform_2, window_bounds = array<i64: 1, 128>}, {transform_indices = @transform_3, window_bounds = array<i64: 256, 128>}]} {
    %c0 = arith.constant 0 : index
    %c0_0 = arith.constant 0 : index
    %0 = vector.load %arg1[%c0, %c0_0] : memref<256x256xbf16, #tpu.memory_space<vmem>>, vector<256x256xbf16>
    %c0_1 = arith.constant 0 : index
    %c0_2 = arith.constant 0 : index
    %1 = vector.load %arg2[%c0_1, %c0_2] : memref<256x128xbf16, #tpu.memory_space<vmem>>, vector<256x128xbf16>
    %cst = arith.constant dense<0.000000e+00> : vector<256x128xf32>
    %2 = tpu.matmul %0, %1, %cst {dimension_numbers = #tpu.dot_dimension_numbers<[1], [0], [0], [1], [0, 0, 1, 1], [], []>} : vector<256x256xbf16>, vector<256x128xbf16>, vector<256x128xf32> -> vector<256x128xf32>
    %c0_3 = arith.constant 0 : index
    %c0_4 = arith.constant 0 : index
    %3 = vector.load %arg3[%c0_3, %c0_4] : memref<1x128xf32, #tpu.memory_space<vmem>>, vector<1x128xf32>
    %4 = vector.broadcast %3 : vector<1x128xf32> to vector<256x128xf32>
    %5 = arith.addf %2, %4 : vector<256x128xf32>
    %cst_5 = arith.constant 0.000000e+00 : f32
    %6 = vector.broadcast %cst_5 : f32 to vector<256x128xf32>
    %7 = arith.cmpf oge, %5, %6 : vector<256x128xf32>
    %cst_6 = arith.constant 2.000000e-01 : f32
    %8 = vector.broadcast %cst_6 : f32 to vector<256x128xf32>
    %9 = arith.mulf %5, %8 : vector<256x128xf32>
    %10 = arith.select %7, %5, %9 : vector<256x128xi1>, vector<256x128xf32>
    %11 = arith.truncf %10 : vector<256x128xf32> to vector<256x128xbf16>
    %c0_7 = arith.constant 0 : index
    %c0_8 = arith.constant 0 : index
    %12 = vector.load %arg4[%c0_7, %c0_8] : memref<256x128xbf16, #tpu.memory_space<vmem>>, vector<256x128xbf16>
    tpu.vector_store %arg4[%c0_7, %c0_8], %11 {strides = array<i32>} : memref<256x128xbf16, #tpu.memory_space<vmem>>, vector<256x128xbf16>,
    return
  }
  func.func @transform_0(%arg0: i32) -> (i32, i32) {
    %c0_i32 = arith.constant 0 : i32
    %c0_i32_0 = arith.constant 0 : i32
    return %arg0, %c0_i32 : i32, i32
  }
  func.func @transform_1(%arg0: i32) -> (i32, i32) {
    %c0_i32 = arith.constant 0 : i32
    %c0_i32_0 = arith.constant 0 : i32
    %c0_i32_1 = arith.constant 0 : i32
    return %c0_i32, %c0_i32_0 : i32, i32
  }
  func.func @transform_2(%arg0: i32) -> (i32, i32) {
    %c0_i32 = arith.constant 0 : i32
    %c0_i32_0 = arith.constant 0 : i32
    %c0_i32_1 = arith.constant 0 : i32
    return %c0_i32, %c0_i32_0 : i32, i32
  }
  func.func @transform_3(%arg0: i32) -> (i32, i32) {
    %c0_i32 = arith.constant 0 : i32
    %c0_i32_0 = arith.constant 0 : i32
    return %arg0, %c0_i32 : i32, i32
  }
}

module attributes {stable_mosaic.version = 11 : i64} {
  func.func @_tail_kernel(%arg0: i32, %arg1: memref<128x512xbf16, #tpu.memory_space<vmem>>, %arg2: memref<512x128xbf16, #tpu.memory_space<vmem>>, %arg3: memref<1x128xf32, #tpu.memory_space<vmem>>, %arg4: memref<16x32x128xbf16, #tpu.memory_space<vmem>>, %arg5: memref<16x128x128xbf16, #tpu.memory_space<vmem>>, %arg6: memref<1x128xf32, #tpu.memory_space<vmem>>, %arg7: memref<32x128xf32, #tpu.memory_space<vmem>>, %arg8: memref<2x32xf32, #tpu.memory_space<vmem>>, %arg9: memref<1x1xf32, #tpu.memory_space<vmem>>, %arg10: memref<2x1xf32, #tpu.memory_space<vmem>>) attributes {dimension_semantics = [#tpu.dimension_semantics<arbitrary>], iteration_bounds = array<i64: 1>, scalar_prefetch = 0 : i64, scratch_operands = 0 : i64, tpu.core_type = #tpu.core_type<tc>, window_params = [{pipeline_mode = #tpu.pipeline_mode<synchronous>, transform_indices = @transform_0, window_bounds = array<i64: 128, 512>}, {pipeline_mode = #tpu.pipeline_mode<synchronous>, transform_indices = @transform_1, window_bounds = array<i64: 512, 128>}, {pipeline_mode = #tpu.pipeline_mode<synchronous>, transform_indices = @transform_2, window_bounds = array<i64: 1, 128>}, {pipeline_mode = #tpu.pipeline_mode<synchronous>, transform_indices = @transform_3, window_bounds = array<i64: 16, 32, 128>}, {pipeline_mode = #tpu.pipeline_mode<synchronous>, transform_indices = @transform_4, window_bounds = array<i64: 16, 128, 128>}, {pipeline_mode = #tpu.pipeline_mode<synchronous>, transform_indices = @transform_5, window_bounds = array<i64: 1, 128>}, {pipeline_mode = #tpu.pipeline_mode<synchronous>, transform_indices = @transform_6, window_bounds = array<i64: 32, 128>}, {pipeline_mode = #tpu.pipeline_mode<synchronous>, transform_indices = @transform_7, window_bounds = array<i64: 2, 32>}, {pipeline_mode = #tpu.pipeline_mode<synchronous>, transform_indices = @transform_8, window_bounds = array<i64: 1, 1>}, {pipeline_mode = #tpu.pipeline_mode<synchronous>, transform_indices = @transform_9, window_bounds = array<i64: 2, 1>}]} {
    %c0 = arith.constant 0 : index
    %c0_0 = arith.constant 0 : index
    %0 = vector.load %arg1[%c0, %c0_0] : memref<128x512xbf16, #tpu.memory_space<vmem>>, vector<128x512xbf16>
    %c0_1 = arith.constant 0 : index
    %c0_2 = arith.constant 0 : index
    %1 = vector.load %arg2[%c0_1, %c0_2] : memref<512x128xbf16, #tpu.memory_space<vmem>>, vector<512x128xbf16>
    %cst = arith.constant dense<0.000000e+00> : vector<128x128xf32>
    %2 = tpu.matmul %0, %1, %cst {dimension_numbers = #tpu.dot_dimension_numbers<[1], [0], [0], [1], [0, 0, 1, 1], [], []>} : vector<128x512xbf16>, vector<512x128xbf16>, vector<128x128xf32> -> vector<128x128xf32>
    %c0_3 = arith.constant 0 : index
    %c0_4 = arith.constant 0 : index
    %3 = vector.load %arg3[%c0_3, %c0_4] : memref<1x128xf32, #tpu.memory_space<vmem>>, vector<1x128xf32>
    %4 = vector.broadcast %3 : vector<1x128xf32> to vector<128x128xf32>
    %5 = arith.addf %2, %4 : vector<128x128xf32>
    %cst_5 = arith.constant 0.000000e+00 : f32
    %6 = vector.broadcast %cst_5 : f32 to vector<128x128xf32>
    %7 = arith.cmpf oge, %5, %6 : vector<128x128xf32>
    %cst_6 = arith.constant 2.000000e-01 : f32
    %8 = vector.broadcast %cst_6 : f32 to vector<128x128xf32>
    %9 = arith.mulf %5, %8 : vector<128x128xf32>
    %10 = arith.select %7, %5, %9 : vector<128x128xi1>, vector<128x128xf32>
    %11 = arith.truncf %10 : vector<128x128xf32> to vector<128x128xbf16>
    %cst_7 = arith.constant 0.000000e+00 : f32
    %12 = vector.broadcast %cst_7 : f32 to vector<32x128xf32>
    %c0_8 = arith.constant 0 : index
    %c0_9 = arith.constant 0 : index
    %c0_10 = arith.constant 0 : index
    %13 = vector.load %arg4[%c0_8, %c0_9, %c0_10] : memref<16x32x128xbf16, #tpu.memory_space<vmem>>, vector<1x32x128xbf16>
    %14 = vector.shape_cast %13 : vector<1x32x128xbf16> to vector<32x128xbf16>
    %cst_11 = arith.constant dense<0.000000e+00> : vector<32x128xf32>
    %15 = tpu.matmul %14, %11, %cst_11 {dimension_numbers = #tpu.dot_dimension_numbers<[1], [0], [0], [1], [0, 0, 1, 1], [], []>} : vector<32x128xbf16>, vector<128x128xbf16>, vector<32x128xf32> -> vector<32x128xf32>
    %16 = arith.truncf %15 : vector<32x128xf32> to vector<32x128xbf16>
    %c0_12 = arith.constant 0 : index
    %c0_13 = arith.constant 0 : index
    %c0_14 = arith.constant 0 : index
    %17 = vector.load %arg5[%c0_12, %c0_13, %c0_14] : memref<16x128x128xbf16, #tpu.memory_space<vmem>>, vector<1x128x128xbf16>
    %18 = vector.shape_cast %17 : vector<1x128x128xbf16> to vector<128x128xbf16>
    %cst_15 = arith.constant dense<0.000000e+00> : vector<32x128xf32>
    %19 = tpu.matmul %16, %18, %cst_15 {dimension_numbers = #tpu.dot_dimension_numbers<[1], [0], [0], [1], [0, 0, 1, 1], [], []>} : vector<32x128xbf16>, vector<128x128xbf16>, vector<32x128xf32> -> vector<32x128xf32>
    %20 = arith.addf %12, %19 : vector<32x128xf32>
    %c1 = arith.constant 1 : index
    %c0_16 = arith.constant 0 : index
    %c0_17 = arith.constant 0 : index
    %21 = vector.load %arg4[%c1, %c0_16, %c0_17] : memref<16x32x128xbf16, #tpu.memory_space<vmem>>, vector<1x32x128xbf16>
    %22 = vector.shape_cast %21 : vector<1x32x128xbf16> to vector<32x128xbf16>
    %cst_18 = arith.constant dense<0.000000e+00> : vector<32x128xf32>
    %23 = tpu.matmul %22, %11, %cst_18 {dimension_numbers = #tpu.dot_dimension_numbers<[1], [0], [0], [1], [0, 0, 1, 1], [], []>} : vector<32x128xbf16>, vector<128x128xbf16>, vector<32x128xf32> -> vector<32x128xf32>
    %24 = arith.truncf %23 : vector<32x128xf32> to vector<32x128xbf16>
    %c1_19 = arith.constant 1 : index
    %c0_20 = arith.constant 0 : index
    %c0_21 = arith.constant 0 : index
    %25 = vector.load %arg5[%c1_19, %c0_20, %c0_21] : memref<16x128x128xbf16, #tpu.memory_space<vmem>>, vector<1x128x128xbf16>
    %26 = vector.shape_cast %25 : vector<1x128x128xbf16> to vector<128x128xbf16>
    %cst_22 = arith.constant dense<0.000000e+00> : vector<32x128xf32>
    %27 = tpu.matmul %24, %26, %cst_22 {dimension_numbers = #tpu.dot_dimension_numbers<[1], [0], [0], [1], [0, 0, 1, 1], [], []>} : vector<32x128xbf16>, vector<128x128xbf16>, vector<32x128xf32> -> vector<32x128xf32>
    %28 = arith.addf %20, %27 : vector<32x128xf32>
    %c2 = arith.constant 2 : index
    %c0_23 = arith.constant 0 : index
    %c0_24 = arith.constant 0 : index
    %29 = vector.load %arg4[%c2, %c0_23, %c0_24] : memref<16x32x128xbf16, #tpu.memory_space<vmem>>, vector<1x32x128xbf16>
    %30 = vector.shape_cast %29 : vector<1x32x128xbf16> to vector<32x128xbf16>
    %cst_25 = arith.constant dense<0.000000e+00> : vector<32x128xf32>
    %31 = tpu.matmul %30, %11, %cst_25 {dimension_numbers = #tpu.dot_dimension_numbers<[1], [0], [0], [1], [0, 0, 1, 1], [], []>} : vector<32x128xbf16>, vector<128x128xbf16>, vector<32x128xf32> -> vector<32x128xf32>
    %32 = arith.truncf %31 : vector<32x128xf32> to vector<32x128xbf16>
    %c2_26 = arith.constant 2 : index
    %c0_27 = arith.constant 0 : index
    %c0_28 = arith.constant 0 : index
    %33 = vector.load %arg5[%c2_26, %c0_27, %c0_28] : memref<16x128x128xbf16, #tpu.memory_space<vmem>>, vector<1x128x128xbf16>
    %34 = vector.shape_cast %33 : vector<1x128x128xbf16> to vector<128x128xbf16>
    %cst_29 = arith.constant dense<0.000000e+00> : vector<32x128xf32>
    %35 = tpu.matmul %32, %34, %cst_29 {dimension_numbers = #tpu.dot_dimension_numbers<[1], [0], [0], [1], [0, 0, 1, 1], [], []>} : vector<32x128xbf16>, vector<128x128xbf16>, vector<32x128xf32> -> vector<32x128xf32>
    %36 = arith.addf %28, %35 : vector<32x128xf32>
    %c3 = arith.constant 3 : index
    %c0_30 = arith.constant 0 : index
    %c0_31 = arith.constant 0 : index
    %37 = vector.load %arg4[%c3, %c0_30, %c0_31] : memref<16x32x128xbf16, #tpu.memory_space<vmem>>, vector<1x32x128xbf16>
    %38 = vector.shape_cast %37 : vector<1x32x128xbf16> to vector<32x128xbf16>
    %cst_32 = arith.constant dense<0.000000e+00> : vector<32x128xf32>
    %39 = tpu.matmul %38, %11, %cst_32 {dimension_numbers = #tpu.dot_dimension_numbers<[1], [0], [0], [1], [0, 0, 1, 1], [], []>} : vector<32x128xbf16>, vector<128x128xbf16>, vector<32x128xf32> -> vector<32x128xf32>
    %40 = arith.truncf %39 : vector<32x128xf32> to vector<32x128xbf16>
    %c3_33 = arith.constant 3 : index
    %c0_34 = arith.constant 0 : index
    %c0_35 = arith.constant 0 : index
    %41 = vector.load %arg5[%c3_33, %c0_34, %c0_35] : memref<16x128x128xbf16, #tpu.memory_space<vmem>>, vector<1x128x128xbf16>
    %42 = vector.shape_cast %41 : vector<1x128x128xbf16> to vector<128x128xbf16>
    %cst_36 = arith.constant dense<0.000000e+00> : vector<32x128xf32>
    %43 = tpu.matmul %40, %42, %cst_36 {dimension_numbers = #tpu.dot_dimension_numbers<[1], [0], [0], [1], [0, 0, 1, 1], [], []>} : vector<32x128xbf16>, vector<128x128xbf16>, vector<32x128xf32> -> vector<32x128xf32>
    %44 = arith.addf %36, %43 : vector<32x128xf32>
    %c4 = arith.constant 4 : index
    %c0_37 = arith.constant 0 : index
    %c0_38 = arith.constant 0 : index
    %45 = vector.load %arg4[%c4, %c0_37, %c0_38] : memref<16x32x128xbf16, #tpu.memory_space<vmem>>, vector<1x32x128xbf16>
    %46 = vector.shape_cast %45 : vector<1x32x128xbf16> to vector<32x128xbf16>
    %cst_39 = arith.constant dense<0.000000e+00> : vector<32x128xf32>
    %47 = tpu.matmul %46, %11, %cst_39 {dimension_numbers = #tpu.dot_dimension_numbers<[1], [0], [0], [1], [0, 0, 1, 1], [], []>} : vector<32x128xbf16>, vector<128x128xbf16>, vector<32x128xf32> -> vector<32x128xf32>
    %48 = arith.truncf %47 : vector<32x128xf32> to vector<32x128xbf16>
    %c4_40 = arith.constant 4 : index
    %c0_41 = arith.constant 0 : index
    %c0_42 = arith.constant 0 : index
    %49 = vector.load %arg5[%c4_40, %c0_41, %c0_42] : memref<16x128x128xbf16, #tpu.memory_space<vmem>>, vector<1x128x128xbf16>
    %50 = vector.shape_cast %49 : vector<1x128x128xbf16> to vector<128x128xbf16>
    %cst_43 = arith.constant dense<0.000000e+00> : vector<32x128xf32>
    %51 = tpu.matmul %48, %50, %cst_43 {dimension_numbers = #tpu.dot_dimension_numbers<[1], [0], [0], [1], [0, 0, 1, 1], [], []>} : vector<32x128xbf16>, vector<128x128xbf16>, vector<32x128xf32> -> vector<32x128xf32>
    %52 = arith.addf %44, %51 : vector<32x128xf32>
    %c5 = arith.constant 5 : index
    %c0_44 = arith.constant 0 : index
    %c0_45 = arith.constant 0 : index
    %53 = vector.load %arg4[%c5, %c0_44, %c0_45] : memref<16x32x128xbf16, #tpu.memory_space<vmem>>, vector<1x32x128xbf16>
    %54 = vector.shape_cast %53 : vector<1x32x128xbf16> to vector<32x128xbf16>
    %cst_46 = arith.constant dense<0.000000e+00> : vector<32x128xf32>
    %55 = tpu.matmul %54, %11, %cst_46 {dimension_numbers = #tpu.dot_dimension_numbers<[1], [0], [0], [1], [0, 0, 1, 1], [], []>} : vector<32x128xbf16>, vector<128x128xbf16>, vector<32x128xf32> -> vector<32x128xf32>
    %56 = arith.truncf %55 : vector<32x128xf32> to vector<32x128xbf16>
    %c5_47 = arith.constant 5 : index
    %c0_48 = arith.constant 0 : index
    %c0_49 = arith.constant 0 : index
    %57 = vector.load %arg5[%c5_47, %c0_48, %c0_49] : memref<16x128x128xbf16, #tpu.memory_space<vmem>>, vector<1x128x128xbf16>
    %58 = vector.shape_cast %57 : vector<1x128x128xbf16> to vector<128x128xbf16>
    %cst_50 = arith.constant dense<0.000000e+00> : vector<32x128xf32>
    %59 = tpu.matmul %56, %58, %cst_50 {dimension_numbers = #tpu.dot_dimension_numbers<[1], [0], [0], [1], [0, 0, 1, 1], [], []>} : vector<32x128xbf16>, vector<128x128xbf16>, vector<32x128xf32> -> vector<32x128xf32>
    %60 = arith.addf %52, %59 : vector<32x128xf32>
    %c6 = arith.constant 6 : index
    %c0_51 = arith.constant 0 : index
    %c0_52 = arith.constant 0 : index
    %61 = vector.load %arg4[%c6, %c0_51, %c0_52] : memref<16x32x128xbf16, #tpu.memory_space<vmem>>, vector<1x32x128xbf16>
    %62 = vector.shape_cast %61 : vector<1x32x128xbf16> to vector<32x128xbf16>
    %cst_53 = arith.constant dense<0.000000e+00> : vector<32x128xf32>
    %63 = tpu.matmul %62, %11, %cst_53 {dimension_numbers = #tpu.dot_dimension_numbers<[1], [0], [0], [1], [0, 0, 1, 1], [], []>} : vector<32x128xbf16>, vector<128x128xbf16>, vector<32x128xf32> -> vector<32x128xf32>
    %64 = arith.truncf %63 : vector<32x128xf32> to vector<32x128xbf16>
    %c6_54 = arith.constant 6 : index
    %c0_55 = arith.constant 0 : index
    %c0_56 = arith.constant 0 : index
    %65 = vector.load %arg5[%c6_54, %c0_55, %c0_56] : memref<16x128x128xbf16, #tpu.memory_space<vmem>>, vector<1x128x128xbf16>
    %66 = vector.shape_cast %65 : vector<1x128x128xbf16> to vector<128x128xbf16>
    %cst_57 = arith.constant dense<0.000000e+00> : vector<32x128xf32>
    %67 = tpu.matmul %64, %66, %cst_57 {dimension_numbers = #tpu.dot_dimension_numbers<[1], [0], [0], [1], [0, 0, 1, 1], [], []>} : vector<32x128xbf16>, vector<128x128xbf16>, vector<32x128xf32> -> vector<32x128xf32>
    %68 = arith.addf %60, %67 : vector<32x128xf32>
    %c7 = arith.constant 7 : index
    %c0_58 = arith.constant 0 : index
    %c0_59 = arith.constant 0 : index
    %69 = vector.load %arg4[%c7, %c0_58, %c0_59] : memref<16x32x128xbf16, #tpu.memory_space<vmem>>, vector<1x32x128xbf16>
    %70 = vector.shape_cast %69 : vector<1x32x128xbf16> to vector<32x128xbf16>
    %cst_60 = arith.constant dense<0.000000e+00> : vector<32x128xf32>
    %71 = tpu.matmul %70, %11, %cst_60 {dimension_numbers = #tpu.dot_dimension_numbers<[1], [0], [0], [1], [0, 0, 1, 1], [], []>} : vector<32x128xbf16>, vector<128x128xbf16>, vector<32x128xf32> -> vector<32x128xf32>
    %72 = arith.truncf %71 : vector<32x128xf32> to vector<32x128xbf16>
    %c7_61 = arith.constant 7 : index
    %c0_62 = arith.constant 0 : index
    %c0_63 = arith.constant 0 : index
    %73 = vector.load %arg5[%c7_61, %c0_62, %c0_63] : memref<16x128x128xbf16, #tpu.memory_space<vmem>>, vector<1x128x128xbf16>
    %74 = vector.shape_cast %73 : vector<1x128x128xbf16> to vector<128x128xbf16>
    %cst_64 = arith.constant dense<0.000000e+00> : vector<32x128xf32>
    %75 = tpu.matmul %72, %74, %cst_64 {dimension_numbers = #tpu.dot_dimension_numbers<[1], [0], [0], [1], [0, 0, 1, 1], [], []>} : vector<32x128xbf16>, vector<128x128xbf16>, vector<32x128xf32> -> vector<32x128xf32>
    %76 = arith.addf %68, %75 : vector<32x128xf32>
    %c8 = arith.constant 8 : index
    %c0_65 = arith.constant 0 : index
    %c0_66 = arith.constant 0 : index
    %77 = vector.load %arg4[%c8, %c0_65, %c0_66] : memref<16x32x128xbf16, #tpu.memory_space<vmem>>, vector<1x32x128xbf16>
    %78 = vector.shape_cast %77 : vector<1x32x128xbf16> to vector<32x128xbf16>
    %cst_67 = arith.constant dense<0.000000e+00> : vector<32x128xf32>
    %79 = tpu.matmul %78, %11, %cst_67 {dimension_numbers = #tpu.dot_dimension_numbers<[1], [0], [0], [1], [0, 0, 1, 1], [], []>} : vector<32x128xbf16>, vector<128x128xbf16>, vector<32x128xf32> -> vector<32x128xf32>
    %80 = arith.truncf %79 : vector<32x128xf32> to vector<32x128xbf16>
    %c8_68 = arith.constant 8 : index
    %c0_69 = arith.constant 0 : index
    %c0_70 = arith.constant 0 : index
    %81 = vector.load %arg5[%c8_68, %c0_69, %c0_70] : memref<16x128x128xbf16, #tpu.memory_space<vmem>>, vector<1x128x128xbf16>
    %82 = vector.shape_cast %81 : vector<1x128x128xbf16> to vector<128x128xbf16>
    %cst_71 = arith.constant dense<0.000000e+00> : vector<32x128xf32>
    %83 = tpu.matmul %80, %82, %cst_71 {dimension_numbers = #tpu.dot_dimension_numbers<[1], [0], [0], [1], [0, 0, 1, 1], [], []>} : vector<32x128xbf16>, vector<128x128xbf16>, vector<32x128xf32> -> vector<32x128xf32>
    %84 = arith.addf %76, %83 : vector<32x128xf32>
    %c9 = arith.constant 9 : index
    %c0_72 = arith.constant 0 : index
    %c0_73 = arith.constant 0 : index
    %85 = vector.load %arg4[%c9, %c0_72, %c0_73] : memref<16x32x128xbf16, #tpu.memory_space<vmem>>, vector<1x32x128xbf16>
    %86 = vector.shape_cast %85 : vector<1x32x128xbf16> to vector<32x128xbf16>
    %cst_74 = arith.constant dense<0.000000e+00> : vector<32x128xf32>
    %87 = tpu.matmul %86, %11, %cst_74 {dimension_numbers = #tpu.dot_dimension_numbers<[1], [0], [0], [1], [0, 0, 1, 1], [], []>} : vector<32x128xbf16>, vector<128x128xbf16>, vector<32x128xf32> -> vector<32x128xf32>
    %88 = arith.truncf %87 : vector<32x128xf32> to vector<32x128xbf16>
    %c9_75 = arith.constant 9 : index
    %c0_76 = arith.constant 0 : index
    %c0_77 = arith.constant 0 : index
    %89 = vector.load %arg5[%c9_75, %c0_76, %c0_77] : memref<16x128x128xbf16, #tpu.memory_space<vmem>>, vector<1x128x128xbf16>
    %90 = vector.shape_cast %89 : vector<1x128x128xbf16> to vector<128x128xbf16>
    %cst_78 = arith.constant dense<0.000000e+00> : vector<32x128xf32>
    %91 = tpu.matmul %88, %90, %cst_78 {dimension_numbers = #tpu.dot_dimension_numbers<[1], [0], [0], [1], [0, 0, 1, 1], [], []>} : vector<32x128xbf16>, vector<128x128xbf16>, vector<32x128xf32> -> vector<32x128xf32>
    %92 = arith.addf %84, %91 : vector<32x128xf32>
    %c10 = arith.constant 10 : index
    %c0_79 = arith.constant 0 : index
    %c0_80 = arith.constant 0 : index
    %93 = vector.load %arg4[%c10, %c0_79, %c0_80] : memref<16x32x128xbf16, #tpu.memory_space<vmem>>, vector<1x32x128xbf16>
    %94 = vector.shape_cast %93 : vector<1x32x128xbf16> to vector<32x128xbf16>
    %cst_81 = arith.constant dense<0.000000e+00> : vector<32x128xf32>
    %95 = tpu.matmul %94, %11, %cst_81 {dimension_numbers = #tpu.dot_dimension_numbers<[1], [0], [0], [1], [0, 0, 1, 1], [], []>} : vector<32x128xbf16>, vector<128x128xbf16>, vector<32x128xf32> -> vector<32x128xf32>
    %96 = arith.truncf %95 : vector<32x128xf32> to vector<32x128xbf16>
    %c10_82 = arith.constant 10 : index
    %c0_83 = arith.constant 0 : index
    %c0_84 = arith.constant 0 : index
    %97 = vector.load %arg5[%c10_82, %c0_83, %c0_84] : memref<16x128x128xbf16, #tpu.memory_space<vmem>>, vector<1x128x128xbf16>
    %98 = vector.shape_cast %97 : vector<1x128x128xbf16> to vector<128x128xbf16>
    %cst_85 = arith.constant dense<0.000000e+00> : vector<32x128xf32>
    %99 = tpu.matmul %96, %98, %cst_85 {dimension_numbers = #tpu.dot_dimension_numbers<[1], [0], [0], [1], [0, 0, 1, 1], [], []>} : vector<32x128xbf16>, vector<128x128xbf16>, vector<32x128xf32> -> vector<32x128xf32>
    %100 = arith.addf %92, %99 : vector<32x128xf32>
    %c11 = arith.constant 11 : index
    %c0_86 = arith.constant 0 : index
    %c0_87 = arith.constant 0 : index
    %101 = vector.load %arg4[%c11, %c0_86, %c0_87] : memref<16x32x128xbf16, #tpu.memory_space<vmem>>, vector<1x32x128xbf16>
    %102 = vector.shape_cast %101 : vector<1x32x128xbf16> to vector<32x128xbf16>
    %cst_88 = arith.constant dense<0.000000e+00> : vector<32x128xf32>
    %103 = tpu.matmul %102, %11, %cst_88 {dimension_numbers = #tpu.dot_dimension_numbers<[1], [0], [0], [1], [0, 0, 1, 1], [], []>} : vector<32x128xbf16>, vector<128x128xbf16>, vector<32x128xf32> -> vector<32x128xf32>
    %104 = arith.truncf %103 : vector<32x128xf32> to vector<32x128xbf16>
    %c11_89 = arith.constant 11 : index
    %c0_90 = arith.constant 0 : index
    %c0_91 = arith.constant 0 : index
    %105 = vector.load %arg5[%c11_89, %c0_90, %c0_91] : memref<16x128x128xbf16, #tpu.memory_space<vmem>>, vector<1x128x128xbf16>
    %106 = vector.shape_cast %105 : vector<1x128x128xbf16> to vector<128x128xbf16>
    %cst_92 = arith.constant dense<0.000000e+00> : vector<32x128xf32>
    %107 = tpu.matmul %104, %106, %cst_92 {dimension_numbers = #tpu.dot_dimension_numbers<[1], [0], [0], [1], [0, 0, 1, 1], [], []>} : vector<32x128xbf16>, vector<128x128xbf16>, vector<32x128xf32> -> vector<32x128xf32>
    %108 = arith.addf %100, %107 : vector<32x128xf32>
    %c12 = arith.constant 12 : index
    %c0_93 = arith.constant 0 : index
    %c0_94 = arith.constant 0 : index
    %109 = vector.load %arg4[%c12, %c0_93, %c0_94] : memref<16x32x128xbf16, #tpu.memory_space<vmem>>, vector<1x32x128xbf16>
    %110 = vector.shape_cast %109 : vector<1x32x128xbf16> to vector<32x128xbf16>
    %cst_95 = arith.constant dense<0.000000e+00> : vector<32x128xf32>
    %111 = tpu.matmul %110, %11, %cst_95 {dimension_numbers = #tpu.dot_dimension_numbers<[1], [0], [0], [1], [0, 0, 1, 1], [], []>} : vector<32x128xbf16>, vector<128x128xbf16>, vector<32x128xf32> -> vector<32x128xf32>
    %112 = arith.truncf %111 : vector<32x128xf32> to vector<32x128xbf16>
    %c12_96 = arith.constant 12 : index
    %c0_97 = arith.constant 0 : index
    %c0_98 = arith.constant 0 : index
    %113 = vector.load %arg5[%c12_96, %c0_97, %c0_98] : memref<16x128x128xbf16, #tpu.memory_space<vmem>>, vector<1x128x128xbf16>
    %114 = vector.shape_cast %113 : vector<1x128x128xbf16> to vector<128x128xbf16>
    %cst_99 = arith.constant dense<0.000000e+00> : vector<32x128xf32>
    %115 = tpu.matmul %112, %114, %cst_99 {dimension_numbers = #tpu.dot_dimension_numbers<[1], [0], [0], [1], [0, 0, 1, 1], [], []>} : vector<32x128xbf16>, vector<128x128xbf16>, vector<32x128xf32> -> vector<32x128xf32>
    %116 = arith.addf %108, %115 : vector<32x128xf32>
    %c13 = arith.constant 13 : index
    %c0_100 = arith.constant 0 : index
    %c0_101 = arith.constant 0 : index
    %117 = vector.load %arg4[%c13, %c0_100, %c0_101] : memref<16x32x128xbf16, #tpu.memory_space<vmem>>, vector<1x32x128xbf16>
    %118 = vector.shape_cast %117 : vector<1x32x128xbf16> to vector<32x128xbf16>
    %cst_102 = arith.constant dense<0.000000e+00> : vector<32x128xf32>
    %119 = tpu.matmul %118, %11, %cst_102 {dimension_numbers = #tpu.dot_dimension_numbers<[1], [0], [0], [1], [0, 0, 1, 1], [], []>} : vector<32x128xbf16>, vector<128x128xbf16>, vector<32x128xf32> -> vector<32x128xf32>
    %120 = arith.truncf %119 : vector<32x128xf32> to vector<32x128xbf16>
    %c13_103 = arith.constant 13 : index
    %c0_104 = arith.constant 0 : index
    %c0_105 = arith.constant 0 : index
    %121 = vector.load %arg5[%c13_103, %c0_104, %c0_105] : memref<16x128x128xbf16, #tpu.memory_space<vmem>>, vector<1x128x128xbf16>
    %122 = vector.shape_cast %121 : vector<1x128x128xbf16> to vector<128x128xbf16>
    %cst_106 = arith.constant dense<0.000000e+00> : vector<32x128xf32>
    %123 = tpu.matmul %120, %122, %cst_106 {dimension_numbers = #tpu.dot_dimension_numbers<[1], [0], [0], [1], [0, 0, 1, 1], [], []>} : vector<32x128xbf16>, vector<128x128xbf16>, vector<32x128xf32> -> vector<32x128xf32>
    %124 = arith.addf %116, %123 : vector<32x128xf32>
    %c14 = arith.constant 14 : index
    %c0_107 = arith.constant 0 : index
    %c0_108 = arith.constant 0 : index
    %125 = vector.load %arg4[%c14, %c0_107, %c0_108] : memref<16x32x128xbf16, #tpu.memory_space<vmem>>, vector<1x32x128xbf16>
    %126 = vector.shape_cast %125 : vector<1x32x128xbf16> to vector<32x128xbf16>
    %cst_109 = arith.constant dense<0.000000e+00> : vector<32x128xf32>
    %127 = tpu.matmul %126, %11, %cst_109 {dimension_numbers = #tpu.dot_dimension_numbers<[1], [0], [0], [1], [0, 0, 1, 1], [], []>} : vector<32x128xbf16>, vector<128x128xbf16>, vector<32x128xf32> -> vector<32x128xf32>
    %128 = arith.truncf %127 : vector<32x128xf32> to vector<32x128xbf16>
    %c14_110 = arith.constant 14 : index
    %c0_111 = arith.constant 0 : index
    %c0_112 = arith.constant 0 : index
    %129 = vector.load %arg5[%c14_110, %c0_111, %c0_112] : memref<16x128x128xbf16, #tpu.memory_space<vmem>>, vector<1x128x128xbf16>
    %130 = vector.shape_cast %129 : vector<1x128x128xbf16> to vector<128x128xbf16>
    %cst_113 = arith.constant dense<0.000000e+00> : vector<32x128xf32>
    %131 = tpu.matmul %128, %130, %cst_113 {dimension_numbers = #tpu.dot_dimension_numbers<[1], [0], [0], [1], [0, 0, 1, 1], [], []>} : vector<32x128xbf16>, vector<128x128xbf16>, vector<32x128xf32> -> vector<32x128xf32>
    %132 = arith.addf %124, %131 : vector<32x128xf32>
    %c15 = arith.constant 15 : index
    %c0_114 = arith.constant 0 : index
    %c0_115 = arith.constant 0 : index
    %133 = vector.load %arg4[%c15, %c0_114, %c0_115] : memref<16x32x128xbf16, #tpu.memory_space<vmem>>, vector<1x32x128xbf16>
    %134 = vector.shape_cast %133 : vector<1x32x128xbf16> to vector<32x128xbf16>
    %cst_116 = arith.constant dense<0.000000e+00> : vector<32x128xf32>
    %135 = tpu.matmul %134, %11, %cst_116 {dimension_numbers = #tpu.dot_dimension_numbers<[1], [0], [0], [1], [0, 0, 1, 1], [], []>} : vector<32x128xbf16>, vector<128x128xbf16>, vector<32x128xf32> -> vector<32x128xf32>
    %136 = arith.truncf %135 : vector<32x128xf32> to vector<32x128xbf16>
    %c15_117 = arith.constant 15 : index
    %c0_118 = arith.constant 0 : index
    %c0_119 = arith.constant 0 : index
    %137 = vector.load %arg5[%c15_117, %c0_118, %c0_119] : memref<16x128x128xbf16, #tpu.memory_space<vmem>>, vector<1x128x128xbf16>
    %138 = vector.shape_cast %137 : vector<1x128x128xbf16> to vector<128x128xbf16>
    %cst_120 = arith.constant dense<0.000000e+00> : vector<32x128xf32>
    %139 = tpu.matmul %136, %138, %cst_120 {dimension_numbers = #tpu.dot_dimension_numbers<[1], [0], [0], [1], [0, 0, 1, 1], [], []>} : vector<32x128xbf16>, vector<128x128xbf16>, vector<32x128xf32> -> vector<32x128xf32>
    %140 = arith.addf %132, %139 : vector<32x128xf32>
    %c0_121 = arith.constant 0 : index
    %c0_122 = arith.constant 0 : index
    %141 = vector.load %arg6[%c0_121, %c0_122] : memref<1x128xf32, #tpu.memory_space<vmem>>, vector<1x128xf32>
    %142 = vector.broadcast %141 : vector<1x128xf32> to vector<32x128xf32>
    %143 = arith.addf %140, %142 : vector<32x128xf32>
    %cst_123 = arith.constant 0.000000e+00 : f32
    %144 = vector.broadcast %cst_123 : f32 to vector<32x128xf32>
    %145 = arith.cmpf oge, %143, %144 : vector<32x128xf32>
    %cst_124 = arith.constant 2.000000e-01 : f32
    %146 = vector.broadcast %cst_124 : f32 to vector<32x128xf32>
    %147 = arith.mulf %143, %146 : vector<32x128xf32>
    %148 = arith.select %145, %143, %147 : vector<32x128xi1>, vector<32x128xf32>
    %c0_125 = arith.constant 0 : index
    %c0_126 = arith.constant 0 : index
    %149 = vector.load %arg7[%c0_125, %c0_126] : memref<32x128xf32, #tpu.memory_space<vmem>>, vector<32x128xf32>
    %150 = arith.mulf %148, %149 : vector<32x128xf32>
    %c0_127 = arith.constant 0 : index
    %c0_128 = arith.constant 0 : index
    %151 = vector.load %arg8[%c0_127, %c0_128] : memref<2x32xf32, #tpu.memory_space<vmem>>, vector<2x32xf32>
    %cst_129 = arith.constant dense<0.000000e+00> : vector<2x128xf32>
    %152 = tpu.matmul %151, %150, %cst_129 {dimension_numbers = #tpu.dot_dimension_numbers<[1], [0], [0], [1], [0, 0, 1, 1], [], []>} : vector<2x32xf32>, vector<32x128xf32>, vector<2x128xf32> -> vector<2x128xf32>
    %cst_130 = arith.constant dense<0.000000e+00> : vector<2xf32>
    %153 = vector.multi_reduction <add>, %152, %cst_130 [1] : vector<2x128xf32> to vector<2xf32>
    %154 = vector.shape_cast %153 : vector<2xf32> to vector<2x1xf32>
    %c0_131 = arith.constant 0 : index
    %c0_132 = arith.constant 0 : index
    %155 = vector.load %arg9[%c0_131, %c0_132] : memref<1x1xf32, #tpu.memory_space<vmem>>, vector<1x1xf32>
    %156 = vector.broadcast %155 : vector<1x1xf32> to vector<2x1xf32>
    %157 = arith.addf %154, %156 : vector<2x1xf32>
    %c0_133 = arith.constant 0 : index
    %c0_134 = arith.constant 0 : index
    %158 = vector.load %arg10[%c0_133, %c0_134] : memref<2x1xf32, #tpu.memory_space<vmem>>, vector<2x1xf32>
    tpu.vector_store %arg10[%c0_133, %c0_134], %157 {strides = array<i32>} : memref<2x1xf32, #tpu.memory_space<vmem>>, vector<2x1xf32>,
    return
  }
  func.func @transform_0(%arg0: i32) -> (i32, i32) {
    %c0_i32 = arith.constant 0 : i32
    %c0_i32_0 = arith.constant 0 : i32
    %c0_i32_1 = arith.constant 0 : i32
    return %c0_i32, %c0_i32_0 : i32, i32
  }
  func.func @transform_1(%arg0: i32) -> (i32, i32) {
    %c0_i32 = arith.constant 0 : i32
    %c0_i32_0 = arith.constant 0 : i32
    %c0_i32_1 = arith.constant 0 : i32
    return %c0_i32, %c0_i32_0 : i32, i32
  }
  func.func @transform_2(%arg0: i32) -> (i32, i32) {
    %c0_i32 = arith.constant 0 : i32
    %c0_i32_0 = arith.constant 0 : i32
    %c0_i32_1 = arith.constant 0 : i32
    return %c0_i32, %c0_i32_0 : i32, i32
  }
  func.func @transform_3(%arg0: i32) -> (i32, i32, i32) {
    %c0_i32 = arith.constant 0 : i32
    %c0_i32_0 = arith.constant 0 : i32
    %c0_i32_1 = arith.constant 0 : i32
    %c0_i32_2 = arith.constant 0 : i32
    return %c0_i32, %c0_i32_0, %c0_i32_1 : i32, i32, i32
  }
  func.func @transform_4(%arg0: i32) -> (i32, i32, i32) {
    %c0_i32 = arith.constant 0 : i32
    %c0_i32_0 = arith.constant 0 : i32
    %c0_i32_1 = arith.constant 0 : i32
    %c0_i32_2 = arith.constant 0 : i32
    return %c0_i32, %c0_i32_0, %c0_i32_1 : i32, i32, i32
  }
  func.func @transform_5(%arg0: i32) -> (i32, i32) {
    %c0_i32 = arith.constant 0 : i32
    %c0_i32_0 = arith.constant 0 : i32
    %c0_i32_1 = arith.constant 0 : i32
    return %c0_i32, %c0_i32_0 : i32, i32
  }
  func.func @transform_6(%arg0: i32) -> (i32, i32) {
    %c0_i32 = arith.constant 0 : i32
    %c0_i32_0 = arith.constant 0 : i32
    %c0_i32_1 = arith.constant 0 : i32
    return %c0_i32, %c0_i32_0 : i32, i32
  }
  func.func @transform_7(%arg0: i32) -> (i32, i32) {
    %c0_i32 = arith.constant 0 : i32
    %c0_i32_0 = arith.constant 0 : i32
    %c0_i32_1 = arith.constant 0 : i32
    return %c0_i32, %c0_i32_0 : i32, i32
  }
  func.func @transform_8(%arg0: i32) -> (i32, i32) {
    %c0_i32 = arith.constant 0 : i32
    %c0_i32_0 = arith.constant 0 : i32
    %c0_i32_1 = arith.constant 0 : i32
    return %c0_i32, %c0_i32_0 : i32, i32
  }
  func.func @transform_9(%arg0: i32) -> (i32, i32) {
    %c0_i32 = arith.constant 0 : i32
    %c0_i32_0 = arith.constant 0 : i32
    %c0_i32_1 = arith.constant 0 : i32
    return %c0_i32, %c0_i32_0 : i32, i32
  }
}

</mosaic_0001>

<llo_original>
// kernel: _lambda_.3
$region0: #{_lambda_.3}
  #allocation0 [shape = 'u32[]', space=smem, size = 0x4, offset = 0x4, fixed_abs, tag = 'smem constant byte address 0x4 - core index']
  #allocation1 [shape = 'u32[144,128]{1,0:T(1,128)}', space=vmem, size = 0x12000, scoped, tag = 'internal scratch']
  %s0 = inlined_call_operand.vmem [shape: bf16[2048,48], index: 0, kind: input, shape index: {}]
  %s1 = inlined_call_operand.vmem [shape: bf16[48,128], index: 1, kind: input, shape index: {}]
  %s2 = inlined_call_operand.vmem [shape: f32[1,128], index: 2, kind: input, shape index: {}]
  %s3 = inlined_call_operand.vmem [shape: bf16[2048,128], index: 3, kind: output, shape index: {}]
  %s4 = sld [smem:[#allocation0]]
  $region45: #{_lambda_.3} parent=0
    _
  %s6 = ssub.s32 1, %s4
  %s7 = scalar_select 0, %s6, %s4
  loop: start=0, step=1, limit=4
  $region2: #{_lambda_.3} parent=0 // loop_pre_header
    _
  $region3: #{_lambda_.3} parent=0 // loop_header
    %s9 = sphi 0, %s13
    %p10 = scmp.ge.s32.totalorder %s9, 4
    %s19 = sphi 0, %s21
    %s22 = sphi 0, %s19
    %s23 = sphi 0, %s22
    %s39 = sphi 0, %s23
    %s43 = sphi 0, %s43
    %s45 = sphi 0, %s43
    %s46 = sphi 0, %s45
    %s60 = sphi 0, %s46
    %s64 = sphi 0, %s64
    %s66 = sphi 0, %s64
    %s67 = sphi 0, %s66
    %s81 = sphi 0, %s67
    %s87 = sphi 0, %s89
    %s90 = sphi 0, %s87
    %s91 = sphi 0, %s90
    %s107 = sphi 0, %s91
  $region4: #{_lambda_.3} parent=0 // loop_header_branch
    %12 = sbr.rel (%p10) target = $region8
  $region5: #{_lambda_.3} parent=0 // loop_body
    %s14 = ssub.s32 %s9, 1
    %s15 = ssub.s32 %s9, 2
    %s16 = sadd.s32 %s9, 1
    %s17 = ssub.s32 %s9, %s16
    %p18 = scmp.eq.s32.totalorder %s17, 0
    %s20 = sadd.s32 %s19, 1
    %s21 = scalar_select %p18, %s19, %s20
    %p24 = pneg %p18
    %p25 = scmp.eq.s32.totalorder %s9, 1
    %p26 = por %p24, %p25
    %p27 = scmp.ne.s32.totalorder %s19, %s22
    %p28 = scmp.eq.s32.totalorder %s9, 0
    %p29 = por %p27, %p28
    %p30 = scmp.ne.s32.totalorder %s19, %s22
    %p31 = scmp.eq.s32.totalorder %s14, 1
    %p32 = por %p30, %p31
    %p33 = scmp.ne.s32.totalorder %s22, %s23
    %p34 = scmp.eq.s32.totalorder %s14, 0
    %p35 = por %p33, %p34
    %p36 = scmp.ne.s32.totalorder %s22, %s23
    %p37 = scmp.eq.s32.totalorder %s15, 1
    %p38 = por %p36, %p37
    %p40 = scmp.ne.s32.totalorder %s23, %s39
    %p41 = scmp.eq.s32.totalorder %s15, 0
    %p42 = por %p40, %p41
    %s44 = sadd.s32 %s43, 1
    %p47 = scmp.eq.s32.totalorder %s9, 1
    %p48 = scmp.ne.s32.totalorder %s43, %s45
    %p49 = scmp.eq.s32.totalorder %s9, 0
    %p50 = por %p48, %p49
    %p51 = scmp.ne.s32.totalorder %s43, %s45
    %p52 = scmp.eq.s32.totalorder %s14, 1
    %p53 = por %p51, %p52
    %p54 = scmp.ne.s32.totalorder %s45, %s46
    %p55 = scmp.eq.s32.totalorder %s14, 0
    %p56 = por %p54, %p55
    %p57 = scmp.ne.s32.totalorder %s45, %s46
    %p58 = scmp.eq.s32.totalorder %s15, 1
    %p59 = por %p57, %p58
    %p61 = scmp.ne.s32.totalorder %s46, %s60
    %p62 = scmp.eq.s32.totalorder %s15, 0
    %p63 = por %p61, %p62
    %s65 = sadd.s32 %s64, 1
    %p68 = scmp.eq.s32.totalorder %s9, 1
    %p69 = scmp.ne.s32.totalorder %s64, %s66
    %p70 = scmp.eq.s32.totalorder %s9, 0
    %p71 = por %p69, %p70
    %p72 = scmp.ne.s32.totalorder %s64, %s66
    %p73 = scmp.eq.s32.totalorder %s14, 1
    %p74 = por %p72, %p73
    %p75 = scmp.ne.s32.totalorder %s66, %s67
    %p76 = scmp.eq.s32.totalorder %s14, 0
    %p77 = por %p75, %p76
    %p78 = scmp.ne.s32.totalorder %s66, %s67
    %p79 = scmp.eq.s32.totalorder %s15, 1
    %p80 = por %p78, %p79
    %p82 = scmp.ne.s32.totalorder %s67, %s81
    %p83 = scmp.eq.s32.totalorder %s15, 0
    %p84 = por %p82, %p83
    %s85 = ssub.s32 %s9, %s16
    %p86 = scmp.eq.s32.totalorder %s85, 0
    %s88 = sadd.s32 %s87, 1
    %s89 = scalar_select %p86, %s87, %s88
    %p92 = pneg %p86
    %p93 = scmp.eq.s32.totalorder %s9, 1
    %p94 = por %p92, %p93
    %p95 = scmp.ne.s32.totalorder %s87, %s90
    %p96 = scmp.eq.s32.totalorder %s9, 0
    %p97 = por %p95, %p96
    %p98 = scmp.ne.s32.totalorder %s87, %s90
    %p99 = scmp.eq.s32.totalorder %s14, 1
    %p100 = por %p98, %p99
    %p101 = scmp.ne.s32.totalorder %s90, %s91
    %p102 = scmp.eq.s32.totalorder %s14, 0
    %p103 = por %p101, %p102
    %p104 = scmp.ne.s32.totalorder %s90, %s91
    %p105 = scmp.eq.s32.totalorder %s15, 1
    %p106 = por %p104, %p105
    %p108 = scmp.ne.s32.totalorder %s91, %s107
    %p109 = scmp.eq.s32.totalorder %s15, 0
    %p110 = por %p108, %p109
    %p111 = scmp.le.s32.totalorder 1, %s9
    %p112 = scmp.lt.s32.totalorder %s9, 3
    %p113 = pnand %p111, %p112
    %p114 = pneg %p113
    // Predicated region
    $region9: #{_lambda_.3} parent=5 // pred_check
      _
    $region10: #{_lambda_.3} parent=5 // pred_check_branch
      %116 = sbr.rel (%p113) target = $region12
    $region11: #{_lambda_.3} parent=5 // pred_region
      %s117 = ssub.s32 %s9, 1
      // Predicated region
      $region13: #{_lambda_.3} parent=11 // pred_check
        %p118 = pneg %p56
      $region14: #{_lambda_.3} parent=11 // pred_check_branch
        %120 = sbr.rel (%p118) target = $region16
      $region15: #{_lambda_.3} parent=11 // pred_region
        _
      $region16: #{_lambda_.3} parent=11 // pred_fallthru
        _
      // Predicated region
      $region17: #{_lambda_.3} parent=11 // pred_check
        %p121 = pneg %p77
      $region18: #{_lambda_.3} parent=11 // pred_check_branch
        %123 = sbr.rel (%p121) target = $region20
      $region19: #{_lambda_.3} parent=11 // pred_region
        _
      $region20: #{_lambda_.3} parent=11 // pred_fallthru
        _
    $region12: #{_lambda_.3} parent=5 // pred_fallthru
      _
    %p124 = scmp.lt.s32.totalorder %s9, 2
    // Predicated region
    $region21: #{_lambda_.3} parent=5 // pred_check
      %p125 = pneg %p124
    $region22: #{_lambda_.3} parent=5 // pred_check_branch
      %127 = sbr.rel (%p125) target = $region24
    $region23: #{_lambda_.3} parent=5 // pred_region
      // Predicated region
      $region25: #{_lambda_.3} parent=23 // pred_check
        %p128 = pneg %p29
      $region26: #{_lambda_.3} parent=23 // pred_check_branch
        %130 = sbr.rel (%p128) target = $region28
      $region27: #{_lambda_.3} parent=23 // pred_region
        %s131 = smul.u32 128, %s9
        %p132 = scmp.lt.s32.totalorder %s131, 255
        %s133 = scalar_select %p132, %s131, 255
        %s134 = smul.addr %s133, 4
        %s135 = scalar_lea.vmem %s0, %s134
        %s136 = smul.u32 128, %s9
      $region28: #{_lambda_.3} parent=23 // pred_fallthru
        _
    $region24: #{_lambda_.3} parent=5 // pred_fallthru
      _
    %p137 = scmp.le.s32.totalorder 1, %s9
    %p138 = scmp.lt.s32.totalorder %s9, 3
    %p139 = pnand %p137, %p138
    %p140 = pneg %p139
    // Predicated region
    $region29: #{_lambda_.3} parent=5 // pred_check
      _
    $region30: #{_lambda_.3} parent=5 // pred_check_branch
      %142 = sbr.rel (%p139) target = $region32
    $region31: #{_lambda_.3} parent=5 // pred_region
      %s143 = ssub.s32 %s9, 1
      %s144 = smul.u32 128, %s14
      %p145 = scmp.lt.s32.totalorder %s144, 255
      %s146 = scalar_select %p145, %s144, 255
      %s147 = smul.addr %s146, 4
      %s148 = scalar_lea.vmem %s0, %s147
      %p149 = pneg %p35
      %p150 = pneg %p32
      %p151 = pneg %p56
      %p152 = pneg %p53
      %p153 = pneg %p77
      %p154 = pneg %p74
      %p155 = pneg %p103
      %p156 = pneg %p100
      %s157 = smul.u32 128, %s14
      %p158 = scmp.lt.s32.totalorder %s157, 255
      %s159 = scalar_select %p158, %s157, 255
      %s160 = smul.addr %s159, 4
      %s161 = scalar_lea.vmem %s3, %s160
      %s162 = smul.u32 128, %s14
      %p163 = scmp.lt.s32.totalorder %s162, 255
      %s164 = scalar_select %p163, %s162, 255
      %s165 = smul.addr %s164, 4
      %s166 = scalar_lea.vmem %s0, %s165
      %s167 = smul.u32 128, %s14
      %s168 = smul.u32 128, %s14
      %p169 = scmp.lt.s32.totalorder %s168, 255
      %s170 = scalar_select %p169, %s168, 255
      %s171 = smul.addr %s170, 4
      %s172 = scalar_lea.vmem %s3, %s171
      %s173 = smul.u32 128, %s14
      %v175 = vld [vmem:[%s166] sm:$0xf]
      %v176 = vld [vmem:[%s166 + $0x4] sm:$0xf]
      %v177 = vld [vmem:[%s166 + $0x8] sm:$0xf]
      %v178 = vld [vmem:[%s166 + $0xc] sm:$0xf]
      %v179 = vld [vmem:[%s166 + $0x10] sm:$0xf]
      %v180 = vld [vmem:[%s166 + $0x14] sm:$0xf]
      %v181 = vld [vmem:[%s166 + $0x18] sm:$0xf]
      %v182 = vld [vmem:[%s166 + $0x1c] sm:$0xf]
      %v183 = vld [vmem:[%s166 + $0x20] sm:$0xf]
      %v184 = vld [vmem:[%s166 + $0x24] sm:$0xf]
      %v185 = vld [vmem:[%s166 + $0x28] sm:$0xf]
      %v186 = vld [vmem:[%s166 + $0x2c] sm:$0xf]
      %v187 = vld [vmem:[%s166 + $0x30] sm:$0xf]
      %v188 = vld [vmem:[%s166 + $0x34] sm:$0xf]
      %v189 = vld [vmem:[%s166 + $0x38] sm:$0xf]
      %v190 = vld [vmem:[%s166 + $0x3c] sm:$0xf]
      %v191 = vld [vmem:[%s166 + $0x40] sm:$0xf]
      %v192 = vld [vmem:[%s166 + $0x44] sm:$0xf]
      %v193 = vld [vmem:[%s166 + $0x48] sm:$0xf]
      %v194 = vld [vmem:[%s166 + $0x4c] sm:$0xf]
      %v195 = vld [vmem:[%s166 + $0x50] sm:$0xf]
      %v196 = vld [vmem:[%s166 + $0x54] sm:$0xf]
      %v197 = vld [vmem:[%s166 + $0x58] sm:$0xf]
      %v198 = vld [vmem:[%s166 + $0x5c] sm:$0xf]
      %v199 = vld [vmem:[%s166 + $0x60] sm:$0xf]
      %v200 = vld [vmem:[%s166 + $0x64] sm:$0xf]
      %v201 = vld [vmem:[%s166 + $0x68] sm:$0xf]
      %v202 = vld [vmem:[%s166 + $0x6c] sm:$0xf]
      %v203 = vld [vmem:[%s166 + $0x70] sm:$0xf]
      %v204 = vld [vmem:[%s166 + $0x74] sm:$0xf]
      %v205 = vld [vmem:[%s166 + $0x78] sm:$0xf]
      %v206 = vld [vmem:[%s166 + $0x7c] sm:$0xf]
      %v207 = vld [vmem:[%s166 + $0x80] sm:$0xf]
      %v208 = vld [vmem:[%s166 + $0x84] sm:$0xf]
      %v209 = vld [vmem:[%s166 + $0x88] sm:$0xf]
      %v210 = vld [vmem:[%s166 + $0x8c] sm:$0xf]
      %v211 = vld [vmem:[%s166 + $0x90] sm:$0xf]
      %v212 = vld [vmem:[%s166 + $0x94] sm:$0xf]
      %v213 = vld [vmem:[%s166 + $0x98] sm:$0xf]
      %v214 = vld [vmem:[%s166 + $0x9c] sm:$0xf]
      %v215 = vld [vmem:[%s166 + $0xa0] sm:$0xf]
      %v216 = vld [vmem:[%s166 + $0xa4] sm:$0xf]
      %v217 = vld [vmem:[%s166 + $0xa8] sm:$0xf]
      %v218 = vld [vmem:[%s166 + $0xac] sm:$0xf]
      %v219 = vld [vmem:[%s166 + $0xb0] sm:$0xf]
      %v220 = vld [vmem:[%s166 + $0xb4] sm:$0xf]
      %v221 = vld [vmem:[%s166 + $0xb8] sm:$0xf]
      %v222 = vld [vmem:[%s166 + $0xbc] sm:$0xf]
      %v223 = vld [vmem:[%s166 + $0xc0] sm:$0xf]
      %v224 = vld [vmem:[%s166 + $0xc4] sm:$0xf]
      %v225 = vld [vmem:[%s166 + $0xc8] sm:$0xf]
      %v226 = vld [vmem:[%s166 + $0xcc] sm:$0xf]
      %v227 = vld [vmem:[%s166 + $0xd0] sm:$0xf]
      %v228 = vld [vmem:[%s166 + $0xd4] sm:$0xf]
      %v229 = vld [vmem:[%s166 + $0xd8] sm:$0xf]
      %v230 = vld [vmem:[%s166 + $0xdc] sm:$0xf]
      %v231 = vld [vmem:[%s166 + $0xe0] sm:$0xf]
      %v232 = vld [vmem:[%s166 + $0xe4] sm:$0xf]
      %v233 = vld [vmem:[%s166 + $0xe8] sm:$0xf]
      %v234 = vld [vmem:[%s166 + $0xec] sm:$0xf]
      %v235 = vld [vmem:[%s166 + $0xf0] sm:$0xf]
      %v236 = vld [vmem:[%s166 + $0xf4] sm:$0xf]
      %v237 = vld [vmem:[%s166 + $0xf8] sm:$0xf]
      %v238 = vld [vmem:[%s166 + $0xfc] sm:$0xf]
      %v239 = vld [vmem:[%s166 + $0x100] sm:$0xf]
      %v240 = vld [vmem:[%s166 + $0x104] sm:$0xf]
      %v241 = vld [vmem:[%s166 + $0x108] sm:$0xf]
      %v242 = vld [vmem:[%s166 + $0x10c] sm:$0xf]
      %v243 = vld [vmem:[%s166 + $0x110] sm:$0xf]
      %v244 = vld [vmem:[%s166 + $0x114] sm:$0xf]
      %v245 = vld [vmem:[%s166 + $0x118] sm:$0xf]
      %v246 = vld [vmem:[%s166 + $0x11c] sm:$0xf]
      %v247 = vld [vmem:[%s166 + $0x120] sm:$0xf]
      %v248 = vld [vmem:[%s166 + $0x124] sm:$0xf]
      %v249 = vld [vmem:[%s166 + $0x128] sm:$0xf]
      %v250 = vld [vmem:[%s166 + $0x12c] sm:$0xf]
      %v251 = vld [vmem:[%s166 + $0x130] sm:$0xf]
      %v252 = vld [vmem:[%s166 + $0x134] sm:$0xf]
      %v253 = vld [vmem:[%s166 + $0x138] sm:$0xf]
      %v254 = vld [vmem:[%s166 + $0x13c] sm:$0xf]
      %v255 = vld [vmem:[%s166 + $0x140] sm:$0xf]
      %v256 = vld [vmem:[%s166 + $0x144] sm:$0xf]
      %v257 = vld [vmem:[%s166 + $0x148] sm:$0xf]
      %v258 = vld [vmem:[%s166 + $0x14c] sm:$0xf]
      %v259 = vld [vmem:[%s166 + $0x150] sm:$0xf]
      %v260 = vld [vmem:[%s166 + $0x154] sm:$0xf]
      %v261 = vld [vmem:[%s166 + $0x158] sm:$0xf]
      %v262 = vld [vmem:[%s166 + $0x15c] sm:$0xf]
      %v263 = vld [vmem:[%s166 + $0x160] sm:$0xf]
      %v264 = vld [vmem:[%s166 + $0x164] sm:$0xf]
      %v265 = vld [vmem:[%s166 + $0x168] sm:$0xf]
      %v266 = vld [vmem:[%s166 + $0x16c] sm:$0xf]
      %v267 = vld [vmem:[%s166 + $0x170] sm:$0xf]
      %v268 = vld [vmem:[%s166 + $0x174] sm:$0xf]
      %v269 = vld [vmem:[%s166 + $0x178] sm:$0xf]
      %v270 = vld [vmem:[%s166 + $0x17c] sm:$0xf]
      %v271 = vld [vmem:[%s166 + $0x180] sm:$0xf]
      %v272 = vld [vmem:[%s166 + $0x184] sm:$0xf]
      %v273 = vld [vmem:[%s166 + $0x188] sm:$0xf]
      %v274 = vld [vmem:[%s166 + $0x18c] sm:$0xf]
      %v275 = vld [vmem:[%s166 + $0x190] sm:$0xf]
      %v276 = vld [vmem:[%s166 + $0x194] sm:$0xf]
      %v277 = vld [vmem:[%s166 + $0x198] sm:$0xf]
      %v278 = vld [vmem:[%s166 + $0x19c] sm:$0xf]
      %v279 = vld [vmem:[%s166 + $0x1a0] sm:$0xf]
      %v280 = vld [vmem:[%s166 + $0x1a4] sm:$0xf]
      %v281 = vld [vmem:[%s166 + $0x1a8] sm:$0xf]
      %v282 = vld [vmem:[%s166 + $0x1ac] sm:$0xf]
      %v283 = vld [vmem:[%s166 + $0x1b0] sm:$0xf]
      %v284 = vld [vmem:[%s166 + $0x1b4] sm:$0xf]
      %v285 = vld [vmem:[%s166 + $0x1b8] sm:$0xf]
      %v286 = vld [vmem:[%s166 + $0x1bc] sm:$0xf]
      %v287 = vld [vmem:[%s166 + $0x1c0] sm:$0xf]
      %v288 = vld [vmem:[%s166 + $0x1c4] sm:$0xf]
      %v289 = vld [vmem:[%s166 + $0x1c8] sm:$0xf]
      %v290 = vld [vmem:[%s166 + $0x1cc] sm:$0xf]
      %v291 = vld [vmem:[%s166 + $0x1d0] sm:$0xf]
      %v292 = vld [vmem:[%s166 + $0x1d4] sm:$0xf]
      %v293 = vld [vmem:[%s166 + $0x1d8] sm:$0xf]
      %v294 = vld [vmem:[%s166 + $0x1dc] sm:$0xf]
      %v295 = vld [vmem:[%s166 + $0x1e0] sm:$0xf]
      %v296 = vld [vmem:[%s166 + $0x1e4] sm:$0xf]
      %v297 = vld [vmem:[%s166 + $0x1e8] sm:$0xf]
      %v298 = vld [vmem:[%s166 + $0x1ec] sm:$0xf]
      %v299 = vld [vmem:[%s166 + $0x1f0] sm:$0xf]
      %v300 = vld [vmem:[%s166 + $0x1f4] sm:$0xf]
      %v301 = vld [vmem:[%s166 + $0x1f8] sm:$0xf]
      %v302 = vld [vmem:[%s166 + $0x1fc] sm:$0xf]
      %v303 = vld [vmem:[%s1] sm:$0xf]
      %v304 = vld [vmem:[%s1 + $0x4] sm:$0xf]
      %v305 = vld [vmem:[%s1 + $0x8] sm:$0xf]
      %v306 = vld [vmem:[%s1 + $0xc] sm:$0xf]
      %v307 = vld [vmem:[%s1 + $0x10] sm:$0xf]
      %v308 = vld [vmem:[%s1 + $0x14] sm:$0xf]
      %v309 = vld [vmem:[%s2] sm:$0x1]
      %v311 = vlaneseq
      %v312 = vshrl.u32 %v311, 7
      %v313 = vsub.s32 0, %v312
      %v314 = vrot.slane %v309, %v313
      %v444 = vunpack.c.l.b16 %v175
      %v445 = vunpack.c.l.b16 %v176
      %v446 = vunpack.c.l.b16 %v177
      %v447 = vunpack.c.l.b16 %v178
      %v448 = vunpack.c.l.b16 %v179
      %v449 = vunpack.c.l.b16 %v180
      %v450 = vunpack.c.l.b16 %v181
      %v451 = vunpack.c.l.b16 %v182
      %v452 = vunpack.c.l.b16 %v183
      %v453 = vunpack.c.l.b16 %v184
      %v454 = vunpack.c.l.b16 %v185
      %v455 = vunpack.c.l.b16 %v186
      %v456 = vunpack.c.l.b16 %v187
      %v457 = vunpack.c.l.b16 %v188
      %v458 = vunpack.c.l.b16 %v189
      %v459 = vunpack.c.l.b16 %v190
      %v460 = vunpack.c.l.b16 %v191
      %v461 = vunpack.c.l.b16 %v192
      %v462 = vunpack.c.l.b16 %v193
      %v463 = vunpack.c.l.b16 %v194
      %v464 = vunpack.c.l.b16 %v195
      %v465 = vunpack.c.l.b16 %v196
      %v466 = vunpack.c.l.b16 %v197
      %v467 = vunpack.c.l.b16 %v198
      %v468 = vunpack.c.l.b16 %v199
      %v469 = vunpack.c.l.b16 %v200
      %v470 = vunpack.c.l.b16 %v201
      %v471 = vunpack.c.l.b16 %v202
      %v472 = vunpack.c.l.b16 %v203
      %v473 = vunpack.c.l.b16 %v204
      %v474 = vunpack.c.l.b16 %v205
      %v475 = vunpack.c.l.b16 %v206
      %v476 = vunpack.c.l.b16 %v207
      %v477 = vunpack.c.l.b16 %v208
      %v478 = vunpack.c.l.b16 %v209
      %v479 = vunpack.c.l.b16 %v210
      %v480 = vunpack.c.l.b16 %v211
      %v481 = vunpack.c.l.b16 %v212
      %v482 = vunpack.c.l.b16 %v213
      %v483 = vunpack.c.l.b16 %v214
      %v484 = vunpack.c.l.b16 %v215
      %v485 = vunpack.c.l.b16 %v216
      %v486 = vunpack.c.l.b16 %v217
      %v487 = vunpack.c.l.b16 %v218
      %v488 = vunpack.c.l.b16 %v219
      %v489 = vunpack.c.l.b16 %v220
      %v490 = vunpack.c.l.b16 %v221
      %v491 = vunpack.c.l.b16 %v222
      %v492 = vunpack.c.l.b16 %v223
      %v493 = vunpack.c.l.b16 %v224
      %v494 = vunpack.c.l.b16 %v225
      %v495 = vunpack.c.l.b16 %v226
      %v496 = vunpack.c.l.b16 %v227
      %v497 = vunpack.c.l.b16 %v228
      %v498 = vunpack.c.l.b16 %v229
      %v499 = vunpack.c.l.b16 %v230
      %v500 = vunpack.c.l.b16 %v231
      %v501 = vunpack.c.l.b16 %v232
      %v502 = vunpack.c.l.b16 %v233
      %v503 = vunpack.c.l.b16 %v234
      %v504 = vunpack.c.l.b16 %v235
      %v505 = vunpack.c.l.b16 %v236
      %v506 = vunpack.c.l.b16 %v237
      %v507 = vunpack.c.l.b16 %v238
      %v508 = vunpack.c.l.b16 %v239
      %v509 = vunpack.c.l.b16 %v240
      %v510 = vunpack.c.l.b16 %v241
      %v511 = vunpack.c.l.b16 %v242
      %v512 = vunpack.c.l.b16 %v243
      %v513 = vunpack.c.l.b16 %v244
      %v514 = vunpack.c.l.b16 %v245
      %v515 = vunpack.c.l.b16 %v246
      %v516 = vunpack.c.l.b16 %v247
      %v517 = vunpack.c.l.b16 %v248
      %v518 = vunpack.c.l.b16 %v249
      %v519 = vunpack.c.l.b16 %v250
      %v520 = vunpack.c.l.b16 %v251
      %v521 = vunpack.c.l.b16 %v252
      %v522 = vunpack.c.l.b16 %v253
      %v523 = vunpack.c.l.b16 %v254
      %v524 = vunpack.c.l.b16 %v255
      %v525 = vunpack.c.l.b16 %v256
      %v526 = vunpack.c.l.b16 %v257
      %v527 = vunpack.c.l.b16 %v258
      %v528 = vunpack.c.l.b16 %v259
      %v529 = vunpack.c.l.b16 %v260
      %v530 = vunpack.c.l.b16 %v261
      %v531 = vunpack.c.l.b16 %v262
      %v532 = vunpack.c.l.b16 %v263
      %v533 = vunpack.c.l.b16 %v264
      %v534 = vunpack.c.l.b16 %v265
      %v535 = vunpack.c.l.b16 %v266
      %v536 = vunpack.c.l.b16 %v267
      %v537 = vunpack.c.l.b16 %v268
      %v538 = vunpack.c.l.b16 %v269
      %v539 = vunpack.c.l.b16 %v270
      %v540 = vunpack.c.l.b16 %v271
      %v541 = vunpack.c.l.b16 %v272
      %v542 = vunpack.c.l.b16 %v273
      %v543 = vunpack.c.l.b16 %v274
      %v544 = vunpack.c.l.b16 %v275
      %v545 = vunpack.c.l.b16 %v276
      %v546 = vunpack.c.l.b16 %v277
      %v547 = vunpack.c.l.b16 %v278
      %v548 = vunpack.c.l.b16 %v279
      %v549 = vunpack.c.l.b16 %v280
      %v550 = vunpack.c.l.b16 %v281
      %v551 = vunpack.c.l.b16 %v282
      %v552 = vunpack.c.l.b16 %v283
      %v553 = vunpack.c.l.b16 %v284
      %v554 = vunpack.c.l.b16 %v285
      %v555 = vunpack.c.l.b16 %v286
      %v556 = vunpack.c.l.b16 %v287
      %v557 = vunpack.c.l.b16 %v288
      %v558 = vunpack.c.l.b16 %v289
      %v559 = vunpack.c.l.b16 %v290
      %v560 = vunpack.c.l.b16 %v291
      %v561 = vunpack.c.l.b16 %v292
      %v562 = vunpack.c.l.b16 %v293
      %v563 = vunpack.c.l.b16 %v294
      %v564 = vunpack.c.l.b16 %v295
      %v565 = vunpack.c.l.b16 %v296
      %v566 = vunpack.c.l.b16 %v297
      %v567 = vunpack.c.l.b16 %v298
      %v568 = vunpack.c.l.b16 %v299
      %v569 = vunpack.c.l.b16 %v300
      %v570 = vunpack.c.l.b16 %v301
      %v571 = vunpack.c.l.b16 %v302
      %v572 = vpack.c.b16 %v445, %v444
      %v573 = vpack.c.b16 %v447, %v446
      %v574 = vpack.c.b16 %v449, %v448
      %v575 = vpack.c.b16 %v451, %v450
      %v576 = vpack.c.b16 %v453, %v452
      %v577 = vpack.c.b16 %v455, %v454
      %v578 = vpack.c.b16 %v457, %v456
      %v579 = vpack.c.b16 %v459, %v458
      %v580 = vpack.c.b16 %v461, %v460
      %v581 = vpack.c.b16 %v463, %v462
      %v582 = vpack.c.b16 %v465, %v464
      %v583 = vpack.c.b16 %v467, %v466
      %v584 = vpack.c.b16 %v469, %v468
      %v585 = vpack.c.b16 %v471, %v470
      %v586 = vpack.c.b16 %v473, %v472
      %v587 = vpack.c.b16 %v475, %v474
      %v588 = vpack.c.b16 %v477, %v476
      %v589 = vpack.c.b16 %v479, %v478
      %v590 = vpack.c.b16 %v481, %v480
      %v591 = vpack.c.b16 %v483, %v482
      %v592 = vpack.c.b16 %v485, %v484
      %v593 = vpack.c.b16 %v487, %v486
      %v594 = vpack.c.b16 %v489, %v488
      %v595 = vpack.c.b16 %v491, %v490
      %v596 = vpack.c.b16 %v493, %v492
      %v597 = vpack.c.b16 %v495, %v494
      %v598 = vpack.c.b16 %v497, %v496
      %v599 = vpack.c.b16 %v499, %v498
      %v600 = vpack.c.b16 %v501, %v500
      %v601 = vpack.c.b16 %v503, %v502
      %v602 = vpack.c.b16 %v505, %v504
      %v603 = vpack.c.b16 %v507, %v506
      %v604 = vpack.c.b16 %v509, %v508
      %v605 = vpack.c.b16 %v511, %v510
      %v606 = vpack.c.b16 %v513, %v512
      %v607 = vpack.c.b16 %v515, %v514
      %v608 = vpack.c.b16 %v517, %v516
      %v609 = vpack.c.b16 %v519, %v518
      %v610 = vpack.c.b16 %v521, %v520
      %v611 = vpack.c.b16 %v523, %v522
      %v612 = vpack.c.b16 %v525, %v524
      %v613 = vpack.c.b16 %v527, %v526
      %v614 = vpack.c.b16 %v529, %v528
      %v615 = vpack.c.b16 %v531, %v530
      %v616 = vpack.c.b16 %v533, %v532
      %v617 = vpack.c.b16 %v535, %v534
      %v618 = vpack.c.b16 %v537, %v536
      %v619 = vpack.c.b16 %v539, %v538
      %v620 = vpack.c.b16 %v541, %v540
      %v621 = vpack.c.b16 %v543, %v542
      %v622 = vpack.c.b16 %v545, %v544
      %v623 = vpack.c.b16 %v547, %v546
      %v624 = vpack.c.b16 %v549, %v548
      %v625 = vpack.c.b16 %v551, %v550
      %v626 = vpack.c.b16 %v553, %v552
      %v627 = vpack.c.b16 %v555, %v554
      %v628 = vpack.c.b16 %v557, %v556
      %v629 = vpack.c.b16 %v559, %v558
      %v630 = vpack.c.b16 %v561, %v560
      %v631 = vpack.c.b16 %v563, %v562
      %v632 = vpack.c.b16 %v565, %v564
      %v633 = vpack.c.b16 %v567, %v566
      %v634 = vpack.c.b16 %v569, %v568
      %v635 = vpack.c.b16 %v571, %v570
      %v642 = vunpack.c.l.b16 %v303
      %v643 = vunpack.c.l.b16 %v304
      %v644 = vunpack.c.l.b16 %v305
      %v645 = vunpack.c.l.b16 %v306
      %v646 = vunpack.c.l.b16 %v307
      %v647 = vunpack.c.l.b16 %v308
      %v648 = vpack.c.b16 %v643, %v642
      %v649 = vpack.c.b16 %v645, %v644
      %v650 = vpack.c.b16 %v647, %v646
      %vm654 = vcmask 392192
      %v656 = vsel %vm654, %v572, 0
      %v659 = vsel %vm654, %v573, 0
      %v662 = vsel %vm654, %v574, 0
      %v665 = vsel %vm654, %v575, 0
      %v668 = vsel %vm654, %v576, 0
      %v671 = vsel %vm654, %v577, 0
      %v674 = vsel %vm654, %v578, 0
      %v677 = vsel %vm654, %v579, 0
      %v680 = vsel %vm654, %v580, 0
      %v683 = vsel %vm654, %v581, 0
      %v686 = vsel %vm654, %v582, 0
      %v689 = vsel %vm654, %v583, 0
      %v692 = vsel %vm654, %v584, 0
      %v695 = vsel %vm654, %v585, 0
      %v698 = vsel %vm654, %v586, 0
      %v701 = vsel %vm654, %v587, 0
      %v704 = vsel %vm654, %v588, 0
      %v707 = vsel %vm654, %v589, 0
      %v710 = vsel %vm654, %v590, 0
      %v713 = vsel %vm654, %v591, 0
      %v716 = vsel %vm654, %v592, 0
      %v719 = vsel %vm654, %v593, 0
      %v722 = vsel %vm654, %v594, 0
      %v725 = vsel %vm654, %v595, 0
      %v728 = vsel %vm654, %v596, 0
      %v731 = vsel %vm654, %v597, 0
      %v734 = vsel %vm654, %v598, 0
      %v737 = vsel %vm654, %v599, 0
      %v740 = vsel %vm654, %v600, 0
      %v743 = vsel %vm654, %v601, 0
      %v746 = vsel %vm654, %v602, 0
      %v749 = vsel %vm654, %v603, 0
      %v752 = vsel %vm654, %v604, 0
      %v755 = vsel %vm654, %v605, 0
      %v758 = vsel %vm654, %v606, 0
      %v761 = vsel %vm654, %v607, 0
      %v764 = vsel %vm654, %v608, 0
      %v767 = vsel %vm654, %v609, 0
      %v770 = vsel %vm654, %v610, 0
      %v773 = vsel %vm654, %v611, 0
      %v776 = vsel %vm654, %v612, 0
      %v779 = vsel %vm654, %v613, 0
      %v782 = vsel %vm654, %v614, 0
      %v785 = vsel %vm654, %v615, 0
      %v788 = vsel %vm654, %v616, 0
      %v791 = vsel %vm654, %v617, 0
      %v794 = vsel %vm654, %v618, 0
      %v797 = vsel %vm654, %v619, 0
      %v800 = vsel %vm654, %v620, 0
      %v803 = vsel %vm654, %v621, 0
      %v806 = vsel %vm654, %v622, 0
      %v809 = vsel %vm654, %v623, 0
      %v812 = vsel %vm654, %v624, 0
      %v815 = vsel %vm654, %v625, 0
      %v818 = vsel %vm654, %v626, 0
      %v821 = vsel %vm654, %v627, 0
      %v824 = vsel %vm654, %v628, 0
      %v827 = vsel %vm654, %v629, 0
      %v830 = vsel %vm654, %v630, 0
      %v833 = vsel %vm654, %v631, 0
      %v836 = vsel %vm654, %v632, 0
      %v839 = vsel %vm654, %v633, 0
      %v842 = vsel %vm654, %v634, 0
      %v845 = vsel %vm654, %v635, 0
      %847 = vmatprep.subr.bf16.mxu0 0
      %848 = vmatpush1.bf16.msra.mxu0 %v648
      %849 = vmatprep.subr.bf16.mxu0 0
      %850 = vmatpush1.bf16.msra.mxu0 %v649
      %851 = vmatprep.subr.bf16.mxu0 0
      %852 = vmatpush1.bf16.msra.mxu0 %v650
      %853 = vmatprep.subr.bf16.mxu0 0
      %854 = vmatpush1.bf16.msra.mxu0 0
      %855 = vmatprep.subr.bf16.mxu0 0
      %856 = vmatpush1.bf16.msra.mxu0 0
      %857 = vmatprep.subr.bf16.mxu0 0
      %858 = vmatpush1.bf16.msra.mxu0 0
      %859 = vmatprep.subr.bf16.mxu0 0
      %860 = vmatpush1.bf16.msra.mxu0 0
      %861 = vmatprep.subr.bf16.mxu0 0
      %862 = vmatpush1.bf16.msra.mxu0 0
      %863 = vmatprep.subr.bf16.mxu0 0
      %864 = vmatpush1.bf16.msra.mxu0 0
      %865 = vmatprep.subr.bf16.mxu0 0
      %866 = vmatpush1.bf16.msra.mxu0 0
      %867 = vmatprep.subr.bf16.mxu0 0
      %868 = vmatpush1.bf16.msra.mxu0 0
      %869 = vmatprep.subr.bf16.mxu0 0
      %870 = vmatpush1.bf16.msra.mxu0 0
      %871 = vmatprep.subr.bf16.mxu0 0
      %872 = vmatpush1.bf16.msra.mxu0 0
      %873 = vmatprep.subr.bf16.mxu0 0
      %874 = vmatpush1.bf16.msra.mxu0 0
      %875 = vmatprep.subr.bf16.mxu0 0
      %876 = vmatpush1.bf16.msra.mxu0 0
      %877 = vmatprep.subr.bf16.mxu0 0
      %878 = vmatpush1.bf16.msra.mxu0 0
      %879 = vmatprep.mubr.bf16.mxu0 0
      %880 = vmatmul.mubr.bf16.gmra.mrb[0].mxu0 %v656
      %v881 = vpop.f32.mrb[0].mxu0
      %v882 = vadd.f32 %v314, %v881
      %v883 = vpop.f32.mrb[0].mxu0
      %v884 = vpop.f32.mrb[0].mxu0
      %v885 = vadd.f32 %v314, %v884
      %v886 = vpop.f32.mrb[0].mxu0
      %887 = vmatprep.mubr.bf16.mxu0 0
      %888 = vmatmul.mubr.bf16.gmra.mrb[0].mxu0 %v659
      %v889 = vpop.f32.mrb[0].mxu0
      %v890 = vadd.f32 %v314, %v889
      %v891 = vpop.f32.mrb[0].mxu0
      %v892 = vpop.f32.mrb[0].mxu0
      %v893 = vadd.f32 %v314, %v892
      %v894 = vpop.f32.mrb[0].mxu0
      %895 = vmatprep.mubr.bf16.mxu0 0
      %896 = vmatmul.mubr.bf16.gmra.mrb[0].mxu0 %v662
      %v897 = vpop.f32.mrb[0].mxu0
      %v898 = vadd.f32 %v314, %v897
      %v899 = vpop.f32.mrb[0].mxu0
      %v900 = vpop.f32.mrb[0].mxu0
      %v901 = vadd.f32 %v314, %v900
      %v902 = vpop.f32.mrb[0].mxu0
      %903 = vmatprep.mubr.bf16.mxu0 0
      %904 = vmatmul.mubr.bf16.gmra.mrb[0].mxu0 %v665
      %v905 = vpop.f32.mrb[0].mxu0
      %v906 = vadd.f32 %v314, %v905
      %v907 = vpop.f32.mrb[0].mxu0
      %v908 = vpop.f32.mrb[0].mxu0
      %v909 = vadd.f32 %v314, %v908
      %v910 = vpop.f32.mrb[0].mxu0
      %911 = vmatprep.mubr.bf16.mxu0 0
      %912 = vmatmul.mubr.bf16.gmra.mrb[0].mxu0 %v668
      %v913 = vpop.f32.mrb[0].mxu0
      %v914 = vadd.f32 %v314, %v913
      %v915 = vpop.f32.mrb[0].mxu0
      %v916 = vpop.f32.mrb[0].mxu0
      %v917 = vadd.f32 %v314, %v916
      %v918 = vpop.f32.mrb[0].mxu0
      %919 = vmatprep.mubr.bf16.mxu0 0
      %920 = vmatmul.mubr.bf16.gmra.mrb[0].mxu0 %v671
      %v921 = vpop.f32.mrb[0].mxu0
      %v922 = vadd.f32 %v314, %v921
      %v923 = vpop.f32.mrb[0].mxu0
      %v924 = vpop.f32.mrb[0].mxu0
      %v925 = vadd.f32 %v314, %v924
      %v926 = vpop.f32.mrb[0].mxu0
      %927 = vmatprep.mubr.bf16.mxu0 0
      %928 = vmatmul.mubr.bf16.gmra.mrb[0].mxu0 %v674
      %v929 = vpop.f32.mrb[0].mxu0
      %v930 = vadd.f32 %v314, %v929
      %v931 = vpop.f32.mrb[0].mxu0
      %v932 = vpop.f32.mrb[0].mxu0
      %v933 = vadd.f32 %v314, %v932
      %v934 = vpop.f32.mrb[0].mxu0
      %935 = vmatprep.mubr.bf16.mxu0 0
      %936 = vmatmul.mubr.bf16.gmra.mrb[0].mxu0 %v677
      %v937 = vpop.f32.mrb[0].mxu0
      %v938 = vadd.f32 %v314, %v937
      %v939 = vpop.f32.mrb[0].mxu0
      %v940 = vpop.f32.mrb[0].mxu0
      %v941 = vadd.f32 %v314, %v940
      %v942 = vpop.f32.mrb[0].mxu0
      %943 = vmatprep.mubr.bf16.mxu0 0
      %944 = vmatmul.mubr.bf16.gmra.mrb[0].mxu0 %v680
      %v945 = vpop.f32.mrb[0].mxu0
      %v946 = vadd.f32 %v314, %v945
      %v947 = vpop.f32.mrb[0].mxu0
      %v948 = vpop.f32.mrb[0].mxu0
      %v949 = vadd.f32 %v314, %v948
      %v950 = vpop.f32.mrb[0].mxu0
      %951 = vmatprep.mubr.bf16.mxu0 0
      %952 = vmatmul.mubr.bf16.gmra.mrb[0].mxu0 %v683
      %v953 = vpop.f32.mrb[0].mxu0
      %v954 = vadd.f32 %v314, %v953
      %v955 = vpop.f32.mrb[0].mxu0
      %v956 = vpop.f32.mrb[0].mxu0
      %v957 = vadd.f32 %v314, %v956
      %v958 = vpop.f32.mrb[0].mxu0
      %959 = vmatprep.mubr.bf16.mxu0 0
      %960 = vmatmul.mubr.bf16.gmra.mrb[0].mxu0 %v686
      %v961 = vpop.f32.mrb[0].mxu0
      %v962 = vadd.f32 %v314, %v961
      %v963 = vpop.f32.mrb[0].mxu0
      %v964 = vpop.f32.mrb[0].mxu0
      %v965 = vadd.f32 %v314, %v964
      %v966 = vpop.f32.mrb[0].mxu0
      %967 = vmatprep.mubr.bf16.mxu0 0
      %968 = vmatmul.mubr.bf16.gmra.mrb[0].mxu0 %v689
      %v969 = vpop.f32.mrb[0].mxu0
      %v970 = vadd.f32 %v314, %v969
      %v971 = vpop.f32.mrb[0].mxu0
      %v972 = vpop.f32.mrb[0].mxu0
      %v973 = vadd.f32 %v314, %v972
      %v974 = vpop.f32.mrb[0].mxu0
      %975 = vmatprep.mubr.bf16.mxu0 0
      %976 = vmatmul.mubr.bf16.gmra.mrb[0].mxu0 %v692
      %v977 = vpop.f32.mrb[0].mxu0
      %v978 = vadd.f32 %v314, %v977
      %v979 = vpop.f32.mrb[0].mxu0
      %v980 = vpop.f32.mrb[0].mxu0
      %v981 = vadd.f32 %v314, %v980
      %v982 = vpop.f32.mrb[0].mxu0
      %983 = vmatprep.mubr.bf16.mxu0 0
      %984 = vmatmul.mubr.bf16.gmra.mrb[0].mxu0 %v695
      %v985 = vpop.f32.mrb[0].mxu0
      %v986 = vadd.f32 %v314, %v985
      %v987 = vpop.f32.mrb[0].mxu0
      %v988 = vpop.f32.mrb[0].mxu0
      %v989 = vadd.f32 %v314, %v988
      %v990 = vpop.f32.mrb[0].mxu0
      %991 = vmatprep.mubr.bf16.mxu0 0
      %992 = vmatmul.mubr.bf16.gmra.mrb[0].mxu0 %v698
      %v993 = vpop.f32.mrb[0].mxu0
      %v994 = vadd.f32 %v314, %v993
      %v995 = vpop.f32.mrb[0].mxu0
      %v996 = vpop.f32.mrb[0].mxu0
      %v997 = vadd.f32 %v314, %v996
      %v998 = vpop.f32.mrb[0].mxu0
      %999 = vmatprep.mubr.bf16.mxu0 0
      %1000 = vmatmul.mubr.bf16.gmra.mrb[0].mxu0 %v701
      %v1001 = vpop.f32.mrb[0].mxu0
      %v1002 = vadd.f32 %v314, %v1001
      %v1003 = vpop.f32.mrb[0].mxu0
      %v1004 = vpop.f32.mrb[0].mxu0
      %v1005 = vadd.f32 %v314, %v1004
      %v1006 = vpop.f32.mrb[0].mxu0
      %1007 = vmatprep.mubr.bf16.mxu0 0
      %1008 = vmatmul.mubr.bf16.gmra.mrb[0].mxu0 %v704
      %v1009 = vpop.f32.mrb[0].mxu0
      %v1010 = vadd.f32 %v314, %v1009
      %v1011 = vpop.f32.mrb[0].mxu0
      %v1012 = vpop.f32.mrb[0].mxu0
      %v1013 = vadd.f32 %v314, %v1012
      %v1014 = vpop.f32.mrb[0].mxu0
      %1015 = vmatprep.mubr.bf16.mxu0 0
      %1016 = vmatmul.mubr.bf16.gmra.mrb[0].mxu0 %v707
      %v1017 = vpop.f32.mrb[0].mxu0
      %v1018 = vadd.f32 %v314, %v1017
      %v1019 = vpop.f32.mrb[0].mxu0
      %v1020 = vpop.f32.mrb[0].mxu0
      %v1021 = vadd.f32 %v314, %v1020
      %v1022 = vpop.f32.mrb[0].mxu0
      %1023 = vmatprep.mubr.bf16.mxu0 0
      %1024 = vmatmul.mubr.bf16.gmra.mrb[0].mxu0 %v710
      %v1025 = vpop.f32.mrb[0].mxu0
      %v1026 = vadd.f32 %v314, %v1025
      %v1027 = vpop.f32.mrb[0].mxu0
      %v1028 = vpop.f32.mrb[0].mxu0
      %v1029 = vadd.f32 %v314, %v1028
      %v1030 = vpop.f32.mrb[0].mxu0
      %1031 = vmatprep.mubr.bf16.mxu0 0
      %1032 = vmatmul.mubr.bf16.gmra.mrb[0].mxu0 %v713
      %v1033 = vpop.f32.mrb[0].mxu0
      %v1034 = vadd.f32 %v314, %v1033
      %v1035 = vpop.f32.mrb[0].mxu0
      %v1036 = vpop.f32.mrb[0].mxu0
      %v1037 = vadd.f32 %v314, %v1036
      %v1038 = vpop.f32.mrb[0].mxu0
      %1039 = vmatprep.mubr.bf16.mxu0 0
      %1040 = vmatmul.mubr.bf16.gmra.mrb[0].mxu0 %v716
      %v1041 = vpop.f32.mrb[0].mxu0
      %v1042 = vadd.f32 %v314, %v1041
      %v1043 = vpop.f32.mrb[0].mxu0
      %v1044 = vpop.f32.mrb[0].mxu0
      %v1045 = vadd.f32 %v314, %v1044
      %v1046 = vpop.f32.mrb[0].mxu0
      %1047 = vmatprep.mubr.bf16.mxu0 0
      %1048 = vmatmul.mubr.bf16.gmra.mrb[0].mxu0 %v719
      %v1049 = vpop.f32.mrb[0].mxu0
      %v1050 = vadd.f32 %v314, %v1049
      %v1051 = vpop.f32.mrb[0].mxu0
      %v1052 = vpop.f32.mrb[0].mxu0
      %v1053 = vadd.f32 %v314, %v1052
      %v1054 = vpop.f32.mrb[0].mxu0
      %1055 = vmatprep.mubr.bf16.mxu0 0
      %1056 = vmatmul.mubr.bf16.gmra.mrb[0].mxu0 %v722
      %v1057 = vpop.f32.mrb[0].mxu0
      %v1058 = vadd.f32 %v314, %v1057
      %v1059 = vpop.f32.mrb[0].mxu0
      %v1060 = vpop.f32.mrb[0].mxu0
      %v1061 = vadd.f32 %v314, %v1060
      %v1062 = vpop.f32.mrb[0].mxu0
      %1063 = vmatprep.mubr.bf16.mxu0 0
      %1064 = vmatmul.mubr.bf16.gmra.mrb[0].mxu0 %v725
      %v1065 = vpop.f32.mrb[0].mxu0
      %v1066 = vadd.f32 %v314, %v1065
      %v1067 = vpop.f32.mrb[0].mxu0
      %v1068 = vpop.f32.mrb[0].mxu0
      %v1069 = vadd.f32 %v314, %v1068
      %v1070 = vpop.f32.mrb[0].mxu0
      %1071 = vmatprep.mubr.bf16.mxu0 0
      %1072 = vmatmul.mubr.bf16.gmra.mrb[0].mxu0 %v728
      %v1073 = vpop.f32.mrb[0].mxu0
      %v1074 = vadd.f32 %v314, %v1073
      %v1075 = vpop.f32.mrb[0].mxu0
      %v1076 = vpop.f32.mrb[0].mxu0
      %v1077 = vadd.f32 %v314, %v1076
      %v1078 = vpop.f32.mrb[0].mxu0
      %1079 = vmatprep.mubr.bf16.mxu0 0
      %1080 = vmatmul.mubr.bf16.gmra.mrb[0].mxu0 %v731
      %v1081 = vpop.f32.mrb[0].mxu0
      %v1082 = vadd.f32 %v314, %v1081
      %v1083 = vpop.f32.mrb[0].mxu0
      %v1084 = vpop.f32.mrb[0].mxu0
      %v1085 = vadd.f32 %v314, %v1084
      %v1086 = vpop.f32.mrb[0].mxu0
      %1087 = vmatprep.mubr.bf16.mxu0 0
      %1088 = vmatmul.mubr.bf16.gmra.mrb[0].mxu0 %v734
      %v1089 = vpop.f32.mrb[0].mxu0
      %v1090 = vadd.f32 %v314, %v1089
      %v1091 = vpop.f32.mrb[0].mxu0
      %v1092 = vpop.f32.mrb[0].mxu0
      %v1093 = vadd.f32 %v314, %v1092
      %v1094 = vpop.f32.mrb[0].mxu0
      %1095 = vmatprep.mubr.bf16.mxu0 0
      %1096 = vmatmul.mubr.bf16.gmra.mrb[0].mxu0 %v737
      %v1097 = vpop.f32.mrb[0].mxu0
      %v1098 = vadd.f32 %v314, %v1097
      %v1099 = vpop.f32.mrb[0].mxu0
      %v1100 = vpop.f32.mrb[0].mxu0
      %v1101 = vadd.f32 %v314, %v1100
      %v1102 = vpop.f32.mrb[0].mxu0
      %1103 = vmatprep.mubr.bf16.mxu0 0
      %1104 = vmatmul.mubr.bf16.gmra.mrb[0].mxu0 %v740
      %v1105 = vpop.f32.mrb[0].mxu0
      %v1106 = vadd.f32 %v314, %v1105
      %v1107 = vpop.f32.mrb[0].mxu0
      %v1108 = vpop.f32.mrb[0].mxu0
      %v1109 = vadd.f32 %v314, %v1108
      %v1110 = vpop.f32.mrb[0].mxu0
      %1111 = vmatprep.mubr.bf16.mxu0 0
      %1112 = vmatmul.mubr.bf16.gmra.mrb[0].mxu0 %v743
      %v1113 = vpop.f32.mrb[0].mxu0
      %v1114 = vadd.f32 %v314, %v1113
      %v1115 = vpop.f32.mrb[0].mxu0
      %v1116 = vpop.f32.mrb[0].mxu0
      %v1117 = vadd.f32 %v314, %v1116
      %v1118 = vpop.f32.mrb[0].mxu0
      %1119 = vmatprep.mubr.bf16.mxu0 0
      %1120 = vmatmul.mubr.bf16.gmra.mrb[0].mxu0 %v746
      %v1121 = vpop.f32.mrb[0].mxu0
      %v1122 = vadd.f32 %v314, %v1121
      %v1123 = vpop.f32.mrb[0].mxu0
      %v1124 = vpop.f32.mrb[0].mxu0
      %v1125 = vadd.f32 %v314, %v1124
      %v1126 = vpop.f32.mrb[0].mxu0
      %1127 = vmatprep.mubr.bf16.mxu0 0
      %1128 = vmatmul.mubr.bf16.gmra.mrb[0].mxu0 %v749
      %v1129 = vpop.f32.mrb[0].mxu0
      %v1130 = vadd.f32 %v314, %v1129
      %v1131 = vpop.f32.mrb[0].mxu0
      %v1132 = vpop.f32.mrb[0].mxu0
      %v1133 = vadd.f32 %v314, %v1132
      %v1134 = vpop.f32.mrb[0].mxu0
      %1135 = vmatprep.mubr.bf16.mxu0 0
      %1136 = vmatmul.mubr.bf16.gmra.mrb[0].mxu0 %v752
      %v1137 = vpop.f32.mrb[0].mxu0
      %v1138 = vadd.f32 %v314, %v1137
      %v1139 = vpop.f32.mrb[0].mxu0
      %v1140 = vpop.f32.mrb[0].mxu0
      %v1141 = vadd.f32 %v314, %v1140
      %v1142 = vpop.f32.mrb[0].mxu0
      %1143 = vmatprep.mubr.bf16.mxu0 0
      %1144 = vmatmul.mubr.bf16.gmra.mrb[0].mxu0 %v755
      %v1145 = vpop.f32.mrb[0].mxu0
      %v1146 = vadd.f32 %v314, %v1145
      %v1147 = vpop.f32.mrb[0].mxu0
      %v1148 = vpop.f32.mrb[0].mxu0
      %v1149 = vadd.f32 %v314, %v1148
      %v1150 = vpop.f32.mrb[0].mxu0
      %1151 = vmatprep.mubr.bf16.mxu0 0
      %1152 = vmatmul.mubr.bf16.gmra.mrb[0].mxu0 %v758
      %v1153 = vpop.f32.mrb[0].mxu0
      %v1154 = vadd.f32 %v314, %v1153
      %v1155 = vpop.f32.mrb[0].mxu0
      %v1156 = vpop.f32.mrb[0].mxu0
      %v1157 = vadd.f32 %v314, %v1156
      %v1158 = vpop.f32.mrb[0].mxu0
      %1159 = vmatprep.mubr.bf16.mxu0 0
      %1160 = vmatmul.mubr.bf16.gmra.mrb[0].mxu0 %v761
      %v1161 = vpop.f32.mrb[0].mxu0
      %v1162 = vadd.f32 %v314, %v1161
      %v1163 = vpop.f32.mrb[0].mxu0
      %v1164 = vpop.f32.mrb[0].mxu0
      %v1165 = vadd.f32 %v314, %v1164
      %v1166 = vpop.f32.mrb[0].mxu0
      %1167 = vmatprep.mubr.bf16.mxu0 0
      %1168 = vmatmul.mubr.bf16.gmra.mrb[0].mxu0 %v764
      %v1169 = vpop.f32.mrb[0].mxu0
      %v1170 = vadd.f32 %v314, %v1169
      %v1171 = vpop.f32.mrb[0].mxu0
      %v1172 = vpop.f32.mrb[0].mxu0
      %v1173 = vadd.f32 %v314, %v1172
      %v1174 = vpop.f32.mrb[0].mxu0
      %1175 = vmatprep.mubr.bf16.mxu0 0
      %1176 = vmatmul.mubr.bf16.gmra.mrb[0].mxu0 %v767
      %v1177 = vpop.f32.mrb[0].mxu0
      %v1178 = vadd.f32 %v314, %v1177
      %v1179 = vpop.f32.mrb[0].mxu0
      %v1180 = vpop.f32.mrb[0].mxu0
      %v1181 = vadd.f32 %v314, %v1180
      %v1182 = vpop.f32.mrb[0].mxu0
      %1183 = vmatprep.mubr.bf16.mxu0 0
      %1184 = vmatmul.mubr.bf16.gmra.mrb[0].mxu0 %v770
      %v1185 = vpop.f32.mrb[0].mxu0
      %v1186 = vadd.f32 %v314, %v1185
      %v1187 = vpop.f32.mrb[0].mxu0
      %v1188 = vpop.f32.mrb[0].mxu0
      %v1189 = vadd.f32 %v314, %v1188
      %v1190 = vpop.f32.mrb[0].mxu0
      %1191 = vmatprep.mubr.bf16.mxu0 0
      %1192 = vmatmul.mubr.bf16.gmra.mrb[0].mxu0 %v773
      %v1193 = vpop.f32.mrb[0].mxu0
      %v1194 = vadd.f32 %v314, %v1193
      %v1195 = vpop.f32.mrb[0].mxu0
      %v1196 = vpop.f32.mrb[0].mxu0
      %v1197 = vadd.f32 %v314, %v1196
      %v1198 = vpop.f32.mrb[0].mxu0
      %1199 = vmatprep.mubr.bf16.mxu0 0
      %1200 = vmatmul.mubr.bf16.gmra.mrb[0].mxu0 %v776
      %v1201 = vpop.f32.mrb[0].mxu0
      %v1202 = vadd.f32 %v314, %v1201
      %v1203 = vpop.f32.mrb[0].mxu0
      %v1204 = vpop.f32.mrb[0].mxu0
      %v1205 = vadd.f32 %v314, %v1204
      %v1206 = vpop.f32.mrb[0].mxu0
      %1207 = vmatprep.mubr.bf16.mxu0 0
      %1208 = vmatmul.mubr.bf16.gmra.mrb[0].mxu0 %v779
      %v1209 = vpop.f32.mrb[0].mxu0
      %v1210 = vadd.f32 %v314, %v1209
      %v1211 = vpop.f32.mrb[0].mxu0
      %v1212 = vpop.f32.mrb[0].mxu0
      %v1213 = vadd.f32 %v314, %v1212
      %v1214 = vpop.f32.mrb[0].mxu0
      %1215 = vmatprep.mubr.bf16.mxu0 0
      %1216 = vmatmul.mubr.bf16.gmra.mrb[0].mxu0 %v782
      %v1217 = vpop.f32.mrb[0].mxu0
      %v1218 = vadd.f32 %v314, %v1217
      %v1219 = vpop.f32.mrb[0].mxu0
      %v1220 = vpop.f32.mrb[0].mxu0
      %v1221 = vadd.f32 %v314, %v1220
      %v1222 = vpop.f32.mrb[0].mxu0
      %1223 = vmatprep.mubr.bf16.mxu0 0
      %1224 = vmatmul.mubr.bf16.gmra.mrb[0].mxu0 %v785
      %v1225 = vpop.f32.mrb[0].mxu0
      %v1226 = vadd.f32 %v314, %v1225
      %v1227 = vpop.f32.mrb[0].mxu0
      %v1228 = vpop.f32.mrb[0].mxu0
      %v1229 = vadd.f32 %v314, %v1228
      %v1230 = vpop.f32.mrb[0].mxu0
      %1231 = vmatprep.mubr.bf16.mxu0 0
      %1232 = vmatmul.mubr.bf16.gmra.mrb[0].mxu0 %v788
      %v1233 = vpop.f32.mrb[0].mxu0
      %v1234 = vadd.f32 %v314, %v1233
      %v1235 = vpop.f32.mrb[0].mxu0
      %v1236 = vpop.f32.mrb[0].mxu0
      %v1237 = vadd.f32 %v314, %v1236
      %v1238 = vpop.f32.mrb[0].mxu0
      %1239 = vmatprep.mubr.bf16.mxu0 0
      %1240 = vmatmul.mubr.bf16.gmra.mrb[0].mxu0 %v791
      %v1241 = vpop.f32.mrb[0].mxu0
      %v1242 = vadd.f32 %v314, %v1241
      %v1243 = vpop.f32.mrb[0].mxu0
      %v1244 = vpop.f32.mrb[0].mxu0
      %v1245 = vadd.f32 %v314, %v1244
      %v1246 = vpop.f32.mrb[0].mxu0
      %1247 = vmatprep.mubr.bf16.mxu0 0
      %1248 = vmatmul.mubr.bf16.gmra.mrb[0].mxu0 %v794
      %v1249 = vpop.f32.mrb[0].mxu0
      %v1250 = vadd.f32 %v314, %v1249
      %v1251 = vpop.f32.mrb[0].mxu0
      %v1252 = vpop.f32.mrb[0].mxu0
      %v1253 = vadd.f32 %v314, %v1252
      %v1254 = vpop.f32.mrb[0].mxu0
      %1255 = vmatprep.mubr.bf16.mxu0 0
      %1256 = vmatmul.mubr.bf16.gmra.mrb[0].mxu0 %v797
      %v1257 = vpop.f32.mrb[0].mxu0
      %v1258 = vadd.f32 %v314, %v1257
      %v1259 = vpop.f32.mrb[0].mxu0
      %v1260 = vpop.f32.mrb[0].mxu0
      %v1261 = vadd.f32 %v314, %v1260
      %v1262 = vpop.f32.mrb[0].mxu0
      %1263 = vmatprep.mubr.bf16.mxu0 0
      %1264 = vmatmul.mubr.bf16.gmra.mrb[0].mxu0 %v800
      %v1265 = vpop.f32.mrb[0].mxu0
      %v1266 = vadd.f32 %v314, %v1265
      %v1267 = vpop.f32.mrb[0].mxu0
      %v1268 = vpop.f32.mrb[0].mxu0
      %v1269 = vadd.f32 %v314, %v1268
      %v1270 = vpop.f32.mrb[0].mxu0
      %1271 = vmatprep.mubr.bf16.mxu0 0
      %1272 = vmatmul.mubr.bf16.gmra.mrb[0].mxu0 %v803
      %v1273 = vpop.f32.mrb[0].mxu0
      %v1274 = vadd.f32 %v314, %v1273
      %v1275 = vpop.f32.mrb[0].mxu0
      %v1276 = vpop.f32.mrb[0].mxu0
      %v1277 = vadd.f32 %v314, %v1276
      %v1278 = vpop.f32.mrb[0].mxu0
      %1279 = vmatprep.mubr.bf16.mxu0 0
      %1280 = vmatmul.mubr.bf16.gmra.mrb[0].mxu0 %v806
      %v1281 = vpop.f32.mrb[0].mxu0
      %v1282 = vadd.f32 %v314, %v1281
      %v1283 = vpop.f32.mrb[0].mxu0
      %v1284 = vpop.f32.mrb[0].mxu0
      %v1285 = vadd.f32 %v314, %v1284
      %v1286 = vpop.f32.mrb[0].mxu0
      %1287 = vmatprep.mubr.bf16.mxu0 0
      %1288 = vmatmul.mubr.bf16.gmra.mrb[0].mxu0 %v809
      %v1289 = vpop.f32.mrb[0].mxu0
      %v1290 = vadd.f32 %v314, %v1289
      %v1291 = vpop.f32.mrb[0].mxu0
      %v1292 = vpop.f32.mrb[0].mxu0
      %v1293 = vadd.f32 %v314, %v1292
      %v1294 = vpop.f32.mrb[0].mxu0
      %1295 = vmatprep.mubr.bf16.mxu0 0
      %1296 = vmatmul.mubr.bf16.gmra.mrb[0].mxu0 %v812
      %v1297 = vpop.f32.mrb[0].mxu0
      %v1298 = vadd.f32 %v314, %v1297
      %v1299 = vpop.f32.mrb[0].mxu0
      %v1300 = vpop.f32.mrb[0].mxu0
      %v1301 = vadd.f32 %v314, %v1300
      %v1302 = vpop.f32.mrb[0].mxu0
      %1303 = vmatprep.mubr.bf16.mxu0 0
      %1304 = vmatmul.mubr.bf16.gmra.mrb[0].mxu0 %v815
      %v1305 = vpop.f32.mrb[0].mxu0
      %v1306 = vadd.f32 %v314, %v1305
      %v1307 = vpop.f32.mrb[0].mxu0
      %v1308 = vpop.f32.mrb[0].mxu0
      %v1309 = vadd.f32 %v314, %v1308
      %v1310 = vpop.f32.mrb[0].mxu0
      %1311 = vmatprep.mubr.bf16.mxu0 0
      %1312 = vmatmul.mubr.bf16.gmra.mrb[0].mxu0 %v818
      %v1313 = vpop.f32.mrb[0].mxu0
      %v1314 = vadd.f32 %v314, %v1313
      %v1315 = vpop.f32.mrb[0].mxu0
      %v1316 = vpop.f32.mrb[0].mxu0
      %v1317 = vadd.f32 %v314, %v1316
      %v1318 = vpop.f32.mrb[0].mxu0
      %1319 = vmatprep.mubr.bf16.mxu0 0
      %1320 = vmatmul.mubr.bf16.gmra.mrb[0].mxu0 %v821
      %v1321 = vpop.f32.mrb[0].mxu0
      %v1322 = vadd.f32 %v314, %v1321
      %v1323 = vpop.f32.mrb[0].mxu0
      %v1324 = vpop.f32.mrb[0].mxu0
      %v1325 = vadd.f32 %v314, %v1324
      %v1326 = vpop.f32.mrb[0].mxu0
      %1327 = vmatprep.mubr.bf16.mxu0 0
      %1328 = vmatmul.mubr.bf16.gmra.mrb[0].mxu0 %v824
      %v1329 = vpop.f32.mrb[0].mxu0
      %v1330 = vadd.f32 %v314, %v1329
      %v1331 = vpop.f32.mrb[0].mxu0
      %v1332 = vpop.f32.mrb[0].mxu0
      %v1333 = vadd.f32 %v314, %v1332
      %v1334 = vpop.f32.mrb[0].mxu0
      %1335 = vmatprep.mubr.bf16.mxu0 0
      %1336 = vmatmul.mubr.bf16.gmra.mrb[0].mxu0 %v827
      %v1337 = vpop.f32.mrb[0].mxu0
      %v1338 = vadd.f32 %v314, %v1337
      %v1339 = vpop.f32.mrb[0].mxu0
      %v1340 = vpop.f32.mrb[0].mxu0
      %v1341 = vadd.f32 %v314, %v1340
      %v1342 = vpop.f32.mrb[0].mxu0
      %1343 = vmatprep.mubr.bf16.mxu0 0
      %1344 = vmatmul.mubr.bf16.gmra.mrb[0].mxu0 %v830
      %v1345 = vpop.f32.mrb[0].mxu0
      %v1346 = vadd.f32 %v314, %v1345
      %v1347 = vpop.f32.mrb[0].mxu0
      %v1348 = vpop.f32.mrb[0].mxu0
      %v1349 = vadd.f32 %v314, %v1348
      %v1350 = vpop.f32.mrb[0].mxu0
      %1351 = vmatprep.mubr.bf16.mxu0 0
      %1352 = vmatmul.mubr.bf16.gmra.mrb[0].mxu0 %v833
      %v1353 = vpop.f32.mrb[0].mxu0
      %v1354 = vadd.f32 %v314, %v1353
      %v1355 = vpop.f32.mrb[0].mxu0
      %v1356 = vpop.f32.mrb[0].mxu0
      %v1357 = vadd.f32 %v314, %v1356
      %v1358 = vpop.f32.mrb[0].mxu0
      %1359 = vmatprep.mubr.bf16.mxu0 0
      %1360 = vmatmul.mubr.bf16.gmra.mrb[0].mxu0 %v836
      %v1361 = vpop.f32.mrb[0].mxu0
      %v1362 = vadd.f32 %v314, %v1361
      %v1363 = vpop.f32.mrb[0].mxu0
      %v1364 = vpop.f32.mrb[0].mxu0
      %v1365 = vadd.f32 %v314, %v1364
      %v1366 = vpop.f32.mrb[0].mxu0
      %1367 = vmatprep.mubr.bf16.mxu0 0
      %1368 = vmatmul.mubr.bf16.gmra.mrb[0].mxu0 %v839
      %v1369 = vpop.f32.mrb[0].mxu0
      %v1370 = vadd.f32 %v314, %v1369
      %v1371 = vpop.f32.mrb[0].mxu0
      %v1372 = vpop.f32.mrb[0].mxu0
      %v1373 = vadd.f32 %v314, %v1372
      %v1374 = vpop.f32.mrb[0].mxu0
      %1375 = vmatprep.mubr.bf16.mxu0 0
      %1376 = vmatmul.mubr.bf16.gmra.mrb[0].mxu0 %v842
      %v1377 = vpop.f32.mrb[0].mxu0
      %v1378 = vadd.f32 %v314, %v1377
      %v1379 = vpop.f32.mrb[0].mxu0
      %v1380 = vpop.f32.mrb[0].mxu0
      %v1381 = vadd.f32 %v314, %v1380
      %v1382 = vpop.f32.mrb[0].mxu0
      %1383 = vmatprep.mubr.bf16.mxu0 0
      %1384 = vmatmul.mubr.bf16.gmra.mrb[0].mxu0 %v845
      %v1385 = vpop.f32.mrb[0].mxu0
      %v1386 = vadd.f32 %v314, %v1385
      %v1387 = vpop.f32.mrb[0].mxu0
      %v1388 = vpop.f32.mrb[0].mxu0
      %v1389 = vadd.f32 %v314, %v1388
      %v1390 = vpop.f32.mrb[0].mxu0
      %1391 = vdwg.mxu0
      %vm1392 = vcmp.ge.f32.partialorder %v882, 0.0
      %vm1393 = vcmp.ge.f32.partialorder %v885, 0.0
      %vm1394 = vcmp.ge.f32.partialorder %v890, 0.0
      %vm1395 = vcmp.ge.f32.partialorder %v893, 0.0
      %vm1396 = vcmp.ge.f32.partialorder %v898, 0.0
      %vm1397 = vcmp.ge.f32.partialorder %v901, 0.0
      %vm1398 = vcmp.ge.f32.partialorder %v906, 0.0
      %vm1399 = vcmp.ge.f32.partialorder %v909, 0.0
      %vm1400 = vcmp.ge.f32.partialorder %v914, 0.0
      %vm1401 = vcmp.ge.f32.partialorder %v917, 0.0
      %vm1402 = vcmp.ge.f32.partialorder %v922, 0.0
      %vm1403 = vcmp.ge.f32.partialorder %v925, 0.0
      %vm1404 = vcmp.ge.f32.partialorder %v930, 0.0
      %vm1405 = vcmp.ge.f32.partialorder %v933, 0.0
      %vm1406 = vcmp.ge.f32.partialorder %v938, 0.0
      %vm1407 = vcmp.ge.f32.partialorder %v941, 0.0
      %vm1408 = vcmp.ge.f32.partialorder %v946, 0.0
      %vm1409 = vcmp.ge.f32.partialorder %v949, 0.0
      %vm1410 = vcmp.ge.f32.partialorder %v954, 0.0
      %vm1411 = vcmp.ge.f32.partialorder %v957, 0.0
      %vm1412 = vcmp.ge.f32.partialorder %v962, 0.0
      %vm1413 = vcmp.ge.f32.partialorder %v965, 0.0
      %vm1414 = vcmp.ge.f32.partialorder %v970, 0.0
      %vm1415 = vcmp.ge.f32.partialorder %v973, 0.0
      %vm1416 = vcmp.ge.f32.partialorder %v978, 0.0
      %vm1417 = vcmp.ge.f32.partialorder %v981, 0.0
      %vm1418 = vcmp.ge.f32.partialorder %v986, 0.0
      %vm1419 = vcmp.ge.f32.partialorder %v989, 0.0
      %vm1420 = vcmp.ge.f32.partialorder %v994, 0.0
      %vm1421 = vcmp.ge.f32.partialorder %v997, 0.0
      %vm1422 = vcmp.ge.f32.partialorder %v1002, 0.0
      %vm1423 = vcmp.ge.f32.partialorder %v1005, 0.0
      %vm1424 = vcmp.ge.f32.partialorder %v1010, 0.0
      %vm1425 = vcmp.ge.f32.partialorder %v1013, 0.0
      %vm1426 = vcmp.ge.f32.partialorder %v1018, 0.0
      %vm1427 = vcmp.ge.f32.partialorder %v1021, 0.0
      %vm1428 = vcmp.ge.f32.partialorder %v1026, 0.0
      %vm1429 = vcmp.ge.f32.partialorder %v1029, 0.0
      %vm1430 = vcmp.ge.f32.partialorder %v1034, 0.0
      %vm1431 = vcmp.ge.f32.partialorder %v1037, 0.0
      %vm1432 = vcmp.ge.f32.partialorder %v1042, 0.0
      %vm1433 = vcmp.ge.f32.partialorder %v1045, 0.0
      %vm1434 = vcmp.ge.f32.partialorder %v1050, 0.0
      %vm1435 = vcmp.ge.f32.partialorder %v1053, 0.0
      %vm1436 = vcmp.ge.f32.partialorder %v1058, 0.0
      %vm1437 = vcmp.ge.f32.partialorder %v1061, 0.0
      %vm1438 = vcmp.ge.f32.partialorder %v1066, 0.0
      %vm1439 = vcmp.ge.f32.partialorder %v1069, 0.0
      %vm1440 = vcmp.ge.f32.partialorder %v1074, 0.0
      %vm1441 = vcmp.ge.f32.partialorder %v1077, 0.0
      %vm1442 = vcmp.ge.f32.partialorder %v1082, 0.0
      %vm1443 = vcmp.ge.f32.partialorder %v1085, 0.0
      %vm1444 = vcmp.ge.f32.partialorder %v1090, 0.0
      %vm1445 = vcmp.ge.f32.partialorder %v1093, 0.0
      %vm1446 = vcmp.ge.f32.partialorder %v1098, 0.0
      %vm1447 = vcmp.ge.f32.partialorder %v1101, 0.0
      %vm1448 = vcmp.ge.f32.partialorder %v1106, 0.0
      %vm1449 = vcmp.ge.f32.partialorder %v1109, 0.0
      %vm1450 = vcmp.ge.f32.partialorder %v1114, 0.0
      %vm1451 = vcmp.ge.f32.partialorder %v1117, 0.0
      %vm1452 = vcmp.ge.f32.partialorder %v1122, 0.0
      %vm1453 = vcmp.ge.f32.partialorder %v1125, 0.0
      %vm1454 = vcmp.ge.f32.partialorder %v1130, 0.0
      %vm1455 = vcmp.ge.f32.partialorder %v1133, 0.0
      %vm1456 = vcmp.ge.f32.partialorder %v1138, 0.0
      %vm1457 = vcmp.ge.f32.partialorder %v1141, 0.0
      %vm1458 = vcmp.ge.f32.partialorder %v1146, 0.0
      %vm1459 = vcmp.ge.f32.partialorder %v1149, 0.0
      %vm1460 = vcmp.ge.f32.partialorder %v1154, 0.0
      %vm1461 = vcmp.ge.f32.partialorder %v1157, 0.0
      %vm1462 = vcmp.ge.f32.partialorder %v1162, 0.0
      %vm1463 = vcmp.ge.f32.partialorder %v1165, 0.0
      %vm1464 = vcmp.ge.f32.partialorder %v1170, 0.0
      %vm1465 = vcmp.ge.f32.partialorder %v1173, 0.0
      %vm1466 = vcmp.ge.f32.partialorder %v1178, 0.0
      %vm1467 = vcmp.ge.f32.partialorder %v1181, 0.0
      %vm1468 = vcmp.ge.f32.partialorder %v1186, 0.0
      %vm1469 = vcmp.ge.f32.partialorder %v1189, 0.0
      %vm1470 = vcmp.ge.f32.partialorder %v1194, 0.0
      %vm1471 = vcmp.ge.f32.partialorder %v1197, 0.0
      %vm1472 = vcmp.ge.f32.partialorder %v1202, 0.0
      %vm1473 = vcmp.ge.f32.partialorder %v1205, 0.0
      %vm1474 = vcmp.ge.f32.partialorder %v1210, 0.0
      %vm1475 = vcmp.ge.f32.partialorder %v1213, 0.0
      %vm1476 = vcmp.ge.f32.partialorder %v1218, 0.0
      %vm1477 = vcmp.ge.f32.partialorder %v1221, 0.0
      %vm1478 = vcmp.ge.f32.partialorder %v1226, 0.0
      %vm1479 = vcmp.ge.f32.partialorder %v1229, 0.0
      %vm1480 = vcmp.ge.f32.partialorder %v1234, 0.0
      %vm1481 = vcmp.ge.f32.partialorder %v1237, 0.0
      %vm1482 = vcmp.ge.f32.partialorder %v1242, 0.0
      %vm1483 = vcmp.ge.f32.partialorder %v1245, 0.0
      %vm1484 = vcmp.ge.f32.partialorder %v1250, 0.0
      %vm1485 = vcmp.ge.f32.partialorder %v1253, 0.0
      %vm1486 = vcmp.ge.f32.partialorder %v1258, 0.0
      %vm1487 = vcmp.ge.f32.partialorder %v1261, 0.0
      %vm1488 = vcmp.ge.f32.partialorder %v1266, 0.0
      %vm1489 = vcmp.ge.f32.partialorder %v1269, 0.0
      %vm1490 = vcmp.ge.f32.partialorder %v1274, 0.0
      %vm1491 = vcmp.ge.f32.partialorder %v1277, 0.0
      %vm1492 = vcmp.ge.f32.partialorder %v1282, 0.0
      %vm1493 = vcmp.ge.f32.partialorder %v1285, 0.0
      %vm1494 = vcmp.ge.f32.partialorder %v1290, 0.0
      %vm1495 = vcmp.ge.f32.partialorder %v1293, 0.0
      %vm1496 = vcmp.ge.f32.partialorder %v1298, 0.0
      %vm1497 = vcmp.ge.f32.partialorder %v1301, 0.0
      %vm1498 = vcmp.ge.f32.partialorder %v1306, 0.0
      %vm1499 = vcmp.ge.f32.partialorder %v1309, 0.0
      %vm1500 = vcmp.ge.f32.partialorder %v1314, 0.0
      %vm1501 = vcmp.ge.f32.partialorder %v1317, 0.0
      %vm1502 = vcmp.ge.f32.partialorder %v1322, 0.0
      %vm1503 = vcmp.ge.f32.partialorder %v1325, 0.0
      %vm1504 = vcmp.ge.f32.partialorder %v1330, 0.0
      %vm1505 = vcmp.ge.f32.partialorder %v1333, 0.0
      %vm1506 = vcmp.ge.f32.partialorder %v1338, 0.0
      %vm1507 = vcmp.ge.f32.partialorder %v1341, 0.0
      %vm1508 = vcmp.ge.f32.partialorder %v1346, 0.0
      %vm1509 = vcmp.ge.f32.partialorder %v1349, 0.0
      %vm1510 = vcmp.ge.f32.partialorder %v1354, 0.0
      %vm1511 = vcmp.ge.f32.partialorder %v1357, 0.0
      %vm1512 = vcmp.ge.f32.partialorder %v1362, 0.0
      %vm1513 = vcmp.ge.f32.partialorder %v1365, 0.0
      %vm1514 = vcmp.ge.f32.partialorder %v1370, 0.0
      %vm1515 = vcmp.ge.f32.partialorder %v1373, 0.0
      %vm1516 = vcmp.ge.f32.partialorder %v1378, 0.0
      %vm1517 = vcmp.ge.f32.partialorder %v1381, 0.0
      %vm1518 = vcmp.ge.f32.partialorder %v1386, 0.0
      %vm1519 = vcmp.ge.f32.partialorder %v1389, 0.0
      %v1520 = vmul.f32 %v882, 0.2
      %v1521 = vmul.f32 %v885, 0.2
      %v1522 = vmul.f32 %v890, 0.2
      %v1523 = vmul.f32 %v893, 0.2
      %v1524 = vmul.f32 %v898, 0.2
      %v1525 = vmul.f32 %v901, 0.2
      %v1526 = vmul.f32 %v906, 0.2
      %v1527 = vmul.f32 %v909, 0.2
      %v1528 = vmul.f32 %v914, 0.2
      %v1529 = vmul.f32 %v917, 0.2
      %v1530 = vmul.f32 %v922, 0.2
      %v1531 = vmul.f32 %v925, 0.2
      %v1532 = vmul.f32 %v930, 0.2
      %v1533 = vmul.f32 %v933, 0.2
      %v1534 = vmul.f32 %v938, 0.2
      %v1535 = vmul.f32 %v941, 0.2
      %v1536 = vmul.f32 %v946, 0.2
      %v1537 = vmul.f32 %v949, 0.2
      %v1538 = vmul.f32 %v954, 0.2
      %v1539 = vmul.f32 %v957, 0.2
      %v1540 = vmul.f32 %v962, 0.2
      %v1541 = vmul.f32 %v965, 0.2
      %v1542 = vmul.f32 %v970, 0.2
      %v1543 = vmul.f32 %v973, 0.2
      %v1544 = vmul.f32 %v978, 0.2
      %v1545 = vmul.f32 %v981, 0.2
      %v1546 = vmul.f32 %v986, 0.2
      %v1547 = vmul.f32 %v989, 0.2
      %v1548 = vmul.f32 %v994, 0.2
      %v1549 = vmul.f32 %v997, 0.2
      %v1550 = vmul.f32 %v1002, 0.2
      %v1551 = vmul.f32 %v1005, 0.2
      %v1552 = vmul.f32 %v1010, 0.2
      %v1553 = vmul.f32 %v1013, 0.2
      %v1554 = vmul.f32 %v1018, 0.2
      %v1555 = vmul.f32 %v1021, 0.2
      %v1556 = vmul.f32 %v1026, 0.2
      %v1557 = vmul.f32 %v1029, 0.2
      %v1558 = vmul.f32 %v1034, 0.2
      %v1559 = vmul.f32 %v1037, 0.2
      %v1560 = vmul.f32 %v1042, 0.2
      %v1561 = vmul.f32 %v1045, 0.2
      %v1562 = vmul.f32 %v1050, 0.2
      %v1563 = vmul.f32 %v1053, 0.2
      %v1564 = vmul.f32 %v1058, 0.2
      %v1565 = vmul.f32 %v1061, 0.2
      %v1566 = vmul.f32 %v1066, 0.2
      %v1567 = vmul.f32 %v1069, 0.2
      %v1568 = vmul.f32 %v1074, 0.2
      %v1569 = vmul.f32 %v1077, 0.2
      %v1570 = vmul.f32 %v1082, 0.2
      %v1571 = vmul.f32 %v1085, 0.2
      %v1572 = vmul.f32 %v1090, 0.2
      %v1573 = vmul.f32 %v1093, 0.2
      %v1574 = vmul.f32 %v1098, 0.2
      %v1575 = vmul.f32 %v1101, 0.2
      %v1576 = vmul.f32 %v1106, 0.2
      %v1577 = vmul.f32 %v1109, 0.2
      %v1578 = vmul.f32 %v1114, 0.2
      %v1579 = vmul.f32 %v1117, 0.2
      %v1580 = vmul.f32 %v1122, 0.2
      %v1581 = vmul.f32 %v1125, 0.2
      %v1582 = vmul.f32 %v1130, 0.2
      %v1583 = vmul.f32 %v1133, 0.2
      %v1584 = vmul.f32 %v1138, 0.2
      %v1585 = vmul.f32 %v1141, 0.2
      %v1586 = vmul.f32 %v1146, 0.2
      %v1587 = vmul.f32 %v1149, 0.2
      %v1588 = vmul.f32 %v1154, 0.2
      %v1589 = vmul.f32 %v1157, 0.2
      %v1590 = vmul.f32 %v1162, 0.2
      %v1591 = vmul.f32 %v1165, 0.2
      %v1592 = vmul.f32 %v1170, 0.2
      %v1593 = vmul.f32 %v1173, 0.2
      %v1594 = vmul.f32 %v1178, 0.2
      %v1595 = vmul.f32 %v1181, 0.2
      %v1596 = vmul.f32 %v1186, 0.2
      %v1597 = vmul.f32 %v1189, 0.2
      %v1598 = vmul.f32 %v1194, 0.2
      %v1599 = vmul.f32 %v1197, 0.2
      %v1600 = vmul.f32 %v1202, 0.2
      %v1601 = vmul.f32 %v1205, 0.2
      %v1602 = vmul.f32 %v1210, 0.2
      %v1603 = vmul.f32 %v1213, 0.2
      %v1604 = vmul.f32 %v1218, 0.2
      %v1605 = vmul.f32 %v1221, 0.2
      %v1606 = vmul.f32 %v1226, 0.2
      %v1607 = vmul.f32 %v1229, 0.2
      %v1608 = vmul.f32 %v1234, 0.2
      %v1609 = vmul.f32 %v1237, 0.2
      %v1610 = vmul.f32 %v1242, 0.2
      %v1611 = vmul.f32 %v1245, 0.2
      %v1612 = vmul.f32 %v1250, 0.2
      %v1613 = vmul.f32 %v1253, 0.2
      %v1614 = vmul.f32 %v1258, 0.2
      %v1615 = vmul.f32 %v1261, 0.2
      %v1616 = vmul.f32 %v1266, 0.2
      %v1617 = vmul.f32 %v1269, 0.2
      %v1618 = vmul.f32 %v1274, 0.2
      %v1619 = vmul.f32 %v1277, 0.2
      %v1620 = vmul.f32 %v1282, 0.2
      %v1621 = vmul.f32 %v1285, 0.2
      %v1622 = vmul.f32 %v1290, 0.2
      %v1623 = vmul.f32 %v1293, 0.2
      %v1624 = vmul.f32 %v1298, 0.2
      %v1625 = vmul.f32 %v1301, 0.2
      %v1626 = vmul.f32 %v1306, 0.2
      %v1627 = vmul.f32 %v1309, 0.2
      %v1628 = vmul.f32 %v1314, 0.2
      %v1629 = vmul.f32 %v1317, 0.2
      %v1630 = vmul.f32 %v1322, 0.2
      %v1631 = vmul.f32 %v1325, 0.2
      %v1632 = vmul.f32 %v1330, 0.2
      %v1633 = vmul.f32 %v1333, 0.2
      %v1634 = vmul.f32 %v1338, 0.2
      %v1635 = vmul.f32 %v1341, 0.2
      %v1636 = vmul.f32 %v1346, 0.2
      %v1637 = vmul.f32 %v1349, 0.2
      %v1638 = vmul.f32 %v1354, 0.2
      %v1639 = vmul.f32 %v1357, 0.2
      %v1640 = vmul.f32 %v1362, 0.2
      %v1641 = vmul.f32 %v1365, 0.2
      %v1642 = vmul.f32 %v1370, 0.2
      %v1643 = vmul.f32 %v1373, 0.2
      %v1644 = vmul.f32 %v1378, 0.2
      %v1645 = vmul.f32 %v1381, 0.2
      %v1646 = vmul.f32 %v1386, 0.2
      %v1647 = vmul.f32 %v1389, 0.2
      %v1648 = vsel %vm1392, %v882, %v1520
      %v1649 = vsel %vm1393, %v885, %v1521
      %v1650 = vsel %vm1394, %v890, %v1522
      %v1651 = vsel %vm1395, %v893, %v1523
      %v1652 = vsel %vm1396, %v898, %v1524
      %v1653 = vsel %vm1397, %v901, %v1525
      %v1654 = vsel %vm1398, %v906, %v1526
      %v1655 = vsel %vm1399, %v909, %v1527
      %v1656 = vsel %vm1400, %v914, %v1528
      %v1657 = vsel %vm1401, %v917, %v1529
      %v1658 = vsel %vm1402, %v922, %v1530
      %v1659 = vsel %vm1403, %v925, %v1531
      %v1660 = vsel %vm1404, %v930, %v1532
      %v1661 = vsel %vm1405, %v933, %v1533
      %v1662 = vsel %vm1406, %v938, %v1534
      %v1663 = vsel %vm1407, %v941, %v1535
      %v1664 = vsel %vm1408, %v946, %v1536
      %v1665 = vsel %vm1409, %v949, %v1537
      %v1666 = vsel %vm1410, %v954, %v1538
      %v1667 = vsel %vm1411, %v957, %v1539
      %v1668 = vsel %vm1412, %v962, %v1540
      %v1669 = vsel %vm1413, %v965, %v1541
      %v1670 = vsel %vm1414, %v970, %v1542
      %v1671 = vsel %vm1415, %v973, %v1543
      %v1672 = vsel %vm1416, %v978, %v1544
      %v1673 = vsel %vm1417, %v981, %v1545
      %v1674 = vsel %vm1418, %v986, %v1546
      %v1675 = vsel %vm1419, %v989, %v1547
      %v1676 = vsel %vm1420, %v994, %v1548
      %v1677 = vsel %vm1421, %v997, %v1549
      %v1678 = vsel %vm1422, %v1002, %v1550
      %v1679 = vsel %vm1423, %v1005, %v1551
      %v1680 = vsel %vm1424, %v1010, %v1552
      %v1681 = vsel %vm1425, %v1013, %v1553
      %v1682 = vsel %vm1426, %v1018, %v1554
      %v1683 = vsel %vm1427, %v1021, %v1555
      %v1684 = vsel %vm1428, %v1026, %v1556
      %v1685 = vsel %vm1429, %v1029, %v1557
      %v1686 = vsel %vm1430, %v1034, %v1558
      %v1687 = vsel %vm1431, %v1037, %v1559
      %v1688 = vsel %vm1432, %v1042, %v1560
      %v1689 = vsel %vm1433, %v1045, %v1561
      %v1690 = vsel %vm1434, %v1050, %v1562
      %v1691 = vsel %vm1435, %v1053, %v1563
      %v1692 = vsel %vm1436, %v1058, %v1564
      %v1693 = vsel %vm1437, %v1061, %v1565
      %v1694 = vsel %vm1438, %v1066, %v1566
      %v1695 = vsel %vm1439, %v1069, %v1567
      %v1696 = vsel %vm1440, %v1074, %v1568
      %v1697 = vsel %vm1441, %v1077, %v1569
      %v1698 = vsel %vm1442, %v1082, %v1570
      %v1699 = vsel %vm1443, %v1085, %v1571
      %v1700 = vsel %vm1444, %v1090, %v1572
      %v1701 = vsel %vm1445, %v1093, %v1573
      %v1702 = vsel %vm1446, %v1098, %v1574
      %v1703 = vsel %vm1447, %v1101, %v1575
      %v1704 = vsel %vm1448, %v1106, %v1576
      %v1705 = vsel %vm1449, %v1109, %v1577
      %v1706 = vsel %vm1450, %v1114, %v1578
      %v1707 = vsel %vm1451, %v1117, %v1579
      %v1708 = vsel %vm1452, %v1122, %v1580
      %v1709 = vsel %vm1453, %v1125, %v1581
      %v1710 = vsel %vm1454, %v1130, %v1582
      %v1711 = vsel %vm1455, %v1133, %v1583
      %v1712 = vsel %vm1456, %v1138, %v1584
      %v1713 = vsel %vm1457, %v1141, %v1585
      %v1714 = vsel %vm1458, %v1146, %v1586
      %v1715 = vsel %vm1459, %v1149, %v1587
      %v1716 = vsel %vm1460, %v1154, %v1588
      %v1717 = vsel %vm1461, %v1157, %v1589
      %v1718 = vsel %vm1462, %v1162, %v1590
      %v1719 = vsel %vm1463, %v1165, %v1591
      %v1720 = vsel %vm1464, %v1170, %v1592
      %v1721 = vsel %vm1465, %v1173, %v1593
      %v1722 = vsel %vm1466, %v1178, %v1594
      %v1723 = vsel %vm1467, %v1181, %v1595
      %v1724 = vsel %vm1468, %v1186, %v1596
      %v1725 = vsel %vm1469, %v1189, %v1597
      %v1726 = vsel %vm1470, %v1194, %v1598
      %v1727 = vsel %vm1471, %v1197, %v1599
      %v1728 = vsel %vm1472, %v1202, %v1600
      %v1729 = vsel %vm1473, %v1205, %v1601
      %v1730 = vsel %vm1474, %v1210, %v1602
      %v1731 = vsel %vm1475, %v1213, %v1603
      %v1732 = vsel %vm1476, %v1218, %v1604
      %v1733 = vsel %vm1477, %v1221, %v1605
      %v1734 = vsel %vm1478, %v1226, %v1606
      %v1735 = vsel %vm1479, %v1229, %v1607
      %v1736 = vsel %vm1480, %v1234, %v1608
      %v1737 = vsel %vm1481, %v1237, %v1609
      %v1738 = vsel %vm1482, %v1242, %v1610
      %v1739 = vsel %vm1483, %v1245, %v1611
      %v1740 = vsel %vm1484, %v1250, %v1612
      %v1741 = vsel %vm1485, %v1253, %v1613
      %v1742 = vsel %vm1486, %v1258, %v1614
      %v1743 = vsel %vm1487, %v1261, %v1615
      %v1744 = vsel %vm1488, %v1266, %v1616
      %v1745 = vsel %vm1489, %v1269, %v1617
      %v1746 = vsel %vm1490, %v1274, %v1618
      %v1747 = vsel %vm1491, %v1277, %v1619
      %v1748 = vsel %vm1492, %v1282, %v1620
      %v1749 = vsel %vm1493, %v1285, %v1621
      %v1750 = vsel %vm1494, %v1290, %v1622
      %v1751 = vsel %vm1495, %v1293, %v1623
      %v1752 = vsel %vm1496, %v1298, %v1624
      %v1753 = vsel %vm1497, %v1301, %v1625
      %v1754 = vsel %vm1498, %v1306, %v1626
      %v1755 = vsel %vm1499, %v1309, %v1627
      %v1756 = vsel %vm1500, %v1314, %v1628
      %v1757 = vsel %vm1501, %v1317, %v1629
      %v1758 = vsel %vm1502, %v1322, %v1630
      %v1759 = vsel %vm1503, %v1325, %v1631
      %v1760 = vsel %vm1504, %v1330, %v1632
      %v1761 = vsel %vm1505, %v1333, %v1633
      %v1762 = vsel %vm1506, %v1338, %v1634
      %v1763 = vsel %vm1507, %v1341, %v1635
      %v1764 = vsel %vm1508, %v1346, %v1636
      %v1765 = vsel %vm1509, %v1349, %v1637
      %v1766 = vsel %vm1510, %v1354, %v1638
      %v1767 = vsel %vm1511, %v1357, %v1639
      %v1768 = vsel %vm1512, %v1362, %v1640
      %v1769 = vsel %vm1513, %v1365, %v1641
      %v1770 = vsel %vm1514, %v1370, %v1642
      %v1771 = vsel %vm1515, %v1373, %v1643
      %v1772 = vsel %vm1516, %v1378, %v1644
      %v1773 = vsel %vm1517, %v1381, %v1645
      %v1774 = vsel %vm1518, %v1386, %v1646
      %v1775 = vsel %vm1519, %v1389, %v1647
      %v1776 = vpack.c.bf16 %v1649, %v1648
      %v1777 = vpack.c.bf16 %v1651, %v1650
      %v1778 = vpack.c.bf16 %v1653, %v1652
      %v1779 = vpack.c.bf16 %v1655, %v1654
      %v1780 = vpack.c.bf16 %v1657, %v1656
      %v1781 = vpack.c.bf16 %v1659, %v1658
      %v1782 = vpack.c.bf16 %v1661, %v1660
      %v1783 = vpack.c.bf16 %v1663, %v1662
      %v1784 = vpack.c.bf16 %v1665, %v1664
      %v1785 = vpack.c.bf16 %v1667, %v1666
      %v1786 = vpack.c.bf16 %v1669, %v1668
      %v1787 = vpack.c.bf16 %v1671, %v1670
      %v1788 = vpack.c.bf16 %v1673, %v1672
      %v1789 = vpack.c.bf16 %v1675, %v1674
      %v1790 = vpack.c.bf16 %v1677, %v1676
      %v1791 = vpack.c.bf16 %v1679, %v1678
      %v1792 = vpack.c.bf16 %v1681, %v1680
      %v1793 = vpack.c.bf16 %v1683, %v1682
      %v1794 = vpack.c.bf16 %v1685, %v1684
      %v1795 = vpack.c.bf16 %v1687, %v1686
      %v1796 = vpack.c.bf16 %v1689, %v1688
      %v1797 = vpack.c.bf16 %v1691, %v1690
      %v1798 = vpack.c.bf16 %v1693, %v1692
      %v1799 = vpack.c.bf16 %v1695, %v1694
      %v1800 = vpack.c.bf16 %v1697, %v1696
      %v1801 = vpack.c.bf16 %v1699, %v1698
      %v1802 = vpack.c.bf16 %v1701, %v1700
      %v1803 = vpack.c.bf16 %v1703, %v1702
      %v1804 = vpack.c.bf16 %v1705, %v1704
      %v1805 = vpack.c.bf16 %v1707, %v1706
      %v1806 = vpack.c.bf16 %v1709, %v1708
      %v1807 = vpack.c.bf16 %v1711, %v1710
      %v1808 = vpack.c.bf16 %v1713, %v1712
      %v1809 = vpack.c.bf16 %v1715, %v1714
      %v1810 = vpack.c.bf16 %v1717, %v1716
      %v1811 = vpack.c.bf16 %v1719, %v1718
      %v1812 = vpack.c.bf16 %v1721, %v1720
      %v1813 = vpack.c.bf16 %v1723, %v1722
      %v1814 = vpack.c.bf16 %v1725, %v1724
      %v1815 = vpack.c.bf16 %v1727, %v1726
      %v1816 = vpack.c.bf16 %v1729, %v1728
      %v1817 = vpack.c.bf16 %v1731, %v1730
      %v1818 = vpack.c.bf16 %v1733, %v1732
      %v1819 = vpack.c.bf16 %v1735, %v1734
      %v1820 = vpack.c.bf16 %v1737, %v1736
      %v1821 = vpack.c.bf16 %v1739, %v1738
      %v1822 = vpack.c.bf16 %v1741, %v1740
      %v1823 = vpack.c.bf16 %v1743, %v1742
      %v1824 = vpack.c.bf16 %v1745, %v1744
      %v1825 = vpack.c.bf16 %v1747, %v1746
      %v1826 = vpack.c.bf16 %v1749, %v1748
      %v1827 = vpack.c.bf16 %v1751, %v1750
      %v1828 = vpack.c.bf16 %v1753, %v1752
      %v1829 = vpack.c.bf16 %v1755, %v1754
      %v1830 = vpack.c.bf16 %v1757, %v1756
      %v1831 = vpack.c.bf16 %v1759, %v1758
      %v1832 = vpack.c.bf16 %v1761, %v1760
      %v1833 = vpack.c.bf16 %v1763, %v1762
      %v1834 = vpack.c.bf16 %v1765, %v1764
      %v1835 = vpack.c.bf16 %v1767, %v1766
      %v1836 = vpack.c.bf16 %v1769, %v1768
      %v1837 = vpack.c.bf16 %v1771, %v1770
      %v1838 = vpack.c.bf16 %v1773, %v1772
      %v1839 = vpack.c.bf16 %v1775, %v1774
      %v1904 = vunpack.c.l.b16 %v1776
      %v1905 = vunpack.c.h.b16 %v1776
      %v1906 = vunpack.c.l.b16 %v1777
      %v1907 = vunpack.c.h.b16 %v1777
      %v1908 = vunpack.c.l.b16 %v1778
      %v1909 = vunpack.c.h.b16 %v1778
      %v1910 = vunpack.c.l.b16 %v1779
      %v1911 = vunpack.c.h.b16 %v1779
      %v1912 = vunpack.c.l.b16 %v1780
      %v1913 = vunpack.c.h.b16 %v1780
      %v1914 = vunpack.c.l.b16 %v1781
      %v1915 = vunpack.c.h.b16 %v1781
      %v1916 = vunpack.c.l.b16 %v1782
      %v1917 = vunpack.c.h.b16 %v1782
      %v1918 = vunpack.c.l.b16 %v1783
      %v1919 = vunpack.c.h.b16 %v1783
      %v1920 = vunpack.c.l.b16 %v1784
      %v1921 = vunpack.c.h.b16 %v1784
      %v1922 = vunpack.c.l.b16 %v1785
      %v1923 = vunpack.c.h.b16 %v1785
      %v1924 = vunpack.c.l.b16 %v1786
      %v1925 = vunpack.c.h.b16 %v1786
      %v1926 = vunpack.c.l.b16 %v1787
      %v1927 = vunpack.c.h.b16 %v1787
      %v1928 = vunpack.c.l.b16 %v1788
      %v1929 = vunpack.c.h.b16 %v1788
      %v1930 = vunpack.c.l.b16 %v1789
      %v1931 = vunpack.c.h.b16 %v1789
      %v1932 = vunpack.c.l.b16 %v1790
      %v1933 = vunpack.c.h.b16 %v1790
      %v1934 = vunpack.c.l.b16 %v1791
      %v1935 = vunpack.c.h.b16 %v1791
      %v1936 = vunpack.c.l.b16 %v1792
      %v1937 = vunpack.c.h.b16 %v1792
      %v1938 = vunpack.c.l.b16 %v1793
      %v1939 = vunpack.c.h.b16 %v1793
      %v1940 = vunpack.c.l.b16 %v1794
      %v1941 = vunpack.c.h.b16 %v1794
      %v1942 = vunpack.c.l.b16 %v1795
      %v1943 = vunpack.c.h.b16 %v1795
      %v1944 = vunpack.c.l.b16 %v1796
      %v1945 = vunpack.c.h.b16 %v1796
      %v1946 = vunpack.c.l.b16 %v1797
      %v1947 = vunpack.c.h.b16 %v1797
      %v1948 = vunpack.c.l.b16 %v1798
      %v1949 = vunpack.c.h.b16 %v1798
      %v1950 = vunpack.c.l.b16 %v1799
      %v1951 = vunpack.c.h.b16 %v1799
      %v1952 = vunpack.c.l.b16 %v1800
      %v1953 = vunpack.c.h.b16 %v1800
      %v1954 = vunpack.c.l.b16 %v1801
      %v1955 = vunpack.c.h.b16 %v1801
      %v1956 = vunpack.c.l.b16 %v1802
      %v1957 = vunpack.c.h.b16 %v1802
      %v1958 = vunpack.c.l.b16 %v1803
      %v1959 = vunpack.c.h.b16 %v1803
      %v1960 = vunpack.c.l.b16 %v1804
      %v1961 = vunpack.c.h.b16 %v1804
      %v1962 = vunpack.c.l.b16 %v1805
      %v1963 = vunpack.c.h.b16 %v1805
      %v1964 = vunpack.c.l.b16 %v1806
      %v1965 = vunpack.c.h.b16 %v1806
      %v1966 = vunpack.c.l.b16 %v1807
      %v1967 = vunpack.c.h.b16 %v1807
      %v1968 = vunpack.c.l.b16 %v1808
      %v1969 = vunpack.c.h.b16 %v1808
      %v1970 = vunpack.c.l.b16 %v1809
      %v1971 = vunpack.c.h.b16 %v1809
      %v1972 = vunpack.c.l.b16 %v1810
      %v1973 = vunpack.c.h.b16 %v1810
      %v1974 = vunpack.c.l.b16 %v1811
      %v1975 = vunpack.c.h.b16 %v1811
      %v1976 = vunpack.c.l.b16 %v1812
      %v1977 = vunpack.c.h.b16 %v1812
      %v1978 = vunpack.c.l.b16 %v1813
      %v1979 = vunpack.c.h.b16 %v1813
      %v1980 = vunpack.c.l.b16 %v1814
      %v1981 = vunpack.c.h.b16 %v1814
      %v1982 = vunpack.c.l.b16 %v1815
      %v1983 = vunpack.c.h.b16 %v1815
      %v1984 = vunpack.c.l.b16 %v1816
      %v1985 = vunpack.c.h.b16 %v1816
      %v1986 = vunpack.c.l.b16 %v1817
      %v1987 = vunpack.c.h.b16 %v1817
      %v1988 = vunpack.c.l.b16 %v1818
      %v1989 = vunpack.c.h.b16 %v1818
      %v1990 = vunpack.c.l.b16 %v1819
      %v1991 = vunpack.c.h.b16 %v1819
      %v1992 = vunpack.c.l.b16 %v1820
      %v1993 = vunpack.c.h.b16 %v1820
      %v1994 = vunpack.c.l.b16 %v1821
      %v1995 = vunpack.c.h.b16 %v1821
      %v1996 = vunpack.c.l.b16 %v1822
      %v1997 = vunpack.c.h.b16 %v1822
      %v1998 = vunpack.c.l.b16 %v1823
      %v1999 = vunpack.c.h.b16 %v1823
      %v2000 = vunpack.c.l.b16 %v1824
      %v2001 = vunpack.c.h.b16 %v1824
      %v2002 = vunpack.c.l.b16 %v1825
      %v2003 = vunpack.c.h.b16 %v1825
      %v2004 = vunpack.c.l.b16 %v1826
      %v2005 = vunpack.c.h.b16 %v1826
      %v2006 = vunpack.c.l.b16 %v1827
      %v2007 = vunpack.c.h.b16 %v1827
      %v2008 = vunpack.c.l.b16 %v1828
      %v2009 = vunpack.c.h.b16 %v1828
      %v2010 = vunpack.c.l.b16 %v1829
      %v2011 = vunpack.c.h.b16 %v1829
      %v2012 = vunpack.c.l.b16 %v1830
      %v2013 = vunpack.c.h.b16 %v1830
      %v2014 = vunpack.c.l.b16 %v1831
      %v2015 = vunpack.c.h.b16 %v1831
      %v2016 = vunpack.c.l.b16 %v1832
      %v2017 = vunpack.c.h.b16 %v1832
      %v2018 = vunpack.c.l.b16 %v1833
      %v2019 = vunpack.c.h.b16 %v1833
      %v2020 = vunpack.c.l.b16 %v1834
      %v2021 = vunpack.c.h.b16 %v1834
      %v2022 = vunpack.c.l.b16 %v1835
      %v2023 = vunpack.c.h.b16 %v1835
      %v2024 = vunpack.c.l.b16 %v1836
      %v2025 = vunpack.c.h.b16 %v1836
      %v2026 = vunpack.c.l.b16 %v1837
      %v2027 = vunpack.c.h.b16 %v1837
      %v2028 = vunpack.c.l.b16 %v1838
      %v2029 = vunpack.c.h.b16 %v1838
      %v2030 = vunpack.c.l.b16 %v1839
      %v2031 = vunpack.c.h.b16 %v1839
      %v2032 = vpack.c.b16 %v1904, %v1904
      %v2033 = vpack.c.b16 %v1905, %v1905
      %v2034 = vpack.c.b16 %v1906, %v1906
      %v2035 = vpack.c.b16 %v1907, %v1907
      %v2036 = vpack.c.b16 %v1908, %v1908
      %v2037 = vpack.c.b16 %v1909, %v1909
      %v2038 = vpack.c.b16 %v1910, %v1910
      %v2039 = vpack.c.b16 %v1911, %v1911
      %v2040 = vpack.c.b16 %v1912, %v1912
      %v2041 = vpack.c.b16 %v1913, %v1913
      %v2042 = vpack.c.b16 %v1914, %v1914
      %v2043 = vpack.c.b16 %v1915, %v1915
      %v2044 = vpack.c.b16 %v1916, %v1916
      %v2045 = vpack.c.b16 %v1917, %v1917
      %v2046 = vpack.c.b16 %v1918, %v1918
      %v2047 = vpack.c.b16 %v1919, %v1919
      %v2048 = vpack.c.b16 %v1920, %v1920
      %v2049 = vpack.c.b16 %v1921, %v1921
      %v2050 = vpack.c.b16 %v1922, %v1922
      %v2051 = vpack.c.b16 %v1923, %v1923
      %v2052 = vpack.c.b16 %v1924, %v1924
      %v2053 = vpack.c.b16 %v1925, %v1925
      %v2054 = vpack.c.b16 %v1926, %v1926
      %v2055 = vpack.c.b16 %v1927, %v1927
      %v2056 = vpack.c.b16 %v1928, %v1928
      %v2057 = vpack.c.b16 %v1929, %v1929
      %v2058 = vpack.c.b16 %v1930, %v1930
      %v2059 = vpack.c.b16 %v1931, %v1931
      %v2060 = vpack.c.b16 %v1932, %v1932
      %v2061 = vpack.c.b16 %v1933, %v1933
      %v2062 = vpack.c.b16 %v1934, %v1934
      %v2063 = vpack.c.b16 %v1935, %v1935
      %v2064 = vpack.c.b16 %v1936, %v1936
      %v2065 = vpack.c.b16 %v1937, %v1937
      %v2066 = vpack.c.b16 %v1938, %v1938
      %v2067 = vpack.c.b16 %v1939, %v1939
      %v2068 = vpack.c.b16 %v1940, %v1940
      %v2069 = vpack.c.b16 %v1941, %v1941
      %v2070 = vpack.c.b16 %v1942, %v1942
      %v2071 = vpack.c.b16 %v1943, %v1943
      %v2072 = vpack.c.b16 %v1944, %v1944
      %v2073 = vpack.c.b16 %v1945, %v1945
      %v2074 = vpack.c.b16 %v1946, %v1946
      %v2075 = vpack.c.b16 %v1947, %v1947
      %v2076 = vpack.c.b16 %v1948, %v1948
      %v2077 = vpack.c.b16 %v1949, %v1949
      %v2078 = vpack.c.b16 %v1950, %v1950
      %v2079 = vpack.c.b16 %v1951, %v1951
      %v2080 = vpack.c.b16 %v1952, %v1952
      %v2081 = vpack.c.b16 %v1953, %v1953
      %v2082 = vpack.c.b16 %v1954, %v1954
      %v2083 = vpack.c.b16 %v1955, %v1955
      %v2084 = vpack.c.b16 %v1956, %v1956
      %v2085 = vpack.c.b16 %v1957, %v1957
      %v2086 = vpack.c.b16 %v1958, %v1958
      %v2087 = vpack.c.b16 %v1959, %v1959
      %v2088 = vpack.c.b16 %v1960, %v1960
      %v2089 = vpack.c.b16 %v1961, %v1961
      %v2090 = vpack.c.b16 %v1962, %v1962
      %v2091 = vpack.c.b16 %v1963, %v1963
      %v2092 = vpack.c.b16 %v1964, %v1964
      %v2093 = vpack.c.b16 %v1965, %v1965
      %v2094 = vpack.c.b16 %v1966, %v1966
      %v2095 = vpack.c.b16 %v1967, %v1967
      %v2096 = vpack.c.b16 %v1968, %v1968
      %v2097 = vpack.c.b16 %v1969, %v1969
      %v2098 = vpack.c.b16 %v1970, %v1970
      %v2099 = vpack.c.b16 %v1971, %v1971
      %v2100 = vpack.c.b16 %v1972, %v1972
      %v2101 = vpack.c.b16 %v1973, %v1973
      %v2102 = vpack.c.b16 %v1974, %v1974
      %v2103 = vpack.c.b16 %v1975, %v1975
      %v2104 = vpack.c.b16 %v1976, %v1976
      %v2105 = vpack.c.b16 %v1977, %v1977
      %v2106 = vpack.c.b16 %v1978, %v1978
      %v2107 = vpack.c.b16 %v1979, %v1979
      %v2108 = vpack.c.b16 %v1980, %v1980
      %v2109 = vpack.c.b16 %v1981, %v1981
      %v2110 = vpack.c.b16 %v1982, %v1982
      %v2111 = vpack.c.b16 %v1983, %v1983
      %v2112 = vpack.c.b16 %v1984, %v1984
      %v2113 = vpack.c.b16 %v1985, %v1985
      %v2114 = vpack.c.b16 %v1986, %v1986
      %v2115 = vpack.c.b16 %v1987, %v1987
      %v2116 = vpack.c.b16 %v1988, %v1988
      %v2117 = vpack.c.b16 %v1989, %v1989
      %v2118 = vpack.c.b16 %v1990, %v1990
      %v2119 = vpack.c.b16 %v1991, %v1991
      %v2120 = vpack.c.b16 %v1992, %v1992
      %v2121 = vpack.c.b16 %v1993, %v1993
      %v2122 = vpack.c.b16 %v1994, %v1994
      %v2123 = vpack.c.b16 %v1995, %v1995
      %v2124 = vpack.c.b16 %v1996, %v1996
      %v2125 = vpack.c.b16 %v1997, %v1997
      %v2126 = vpack.c.b16 %v1998, %v1998
      %v2127 = vpack.c.b16 %v1999, %v1999
      %v2128 = vpack.c.b16 %v2000, %v2000
      %v2129 = vpack.c.b16 %v2001, %v2001
      %v2130 = vpack.c.b16 %v2002, %v2002
      %v2131 = vpack.c.b16 %v2003, %v2003
      %v2132 = vpack.c.b16 %v2004, %v2004
      %v2133 = vpack.c.b16 %v2005, %v2005
      %v2134 = vpack.c.b16 %v2006, %v2006
      %v2135 = vpack.c.b16 %v2007, %v2007
      %v2136 = vpack.c.b16 %v2008, %v2008
      %v2137 = vpack.c.b16 %v2009, %v2009
      %v2138 = vpack.c.b16 %v2010, %v2010
      %v2139 = vpack.c.b16 %v2011, %v2011
      %v2140 = vpack.c.b16 %v2012, %v2012
      %v2141 = vpack.c.b16 %v2013, %v2013
      %v2142 = vpack.c.b16 %v2014, %v2014
      %v2143 = vpack.c.b16 %v2015, %v2015
      %v2144 = vpack.c.b16 %v2016, %v2016
      %v2145 = vpack.c.b16 %v2017, %v2017
      %v2146 = vpack.c.b16 %v2018, %v2018
      %v2147 = vpack.c.b16 %v2019, %v2019
      %v2148 = vpack.c.b16 %v2020, %v2020
      %v2149 = vpack.c.b16 %v2021, %v2021
      %v2150 = vpack.c.b16 %v2022, %v2022
      %v2151 = vpack.c.b16 %v2023, %v2023
      %v2152 = vpack.c.b16 %v2024, %v2024
      %v2153 = vpack.c.b16 %v2025, %v2025
      %v2154 = vpack.c.b16 %v2026, %v2026
      %v2155 = vpack.c.b16 %v2027, %v2027
      %v2156 = vpack.c.b16 %v2028, %v2028
      %v2157 = vpack.c.b16 %v2029, %v2029
      %v2158 = vpack.c.b16 %v2030, %v2030
      %v2159 = vpack.c.b16 %v2031, %v2031
      %2288 = vst [vmem:[%s172] sm:$0xf] %v2032
      %2289 = vst [vmem:[%s172 + $0x4] sm:$0xf] %v2033
      %2290 = vst [vmem:[%s172 + $0x8] sm:$0xf] %v2034
      %2291 = vst [vmem:[%s172 + $0xc] sm:$0xf] %v2035
      %2292 = vst [vmem:[%s172 + $0x10] sm:$0xf] %v2036
      %2293 = vst [vmem:[%s172 + $0x14] sm:$0xf] %v2037
      %2294 = vst [vmem:[%s172 + $0x18] sm:$0xf] %v2038
      %2295 = vst [vmem:[%s172 + $0x1c] sm:$0xf] %v2039
      %2296 = vst [vmem:[%s172 + $0x20] sm:$0xf] %v2040
      %2297 = vst [vmem:[%s172 + $0x24] sm:$0xf] %v2041
      %2298 = vst [vmem:[%s172 + $0x28] sm:$0xf] %v2042
      %2299 = vst [vmem:[%s172 + $0x2c] sm:$0xf] %v2043
      %2300 = vst [vmem:[%s172 + $0x30] sm:$0xf] %v2044
      %2301 = vst [vmem:[%s172 + $0x34] sm:$0xf] %v2045
      %2302 = vst [vmem:[%s172 + $0x38] sm:$0xf] %v2046
      %2303 = vst [vmem:[%s172 + $0x3c] sm:$0xf] %v2047
      %2304 = vst [vmem:[%s172 + $0x40] sm:$0xf] %v2048
      %2305 = vst [vmem:[%s172 + $0x44] sm:$0xf] %v2049
      %2306 = vst [vmem:[%s172 + $0x48] sm:$0xf] %v2050
      %2307 = vst [vmem:[%s172 + $0x4c] sm:$0xf] %v2051
      %2308 = vst [vmem:[%s172 + $0x50] sm:$0xf] %v2052
      %2309 = vst [vmem:[%s172 + $0x54] sm:$0xf] %v2053
      %2310 = vst [vmem:[%s172 + $0x58] sm:$0xf] %v2054
      %2311 = vst [vmem:[%s172 + $0x5c] sm:$0xf] %v2055
      %2312 = vst [vmem:[%s172 + $0x60] sm:$0xf] %v2056
      %2313 = vst [vmem:[%s172 + $0x64] sm:$0xf] %v2057
      %2314 = vst [vmem:[%s172 + $0x68] sm:$0xf] %v2058
      %2315 = vst [vmem:[%s172 + $0x6c] sm:$0xf] %v2059
      %2316 = vst [vmem:[%s172 + $0x70] sm:$0xf] %v2060
      %2317 = vst [vmem:[%s172 + $0x74] sm:$0xf] %v2061
      %2318 = vst [vmem:[%s172 + $0x78] sm:$0xf] %v2062
      %2319 = vst [vmem:[%s172 + $0x7c] sm:$0xf] %v2063
      %2320 = vst [vmem:[%s172 + $0x80] sm:$0xf] %v2064
      %2321 = vst [vmem:[%s172 + $0x84] sm:$0xf] %v2065
      %2322 = vst [vmem:[%s172 + $0x88] sm:$0xf] %v2066
      %2323 = vst [vmem:[%s172 + $0x8c] sm:$0xf] %v2067
      %2324 = vst [vmem:[%s172 + $0x90] sm:$0xf] %v2068
      %2325 = vst [vmem:[%s172 + $0x94] sm:$0xf] %v2069
      %2326 = vst [vmem:[%s172 + $0x98] sm:$0xf] %v2070
      %2327 = vst [vmem:[%s172 + $0x9c] sm:$0xf] %v2071
      %2328 = vst [vmem:[%s172 + $0xa0] sm:$0xf] %v2072
      %2329 = vst [vmem:[%s172 + $0xa4] sm:$0xf] %v2073
      %2330 = vst [vmem:[%s172 + $0xa8] sm:$0xf] %v2074
      %2331 = vst [vmem:[%s172 + $0xac] sm:$0xf] %v2075
      %2332 = vst [vmem:[%s172 + $0xb0] sm:$0xf] %v2076
      %2333 = vst [vmem:[%s172 + $0xb4] sm:$0xf] %v2077
      %2334 = vst [vmem:[%s172 + $0xb8] sm:$0xf] %v2078
      %2335 = vst [vmem:[%s172 + $0xbc] sm:$0xf] %v2079
      %2336 = vst [vmem:[%s172 + $0xc0] sm:$0xf] %v2080
      %2337 = vst [vmem:[%s172 + $0xc4] sm:$0xf] %v2081
      %2338 = vst [vmem:[%s172 + $0xc8] sm:$0xf] %v2082
      %2339 = vst [vmem:[%s172 + $0xcc] sm:$0xf] %v2083
      %2340 = vst [vmem:[%s172 + $0xd0] sm:$0xf] %v2084
      %2341 = vst [vmem:[%s172 + $0xd4] sm:$0xf] %v2085
      %2342 = vst [vmem:[%s172 + $0xd8] sm:$0xf] %v2086
      %2343 = vst [vmem:[%s172 + $0xdc] sm:$0xf] %v2087
      %2344 = vst [vmem:[%s172 + $0xe0] sm:$0xf] %v2088
      %2345 = vst [vmem:[%s172 + $0xe4] sm:$0xf] %v2089
      %2346 = vst [vmem:[%s172 + $0xe8] sm:$0xf] %v2090
      %2347 = vst [vmem:[%s172 + $0xec] sm:$0xf] %v2091
      %2348 = vst [vmem:[%s172 + $0xf0] sm:$0xf] %v2092
      %2349 = vst [vmem:[%s172 + $0xf4] sm:$0xf] %v2093
      %2350 = vst [vmem:[%s172 + $0xf8] sm:$0xf] %v2094
      %2351 = vst [vmem:[%s172 + $0xfc] sm:$0xf] %v2095
      %2352 = vst [vmem:[%s172 + $0x100] sm:$0xf] %v2096
      %2353 = vst [vmem:[%s172 + $0x104] sm:$0xf] %v2097
      %2354 = vst [vmem:[%s172 + $0x108] sm:$0xf] %v2098
      %2355 = vst [vmem:[%s172 + $0x10c] sm:$0xf] %v2099
      %2356 = vst [vmem:[%s172 + $0x110] sm:$0xf] %v2100
      %2357 = vst [vmem:[%s172 + $0x114] sm:$0xf] %v2101
      %2358 = vst [vmem:[%s172 + $0x118] sm:$0xf] %v2102
      %2359 = vst [vmem:[%s172 + $0x11c] sm:$0xf] %v2103
      %2360 = vst [vmem:[%s172 + $0x120] sm:$0xf] %v2104
      %2361 = vst [vmem:[%s172 + $0x124] sm:$0xf] %v2105
      %2362 = vst [vmem:[%s172 + $0x128] sm:$0xf] %v2106
      %2363 = vst [vmem:[%s172 + $0x12c] sm:$0xf] %v2107
      %2364 = vst [vmem:[%s172 + $0x130] sm:$0xf] %v2108
      %2365 = vst [vmem:[%s172 + $0x134] sm:$0xf] %v2109
      %2366 = vst [vmem:[%s172 + $0x138] sm:$0xf] %v2110
      %2367 = vst [vmem:[%s172 + $0x13c] sm:$0xf] %v2111
      %2368 = vst [vmem:[%s172 + $0x140] sm:$0xf] %v2112
      %2369 = vst [vmem:[%s172 + $0x144] sm:$0xf] %v2113
      %2370 = vst [vmem:[%s172 + $0x148] sm:$0xf] %v2114
      %2371 = vst [vmem:[%s172 + $0x14c] sm:$0xf] %v2115
      %2372 = vst [vmem:[%s172 + $0x150] sm:$0xf] %v2116
      %2373 = vst [vmem:[%s172 + $0x154] sm:$0xf] %v2117
      %2374 = vst [vmem:[%s172 + $0x158] sm:$0xf] %v2118
      %2375 = vst [vmem:[%s172 + $0x15c] sm:$0xf] %v2119
      %2376 = vst [vmem:[%s172 + $0x160] sm:$0xf] %v2120
      %2377 = vst [vmem:[%s172 + $0x164] sm:$0xf] %v2121
      %2378 = vst [vmem:[%s172 + $0x168] sm:$0xf] %v2122
      %2379 = vst [vmem:[%s172 + $0x16c] sm:$0xf] %v2123
      %2380 = vst [vmem:[%s172 + $0x170] sm:$0xf] %v2124
      %2381 = vst [vmem:[%s172 + $0x174] sm:$0xf] %v2125
      %2382 = vst [vmem:[%s172 + $0x178] sm:$0xf] %v2126
      %2383 = vst [vmem:[%s172 + $0x17c] sm:$0xf] %v2127
      %2384 = vst [vmem:[%s172 + $0x180] sm:$0xf] %v2128
      %2385 = vst [vmem:[%s172 + $0x184] sm:$0xf] %v2129
      %2386 = vst [vmem:[%s172 + $0x188] sm:$0xf] %v2130
      %2387 = vst [vmem:[%s172 + $0x18c] sm:$0xf] %v2131
      %2388 = vst [vmem:[%s172 + $0x190] sm:$0xf] %v2132
      %2389 = vst [vmem:[%s172 + $0x194] sm:$0xf] %v2133
      %2390 = vst [vmem:[%s172 + $0x198] sm:$0xf] %v2134
      %2391 = vst [vmem:[%s172 + $0x19c] sm:$0xf] %v2135
      %2392 = vst [vmem:[%s172 + $0x1a0] sm:$0xf] %v2136
      %2393 = vst [vmem:[%s172 + $0x1a4] sm:$0xf] %v2137
      %2394 = vst [vmem:[%s172 + $0x1a8] sm:$0xf] %v2138
      %2395 = vst [vmem:[%s172 + $0x1ac] sm:$0xf] %v2139
      %2396 = vst [vmem:[%s172 + $0x1b0] sm:$0xf] %v2140
      %2397 = vst [vmem:[%s172 + $0x1b4] sm:$0xf] %v2141
      %2398 = vst [vmem:[%s172 + $0x1b8] sm:$0xf] %v2142
      %2399 = vst [vmem:[%s172 + $0x1bc] sm:$0xf] %v2143
      %2400 = vst [vmem:[%s172 + $0x1c0] sm:$0xf] %v2144
      %2401 = vst [vmem:[%s172 + $0x1c4] sm:$0xf] %v2145
      %2402 = vst [vmem:[%s172 + $0x1c8] sm:$0xf] %v2146
      %2403 = vst [vmem:[%s172 + $0x1cc] sm:$0xf] %v2147
      %2404 = vst [vmem:[%s172 + $0x1d0] sm:$0xf] %v2148
      %2405 = vst [vmem:[%s172 + $0x1d4] sm:$0xf] %v2149
      %2406 = vst [vmem:[%s172 + $0x1d8] sm:$0xf] %v2150
      %2407 = vst [vmem:[%s172 + $0x1dc] sm:$0xf] %v2151
      %2408 = vst [vmem:[%s172 + $0x1e0] sm:$0xf] %v2152
      %2409 = vst [vmem:[%s172 + $0x1e4] sm:$0xf] %v2153
      %2410 = vst [vmem:[%s172 + $0x1e8] sm:$0xf] %v2154
      %2411 = vst [vmem:[%s172 + $0x1ec] sm:$0xf] %v2155
      %2412 = vst [vmem:[%s172 + $0x1f0] sm:$0xf] %v2156
      %2413 = vst [vmem:[%s172 + $0x1f4] sm:$0xf] %v2157
      %2414 = vst [vmem:[%s172 + $0x1f8] sm:$0xf] %v2158
      %2415 = vst [vmem:[%s172 + $0x1fc] sm:$0xf] %v2159
      %s2416 = smul.u32 128, %s14
      %p2417 = scmp.lt.s32.totalorder %s2416, 255
      %s2418 = scalar_select %p2417, %s2416, 255
      %s2419 = smul.addr %s2418, 4
      %s2420 = scalar_lea.vmem %s3, %s2419
      // Predicated region
      $region33: #{_lambda_.3} parent=31 // pred_check
        %p2421 = pneg %p100
      $region34: #{_lambda_.3} parent=31 // pred_check_branch
        %2423 = sbr.rel (%p2421) target = $region36
      $region35: #{_lambda_.3} parent=31 // pred_region
        %s2424 = smul.u32 128, %s14
      $region36: #{_lambda_.3} parent=31 // pred_fallthru
        _
    $region32: #{_lambda_.3} parent=5 // pred_fallthru
      _
    %p2425 = scmp.le.s32.totalorder 2, %s9
    // Predicated region
    $region37: #{_lambda_.3} parent=5 // pred_check
      %p2426 = pneg %p2425
    $region38: #{_lambda_.3} parent=5 // pred_check_branch
      %2428 = sbr.rel (%p2426) target = $region40
    $region39: #{_lambda_.3} parent=5 // pred_region
      %s2429 = ssub.s32 %s9, 2
      // Predicated region
      $region41: #{_lambda_.3} parent=39 // pred_check
        %p2430 = pneg %p106
      $region42: #{_lambda_.3} parent=39 // pred_check_branch
        %2432 = sbr.rel (%p2430) target = $region44
      $region43: #{_lambda_.3} parent=39 // pred_region
        %s2433 = smul.u32 128, %s15
        %p2434 = scmp.lt.s32.totalorder %s2433, 255
        %s2435 = scalar_select %p2434, %s2433, 255
        %s2436 = smul.addr %s2435, 4
        %s2437 = scalar_lea.vmem %s3, %s2436
      $region44: #{_lambda_.3} parent=39 // pred_fallthru
        _
    $region40: #{_lambda_.3} parent=5 // pred_fallthru
      _
  $region6: #{_lambda_.3} parent=0 // loop_footer
    %s13 = sadd.s32 1, %s9
  $region7: #{_lambda_.3} parent=0 // loop_footer_branch
    %8 = sbr.rel target = $region3
  $region8: #{_lambda_.3} parent=0 // loop_exit
    _

// kernel: _lambda_.4
$region0: #{_lambda_.4}
  #allocation0 [shape = 'u32[]', space=smem, size = 0x4, offset = 0x4, fixed_abs, tag = 'smem constant byte address 0x4 - core index']
  #allocation1 [shape = 'u32[144,128]{1,0:T(1,128)}', space=vmem, size = 0x12000, scoped, tag = 'internal scratch']
  %s0 = inlined_call_operand.vmem [shape: bf16[512,256], index: 0, kind: input, shape index: {}]
  %s1 = inlined_call_operand.vmem [shape: bf16[256,128], index: 1, kind: input, shape index: {}]
  %s2 = inlined_call_operand.vmem [shape: f32[1,128], index: 2, kind: input, shape index: {}]
  %s3 = inlined_call_operand.vmem [shape: bf16[512,128], index: 3, kind: output, shape index: {}]
  %s4 = sld [smem:[#allocation0]]
  $region45: #{_lambda_.4} parent=0
    _
  %s6 = ssub.s32 1, %s4
  %s7 = scalar_select 0, %s6, %s4
  loop: start=0, step=1, limit=4
  $region2: #{_lambda_.4} parent=0 // loop_pre_header
    _
  $region3: #{_lambda_.4} parent=0 // loop_header
    %s9 = sphi 0, %s13
    %p10 = scmp.ge.s32.totalorder %s9, 4
    %s19 = sphi 0, %s21
    %s22 = sphi 0, %s19
    %s23 = sphi 0, %s22
    %s39 = sphi 0, %s23
    %s43 = sphi 0, %s43
    %s45 = sphi 0, %s43
    %s46 = sphi 0, %s45
    %s60 = sphi 0, %s46
    %s64 = sphi 0, %s64
    %s66 = sphi 0, %s64
    %s67 = sphi 0, %s66
    %s81 = sphi 0, %s67
    %s87 = sphi 0, %s89
    %s90 = sphi 0, %s87
    %s91 = sphi 0, %s90
    %s107 = sphi 0, %s91
  $region4: #{_lambda_.4} parent=0 // loop_header_branch
    %12 = sbr.rel (%p10) target = $region8
  $region5: #{_lambda_.4} parent=0 // loop_body
    %s14 = ssub.s32 %s9, 1
    %s15 = ssub.s32 %s9, 2
    %s16 = sadd.s32 %s9, 1
    %s17 = ssub.s32 %s9, %s16
    %p18 = scmp.eq.s32.totalorder %s17, 0
    %s20 = sadd.s32 %s19, 1
    %s21 = scalar_select %p18, %s19, %s20
    %p24 = pneg %p18
    %p25 = scmp.eq.s32.totalorder %s9, 1
    %p26 = por %p24, %p25
    %p27 = scmp.ne.s32.totalorder %s19, %s22
    %p28 = scmp.eq.s32.totalorder %s9, 0
    %p29 = por %p27, %p28
    %p30 = scmp.ne.s32.totalorder %s19, %s22
    %p31 = scmp.eq.s32.totalorder %s14, 1
    %p32 = por %p30, %p31
    %p33 = scmp.ne.s32.totalorder %s22, %s23
    %p34 = scmp.eq.s32.totalorder %s14, 0
    %p35 = por %p33, %p34
    %p36 = scmp.ne.s32.totalorder %s22, %s23
    %p37 = scmp.eq.s32.totalorder %s15, 1
    %p38 = por %p36, %p37
    %p40 = scmp.ne.s32.totalorder %s23, %s39
    %p41 = scmp.eq.s32.totalorder %s15, 0
    %p42 = por %p40, %p41
    %s44 = sadd.s32 %s43, 1
    %p47 = scmp.eq.s32.totalorder %s9, 1
    %p48 = scmp.ne.s32.totalorder %s43, %s45
    %p49 = scmp.eq.s32.totalorder %s9, 0
    %p50 = por %p48, %p49
    %p51 = scmp.ne.s32.totalorder %s43, %s45
    %p52 = scmp.eq.s32.totalorder %s14, 1
    %p53 = por %p51, %p52
    %p54 = scmp.ne.s32.totalorder %s45, %s46
    %p55 = scmp.eq.s32.totalorder %s14, 0
    %p56 = por %p54, %p55
    %p57 = scmp.ne.s32.totalorder %s45, %s46
    %p58 = scmp.eq.s32.totalorder %s15, 1
    %p59 = por %p57, %p58
    %p61 = scmp.ne.s32.totalorder %s46, %s60
    %p62 = scmp.eq.s32.totalorder %s15, 0
    %p63 = por %p61, %p62
    %s65 = sadd.s32 %s64, 1
    %p68 = scmp.eq.s32.totalorder %s9, 1
    %p69 = scmp.ne.s32.totalorder %s64, %s66
    %p70 = scmp.eq.s32.totalorder %s9, 0
    %p71 = por %p69, %p70
    %p72 = scmp.ne.s32.totalorder %s64, %s66
    %p73 = scmp.eq.s32.totalorder %s14, 1
    %p74 = por %p72, %p73
    %p75 = scmp.ne.s32.totalorder %s66, %s67
    %p76 = scmp.eq.s32.totalorder %s14, 0
    %p77 = por %p75, %p76
    %p78 = scmp.ne.s32.totalorder %s66, %s67
    %p79 = scmp.eq.s32.totalorder %s15, 1
    %p80 = por %p78, %p79
    %p82 = scmp.ne.s32.totalorder %s67, %s81
    %p83 = scmp.eq.s32.totalorder %s15, 0
    %p84 = por %p82, %p83
    %s85 = ssub.s32 %s9, %s16
    %p86 = scmp.eq.s32.totalorder %s85, 0
    %s88 = sadd.s32 %s87, 1
    %s89 = scalar_select %p86, %s87, %s88
    %p92 = pneg %p86
    %p93 = scmp.eq.s32.totalorder %s9, 1
    %p94 = por %p92, %p93
    %p95 = scmp.ne.s32.totalorder %s87, %s90
    %p96 = scmp.eq.s32.totalorder %s9, 0
    %p97 = por %p95, %p96
    %p98 = scmp.ne.s32.totalorder %s87, %s90
    %p99 = scmp.eq.s32.totalorder %s14, 1
    %p100 = por %p98, %p99
    %p101 = scmp.ne.s32.totalorder %s90, %s91
    %p102 = scmp.eq.s32.totalorder %s14, 0
    %p103 = por %p101, %p102
    %p104 = scmp.ne.s32.totalorder %s90, %s91
    %p105 = scmp.eq.s32.totalorder %s15, 1
    %p106 = por %p104, %p105
    %p108 = scmp.ne.s32.totalorder %s91, %s107
    %p109 = scmp.eq.s32.totalorder %s15, 0
    %p110 = por %p108, %p109
    %p111 = scmp.le.s32.totalorder 1, %s9
    %p112 = scmp.lt.s32.totalorder %s9, 3
    %p113 = pnand %p111, %p112
    %p114 = pneg %p113
    // Predicated region
    $region9: #{_lambda_.4} parent=5 // pred_check
      _
    $region10: #{_lambda_.4} parent=5 // pred_check_branch
      %116 = sbr.rel (%p113) target = $region12
    $region11: #{_lambda_.4} parent=5 // pred_region
      %s117 = ssub.s32 %s9, 1
      // Predicated region
      $region13: #{_lambda_.4} parent=11 // pred_check
        %p118 = pneg %p56
      $region14: #{_lambda_.4} parent=11 // pred_check_branch
        %120 = sbr.rel (%p118) target = $region16
      $region15: #{_lambda_.4} parent=11 // pred_region
        _
      $region16: #{_lambda_.4} parent=11 // pred_fallthru
        _
      // Predicated region
      $region17: #{_lambda_.4} parent=11 // pred_check
        %p121 = pneg %p77
      $region18: #{_lambda_.4} parent=11 // pred_check_branch
        %123 = sbr.rel (%p121) target = $region20
      $region19: #{_lambda_.4} parent=11 // pred_region
        _
      $region20: #{_lambda_.4} parent=11 // pred_fallthru
        _
    $region12: #{_lambda_.4} parent=5 // pred_fallthru
      _
    %p124 = scmp.lt.s32.totalorder %s9, 2
    // Predicated region
    $region21: #{_lambda_.4} parent=5 // pred_check
      %p125 = pneg %p124
    $region22: #{_lambda_.4} parent=5 // pred_check_branch
      %127 = sbr.rel (%p125) target = $region24
    $region23: #{_lambda_.4} parent=5 // pred_region
      // Predicated region
      $region25: #{_lambda_.4} parent=23 // pred_check
        %p128 = pneg %p29
      $region26: #{_lambda_.4} parent=23 // pred_check_branch
        %130 = sbr.rel (%p128) target = $region28
      $region27: #{_lambda_.4} parent=23 // pred_region
        %s131 = smul.u32 32, %s9
        %p132 = scmp.lt.s32.totalorder %s131, 63
        %s133 = scalar_select %p132, %s131, 63
        %s134 = smul.addr %s133, 2
        %s135 = smul.addr %s134, 4
        %s136 = scalar_lea.vmem %s0, %s135
        %s137 = smul.u32 32, %s9
      $region28: #{_lambda_.4} parent=23 // pred_fallthru
        _
    $region24: #{_lambda_.4} parent=5 // pred_fallthru
      _
    %p138 = scmp.le.s32.totalorder 1, %s9
    %p139 = scmp.lt.s32.totalorder %s9, 3
    %p140 = pnand %p138, %p139
    %p141 = pneg %p140
    // Predicated region
    $region29: #{_lambda_.4} parent=5 // pred_check
      _
    $region30: #{_lambda_.4} parent=5 // pred_check_branch
      %143 = sbr.rel (%p140) target = $region32
    $region31: #{_lambda_.4} parent=5 // pred_region
      %s144 = ssub.s32 %s9, 1
      %s145 = smul.u32 32, %s14
      %p146 = scmp.lt.s32.totalorder %s145, 63
      %s147 = scalar_select %p146, %s145, 63
      %s148 = smul.addr %s147, 2
      %s149 = smul.addr %s148, 4
      %s150 = scalar_lea.vmem %s0, %s149
      %p151 = pneg %p35
      %p152 = pneg %p32
      %p153 = pneg %p56
      %p154 = pneg %p53
      %p155 = pneg %p77
      %p156 = pneg %p74
      %p157 = pneg %p103
      %p158 = pneg %p100
      %s159 = smul.u32 32, %s14
      %p160 = scmp.lt.s32.totalorder %s159, 63
      %s161 = scalar_select %p160, %s159, 63
      %s162 = smul.addr %s161, 4
      %s163 = scalar_lea.vmem %s3, %s162
      %s164 = smul.u32 32, %s14
      %p165 = scmp.lt.s32.totalorder %s164, 63
      %s166 = scalar_select %p165, %s164, 63
      %s167 = smul.addr %s166, 2
      %s168 = smul.addr %s167, 4
      %s169 = scalar_lea.vmem %s0, %s168
      %s170 = smul.u32 32, %s14
      %s171 = smul.u32 32, %s14
      %p172 = scmp.lt.s32.totalorder %s171, 63
      %s173 = scalar_select %p172, %s171, 63
      %s174 = smul.addr %s173, 4
      %s175 = scalar_lea.vmem %s3, %s174
      %s176 = smul.u32 32, %s14
      %v178 = vld [vmem:[%s169] sm:$0xff]
      %v179 = vld [vmem:[%s169 + $0x8] sm:$0xff]
      %v180 = vld [vmem:[%s169 + $0x10] sm:$0xff]
      %v181 = vld [vmem:[%s169 + $0x18] sm:$0xff]
      %v182 = vld [vmem:[%s169 + $0x20] sm:$0xff]
      %v183 = vld [vmem:[%s169 + $0x28] sm:$0xff]
      %v184 = vld [vmem:[%s169 + $0x30] sm:$0xff]
      %v185 = vld [vmem:[%s169 + $0x38] sm:$0xff]
      %v186 = vld [vmem:[%s169 + $0x40] sm:$0xff]
      %v187 = vld [vmem:[%s169 + $0x48] sm:$0xff]
      %v188 = vld [vmem:[%s169 + $0x50] sm:$0xff]
      %v189 = vld [vmem:[%s169 + $0x58] sm:$0xff]
      %v190 = vld [vmem:[%s169 + $0x60] sm:$0xff]
      %v191 = vld [vmem:[%s169 + $0x68] sm:$0xff]
      %v192 = vld [vmem:[%s169 + $0x70] sm:$0xff]
      %v193 = vld [vmem:[%s169 + $0x78] sm:$0xff]
      %v194 = vld [vmem:[%s169 + $0x80] sm:$0xff]
      %v195 = vld [vmem:[%s169 + $0x88] sm:$0xff]
      %v196 = vld [vmem:[%s169 + $0x90] sm:$0xff]
      %v197 = vld [vmem:[%s169 + $0x98] sm:$0xff]
      %v198 = vld [vmem:[%s169 + $0xa0] sm:$0xff]
      %v199 = vld [vmem:[%s169 + $0xa8] sm:$0xff]
      %v200 = vld [vmem:[%s169 + $0xb0] sm:$0xff]
      %v201 = vld [vmem:[%s169 + $0xb8] sm:$0xff]
      %v202 = vld [vmem:[%s169 + $0xc0] sm:$0xff]
      %v203 = vld [vmem:[%s169 + $0xc8] sm:$0xff]
      %v204 = vld [vmem:[%s169 + $0xd0] sm:$0xff]
      %v205 = vld [vmem:[%s169 + $0xd8] sm:$0xff]
      %v206 = vld [vmem:[%s169 + $0xe0] sm:$0xff]
      %v207 = vld [vmem:[%s169 + $0xe8] sm:$0xff]
      %v208 = vld [vmem:[%s169 + $0xf0] sm:$0xff]
      %v209 = vld [vmem:[%s169 + $0xf8] sm:$0xff]
      %v210 = vld [vmem:[%s1] sm:$0xf]
      %v211 = vld [vmem:[%s1 + $0x4] sm:$0xf]
      %v212 = vld [vmem:[%s1 + $0x8] sm:$0xf]
      %v213 = vld [vmem:[%s1 + $0xc] sm:$0xf]
      %v214 = vld [vmem:[%s1 + $0x10] sm:$0xf]
      %v215 = vld [vmem:[%s1 + $0x14] sm:$0xf]
      %v216 = vld [vmem:[%s1 + $0x18] sm:$0xf]
      %v217 = vld [vmem:[%s1 + $0x1c] sm:$0xf]
      %v218 = vld [vmem:[%s1 + $0x20] sm:$0xf]
      %v219 = vld [vmem:[%s1 + $0x24] sm:$0xf]
      %v220 = vld [vmem:[%s1 + $0x28] sm:$0xf]
      %v221 = vld [vmem:[%s1 + $0x2c] sm:$0xf]
      %v222 = vld [vmem:[%s1 + $0x30] sm:$0xf]
      %v223 = vld [vmem:[%s1 + $0x34] sm:$0xf]
      %v224 = vld [vmem:[%s1 + $0x38] sm:$0xf]
      %v225 = vld [vmem:[%s1 + $0x3c] sm:$0xf]
      %v226 = vld [vmem:[%s1 + $0x40] sm:$0xf]
      %v227 = vld [vmem:[%s1 + $0x44] sm:$0xf]
      %v228 = vld [vmem:[%s1 + $0x48] sm:$0xf]
      %v229 = vld [vmem:[%s1 + $0x4c] sm:$0xf]
      %v230 = vld [vmem:[%s1 + $0x50] sm:$0xf]
      %v231 = vld [vmem:[%s1 + $0x54] sm:$0xf]
      %v232 = vld [vmem:[%s1 + $0x58] sm:$0xf]
      %v233 = vld [vmem:[%s1 + $0x5c] sm:$0xf]
      %v234 = vld [vmem:[%s1 + $0x60] sm:$0xf]
      %v235 = vld [vmem:[%s1 + $0x64] sm:$0xf]
      %v236 = vld [vmem:[%s1 + $0x68] sm:$0xf]
      %v237 = vld [vmem:[%s1 + $0x6c] sm:$0xf]
      %v238 = vld [vmem:[%s1 + $0x70] sm:$0xf]
      %v239 = vld [vmem:[%s1 + $0x74] sm:$0xf]
      %v240 = vld [vmem:[%s1 + $0x78] sm:$0xf]
      %v241 = vld [vmem:[%s1 + $0x7c] sm:$0xf]
      %v242 = vld [vmem:[%s2] sm:$0x1]
      %v244 = vlaneseq
      %v245 = vshrl.u32 %v244, 7
      %v246 = vsub.s32 0, %v245
      %v247 = vrot.slane %v242, %v246
      %v281 = vunpack.c.l.b16 %v178
      %v282 = vunpack.c.h.b16 %v178
      %v283 = vunpack.c.l.b16 %v179
      %v284 = vunpack.c.h.b16 %v179
      %v285 = vunpack.c.l.b16 %v180
      %v286 = vunpack.c.h.b16 %v180
      %v287 = vunpack.c.l.b16 %v181
      %v288 = vunpack.c.h.b16 %v181
      %v289 = vunpack.c.l.b16 %v182
      %v290 = vunpack.c.h.b16 %v182
      %v291 = vunpack.c.l.b16 %v183
      %v292 = vunpack.c.h.b16 %v183
      %v293 = vunpack.c.l.b16 %v184
      %v294 = vunpack.c.h.b16 %v184
      %v295 = vunpack.c.l.b16 %v185
      %v296 = vunpack.c.h.b16 %v185
      %v297 = vunpack.c.l.b16 %v186
      %v298 = vunpack.c.h.b16 %v186
      %v299 = vunpack.c.l.b16 %v187
      %v300 = vunpack.c.h.b16 %v187
      %v301 = vunpack.c.l.b16 %v188
      %v302 = vunpack.c.h.b16 %v188
      %v303 = vunpack.c.l.b16 %v189
      %v304 = vunpack.c.h.b16 %v189
      %v305 = vunpack.c.l.b16 %v190
      %v306 = vunpack.c.h.b16 %v190
      %v307 = vunpack.c.l.b16 %v191
      %v308 = vunpack.c.h.b16 %v191
      %v309 = vunpack.c.l.b16 %v192
      %v310 = vunpack.c.h.b16 %v192
      %v311 = vunpack.c.l.b16 %v193
      %v312 = vunpack.c.h.b16 %v193
      %v313 = vunpack.c.l.b16 %v194
      %v314 = vunpack.c.h.b16 %v194
      %v315 = vunpack.c.l.b16 %v195
      %v316 = vunpack.c.h.b16 %v195
      %v317 = vunpack.c.l.b16 %v196
      %v318 = vunpack.c.h.b16 %v196
      %v319 = vunpack.c.l.b16 %v197
      %v320 = vunpack.c.h.b16 %v197
      %v321 = vunpack.c.l.b16 %v198
      %v322 = vunpack.c.h.b16 %v198
      %v323 = vunpack.c.l.b16 %v199
      %v324 = vunpack.c.h.b16 %v199
      %v325 = vunpack.c.l.b16 %v200
      %v326 = vunpack.c.h.b16 %v200
      %v327 = vunpack.c.l.b16 %v201
      %v328 = vunpack.c.h.b16 %v201
      %v329 = vunpack.c.l.b16 %v202
      %v330 = vunpack.c.h.b16 %v202
      %v331 = vunpack.c.l.b16 %v203
      %v332 = vunpack.c.h.b16 %v203
      %v333 = vunpack.c.l.b16 %v204
      %v334 = vunpack.c.h.b16 %v204
      %v335 = vunpack.c.l.b16 %v205
      %v336 = vunpack.c.h.b16 %v205
      %v337 = vunpack.c.l.b16 %v206
      %v338 = vunpack.c.h.b16 %v206
      %v339 = vunpack.c.l.b16 %v207
      %v340 = vunpack.c.h.b16 %v207
      %v341 = vunpack.c.l.b16 %v208
      %v342 = vunpack.c.h.b16 %v208
      %v343 = vunpack.c.l.b16 %v209
      %v344 = vunpack.c.h.b16 %v209
      %v345 = vpack.c.b16 %v283, %v281
      %v346 = vpack.c.b16 %v284, %v282
      %v347 = vpack.c.b16 %v287, %v285
      %v348 = vpack.c.b16 %v288, %v286
      %v349 = vpack.c.b16 %v291, %v289
      %v350 = vpack.c.b16 %v292, %v290
      %v351 = vpack.c.b16 %v295, %v293
      %v352 = vpack.c.b16 %v296, %v294
      %v353 = vpack.c.b16 %v299, %v297
      %v354 = vpack.c.b16 %v300, %v298
      %v355 = vpack.c.b16 %v303, %v301
      %v356 = vpack.c.b16 %v304, %v302
      %v357 = vpack.c.b16 %v307, %v305
      %v358 = vpack.c.b16 %v308, %v306
      %v359 = vpack.c.b16 %v311, %v309
      %v360 = vpack.c.b16 %v312, %v310
      %v361 = vpack.c.b16 %v315, %v313
      %v362 = vpack.c.b16 %v316, %v314
      %v363 = vpack.c.b16 %v319, %v317
      %v364 = vpack.c.b16 %v320, %v318
      %v365 = vpack.c.b16 %v323, %v321
      %v366 = vpack.c.b16 %v324, %v322
      %v367 = vpack.c.b16 %v327, %v325
      %v368 = vpack.c.b16 %v328, %v326
      %v369 = vpack.c.b16 %v331, %v329
      %v370 = vpack.c.b16 %v332, %v330
      %v371 = vpack.c.b16 %v335, %v333
      %v372 = vpack.c.b16 %v336, %v334
      %v373 = vpack.c.b16 %v339, %v337
      %v374 = vpack.c.b16 %v340, %v338
      %v375 = vpack.c.b16 %v343, %v341
      %v376 = vpack.c.b16 %v344, %v342
      %v441 = vunpack.c.l.b16 %v210
      %v442 = vunpack.c.l.b16 %v211
      %v443 = vunpack.c.l.b16 %v212
      %v444 = vunpack.c.l.b16 %v213
      %v445 = vunpack.c.l.b16 %v214
      %v446 = vunpack.c.l.b16 %v215
      %v447 = vunpack.c.l.b16 %v216
      %v448 = vunpack.c.l.b16 %v217
      %v449 = vunpack.c.l.b16 %v218
      %v450 = vunpack.c.l.b16 %v219
      %v451 = vunpack.c.l.b16 %v220
      %v452 = vunpack.c.l.b16 %v221
      %v453 = vunpack.c.l.b16 %v222
      %v454 = vunpack.c.l.b16 %v223
      %v455 = vunpack.c.l.b16 %v224
      %v456 = vunpack.c.l.b16 %v225
      %v457 = vunpack.c.l.b16 %v226
      %v458 = vunpack.c.l.b16 %v227
      %v459 = vunpack.c.l.b16 %v228
      %v460 = vunpack.c.l.b16 %v229
      %v461 = vunpack.c.l.b16 %v230
      %v462 = vunpack.c.l.b16 %v231
      %v463 = vunpack.c.l.b16 %v232
      %v464 = vunpack.c.l.b16 %v233
      %v465 = vunpack.c.l.b16 %v234
      %v466 = vunpack.c.l.b16 %v235
      %v467 = vunpack.c.l.b16 %v236
      %v468 = vunpack.c.l.b16 %v237
      %v469 = vunpack.c.l.b16 %v238
      %v470 = vunpack.c.l.b16 %v239
      %v471 = vunpack.c.l.b16 %v240
      %v472 = vunpack.c.l.b16 %v241
      %v473 = vpack.c.b16 %v442, %v441
      %v474 = vpack.c.b16 %v444, %v443
      %v475 = vpack.c.b16 %v446, %v445
      %v476 = vpack.c.b16 %v448, %v447
      %v477 = vpack.c.b16 %v450, %v449
      %v478 = vpack.c.b16 %v452, %v451
      %v479 = vpack.c.b16 %v454, %v453
      %v480 = vpack.c.b16 %v456, %v455
      %v481 = vpack.c.b16 %v458, %v457
      %v482 = vpack.c.b16 %v460, %v459
      %v483 = vpack.c.b16 %v462, %v461
      %v484 = vpack.c.b16 %v464, %v463
      %v485 = vpack.c.b16 %v466, %v465
      %v486 = vpack.c.b16 %v468, %v467
      %v487 = vpack.c.b16 %v470, %v469
      %v488 = vpack.c.b16 %v472, %v471
      %505 = vmatprep.subr.bf16.mxu0 0
      %506 = vmatpush1.bf16.msra.mxu0 %v473
      %507 = vmatprep.subr.bf16.mxu0 0
      %508 = vmatpush1.bf16.msra.mxu0 %v474
      %509 = vmatprep.subr.bf16.mxu0 0
      %510 = vmatpush1.bf16.msra.mxu0 %v475
      %511 = vmatprep.subr.bf16.mxu0 0
      %512 = vmatpush1.bf16.msra.mxu0 %v476
      %513 = vmatprep.subr.bf16.mxu0 0
      %514 = vmatpush1.bf16.msra.mxu0 %v477
      %515 = vmatprep.subr.bf16.mxu0 0
      %516 = vmatpush1.bf16.msra.mxu0 %v478
      %517 = vmatprep.subr.bf16.mxu0 0
      %518 = vmatpush1.bf16.msra.mxu0 %v479
      %519 = vmatprep.subr.bf16.mxu0 0
      %520 = vmatpush1.bf16.msra.mxu0 %v480
      %521 = vmatprep.subr.bf16.mxu0 0
      %522 = vmatpush1.bf16.msra.mxu0 %v481
      %523 = vmatprep.subr.bf16.mxu0 0
      %524 = vmatpush1.bf16.msra.mxu0 %v482
      %525 = vmatprep.subr.bf16.mxu0 0
      %526 = vmatpush1.bf16.msra.mxu0 %v483
      %527 = vmatprep.subr.bf16.mxu0 0
      %528 = vmatpush1.bf16.msra.mxu0 %v484
      %529 = vmatprep.subr.bf16.mxu0 0
      %530 = vmatpush1.bf16.msra.mxu0 %v485
      %531 = vmatprep.subr.bf16.mxu0 0
      %532 = vmatpush1.bf16.msra.mxu0 %v486
      %533 = vmatprep.subr.bf16.mxu0 0
      %534 = vmatpush1.bf16.msra.mxu0 %v487
      %535 = vmatprep.subr.bf16.mxu0 0
      %536 = vmatpush1.bf16.msra.mxu0 %v488
      %537 = vmatprep.mubr.bf16.mxu0 %v346
      %538 = vmatmul.mubr.bf16.gmra.mrb[0].mxu0 %v345
      %v539 = vpop.f32.mrb[0].mxu0
      %v540 = vadd.f32 %v247, %v539
      %v541 = vpop.f32.mrb[0].mxu0
      %v542 = vpop.f32.mrb[0].mxu0
      %v543 = vadd.f32 %v247, %v542
      %v544 = vpop.f32.mrb[0].mxu0
      %545 = vmatprep.mubr.bf16.mxu0 %v348
      %546 = vmatmul.mubr.bf16.gmra.mrb[0].mxu0 %v347
      %v547 = vpop.f32.mrb[0].mxu0
      %v548 = vadd.f32 %v247, %v547
      %v549 = vpop.f32.mrb[0].mxu0
      %v550 = vpop.f32.mrb[0].mxu0
      %v551 = vadd.f32 %v247, %v550
      %v552 = vpop.f32.mrb[0].mxu0
      %553 = vmatprep.mubr.bf16.mxu0 %v350
      %554 = vmatmul.mubr.bf16.gmra.mrb[0].mxu0 %v349
      %v555 = vpop.f32.mrb[0].mxu0
      %v556 = vadd.f32 %v247, %v555
      %v557 = vpop.f32.mrb[0].mxu0
      %v558 = vpop.f32.mrb[0].mxu0
      %v559 = vadd.f32 %v247, %v558
      %v560 = vpop.f32.mrb[0].mxu0
      %561 = vmatprep.mubr.bf16.mxu0 %v352
      %562 = vmatmul.mubr.bf16.gmra.mrb[0].mxu0 %v351
      %v563 = vpop.f32.mrb[0].mxu0
      %v564 = vadd.f32 %v247, %v563
      %v565 = vpop.f32.mrb[0].mxu0
      %v566 = vpop.f32.mrb[0].mxu0
      %v567 = vadd.f32 %v247, %v566
      %v568 = vpop.f32.mrb[0].mxu0
      %569 = vmatprep.mubr.bf16.mxu0 %v354
      %570 = vmatmul.mubr.bf16.gmra.mrb[0].mxu0 %v353
      %v571 = vpop.f32.mrb[0].mxu0
      %v572 = vadd.f32 %v247, %v571
      %v573 = vpop.f32.mrb[0].mxu0
      %v574 = vpop.f32.mrb[0].mxu0
      %v575 = vadd.f32 %v247, %v574
      %v576 = vpop.f32.mrb[0].mxu0
      %577 = vmatprep.mubr.bf16.mxu0 %v356
      %578 = vmatmul.mubr.bf16.gmra.mrb[0].mxu0 %v355
      %v579 = vpop.f32.mrb[0].mxu0
      %v580 = vadd.f32 %v247, %v579
      %v581 = vpop.f32.mrb[0].mxu0
      %v582 = vpop.f32.mrb[0].mxu0
      %v583 = vadd.f32 %v247, %v582
      %v584 = vpop.f32.mrb[0].mxu0
      %585 = vmatprep.mubr.bf16.mxu0 %v358
      %586 = vmatmul.mubr.bf16.gmra.mrb[0].mxu0 %v357
      %v587 = vpop.f32.mrb[0].mxu0
      %v588 = vadd.f32 %v247, %v587
      %v589 = vpop.f32.mrb[0].mxu0
      %v590 = vpop.f32.mrb[0].mxu0
      %v591 = vadd.f32 %v247, %v590
      %v592 = vpop.f32.mrb[0].mxu0
      %593 = vmatprep.mubr.bf16.mxu0 %v360
      %594 = vmatmul.mubr.bf16.gmra.mrb[0].mxu0 %v359
      %v595 = vpop.f32.mrb[0].mxu0
      %v596 = vadd.f32 %v247, %v595
      %v597 = vpop.f32.mrb[0].mxu0
      %v598 = vpop.f32.mrb[0].mxu0
      %v599 = vadd.f32 %v247, %v598
      %v600 = vpop.f32.mrb[0].mxu0
      %601 = vmatprep.mubr.bf16.mxu0 %v362
      %602 = vmatmul.mubr.bf16.gmra.mrb[0].mxu0 %v361
      %v603 = vpop.f32.mrb[0].mxu0
      %v604 = vadd.f32 %v247, %v603
      %v605 = vpop.f32.mrb[0].mxu0
      %v606 = vpop.f32.mrb[0].mxu0
      %v607 = vadd.f32 %v247, %v606
      %v608 = vpop.f32.mrb[0].mxu0
      %609 = vmatprep.mubr.bf16.mxu0 %v364
      %610 = vmatmul.mubr.bf16.gmra.mrb[0].mxu0 %v363
      %v611 = vpop.f32.mrb[0].mxu0
      %v612 = vadd.f32 %v247, %v611
      %v613 = vpop.f32.mrb[0].mxu0
      %v614 = vpop.f32.mrb[0].mxu0
      %v615 = vadd.f32 %v247, %v614
      %v616 = vpop.f32.mrb[0].mxu0
      %617 = vmatprep.mubr.bf16.mxu0 %v366
      %618 = vmatmul.mubr.bf16.gmra.mrb[0].mxu0 %v365
      %v619 = vpop.f32.mrb[0].mxu0
      %v620 = vadd.f32 %v247, %v619
      %v621 = vpop.f32.mrb[0].mxu0
      %v622 = vpop.f32.mrb[0].mxu0
      %v623 = vadd.f32 %v247, %v622
      %v624 = vpop.f32.mrb[0].mxu0
      %625 = vmatprep.mubr.bf16.mxu0 %v368
      %626 = vmatmul.mubr.bf16.gmra.mrb[0].mxu0 %v367
      %v627 = vpop.f32.mrb[0].mxu0
      %v628 = vadd.f32 %v247, %v627
      %v629 = vpop.f32.mrb[0].mxu0
      %v630 = vpop.f32.mrb[0].mxu0
      %v631 = vadd.f32 %v247, %v630
      %v632 = vpop.f32.mrb[0].mxu0
      %633 = vmatprep.mubr.bf16.mxu0 %v370
      %634 = vmatmul.mubr.bf16.gmra.mrb[0].mxu0 %v369
      %v635 = vpop.f32.mrb[0].mxu0
      %v636 = vadd.f32 %v247, %v635
      %v637 = vpop.f32.mrb[0].mxu0
      %v638 = vpop.f32.mrb[0].mxu0
      %v639 = vadd.f32 %v247, %v638
      %v640 = vpop.f32.mrb[0].mxu0
      %641 = vmatprep.mubr.bf16.mxu0 %v372
      %642 = vmatmul.mubr.bf16.gmra.mrb[0].mxu0 %v371
      %v643 = vpop.f32.mrb[0].mxu0
      %v644 = vadd.f32 %v247, %v643
      %v645 = vpop.f32.mrb[0].mxu0
      %v646 = vpop.f32.mrb[0].mxu0
      %v647 = vadd.f32 %v247, %v646
      %v648 = vpop.f32.mrb[0].mxu0
      %649 = vmatprep.mubr.bf16.mxu0 %v374
      %650 = vmatmul.mubr.bf16.gmra.mrb[0].mxu0 %v373
      %v651 = vpop.f32.mrb[0].mxu0
      %v652 = vadd.f32 %v247, %v651
      %v653 = vpop.f32.mrb[0].mxu0
      %v654 = vpop.f32.mrb[0].mxu0
      %v655 = vadd.f32 %v247, %v654
      %v656 = vpop.f32.mrb[0].mxu0
      %657 = vmatprep.mubr.bf16.mxu0 %v376
      %658 = vmatmul.mubr.bf16.gmra.mrb[0].mxu0 %v375
      %v659 = vpop.f32.mrb[0].mxu0
      %v660 = vadd.f32 %v247, %v659
      %v661 = vpop.f32.mrb[0].mxu0
      %v662 = vpop.f32.mrb[0].mxu0
      %v663 = vadd.f32 %v247, %v662
      %v664 = vpop.f32.mrb[0].mxu0
      %665 = vdwg.mxu0
      %vm666 = vcmp.ge.f32.partialorder %v540, 0.0
      %vm667 = vcmp.ge.f32.partialorder %v543, 0.0
      %vm668 = vcmp.ge.f32.partialorder %v548, 0.0
      %vm669 = vcmp.ge.f32.partialorder %v551, 0.0
      %vm670 = vcmp.ge.f32.partialorder %v556, 0.0
      %vm671 = vcmp.ge.f32.partialorder %v559, 0.0
      %vm672 = vcmp.ge.f32.partialorder %v564, 0.0
      %vm673 = vcmp.ge.f32.partialorder %v567, 0.0
      %vm674 = vcmp.ge.f32.partialorder %v572, 0.0
      %vm675 = vcmp.ge.f32.partialorder %v575, 0.0
      %vm676 = vcmp.ge.f32.partialorder %v580, 0.0
      %vm677 = vcmp.ge.f32.partialorder %v583, 0.0
      %vm678 = vcmp.ge.f32.partialorder %v588, 0.0
      %vm679 = vcmp.ge.f32.partialorder %v591, 0.0
      %vm680 = vcmp.ge.f32.partialorder %v596, 0.0
      %vm681 = vcmp.ge.f32.partialorder %v599, 0.0
      %vm682 = vcmp.ge.f32.partialorder %v604, 0.0
      %vm683 = vcmp.ge.f32.partialorder %v607, 0.0
      %vm684 = vcmp.ge.f32.partialorder %v612, 0.0
      %vm685 = vcmp.ge.f32.partialorder %v615, 0.0
      %vm686 = vcmp.ge.f32.partialorder %v620, 0.0
      %vm687 = vcmp.ge.f32.partialorder %v623, 0.0
      %vm688 = vcmp.ge.f32.partialorder %v628, 0.0
      %vm689 = vcmp.ge.f32.partialorder %v631, 0.0
      %vm690 = vcmp.ge.f32.partialorder %v636, 0.0
      %vm691 = vcmp.ge.f32.partialorder %v639, 0.0
      %vm692 = vcmp.ge.f32.partialorder %v644, 0.0
      %vm693 = vcmp.ge.f32.partialorder %v647, 0.0
      %vm694 = vcmp.ge.f32.partialorder %v652, 0.0
      %vm695 = vcmp.ge.f32.partialorder %v655, 0.0
      %vm696 = vcmp.ge.f32.partialorder %v660, 0.0
      %vm697 = vcmp.ge.f32.partialorder %v663, 0.0
      %v698 = vmul.f32 %v540, 0.2
      %v699 = vmul.f32 %v543, 0.2
      %v700 = vmul.f32 %v548, 0.2
      %v701 = vmul.f32 %v551, 0.2
      %v702 = vmul.f32 %v556, 0.2
      %v703 = vmul.f32 %v559, 0.2
      %v704 = vmul.f32 %v564, 0.2
      %v705 = vmul.f32 %v567, 0.2
      %v706 = vmul.f32 %v572, 0.2
      %v707 = vmul.f32 %v575, 0.2
      %v708 = vmul.f32 %v580, 0.2
      %v709 = vmul.f32 %v583, 0.2
      %v710 = vmul.f32 %v588, 0.2
      %v711 = vmul.f32 %v591, 0.2
      %v712 = vmul.f32 %v596, 0.2
      %v713 = vmul.f32 %v599, 0.2
      %v714 = vmul.f32 %v604, 0.2
      %v715 = vmul.f32 %v607, 0.2
      %v716 = vmul.f32 %v612, 0.2
      %v717 = vmul.f32 %v615, 0.2
      %v718 = vmul.f32 %v620, 0.2
      %v719 = vmul.f32 %v623, 0.2
      %v720 = vmul.f32 %v628, 0.2
      %v721 = vmul.f32 %v631, 0.2
      %v722 = vmul.f32 %v636, 0.2
      %v723 = vmul.f32 %v639, 0.2
      %v724 = vmul.f32 %v644, 0.2
      %v725 = vmul.f32 %v647, 0.2
      %v726 = vmul.f32 %v652, 0.2
      %v727 = vmul.f32 %v655, 0.2
      %v728 = vmul.f32 %v660, 0.2
      %v729 = vmul.f32 %v663, 0.2
      %v730 = vsel %vm666, %v540, %v698
      %v731 = vsel %vm667, %v543, %v699
      %v732 = vsel %vm668, %v548, %v700
      %v733 = vsel %vm669, %v551, %v701
      %v734 = vsel %vm670, %v556, %v702
      %v735 = vsel %vm671, %v559, %v703
      %v736 = vsel %vm672, %v564, %v704
      %v737 = vsel %vm673, %v567, %v705
      %v738 = vsel %vm674, %v572, %v706
      %v739 = vsel %vm675, %v575, %v707
      %v740 = vsel %vm676, %v580, %v708
      %v741 = vsel %vm677, %v583, %v709
      %v742 = vsel %vm678, %v588, %v710
      %v743 = vsel %vm679, %v591, %v711
      %v744 = vsel %vm680, %v596, %v712
      %v745 = vsel %vm681, %v599, %v713
      %v746 = vsel %vm682, %v604, %v714
      %v747 = vsel %vm683, %v607, %v715
      %v748 = vsel %vm684, %v612, %v716
      %v749 = vsel %vm685, %v615, %v717
      %v750 = vsel %vm686, %v620, %v718
      %v751 = vsel %vm687, %v623, %v719
      %v752 = vsel %vm688, %v628, %v720
      %v753 = vsel %vm689, %v631, %v721
      %v754 = vsel %vm690, %v636, %v722
      %v755 = vsel %vm691, %v639, %v723
      %v756 = vsel %vm692, %v644, %v724
      %v757 = vsel %vm693, %v647, %v725
      %v758 = vsel %vm694, %v652, %v726
      %v759 = vsel %vm695, %v655, %v727
      %v760 = vsel %vm696, %v660, %v728
      %v761 = vsel %vm697, %v663, %v729
      %v762 = vpack.c.bf16 %v731, %v730
      %v763 = vpack.c.bf16 %v733, %v732
      %v764 = vpack.c.bf16 %v735, %v734
      %v765 = vpack.c.bf16 %v737, %v736
      %v766 = vpack.c.bf16 %v739, %v738
      %v767 = vpack.c.bf16 %v741, %v740
      %v768 = vpack.c.bf16 %v743, %v742
      %v769 = vpack.c.bf16 %v745, %v744
      %v770 = vpack.c.bf16 %v747, %v746
      %v771 = vpack.c.bf16 %v749, %v748
      %v772 = vpack.c.bf16 %v751, %v750
      %v773 = vpack.c.bf16 %v753, %v752
      %v774 = vpack.c.bf16 %v755, %v754
      %v775 = vpack.c.bf16 %v757, %v756
      %v776 = vpack.c.bf16 %v759, %v758
      %v777 = vpack.c.bf16 %v761, %v760
      %v794 = vunpack.c.l.b16 %v762
      %v795 = vunpack.c.h.b16 %v762
      %v796 = vunpack.c.l.b16 %v763
      %v797 = vunpack.c.h.b16 %v763
      %v798 = vunpack.c.l.b16 %v764
      %v799 = vunpack.c.h.b16 %v764
      %v800 = vunpack.c.l.b16 %v765
      %v801 = vunpack.c.h.b16 %v765
      %v802 = vunpack.c.l.b16 %v766
      %v803 = vunpack.c.h.b16 %v766
      %v804 = vunpack.c.l.b16 %v767
      %v805 = vunpack.c.h.b16 %v767
      %v806 = vunpack.c.l.b16 %v768
      %v807 = vunpack.c.h.b16 %v768
      %v808 = vunpack.c.l.b16 %v769
      %v809 = vunpack.c.h.b16 %v769
      %v810 = vunpack.c.l.b16 %v770
      %v811 = vunpack.c.h.b16 %v770
      %v812 = vunpack.c.l.b16 %v771
      %v813 = vunpack.c.h.b16 %v771
      %v814 = vunpack.c.l.b16 %v772
      %v815 = vunpack.c.h.b16 %v772
      %v816 = vunpack.c.l.b16 %v773
      %v817 = vunpack.c.h.b16 %v773
      %v818 = vunpack.c.l.b16 %v774
      %v819 = vunpack.c.h.b16 %v774
      %v820 = vunpack.c.l.b16 %v775
      %v821 = vunpack.c.h.b16 %v775
      %v822 = vunpack.c.l.b16 %v776
      %v823 = vunpack.c.h.b16 %v776
      %v824 = vunpack.c.l.b16 %v777
      %v825 = vunpack.c.h.b16 %v777
      %v826 = vpack.c.b16 %v794, %v794
      %v827 = vpack.c.b16 %v795, %v795
      %v828 = vpack.c.b16 %v796, %v796
      %v829 = vpack.c.b16 %v797, %v797
      %v830 = vpack.c.b16 %v798, %v798
      %v831 = vpack.c.b16 %v799, %v799
      %v832 = vpack.c.b16 %v800, %v800
      %v833 = vpack.c.b16 %v801, %v801
      %v834 = vpack.c.b16 %v802, %v802
      %v835 = vpack.c.b16 %v803, %v803
      %v836 = vpack.c.b16 %v804, %v804
      %v837 = vpack.c.b16 %v805, %v805
      %v838 = vpack.c.b16 %v806, %v806
      %v839 = vpack.c.b16 %v807, %v807
      %v840 = vpack.c.b16 %v808, %v808
      %v841 = vpack.c.b16 %v809, %v809
      %v842 = vpack.c.b16 %v810, %v810
      %v843 = vpack.c.b16 %v811, %v811
      %v844 = vpack.c.b16 %v812, %v812
      %v845 = vpack.c.b16 %v813, %v813
      %v846 = vpack.c.b16 %v814, %v814
      %v847 = vpack.c.b16 %v815, %v815
      %v848 = vpack.c.b16 %v816, %v816
      %v849 = vpack.c.b16 %v817, %v817
      %v850 = vpack.c.b16 %v818, %v818
      %v851 = vpack.c.b16 %v819, %v819
      %v852 = vpack.c.b16 %v820, %v820
      %v853 = vpack.c.b16 %v821, %v821
      %v854 = vpack.c.b16 %v822, %v822
      %v855 = vpack.c.b16 %v823, %v823
      %v856 = vpack.c.b16 %v824, %v824
      %v857 = vpack.c.b16 %v825, %v825
      %890 = vst [vmem:[%s175] sm:$0xf] %v826
      %891 = vst [vmem:[%s175 + $0x4] sm:$0xf] %v827
      %892 = vst [vmem:[%s175 + $0x8] sm:$0xf] %v828
      %893 = vst [vmem:[%s175 + $0xc] sm:$0xf] %v829
      %894 = vst [vmem:[%s175 + $0x10] sm:$0xf] %v830
      %895 = vst [vmem:[%s175 + $0x14] sm:$0xf] %v831
      %896 = vst [vmem:[%s175 + $0x18] sm:$0xf] %v832
      %897 = vst [vmem:[%s175 + $0x1c] sm:$0xf] %v833
      %898 = vst [vmem:[%s175 + $0x20] sm:$0xf] %v834
      %899 = vst [vmem:[%s175 + $0x24] sm:$0xf] %v835
      %900 = vst [vmem:[%s175 + $0x28] sm:$0xf] %v836
      %901 = vst [vmem:[%s175 + $0x2c] sm:$0xf] %v837
      %902 = vst [vmem:[%s175 + $0x30] sm:$0xf] %v838
      %903 = vst [vmem:[%s175 + $0x34] sm:$0xf] %v839
      %904 = vst [vmem:[%s175 + $0x38] sm:$0xf] %v840
      %905 = vst [vmem:[%s175 + $0x3c] sm:$0xf] %v841
      %906 = vst [vmem:[%s175 + $0x40] sm:$0xf] %v842
      %907 = vst [vmem:[%s175 + $0x44] sm:$0xf] %v843
      %908 = vst [vmem:[%s175 + $0x48] sm:$0xf] %v844
      %909 = vst [vmem:[%s175 + $0x4c] sm:$0xf] %v845
      %910 = vst [vmem:[%s175 + $0x50] sm:$0xf] %v846
      %911 = vst [vmem:[%s175 + $0x54] sm:$0xf] %v847
      %912 = vst [vmem:[%s175 + $0x58] sm:$0xf] %v848
      %913 = vst [vmem:[%s175 + $0x5c] sm:$0xf] %v849
      %914 = vst [vmem:[%s175 + $0x60] sm:$0xf] %v850
      %915 = vst [vmem:[%s175 + $0x64] sm:$0xf] %v851
      %916 = vst [vmem:[%s175 + $0x68] sm:$0xf] %v852
      %917 = vst [vmem:[%s175 + $0x6c] sm:$0xf] %v853
      %918 = vst [vmem:[%s175 + $0x70] sm:$0xf] %v854
      %919 = vst [vmem:[%s175 + $0x74] sm:$0xf] %v855
      %920 = vst [vmem:[%s175 + $0x78] sm:$0xf] %v856
      %921 = vst [vmem:[%s175 + $0x7c] sm:$0xf] %v857
      %s922 = smul.u32 32, %s14
      %p923 = scmp.lt.s32.totalorder %s922, 63
      %s924 = scalar_select %p923, %s922, 63
      %s925 = smul.addr %s924, 4
      %s926 = scalar_lea.vmem %s3, %s925
      // Predicated region
      $region33: #{_lambda_.4} parent=31 // pred_check
        %p927 = pneg %p100
      $region34: #{_lambda_.4} parent=31 // pred_check_branch
        %929 = sbr.rel (%p927) target = $region36
      $region35: #{_lambda_.4} parent=31 // pred_region
        %s930 = smul.u32 32, %s14
      $region36: #{_lambda_.4} parent=31 // pred_fallthru
        _
    $region32: #{_lambda_.4} parent=5 // pred_fallthru
      _
    %p931 = scmp.le.s32.totalorder 2, %s9
    // Predicated region
    $region37: #{_lambda_.4} parent=5 // pred_check
      %p932 = pneg %p931
    $region38: #{_lambda_.4} parent=5 // pred_check_branch
      %934 = sbr.rel (%p932) target = $region40
    $region39: #{_lambda_.4} parent=5 // pred_region
      %s935 = ssub.s32 %s9, 2
      // Predicated region
      $region41: #{_lambda_.4} parent=39 // pred_check
        %p936 = pneg %p106
      $region42: #{_lambda_.4} parent=39 // pred_check_branch
        %938 = sbr.rel (%p936) target = $region44
      $region43: #{_lambda_.4} parent=39 // pred_region
        %s939 = smul.u32 32, %s15
        %p940 = scmp.lt.s32.totalorder %s939, 63
        %s941 = scalar_select %p940, %s939, 63
        %s942 = smul.addr %s941, 4
        %s943 = scalar_lea.vmem %s3, %s942
      $region44: #{_lambda_.4} parent=39 // pred_fallthru
        _
    $region40: #{_lambda_.4} parent=5 // pred_fallthru
      _
  $region6: #{_lambda_.4} parent=0 // loop_footer
    %s13 = sadd.s32 1, %s9
  $region7: #{_lambda_.4} parent=0 // loop_footer_branch
    %8 = sbr.rel target = $region3
  $region8: #{_lambda_.4} parent=0 // loop_exit
    _

// kernel: _lambda_.5
$region0: #{_lambda_.5}
  #allocation0 [shape = 'u32[]', space=smem, size = 0x4, offset = 0x4, fixed_abs, tag = 'smem constant byte address 0x4 - core index']
  #allocation1 [shape = 'u32[144,128]{1,0:T(1,128)}', space=vmem, size = 0x12000, scoped, tag = 'internal scratch']
  #allocation2 [shape = 'f32[1,1]{1,0:T(1,128)S(1)}', space=vmem, size = 0x200, scoped, tag = 'scoped memory for _lambda_.5']
  %s0 = inlined_call_operand.vmem [shape: bf16[128,512], index: 0, kind: input, shape index: {}]
  %s1 = inlined_call_operand.vmem [shape: bf16[512,128], index: 1, kind: input, shape index: {}]
  %s2 = inlined_call_operand.vmem [shape: f32[1,128], index: 2, kind: input, shape index: {}]
  %s3 = inlined_call_operand.vmem [shape: bf16[16,32,128], index: 3, kind: input, shape index: {}]
  %s4 = inlined_call_operand.vmem [shape: bf16[16,128,128], index: 4, kind: input, shape index: {}]
  %s5 = inlined_call_operand.vmem [shape: f32[1,128], index: 5, kind: input, shape index: {}]
  %s6 = inlined_call_operand.vmem [shape: f32[32,128], index: 6, kind: input, shape index: {}]
  %s7 = inlined_call_operand.vmem [shape: f32[2,32], index: 7, kind: input, shape index: {}]
  %s8 = inlined_call_operand.<no memory space> [shape: f32[1,1], index: 8, kind: input, shape index: {}]
  %s9 = inlined_call_operand.vmem [shape: f32[2,1], index: 9, kind: output, shape index: {}]
  %s10 = sld [smem:[#allocation0]]
  $region46: #{_lambda_.5} parent=0
    _
  %s12 = ssub.s32 1, %s10
  %s13 = scalar_select 0, %s12, %s10
  %v14 = vstv %s8
  %15 = vst [vmem:[#allocation2] sm:$0x1] %v14
  // Predicated region
  $region2: #{_lambda_.5} parent=0 // pred_check
    _
  $region3: #{_lambda_.5} parent=0 // pred_check_branch
    %17 = sbr.rel (0) target = $region5
  $region4: #{_lambda_.5} parent=0 // pred_region
    _
  $region5: #{_lambda_.5} parent=0 // pred_fallthru
    _
  // Predicated region
  $region6: #{_lambda_.5} parent=0 // pred_check
    _
  $region7: #{_lambda_.5} parent=0 // pred_check_branch
    %19 = sbr.rel (0) target = $region9
  $region8: #{_lambda_.5} parent=0 // pred_region
    _
  $region9: #{_lambda_.5} parent=0 // pred_fallthru
    _
  // Predicated region
  $region10: #{_lambda_.5} parent=0 // pred_check
    _
  $region11: #{_lambda_.5} parent=0 // pred_check_branch
    %21 = sbr.rel (0) target = $region13
  $region12: #{_lambda_.5} parent=0 // pred_region
    _
  $region13: #{_lambda_.5} parent=0 // pred_fallthru
    _
  // Predicated region
  $region14: #{_lambda_.5} parent=0 // pred_check
    _
  $region15: #{_lambda_.5} parent=0 // pred_check_branch
    %23 = sbr.rel (0) target = $region17
  $region16: #{_lambda_.5} parent=0 // pred_region
    _
  $region17: #{_lambda_.5} parent=0 // pred_fallthru
    _
  // Predicated region
  $region18: #{_lambda_.5} parent=0 // pred_check
    _
  $region19: #{_lambda_.5} parent=0 // pred_check_branch
    %25 = sbr.rel (0) target = $region21
  $region20: #{_lambda_.5} parent=0 // pred_region
    _
  $region21: #{_lambda_.5} parent=0 // pred_fallthru
    _
  // Predicated region
  $region22: #{_lambda_.5} parent=0 // pred_check
    _
  $region23: #{_lambda_.5} parent=0 // pred_check_branch
    %27 = sbr.rel (0) target = $region25
  $region24: #{_lambda_.5} parent=0 // pred_region
    _
  $region25: #{_lambda_.5} parent=0 // pred_fallthru
    _
  // Predicated region
  $region26: #{_lambda_.5} parent=0 // pred_check
    _
  $region27: #{_lambda_.5} parent=0 // pred_check_branch
    %29 = sbr.rel (0) target = $region29
  $region28: #{_lambda_.5} parent=0 // pred_region
    _
  $region29: #{_lambda_.5} parent=0 // pred_fallthru
    _
  // Predicated region
  $region30: #{_lambda_.5} parent=0 // pred_check
    _
  $region31: #{_lambda_.5} parent=0 // pred_check_branch
    %31 = sbr.rel (0) target = $region33
  $region32: #{_lambda_.5} parent=0 // pred_region
    _
  $region33: #{_lambda_.5} parent=0 // pred_fallthru
    _
  // Predicated region
  $region34: #{_lambda_.5} parent=0 // pred_check
    _
  $region35: #{_lambda_.5} parent=0 // pred_check_branch
    %33 = sbr.rel (0) target = $region37
  $region36: #{_lambda_.5} parent=0 // pred_region
    _
  $region37: #{_lambda_.5} parent=0 // pred_fallthru
    _
  %v35 = vld [vmem:[%s0] sm:$0xff]
  %v36 = vld [vmem:[%s0 + $0x8] sm:$0xff]
  %v37 = vld [vmem:[%s0 + $0x10] sm:$0xff]
  %v38 = vld [vmem:[%s0 + $0x18] sm:$0xff]
  %v39 = vld [vmem:[%s0 + $0x20] sm:$0xff]
  %v40 = vld [vmem:[%s0 + $0x28] sm:$0xff]
  %v41 = vld [vmem:[%s0 + $0x30] sm:$0xff]
  %v42 = vld [vmem:[%s0 + $0x38] sm:$0xff]
  %v43 = vld [vmem:[%s0 + $0x40] sm:$0xff]
  %v44 = vld [vmem:[%s0 + $0x48] sm:$0xff]
  %v45 = vld [vmem:[%s0 + $0x50] sm:$0xff]
  %v46 = vld [vmem:[%s0 + $0x58] sm:$0xff]
  %v47 = vld [vmem:[%s0 + $0x60] sm:$0xff]
  %v48 = vld [vmem:[%s0 + $0x68] sm:$0xff]
  %v49 = vld [vmem:[%s0 + $0x70] sm:$0xff]
  %v50 = vld [vmem:[%s0 + $0x78] sm:$0xff]
  %v51 = vld [vmem:[%s0 + $0x80] sm:$0xff]
  %v52 = vld [vmem:[%s0 + $0x88] sm:$0xff]
  %v53 = vld [vmem:[%s0 + $0x90] sm:$0xff]
  %v54 = vld [vmem:[%s0 + $0x98] sm:$0xff]
  %v55 = vld [vmem:[%s0 + $0xa0] sm:$0xff]
  %v56 = vld [vmem:[%s0 + $0xa8] sm:$0xff]
  %v57 = vld [vmem:[%s0 + $0xb0] sm:$0xff]
  %v58 = vld [vmem:[%s0 + $0xb8] sm:$0xff]
  %v59 = vld [vmem:[%s0 + $0xc0] sm:$0xff]
  %v60 = vld [vmem:[%s0 + $0xc8] sm:$0xff]
  %v61 = vld [vmem:[%s0 + $0xd0] sm:$0xff]
  %v62 = vld [vmem:[%s0 + $0xd8] sm:$0xff]
  %v63 = vld [vmem:[%s0 + $0xe0] sm:$0xff]
  %v64 = vld [vmem:[%s0 + $0xe8] sm:$0xff]
  %v65 = vld [vmem:[%s0 + $0xf0] sm:$0xff]
  %v66 = vld [vmem:[%s0 + $0xf8] sm:$0xff]
  %v67 = vld [vmem:[%s1] sm:$0xf]
  %v68 = vld [vmem:[%s1 + $0x4] sm:$0xf]
  %v69 = vld [vmem:[%s1 + $0x8] sm:$0xf]
  %v70 = vld [vmem:[%s1 + $0xc] sm:$0xf]
  %v71 = vld [vmem:[%s1 + $0x10] sm:$0xf]
  %v72 = vld [vmem:[%s1 + $0x14] sm:$0xf]
  %v73 = vld [vmem:[%s1 + $0x18] sm:$0xf]
  %v74 = vld [vmem:[%s1 + $0x1c] sm:$0xf]
  %v75 = vld [vmem:[%s1 + $0x20] sm:$0xf]
  %v76 = vld [vmem:[%s1 + $0x24] sm:$0xf]
  %v77 = vld [vmem:[%s1 + $0x28] sm:$0xf]
  %v78 = vld [vmem:[%s1 + $0x2c] sm:$0xf]
  %v79 = vld [vmem:[%s1 + $0x30] sm:$0xf]
  %v80 = vld [vmem:[%s1 + $0x34] sm:$0xf]
  %v81 = vld [vmem:[%s1 + $0x38] sm:$0xf]
  %v82 = vld [vmem:[%s1 + $0x3c] sm:$0xf]
  %v83 = vld [vmem:[%s1 + $0x40] sm:$0xf]
  %v84 = vld [vmem:[%s1 + $0x44] sm:$0xf]
  %v85 = vld [vmem:[%s1 + $0x48] sm:$0xf]
  %v86 = vld [vmem:[%s1 + $0x4c] sm:$0xf]
  %v87 = vld [vmem:[%s1 + $0x50] sm:$0xf]
  %v88 = vld [vmem:[%s1 + $0x54] sm:$0xf]
  %v89 = vld [vmem:[%s1 + $0x58] sm:$0xf]
  %v90 = vld [vmem:[%s1 + $0x5c] sm:$0xf]
  %v91 = vld [vmem:[%s1 + $0x60] sm:$0xf]
  %v92 = vld [vmem:[%s1 + $0x64] sm:$0xf]
  %v93 = vld [vmem:[%s1 + $0x68] sm:$0xf]
  %v94 = vld [vmem:[%s1 + $0x6c] sm:$0xf]
  %v95 = vld [vmem:[%s1 + $0x70] sm:$0xf]
  %v96 = vld [vmem:[%s1 + $0x74] sm:$0xf]
  %v97 = vld [vmem:[%s1 + $0x78] sm:$0xf]
  %v98 = vld [vmem:[%s1 + $0x7c] sm:$0xf]
  %v99 = vld [vmem:[%s1 + $0x80] sm:$0xf]
  %v100 = vld [vmem:[%s1 + $0x84] sm:$0xf]
  %v101 = vld [vmem:[%s1 + $0x88] sm:$0xf]
  %v102 = vld [vmem:[%s1 + $0x8c] sm:$0xf]
  %v103 = vld [vmem:[%s1 + $0x90] sm:$0xf]
  %v104 = vld [vmem:[%s1 + $0x94] sm:$0xf]
  %v105 = vld [vmem:[%s1 + $0x98] sm:$0xf]
  %v106 = vld [vmem:[%s1 + $0x9c] sm:$0xf]
  %v107 = vld [vmem:[%s1 + $0xa0] sm:$0xf]
  %v108 = vld [vmem:[%s1 + $0xa4] sm:$0xf]
  %v109 = vld [vmem:[%s1 + $0xa8] sm:$0xf]
  %v110 = vld [vmem:[%s1 + $0xac] sm:$0xf]
  %v111 = vld [vmem:[%s1 + $0xb0] sm:$0xf]
  %v112 = vld [vmem:[%s1 + $0xb4] sm:$0xf]
  %v113 = vld [vmem:[%s1 + $0xb8] sm:$0xf]
  %v114 = vld [vmem:[%s1 + $0xbc] sm:$0xf]
  %v115 = vld [vmem:[%s1 + $0xc0] sm:$0xf]
  %v116 = vld [vmem:[%s1 + $0xc4] sm:$0xf]
  %v117 = vld [vmem:[%s1 + $0xc8] sm:$0xf]
  %v118 = vld [vmem:[%s1 + $0xcc] sm:$0xf]
  %v119 = vld [vmem:[%s1 + $0xd0] sm:$0xf]
  %v120 = vld [vmem:[%s1 + $0xd4] sm:$0xf]
  %v121 = vld [vmem:[%s1 + $0xd8] sm:$0xf]
  %v122 = vld [vmem:[%s1 + $0xdc] sm:$0xf]
  %v123 = vld [vmem:[%s1 + $0xe0] sm:$0xf]
  %v124 = vld [vmem:[%s1 + $0xe4] sm:$0xf]
  %v125 = vld [vmem:[%s1 + $0xe8] sm:$0xf]
  %v126 = vld [vmem:[%s1 + $0xec] sm:$0xf]
  %v127 = vld [vmem:[%s1 + $0xf0] sm:$0xf]
  %v128 = vld [vmem:[%s1 + $0xf4] sm:$0xf]
  %v129 = vld [vmem:[%s1 + $0xf8] sm:$0xf]
  %v130 = vld [vmem:[%s1 + $0xfc] sm:$0xf]
  %v131 = vld [vmem:[%s2] sm:$0x1]
  %v133 = vlaneseq
  %v134 = vshrl.u32 %v133, 7
  %v135 = vsub.s32 0, %v134
  %v136 = vrot.slane %v131, %v135
  %v170 = vunpack.c.l.b16 %v35
  %v171 = vunpack.c.h.b16 %v35
  %v172 = vunpack.c.l.b16 %v36
  %v173 = vunpack.c.h.b16 %v36
  %v174 = vunpack.c.l.b16 %v37
  %v175 = vunpack.c.h.b16 %v37
  %v176 = vunpack.c.l.b16 %v38
  %v177 = vunpack.c.h.b16 %v38
  %v178 = vunpack.c.l.b16 %v39
  %v179 = vunpack.c.h.b16 %v39
  %v180 = vunpack.c.l.b16 %v40
  %v181 = vunpack.c.h.b16 %v40
  %v182 = vunpack.c.l.b16 %v41
  %v183 = vunpack.c.h.b16 %v41
  %v184 = vunpack.c.l.b16 %v42
  %v185 = vunpack.c.h.b16 %v42
  %v186 = vunpack.c.l.b16 %v43
  %v187 = vunpack.c.h.b16 %v43
  %v188 = vunpack.c.l.b16 %v44
  %v189 = vunpack.c.h.b16 %v44
  %v190 = vunpack.c.l.b16 %v45
  %v191 = vunpack.c.h.b16 %v45
  %v192 = vunpack.c.l.b16 %v46
  %v193 = vunpack.c.h.b16 %v46
  %v194 = vunpack.c.l.b16 %v47
  %v195 = vunpack.c.h.b16 %v47
  %v196 = vunpack.c.l.b16 %v48
  %v197 = vunpack.c.h.b16 %v48
  %v198 = vunpack.c.l.b16 %v49
  %v199 = vunpack.c.h.b16 %v49
  %v200 = vunpack.c.l.b16 %v50
  %v201 = vunpack.c.h.b16 %v50
  %v202 = vunpack.c.l.b16 %v51
  %v203 = vunpack.c.h.b16 %v51
  %v204 = vunpack.c.l.b16 %v52
  %v205 = vunpack.c.h.b16 %v52
  %v206 = vunpack.c.l.b16 %v53
  %v207 = vunpack.c.h.b16 %v53
  %v208 = vunpack.c.l.b16 %v54
  %v209 = vunpack.c.h.b16 %v54
  %v210 = vunpack.c.l.b16 %v55
  %v211 = vunpack.c.h.b16 %v55
  %v212 = vunpack.c.l.b16 %v56
  %v213 = vunpack.c.h.b16 %v56
  %v214 = vunpack.c.l.b16 %v57
  %v215 = vunpack.c.h.b16 %v57
  %v216 = vunpack.c.l.b16 %v58
  %v217 = vunpack.c.h.b16 %v58
  %v218 = vunpack.c.l.b16 %v59
  %v219 = vunpack.c.h.b16 %v59
  %v220 = vunpack.c.l.b16 %v60
  %v221 = vunpack.c.h.b16 %v60
  %v222 = vunpack.c.l.b16 %v61
  %v223 = vunpack.c.h.b16 %v61
  %v224 = vunpack.c.l.b16 %v62
  %v225 = vunpack.c.h.b16 %v62
  %v226 = vunpack.c.l.b16 %v63
  %v227 = vunpack.c.h.b16 %v63
  %v228 = vunpack.c.l.b16 %v64
  %v229 = vunpack.c.h.b16 %v64
  %v230 = vunpack.c.l.b16 %v65
  %v231 = vunpack.c.h.b16 %v65
  %v232 = vunpack.c.l.b16 %v66
  %v233 = vunpack.c.h.b16 %v66
  %v234 = vpack.c.b16 %v174, %v170
  %v235 = vpack.c.b16 %v175, %v171
  %v236 = vpack.c.b16 %v176, %v172
  %v237 = vpack.c.b16 %v177, %v173
  %v238 = vpack.c.b16 %v182, %v178
  %v239 = vpack.c.b16 %v183, %v179
  %v240 = vpack.c.b16 %v184, %v180
  %v241 = vpack.c.b16 %v185, %v181
  %v242 = vpack.c.b16 %v190, %v186
  %v243 = vpack.c.b16 %v191, %v187
  %v244 = vpack.c.b16 %v192, %v188
  %v245 = vpack.c.b16 %v193, %v189
  %v246 = vpack.c.b16 %v198, %v194
  %v247 = vpack.c.b16 %v199, %v195
  %v248 = vpack.c.b16 %v200, %v196
  %v249 = vpack.c.b16 %v201, %v197
  %v250 = vpack.c.b16 %v206, %v202
  %v251 = vpack.c.b16 %v207, %v203
  %v252 = vpack.c.b16 %v208, %v204
  %v253 = vpack.c.b16 %v209, %v205
  %v254 = vpack.c.b16 %v214, %v210
  %v255 = vpack.c.b16 %v215, %v211
  %v256 = vpack.c.b16 %v216, %v212
  %v257 = vpack.c.b16 %v217, %v213
  %v258 = vpack.c.b16 %v222, %v218
  %v259 = vpack.c.b16 %v223, %v219
  %v260 = vpack.c.b16 %v224, %v220
  %v261 = vpack.c.b16 %v225, %v221
  %v262 = vpack.c.b16 %v230, %v226
  %v263 = vpack.c.b16 %v231, %v227
  %v264 = vpack.c.b16 %v232, %v228
  %v265 = vpack.c.b16 %v233, %v229
  %v362 = vunpack.c.l.b16 %v67
  %v363 = vunpack.c.l.b16 %v68
  %v364 = vunpack.c.l.b16 %v69
  %v365 = vunpack.c.l.b16 %v70
  %v366 = vunpack.c.l.b16 %v71
  %v367 = vunpack.c.l.b16 %v72
  %v368 = vunpack.c.l.b16 %v73
  %v369 = vunpack.c.l.b16 %v74
  %v370 = vunpack.c.l.b16 %v75
  %v371 = vunpack.c.l.b16 %v76
  %v372 = vunpack.c.l.b16 %v77
  %v373 = vunpack.c.l.b16 %v78
  %v374 = vunpack.c.l.b16 %v79
  %v375 = vunpack.c.l.b16 %v80
  %v376 = vunpack.c.l.b16 %v81
  %v377 = vunpack.c.l.b16 %v82
  %v378 = vunpack.c.l.b16 %v83
  %v379 = vunpack.c.l.b16 %v84
  %v380 = vunpack.c.l.b16 %v85
  %v381 = vunpack.c.l.b16 %v86
  %v382 = vunpack.c.l.b16 %v87
  %v383 = vunpack.c.l.b16 %v88
  %v384 = vunpack.c.l.b16 %v89
  %v385 = vunpack.c.l.b16 %v90
  %v386 = vunpack.c.l.b16 %v91
  %v387 = vunpack.c.l.b16 %v92
  %v388 = vunpack.c.l.b16 %v93
  %v389 = vunpack.c.l.b16 %v94
  %v390 = vunpack.c.l.b16 %v95
  %v391 = vunpack.c.l.b16 %v96
  %v392 = vunpack.c.l.b16 %v97
  %v393 = vunpack.c.l.b16 %v98
  %v394 = vunpack.c.l.b16 %v99
  %v395 = vunpack.c.l.b16 %v100
  %v396 = vunpack.c.l.b16 %v101
  %v397 = vunpack.c.l.b16 %v102
  %v398 = vunpack.c.l.b16 %v103
  %v399 = vunpack.c.l.b16 %v104
  %v400 = vunpack.c.l.b16 %v105
  %v401 = vunpack.c.l.b16 %v106
  %v402 = vunpack.c.l.b16 %v107
  %v403 = vunpack.c.l.b16 %v108
  %v404 = vunpack.c.l.b16 %v109
  %v405 = vunpack.c.l.b16 %v110
  %v406 = vunpack.c.l.b16 %v111
  %v407 = vunpack.c.l.b16 %v112
  %v408 = vunpack.c.l.b16 %v113
  %v409 = vunpack.c.l.b16 %v114
  %v410 = vunpack.c.l.b16 %v115
  %v411 = vunpack.c.l.b16 %v116
  %v412 = vunpack.c.l.b16 %v117
  %v413 = vunpack.c.l.b16 %v118
  %v414 = vunpack.c.l.b16 %v119
  %v415 = vunpack.c.l.b16 %v120
  %v416 = vunpack.c.l.b16 %v121
  %v417 = vunpack.c.l.b16 %v122
  %v418 = vunpack.c.l.b16 %v123
  %v419 = vunpack.c.l.b16 %v124
  %v420 = vunpack.c.l.b16 %v125
  %v421 = vunpack.c.l.b16 %v126
  %v422 = vunpack.c.l.b16 %v127
  %v423 = vunpack.c.l.b16 %v128
  %v424 = vunpack.c.l.b16 %v129
  %v425 = vunpack.c.l.b16 %v130
  %v426 = vpack.c.b16 %v363, %v362
  %v427 = vpack.c.b16 %v365, %v364
  %v428 = vpack.c.b16 %v367, %v366
  %v429 = vpack.c.b16 %v369, %v368
  %v430 = vpack.c.b16 %v371, %v370
  %v431 = vpack.c.b16 %v373, %v372
  %v432 = vpack.c.b16 %v375, %v374
  %v433 = vpack.c.b16 %v377, %v376
  %v434 = vpack.c.b16 %v379, %v378
  %v435 = vpack.c.b16 %v381, %v380
  %v436 = vpack.c.b16 %v383, %v382
  %v437 = vpack.c.b16 %v385, %v384
  %v438 = vpack.c.b16 %v387, %v386
  %v439 = vpack.c.b16 %v389, %v388
  %v440 = vpack.c.b16 %v391, %v390
  %v441 = vpack.c.b16 %v393, %v392
  %v442 = vpack.c.b16 %v395, %v394
  %v443 = vpack.c.b16 %v397, %v396
  %v444 = vpack.c.b16 %v399, %v398
  %v445 = vpack.c.b16 %v401, %v400
  %v446 = vpack.c.b16 %v403, %v402
  %v447 = vpack.c.b16 %v405, %v404
  %v448 = vpack.c.b16 %v407, %v406
  %v449 = vpack.c.b16 %v409, %v408
  %v450 = vpack.c.b16 %v411, %v410
  %v451 = vpack.c.b16 %v413, %v412
  %v452 = vpack.c.b16 %v415, %v414
  %v453 = vpack.c.b16 %v417, %v416
  %v454 = vpack.c.b16 %v419, %v418
  %v455 = vpack.c.b16 %v421, %v420
  %v456 = vpack.c.b16 %v423, %v422
  %v457 = vpack.c.b16 %v425, %v424
  %490 = vmatprep.subr.bf16.mxu0 0
  %491 = vmatpush1.bf16.msra.mxu0 %v426
  %492 = vmatprep.subr.bf16.mxu0 0
  %493 = vmatpush1.bf16.msra.mxu0 %v427
  %494 = vmatprep.subr.bf16.mxu0 0
  %495 = vmatpush1.bf16.msra.mxu0 %v428
  %496 = vmatprep.subr.bf16.mxu0 0
  %497 = vmatpush1.bf16.msra.mxu0 %v429
  %498 = vmatprep.subr.bf16.mxu0 0
  %499 = vmatpush1.bf16.msra.mxu0 %v430
  %500 = vmatprep.subr.bf16.mxu0 0
  %501 = vmatpush1.bf16.msra.mxu0 %v431
  %502 = vmatprep.subr.bf16.mxu0 0
  %503 = vmatpush1.bf16.msra.mxu0 %v432
  %504 = vmatprep.subr.bf16.mxu0 0
  %505 = vmatpush1.bf16.msra.mxu0 %v433
  %506 = vmatprep.subr.bf16.mxu0 0
  %507 = vmatpush1.bf16.msra.mxu0 %v434
  %508 = vmatprep.subr.bf16.mxu0 0
  %509 = vmatpush1.bf16.msra.mxu0 %v435
  %510 = vmatprep.subr.bf16.mxu0 0
  %511 = vmatpush1.bf16.msra.mxu0 %v436
  %512 = vmatprep.subr.bf16.mxu0 0
  %513 = vmatpush1.bf16.msra.mxu0 %v437
  %514 = vmatprep.subr.bf16.mxu0 0
  %515 = vmatpush1.bf16.msra.mxu0 %v438
  %516 = vmatprep.subr.bf16.mxu0 0
  %517 = vmatpush1.bf16.msra.mxu0 %v439
  %518 = vmatprep.subr.bf16.mxu0 0
  %519 = vmatpush1.bf16.msra.mxu0 %v440
  %520 = vmatprep.subr.bf16.mxu0 0
  %521 = vmatpush1.bf16.msra.mxu0 %v441
  %522 = vmatprep.mubr.bf16.mxu0 %v235
  %523 = vmatmul.mubr.bf16.gmra.mrb[0].mxu0 %v234
  %v524 = vpop.f32.mrb[0].mxu0
  %v525 = vadd.f32 %v136, %v524
  %v526 = vpop.f32.mrb[0].mxu0
  %v527 = vpop.f32.mrb[0].mxu0
  %v528 = vadd.f32 %v136, %v527
  %v529 = vpop.f32.mrb[0].mxu0
  %530 = vmatprep.mubr.bf16.mxu0 %v239
  %531 = vmatmul.mubr.bf16.gmra.mrb[0].mxu0 %v238
  %v532 = vpop.f32.mrb[0].mxu0
  %v533 = vadd.f32 %v136, %v532
  %v534 = vpop.f32.mrb[0].mxu0
  %v535 = vpop.f32.mrb[0].mxu0
  %v536 = vadd.f32 %v136, %v535
  %v537 = vpop.f32.mrb[0].mxu0
  %538 = vmatprep.mubr.bf16.mxu0 %v243
  %539 = vmatmul.mubr.bf16.gmra.mrb[0].mxu0 %v242
  %v540 = vpop.f32.mrb[0].mxu0
  %v541 = vadd.f32 %v136, %v540
  %v542 = vpop.f32.mrb[0].mxu0
  %v543 = vpop.f32.mrb[0].mxu0
  %v544 = vadd.f32 %v136, %v543
  %v545 = vpop.f32.mrb[0].mxu0
  %546 = vmatprep.mubr.bf16.mxu0 %v247
  %547 = vmatmul.mubr.bf16.gmra.mrb[0].mxu0 %v246
  %v548 = vpop.f32.mrb[0].mxu0
  %v549 = vadd.f32 %v136, %v548
  %v550 = vpop.f32.mrb[0].mxu0
  %v551 = vpop.f32.mrb[0].mxu0
  %v552 = vadd.f32 %v136, %v551
  %v553 = vpop.f32.mrb[0].mxu0
  %554 = vmatprep.mubr.bf16.mxu0 %v251
  %555 = vmatmul.mubr.bf16.gmra.mrb[0].mxu0 %v250
  %v556 = vpop.f32.mrb[0].mxu0
  %v557 = vadd.f32 %v136, %v556
  %v558 = vpop.f32.mrb[0].mxu0
  %v559 = vpop.f32.mrb[0].mxu0
  %v560 = vadd.f32 %v136, %v559
  %v561 = vpop.f32.mrb[0].mxu0
  %562 = vmatprep.mubr.bf16.mxu0 %v255
  %563 = vmatmul.mubr.bf16.gmra.mrb[0].mxu0 %v254
  %v564 = vpop.f32.mrb[0].mxu0
  %v565 = vadd.f32 %v136, %v564
  %v566 = vpop.f32.mrb[0].mxu0
  %v567 = vpop.f32.mrb[0].mxu0
  %v568 = vadd.f32 %v136, %v567
  %v569 = vpop.f32.mrb[0].mxu0
  %570 = vmatprep.mubr.bf16.mxu0 %v259
  %571 = vmatmul.mubr.bf16.gmra.mrb[0].mxu0 %v258
  %v572 = vpop.f32.mrb[0].mxu0
  %v573 = vadd.f32 %v136, %v572
  %v574 = vpop.f32.mrb[0].mxu0
  %v575 = vpop.f32.mrb[0].mxu0
  %v576 = vadd.f32 %v136, %v575
  %v577 = vpop.f32.mrb[0].mxu0
  %578 = vmatprep.mubr.bf16.mxu0 %v263
  %579 = vmatmul.mubr.bf16.gmra.mrb[0].mxu0 %v262
  %v580 = vpop.f32.mrb[0].mxu0
  %v581 = vadd.f32 %v136, %v580
  %v582 = vpop.f32.mrb[0].mxu0
  %v583 = vpop.f32.mrb[0].mxu0
  %v584 = vadd.f32 %v136, %v583
  %v585 = vpop.f32.mrb[0].mxu0
  %586 = vdwg.mxu0
  %587 = vmatprep.subr.bf16.mxu0 0
  %588 = vmatpush1.bf16.msra.mxu0 %v442
  %589 = vmatprep.subr.bf16.mxu0 0
  %590 = vmatpush1.bf16.msra.mxu0 %v443
  %591 = vmatprep.subr.bf16.mxu0 0
  %592 = vmatpush1.bf16.msra.mxu0 %v444
  %593 = vmatprep.subr.bf16.mxu0 0
  %594 = vmatpush1.bf16.msra.mxu0 %v445
  %595 = vmatprep.subr.bf16.mxu0 0
  %596 = vmatpush1.bf16.msra.mxu0 %v446
  %597 = vmatprep.subr.bf16.mxu0 0
  %598 = vmatpush1.bf16.msra.mxu0 %v447
  %599 = vmatprep.subr.bf16.mxu0 0
  %600 = vmatpush1.bf16.msra.mxu0 %v448
  %601 = vmatprep.subr.bf16.mxu0 0
  %602 = vmatpush1.bf16.msra.mxu0 %v449
  %603 = vmatprep.subr.bf16.mxu0 0
  %604 = vmatpush1.bf16.msra.mxu0 %v450
  %605 = vmatprep.subr.bf16.mxu0 0
  %606 = vmatpush1.bf16.msra.mxu0 %v451
  %607 = vmatprep.subr.bf16.mxu0 0
  %608 = vmatpush1.bf16.msra.mxu0 %v452
  %609 = vmatprep.subr.bf16.mxu0 0
  %610 = vmatpush1.bf16.msra.mxu0 %v453
  %611 = vmatprep.subr.bf16.mxu0 0
  %612 = vmatpush1.bf16.msra.mxu0 %v454
  %613 = vmatprep.subr.bf16.mxu0 0
  %614 = vmatpush1.bf16.msra.mxu0 %v455
  %615 = vmatprep.subr.bf16.mxu0 0
  %616 = vmatpush1.bf16.msra.mxu0 %v456
  %617 = vmatprep.subr.bf16.mxu0 0
  %618 = vmatpush1.bf16.msra.mxu0 %v457
  %619 = vmatprep.mubr.bf16.mxu0 %v237
  %620 = vmatmul.mubr.bf16.gmra.mrb[0].mxu0 %v236
  %v621 = vpop.f32.mrb[0].mxu0
  %v622 = vadd.f32 %v525, %v621
  %v623 = vpop.f32.mrb[0].mxu0
  %v624 = vpop.f32.mrb[0].mxu0
  %v625 = vadd.f32 %v528, %v624
  %v626 = vpop.f32.mrb[0].mxu0
  %627 = vmatprep.mubr.bf16.mxu0 %v241
  %628 = vmatmul.mubr.bf16.gmra.mrb[0].mxu0 %v240
  %v629 = vpop.f32.mrb[0].mxu0
  %v630 = vadd.f32 %v533, %v629
  %v631 = vpop.f32.mrb[0].mxu0
  %v632 = vpop.f32.mrb[0].mxu0
  %v633 = vadd.f32 %v536, %v632
  %v634 = vpop.f32.mrb[0].mxu0
  %635 = vmatprep.mubr.bf16.mxu0 %v245
  %636 = vmatmul.mubr.bf16.gmra.mrb[0].mxu0 %v244
  %v637 = vpop.f32.mrb[0].mxu0
  %v638 = vadd.f32 %v541, %v637
  %v639 = vpop.f32.mrb[0].mxu0
  %v640 = vpop.f32.mrb[0].mxu0
  %v641 = vadd.f32 %v544, %v640
  %v642 = vpop.f32.mrb[0].mxu0
  %643 = vmatprep.mubr.bf16.mxu0 %v249
  %644 = vmatmul.mubr.bf16.gmra.mrb[0].mxu0 %v248
  %v645 = vpop.f32.mrb[0].mxu0
  %v646 = vadd.f32 %v549, %v645
  %v647 = vpop.f32.mrb[0].mxu0
  %v648 = vpop.f32.mrb[0].mxu0
  %v649 = vadd.f32 %v552, %v648
  %v650 = vpop.f32.mrb[0].mxu0
  %651 = vmatprep.mubr.bf16.mxu0 %v253
  %652 = vmatmul.mubr.bf16.gmra.mrb[0].mxu0 %v252
  %v653 = vpop.f32.mrb[0].mxu0
  %v654 = vadd.f32 %v557, %v653
  %v655 = vpop.f32.mrb[0].mxu0
  %v656 = vpop.f32.mrb[0].mxu0
  %v657 = vadd.f32 %v560, %v656
  %v658 = vpop.f32.mrb[0].mxu0
  %659 = vmatprep.mubr.bf16.mxu0 %v257
  %660 = vmatmul.mubr.bf16.gmra.mrb[0].mxu0 %v256
  %v661 = vpop.f32.mrb[0].mxu0
  %v662 = vadd.f32 %v565, %v661
  %v663 = vpop.f32.mrb[0].mxu0
  %v664 = vpop.f32.mrb[0].mxu0
  %v665 = vadd.f32 %v568, %v664
  %v666 = vpop.f32.mrb[0].mxu0
  %667 = vmatprep.mubr.bf16.mxu0 %v261
  %668 = vmatmul.mubr.bf16.gmra.mrb[0].mxu0 %v260
  %v669 = vpop.f32.mrb[0].mxu0
  %v670 = vadd.f32 %v573, %v669
  %v671 = vpop.f32.mrb[0].mxu0
  %v672 = vpop.f32.mrb[0].mxu0
  %v673 = vadd.f32 %v576, %v672
  %v674 = vpop.f32.mrb[0].mxu0
  %675 = vmatprep.mubr.bf16.mxu0 %v265
  %676 = vmatmul.mubr.bf16.gmra.mrb[0].mxu0 %v264
  %v677 = vpop.f32.mrb[0].mxu0
  %v678 = vadd.f32 %v581, %v677
  %v679 = vpop.f32.mrb[0].mxu0
  %v680 = vpop.f32.mrb[0].mxu0
  %v681 = vadd.f32 %v584, %v680
  %v682 = vpop.f32.mrb[0].mxu0
  %683 = vdwg.mxu0
  %vm684 = vcmp.ge.f32.partialorder %v622, 0.0
  %vm685 = vcmp.ge.f32.partialorder %v625, 0.0
  %vm686 = vcmp.ge.f32.partialorder %v630, 0.0
  %vm687 = vcmp.ge.f32.partialorder %v633, 0.0
  %vm688 = vcmp.ge.f32.partialorder %v638, 0.0
  %vm689 = vcmp.ge.f32.partialorder %v641, 0.0
  %vm690 = vcmp.ge.f32.partialorder %v646, 0.0
  %vm691 = vcmp.ge.f32.partialorder %v649, 0.0
  %vm692 = vcmp.ge.f32.partialorder %v654, 0.0
  %vm693 = vcmp.ge.f32.partialorder %v657, 0.0
  %vm694 = vcmp.ge.f32.partialorder %v662, 0.0
  %vm695 = vcmp.ge.f32.partialorder %v665, 0.0
  %vm696 = vcmp.ge.f32.partialorder %v670, 0.0
  %vm697 = vcmp.ge.f32.partialorder %v673, 0.0
  %vm698 = vcmp.ge.f32.partialorder %v678, 0.0
  %vm699 = vcmp.ge.f32.partialorder %v681, 0.0
  %v700 = vmul.f32 %v622, 0.2
  %v701 = vmul.f32 %v625, 0.2
  %v702 = vmul.f32 %v630, 0.2
  %v703 = vmul.f32 %v633, 0.2
  %v704 = vmul.f32 %v638, 0.2
  %v705 = vmul.f32 %v641, 0.2
  %v706 = vmul.f32 %v646, 0.2
  %v707 = vmul.f32 %v649, 0.2
  %v708 = vmul.f32 %v654, 0.2
  %v709 = vmul.f32 %v657, 0.2
  %v710 = vmul.f32 %v662, 0.2
  %v711 = vmul.f32 %v665, 0.2
  %v712 = vmul.f32 %v670, 0.2
  %v713 = vmul.f32 %v673, 0.2
  %v714 = vmul.f32 %v678, 0.2
  %v715 = vmul.f32 %v681, 0.2
  %v716 = vsel %vm684, %v622, %v700
  %v717 = vsel %vm685, %v625, %v701
  %v718 = vsel %vm686, %v630, %v702
  %v719 = vsel %vm687, %v633, %v703
  %v720 = vsel %vm688, %v638, %v704
  %v721 = vsel %vm689, %v641, %v705
  %v722 = vsel %vm690, %v646, %v706
  %v723 = vsel %vm691, %v649, %v707
  %v724 = vsel %vm692, %v654, %v708
  %v725 = vsel %vm693, %v657, %v709
  %v726 = vsel %vm694, %v662, %v710
  %v727 = vsel %vm695, %v665, %v711
  %v728 = vsel %vm696, %v670, %v712
  %v729 = vsel %vm697, %v673, %v713
  %v730 = vsel %vm698, %v678, %v714
  %v731 = vsel %vm699, %v681, %v715
  %v732 = vpack.c.bf16 %v717, %v716
  %v733 = vpack.c.bf16 %v719, %v718
  %v734 = vpack.c.bf16 %v721, %v720
  %v735 = vpack.c.bf16 %v723, %v722
  %v736 = vpack.c.bf16 %v725, %v724
  %v737 = vpack.c.bf16 %v727, %v726
  %v738 = vpack.c.bf16 %v729, %v728
  %v739 = vpack.c.bf16 %v731, %v730
  %v740 = vld [vmem:[%s3] sm:$0xf]
  %v741 = vld [vmem:[%s3 + $0x4] sm:$0xf]
  %v742 = vld [vmem:[%s3 + $0x8] sm:$0xf]
  %v743 = vld [vmem:[%s3 + $0xc] sm:$0xf]
  %v748 = vunpack.c.l.b16 %v740
  %v749 = vunpack.c.l.b16 %v741
  %v750 = vunpack.c.l.b16 %v742
  %v751 = vunpack.c.l.b16 %v743
  %v752 = vpack.c.b16 %v749, %v748
  %v753 = vpack.c.b16 %v751, %v750
  %756 = vmatprep.subr.bf16.mxu0 0
  %757 = vmatpush1.bf16.msra.mxu0 %v732
  %758 = vmatprep.subr.bf16.mxu0 0
  %759 = vmatpush1.bf16.msra.mxu0 %v733
  %760 = vmatprep.subr.bf16.mxu0 0
  %761 = vmatpush1.bf16.msra.mxu0 %v734
  %762 = vmatprep.subr.bf16.mxu0 0
  %763 = vmatpush1.bf16.msra.mxu0 %v735
  %764 = vmatprep.subr.bf16.mxu0 0
  %765 = vmatpush1.bf16.msra.mxu0 %v736
  %766 = vmatprep.subr.bf16.mxu0 0
  %767 = vmatpush1.bf16.msra.mxu0 %v737
  %768 = vmatprep.subr.bf16.mxu0 0
  %769 = vmatpush1.bf16.msra.mxu0 %v738
  %770 = vmatprep.subr.bf16.mxu0 0
  %771 = vmatpush1.bf16.msra.mxu0 %v739
  %772 = vmatprep.subr.bf16.mxu0 0
  %773 = vmatpush1.bf16.msra.mxu0 0
  %774 = vmatprep.subr.bf16.mxu0 0
  %775 = vmatpush1.bf16.msra.mxu0 0
  %776 = vmatprep.subr.bf16.mxu0 0
  %777 = vmatpush1.bf16.msra.mxu0 0
  %778 = vmatprep.subr.bf16.mxu0 0
  %779 = vmatpush1.bf16.msra.mxu0 0
  %780 = vmatprep.subr.bf16.mxu0 0
  %781 = vmatpush1.bf16.msra.mxu0 0
  %782 = vmatprep.subr.bf16.mxu0 0
  %783 = vmatpush1.bf16.msra.mxu0 0
  %784 = vmatprep.subr.bf16.mxu0 0
  %785 = vmatpush1.bf16.msra.mxu0 0
  %786 = vmatprep.subr.bf16.mxu0 0
  %787 = vmatpush1.bf16.msra.mxu0 0
  %788 = vmatprep.mubr.bf16.mxu0 0
  %789 = vmatmul.mubr.bf16.gmra.mrb[0].mxu0 %v752
  %v790 = vpop.f32.mrb[0].mxu0
  %v791 = vadd.f32 0.0, %v790
  %v792 = vpop.f32.mrb[0].mxu0
  %v793 = vpop.f32.mrb[0].mxu0
  %v794 = vadd.f32 0.0, %v793
  %v795 = vpop.f32.mrb[0].mxu0
  %796 = vmatprep.mubr.bf16.mxu0 0
  %797 = vmatmul.mubr.bf16.gmra.mrb[0].mxu0 %v753
  %v798 = vpop.f32.mrb[0].mxu0
  %v799 = vadd.f32 0.0, %v798
  %v800 = vpop.f32.mrb[0].mxu0
  %v801 = vpop.f32.mrb[0].mxu0
  %v802 = vadd.f32 0.0, %v801
  %v803 = vpop.f32.mrb[0].mxu0
  %804 = vdwg.mxu0
  %v805 = vpack.c.bf16 %v794, %v791
  %v806 = vpack.c.bf16 %v802, %v799
  %v807 = vld [vmem:[%s4] sm:$0xf]
  %v808 = vld [vmem:[%s4 + $0x4] sm:$0xf]
  %v809 = vld [vmem:[%s4 + $0x8] sm:$0xf]
  %v810 = vld [vmem:[%s4 + $0xc] sm:$0xf]
  %v811 = vld [vmem:[%s4 + $0x10] sm:$0xf]
  %v812 = vld [vmem:[%s4 + $0x14] sm:$0xf]
  %v813 = vld [vmem:[%s4 + $0x18] sm:$0xf]
  %v814 = vld [vmem:[%s4 + $0x1c] sm:$0xf]
  %v815 = vld [vmem:[%s4 + $0x20] sm:$0xf]
  %v816 = vld [vmem:[%s4 + $0x24] sm:$0xf]
  %v817 = vld [vmem:[%s4 + $0x28] sm:$0xf]
  %v818 = vld [vmem:[%s4 + $0x2c] sm:$0xf]
  %v819 = vld [vmem:[%s4 + $0x30] sm:$0xf]
  %v820 = vld [vmem:[%s4 + $0x34] sm:$0xf]
  %v821 = vld [vmem:[%s4 + $0x38] sm:$0xf]
  %v822 = vld [vmem:[%s4 + $0x3c] sm:$0xf]
  %s823 = scalar_lea.vmem %s3, 16
  %v824 = vld [vmem:[%s823] sm:$0xf]
  %v825 = vld [vmem:[%s823 + $0x4] sm:$0xf]
  %v826 = vld [vmem:[%s823 + $0x8] sm:$0xf]
  %v827 = vld [vmem:[%s823 + $0xc] sm:$0xf]
  %v832 = vunpack.c.l.b16 %v824
  %v833 = vunpack.c.l.b16 %v825
  %v834 = vunpack.c.l.b16 %v826
  %v835 = vunpack.c.l.b16 %v827
  %v836 = vpack.c.b16 %v833, %v832
  %v837 = vpack.c.b16 %v835, %v834
  %840 = vmatprep.subr.bf16.mxu0 0
  %841 = vmatpush1.bf16.msra.mxu0 %v732
  %842 = vmatprep.subr.bf16.mxu0 0
  %843 = vmatpush1.bf16.msra.mxu0 %v733
  %844 = vmatprep.subr.bf16.mxu0 0
  %845 = vmatpush1.bf16.msra.mxu0 %v734
  %846 = vmatprep.subr.bf16.mxu0 0
  %847 = vmatpush1.bf16.msra.mxu0 %v735
  %848 = vmatprep.subr.bf16.mxu0 0
  %849 = vmatpush1.bf16.msra.mxu0 %v736
  %850 = vmatprep.subr.bf16.mxu0 0
  %851 = vmatpush1.bf16.msra.mxu0 %v737
  %852 = vmatprep.subr.bf16.mxu0 0
  %853 = vmatpush1.bf16.msra.mxu0 %v738
  %854 = vmatprep.subr.bf16.mxu0 0
  %855 = vmatpush1.bf16.msra.mxu0 %v739
  %856 = vmatprep.subr.bf16.mxu0 0
  %857 = vmatpush1.bf16.msra.mxu0 0
  %858 = vmatprep.subr.bf16.mxu0 0
  %859 = vmatpush1.bf16.msra.mxu0 0
  %860 = vmatprep.subr.bf16.mxu0 0
  %861 = vmatpush1.bf16.msra.mxu0 0
  %862 = vmatprep.subr.bf16.mxu0 0
  %863 = vmatpush1.bf16.msra.mxu0 0
  %864 = vmatprep.subr.bf16.mxu0 0
  %865 = vmatpush1.bf16.msra.mxu0 0
  %866 = vmatprep.subr.bf16.mxu0 0
  %867 = vmatpush1.bf16.msra.mxu0 0
  %868 = vmatprep.subr.bf16.mxu0 0
  %869 = vmatpush1.bf16.msra.mxu0 0
  %870 = vmatprep.subr.bf16.mxu0 0
  %871 = vmatpush1.bf16.msra.mxu0 0
  %872 = vmatprep.mubr.bf16.mxu0 0
  %873 = vmatmul.mubr.bf16.gmra.mrb[0].mxu0 %v836
  %v874 = vpop.f32.mrb[0].mxu0
  %v875 = vadd.f32 0.0, %v874
  %v876 = vpop.f32.mrb[0].mxu0
  %v877 = vpop.f32.mrb[0].mxu0
  %v878 = vadd.f32 0.0, %v877
  %v879 = vpop.f32.mrb[0].mxu0
  %880 = vmatprep.mubr.bf16.mxu0 0
  %881 = vmatmul.mubr.bf16.gmra.mrb[0].mxu0 %v837
  %v882 = vpop.f32.mrb[0].mxu0
  %v883 = vadd.f32 0.0, %v882
  %v884 = vpop.f32.mrb[0].mxu0
  %v885 = vpop.f32.mrb[0].mxu0
  %v886 = vadd.f32 0.0, %v885
  %v887 = vpop.f32.mrb[0].mxu0
  %888 = vdwg.mxu0
  %v889 = vpack.c.bf16 %v878, %v875
  %v890 = vpack.c.bf16 %v886, %v883
  %s891 = scalar_lea.vmem %s4, 64
  %v892 = vld [vmem:[%s891] sm:$0xf]
  %v893 = vld [vmem:[%s891 + $0x4] sm:$0xf]
  %v894 = vld [vmem:[%s891 + $0x8] sm:$0xf]
  %v895 = vld [vmem:[%s891 + $0xc] sm:$0xf]
  %v896 = vld [vmem:[%s891 + $0x10] sm:$0xf]
  %v897 = vld [vmem:[%s891 + $0x14] sm:$0xf]
  %v898 = vld [vmem:[%s891 + $0x18] sm:$0xf]
  %v899 = vld [vmem:[%s891 + $0x1c] sm:$0xf]
  %v900 = vld [vmem:[%s891 + $0x20] sm:$0xf]
  %v901 = vld [vmem:[%s891 + $0x24] sm:$0xf]
  %v902 = vld [vmem:[%s891 + $0x28] sm:$0xf]
  %v903 = vld [vmem:[%s891 + $0x2c] sm:$0xf]
  %v904 = vld [vmem:[%s891 + $0x30] sm:$0xf]
  %v905 = vld [vmem:[%s891 + $0x34] sm:$0xf]
  %v906 = vld [vmem:[%s891 + $0x38] sm:$0xf]
  %v907 = vld [vmem:[%s891 + $0x3c] sm:$0xf]
  %v924 = vunpack.c.l.b16 %v892
  %v925 = vunpack.c.l.b16 %v893
  %v926 = vunpack.c.l.b16 %v894
  %v927 = vunpack.c.l.b16 %v895
  %v928 = vunpack.c.l.b16 %v896
  %v929 = vunpack.c.l.b16 %v897
  %v930 = vunpack.c.l.b16 %v898
  %v931 = vunpack.c.l.b16 %v899
  %v932 = vunpack.c.l.b16 %v900
  %v933 = vunpack.c.l.b16 %v901
  %v934 = vunpack.c.l.b16 %v902
  %v935 = vunpack.c.l.b16 %v903
  %v936 = vunpack.c.l.b16 %v904
  %v937 = vunpack.c.l.b16 %v905
  %v938 = vunpack.c.l.b16 %v906
  %v939 = vunpack.c.l.b16 %v907
  %v940 = vpack.c.b16 %v925, %v924
  %v941 = vpack.c.b16 %v927, %v926
  %v942 = vpack.c.b16 %v929, %v928
  %v943 = vpack.c.b16 %v931, %v930
  %v944 = vpack.c.b16 %v933, %v932
  %v945 = vpack.c.b16 %v935, %v934
  %v946 = vpack.c.b16 %v937, %v936
  %v947 = vpack.c.b16 %v939, %v938
  %956 = vmatprep.subr.bf16.mxu0 0
  %957 = vmatpush1.bf16.msra.mxu0 %v940
  %958 = vmatprep.subr.bf16.mxu0 0
  %959 = vmatpush1.bf16.msra.mxu0 %v941
  %960 = vmatprep.subr.bf16.mxu0 0
  %961 = vmatpush1.bf16.msra.mxu0 %v942
  %962 = vmatprep.subr.bf16.mxu0 0
  %963 = vmatpush1.bf16.msra.mxu0 %v943
  %964 = vmatprep.subr.bf16.mxu0 0
  %965 = vmatpush1.bf16.msra.mxu0 %v944
  %966 = vmatprep.subr.bf16.mxu0 0
  %967 = vmatpush1.bf16.msra.mxu0 %v945
  %968 = vmatprep.subr.bf16.mxu0 0
  %969 = vmatpush1.bf16.msra.mxu0 %v946
  %970 = vmatprep.subr.bf16.mxu0 0
  %971 = vmatpush1.bf16.msra.mxu0 %v947
  %972 = vmatprep.subr.bf16.mxu0 0
  %973 = vmatpush1.bf16.msra.mxu0 0
  %974 = vmatprep.subr.bf16.mxu0 0
  %975 = vmatpush1.bf16.msra.mxu0 0
  %976 = vmatprep.subr.bf16.mxu0 0
  %977 = vmatpush1.bf16.msra.mxu0 0
  %978 = vmatprep.subr.bf16.mxu0 0
  %979 = vmatpush1.bf16.msra.mxu0 0
  %980 = vmatprep.subr.bf16.mxu0 0
  %981 = vmatpush1.bf16.msra.mxu0 0
  %982 = vmatprep.subr.bf16.mxu0 0
  %983 = vmatpush1.bf16.msra.mxu0 0
  %984 = vmatprep.subr.bf16.mxu0 0
  %985 = vmatpush1.bf16.msra.mxu0 0
  %986 = vmatprep.subr.bf16.mxu0 0
  %987 = vmatpush1.bf16.msra.mxu0 0
  %988 = vmatprep.mubr.bf16.mxu0 0
  %989 = vmatmul.mubr.bf16.gmra.mrb[0].mxu0 %v889
  %v990 = vpop.f32.mrb[0].mxu0
  %v991 = vadd.f32 0.0, %v990
  %v992 = vpop.f32.mrb[0].mxu0
  %v993 = vpop.f32.mrb[0].mxu0
  %v994 = vadd.f32 0.0, %v993
  %v995 = vpop.f32.mrb[0].mxu0
  %996 = vmatprep.mubr.bf16.mxu0 0
  %997 = vmatmul.mubr.bf16.gmra.mrb[0].mxu0 %v890
  %v998 = vpop.f32.mrb[0].mxu0
  %v999 = vadd.f32 0.0, %v998
  %v1000 = vpop.f32.mrb[0].mxu0
  %v1001 = vpop.f32.mrb[0].mxu0
  %v1002 = vadd.f32 0.0, %v1001
  %v1003 = vpop.f32.mrb[0].mxu0
  %1004 = vdwg.mxu0
  %v1021 = vunpack.c.l.b16 %v807
  %v1022 = vunpack.c.l.b16 %v808
  %v1023 = vunpack.c.l.b16 %v809
  %v1024 = vunpack.c.l.b16 %v810
  %v1025 = vunpack.c.l.b16 %v811
  %v1026 = vunpack.c.l.b16 %v812
  %v1027 = vunpack.c.l.b16 %v813
  %v1028 = vunpack.c.l.b16 %v814
  %v1029 = vunpack.c.l.b16 %v815
  %v1030 = vunpack.c.l.b16 %v816
  %v1031 = vunpack.c.l.b16 %v817
  %v1032 = vunpack.c.l.b16 %v818
  %v1033 = vunpack.c.l.b16 %v819
  %v1034 = vunpack.c.l.b16 %v820
  %v1035 = vunpack.c.l.b16 %v821
  %v1036 = vunpack.c.l.b16 %v822
  %v1037 = vpack.c.b16 %v1022, %v1021
  %v1038 = vpack.c.b16 %v1024, %v1023
  %v1039 = vpack.c.b16 %v1026, %v1025
  %v1040 = vpack.c.b16 %v1028, %v1027
  %v1041 = vpack.c.b16 %v1030, %v1029
  %v1042 = vpack.c.b16 %v1032, %v1031
  %v1043 = vpack.c.b16 %v1034, %v1033
  %v1044 = vpack.c.b16 %v1036, %v1035
  %1053 = vmatprep.subr.bf16.mxu0 0
  %1054 = vmatpush1.bf16.msra.mxu0 %v1037
  %1055 = vmatprep.subr.bf16.mxu0 0
  %1056 = vmatpush1.bf16.msra.mxu0 %v1038
  %1057 = vmatprep.subr.bf16.mxu0 0
  %1058 = vmatpush1.bf16.msra.mxu0 %v1039
  %1059 = vmatprep.subr.bf16.mxu0 0
  %1060 = vmatpush1.bf16.msra.mxu0 %v1040
  %1061 = vmatprep.subr.bf16.mxu0 0
  %1062 = vmatpush1.bf16.msra.mxu0 %v1041
  %1063 = vmatprep.subr.bf16.mxu0 0
  %1064 = vmatpush1.bf16.msra.mxu0 %v1042
  %1065 = vmatprep.subr.bf16.mxu0 0
  %1066 = vmatpush1.bf16.msra.mxu0 %v1043
  %1067 = vmatprep.subr.bf16.mxu0 0
  %1068 = vmatpush1.bf16.msra.mxu0 %v1044
  %1069 = vmatprep.subr.bf16.mxu0 0
  %1070 = vmatpush1.bf16.msra.mxu0 0
  %1071 = vmatprep.subr.bf16.mxu0 0
  %1072 = vmatpush1.bf16.msra.mxu0 0
  %1073 = vmatprep.subr.bf16.mxu0 0
  %1074 = vmatpush1.bf16.msra.mxu0 0
  %1075 = vmatprep.subr.bf16.mxu0 0
  %1076 = vmatpush1.bf16.msra.mxu0 0
  %1077 = vmatprep.subr.bf16.mxu0 0
  %1078 = vmatpush1.bf16.msra.mxu0 0
  %1079 = vmatprep.subr.bf16.mxu0 0
  %1080 = vmatpush1.bf16.msra.mxu0 0
  %1081 = vmatprep.subr.bf16.mxu0 0
  %1082 = vmatpush1.bf16.msra.mxu0 0
  %1083 = vmatprep.subr.bf16.mxu0 0
  %1084 = vmatpush1.bf16.msra.mxu0 0
  %1085 = vmatprep.mubr.bf16.mxu0 0
  %1086 = vmatmul.mubr.bf16.gmra.mrb[0].mxu0 %v805
  %v1087 = vpop.f32.mrb[0].mxu0
  %v1088 = vadd.f32 %v991, %v1087
  %v1089 = vpop.f32.mrb[0].mxu0
  %v1090 = vpop.f32.mrb[0].mxu0
  %v1091 = vadd.f32 %v994, %v1090
  %v1092 = vpop.f32.mrb[0].mxu0
  %1093 = vmatprep.mubr.bf16.mxu0 0
  %1094 = vmatmul.mubr.bf16.gmra.mrb[0].mxu0 %v806
  %v1095 = vpop.f32.mrb[0].mxu0
  %v1096 = vadd.f32 %v999, %v1095
  %v1097 = vpop.f32.mrb[0].mxu0
  %v1098 = vpop.f32.mrb[0].mxu0
  %v1099 = vadd.f32 %v1002, %v1098
  %v1100 = vpop.f32.mrb[0].mxu0
  %1101 = vdwg.mxu0
  %s1102 = scalar_lea.vmem %s3, 32
  %v1103 = vld [vmem:[%s1102] sm:$0xf]
  %v1104 = vld [vmem:[%s1102 + $0x4] sm:$0xf]
  %v1105 = vld [vmem:[%s1102 + $0x8] sm:$0xf]
  %v1106 = vld [vmem:[%s1102 + $0xc] sm:$0xf]
  %v1111 = vunpack.c.l.b16 %v1103
  %v1112 = vunpack.c.l.b16 %v1104
  %v1113 = vunpack.c.l.b16 %v1105
  %v1114 = vunpack.c.l.b16 %v1106
  %v1115 = vpack.c.b16 %v1112, %v1111
  %v1116 = vpack.c.b16 %v1114, %v1113
  %1119 = vmatprep.subr.bf16.mxu0 0
  %1120 = vmatpush1.bf16.msra.mxu0 %v732
  %1121 = vmatprep.subr.bf16.mxu0 0
  %1122 = vmatpush1.bf16.msra.mxu0 %v733
  %1123 = vmatprep.subr.bf16.mxu0 0
  %1124 = vmatpush1.bf16.msra.mxu0 %v734
  %1125 = vmatprep.subr.bf16.mxu0 0
  %1126 = vmatpush1.bf16.msra.mxu0 %v735
  %1127 = vmatprep.subr.bf16.mxu0 0
  %1128 = vmatpush1.bf16.msra.mxu0 %v736
  %1129 = vmatprep.subr.bf16.mxu0 0
  %1130 = vmatpush1.bf16.msra.mxu0 %v737
  %1131 = vmatprep.subr.bf16.mxu0 0
  %1132 = vmatpush1.bf16.msra.mxu0 %v738
  %1133 = vmatprep.subr.bf16.mxu0 0
  %1134 = vmatpush1.bf16.msra.mxu0 %v739
  %1135 = vmatprep.subr.bf16.mxu0 0
  %1136 = vmatpush1.bf16.msra.mxu0 0
  %1137 = vmatprep.subr.bf16.mxu0 0
  %1138 = vmatpush1.bf16.msra.mxu0 0
  %1139 = vmatprep.subr.bf16.mxu0 0
  %1140 = vmatpush1.bf16.msra.mxu0 0
  %1141 = vmatprep.subr.bf16.mxu0 0
  %1142 = vmatpush1.bf16.msra.mxu0 0
  %1143 = vmatprep.subr.bf16.mxu0 0
  %1144 = vmatpush1.bf16.msra.mxu0 0
  %1145 = vmatprep.subr.bf16.mxu0 0
  %1146 = vmatpush1.bf16.msra.mxu0 0
  %1147 = vmatprep.subr.bf16.mxu0 0
  %1148 = vmatpush1.bf16.msra.mxu0 0
  %1149 = vmatprep.subr.bf16.mxu0 0
  %1150 = vmatpush1.bf16.msra.mxu0 0
  %1151 = vmatprep.mubr.bf16.mxu0 0
  %1152 = vmatmul.mubr.bf16.gmra.mrb[0].mxu0 %v1115
  %v1153 = vpop.f32.mrb[0].mxu0
  %v1154 = vadd.f32 0.0, %v1153
  %v1155 = vpop.f32.mrb[0].mxu0
  %v1156 = vpop.f32.mrb[0].mxu0
  %v1157 = vadd.f32 0.0, %v1156
  %v1158 = vpop.f32.mrb[0].mxu0
  %1159 = vmatprep.mubr.bf16.mxu0 0
  %1160 = vmatmul.mubr.bf16.gmra.mrb[0].mxu0 %v1116
  %v1161 = vpop.f32.mrb[0].mxu0
  %v1162 = vadd.f32 0.0, %v1161
  %v1163 = vpop.f32.mrb[0].mxu0
  %v1164 = vpop.f32.mrb[0].mxu0
  %v1165 = vadd.f32 0.0, %v1164
  %v1166 = vpop.f32.mrb[0].mxu0
  %1167 = vdwg.mxu0
  %v1168 = vpack.c.bf16 %v1157, %v1154
  %v1169 = vpack.c.bf16 %v1165, %v1162
  %s1170 = scalar_lea.vmem %s4, 128
  %v1171 = vld [vmem:[%s1170] sm:$0xf]
  %v1172 = vld [vmem:[%s1170 + $0x4] sm:$0xf]
  %v1173 = vld [vmem:[%s1170 + $0x8] sm:$0xf]
  %v1174 = vld [vmem:[%s1170 + $0xc] sm:$0xf]
  %v1175 = vld [vmem:[%s1170 + $0x10] sm:$0xf]
  %v1176 = vld [vmem:[%s1170 + $0x14] sm:$0xf]
  %v1177 = vld [vmem:[%s1170 + $0x18] sm:$0xf]
  %v1178 = vld [vmem:[%s1170 + $0x1c] sm:$0xf]
  %v1179 = vld [vmem:[%s1170 + $0x20] sm:$0xf]
  %v1180 = vld [vmem:[%s1170 + $0x24] sm:$0xf]
  %v1181 = vld [vmem:[%s1170 + $0x28] sm:$0xf]
  %v1182 = vld [vmem:[%s1170 + $0x2c] sm:$0xf]
  %v1183 = vld [vmem:[%s1170 + $0x30] sm:$0xf]
  %v1184 = vld [vmem:[%s1170 + $0x34] sm:$0xf]
  %v1185 = vld [vmem:[%s1170 + $0x38] sm:$0xf]
  %v1186 = vld [vmem:[%s1170 + $0x3c] sm:$0xf]
  %v1203 = vunpack.c.l.b16 %v1171
  %v1204 = vunpack.c.l.b16 %v1172
  %v1205 = vunpack.c.l.b16 %v1173
  %v1206 = vunpack.c.l.b16 %v1174
  %v1207 = vunpack.c.l.b16 %v1175
  %v1208 = vunpack.c.l.b16 %v1176
  %v1209 = vunpack.c.l.b16 %v1177
  %v1210 = vunpack.c.l.b16 %v1178
  %v1211 = vunpack.c.l.b16 %v1179
  %v1212 = vunpack.c.l.b16 %v1180
  %v1213 = vunpack.c.l.b16 %v1181
  %v1214 = vunpack.c.l.b16 %v1182
  %v1215 = vunpack.c.l.b16 %v1183
  %v1216 = vunpack.c.l.b16 %v1184
  %v1217 = vunpack.c.l.b16 %v1185
  %v1218 = vunpack.c.l.b16 %v1186
  %v1219 = vpack.c.b16 %v1204, %v1203
  %v1220 = vpack.c.b16 %v1206, %v1205
  %v1221 = vpack.c.b16 %v1208, %v1207
  %v1222 = vpack.c.b16 %v1210, %v1209
  %v1223 = vpack.c.b16 %v1212, %v1211
  %v1224 = vpack.c.b16 %v1214, %v1213
  %v1225 = vpack.c.b16 %v1216, %v1215
  %v1226 = vpack.c.b16 %v1218, %v1217
  %1235 = vmatprep.subr.bf16.mxu0 0
  %1236 = vmatpush1.bf16.msra.mxu0 %v1219
  %1237 = vmatprep.subr.bf16.mxu0 0
  %1238 = vmatpush1.bf16.msra.mxu0 %v1220
  %1239 = vmatprep.subr.bf16.mxu0 0
  %1240 = vmatpush1.bf16.msra.mxu0 %v1221
  %1241 = vmatprep.subr.bf16.mxu0 0
  %1242 = vmatpush1.bf16.msra.mxu0 %v1222
  %1243 = vmatprep.subr.bf16.mxu0 0
  %1244 = vmatpush1.bf16.msra.mxu0 %v1223
  %1245 = vmatprep.subr.bf16.mxu0 0
  %1246 = vmatpush1.bf16.msra.mxu0 %v1224
  %1247 = vmatprep.subr.bf16.mxu0 0
  %1248 = vmatpush1.bf16.msra.mxu0 %v1225
  %1249 = vmatprep.subr.bf16.mxu0 0
  %1250 = vmatpush1.bf16.msra.mxu0 %v1226
  %1251 = vmatprep.subr.bf16.mxu0 0
  %1252 = vmatpush1.bf16.msra.mxu0 0
  %1253 = vmatprep.subr.bf16.mxu0 0
  %1254 = vmatpush1.bf16.msra.mxu0 0
  %1255 = vmatprep.subr.bf16.mxu0 0
  %1256 = vmatpush1.bf16.msra.mxu0 0
  %1257 = vmatprep.subr.bf16.mxu0 0
  %1258 = vmatpush1.bf16.msra.mxu0 0
  %1259 = vmatprep.subr.bf16.mxu0 0
  %1260 = vmatpush1.bf16.msra.mxu0 0
  %1261 = vmatprep.subr.bf16.mxu0 0
  %1262 = vmatpush1.bf16.msra.mxu0 0
  %1263 = vmatprep.subr.bf16.mxu0 0
  %1264 = vmatpush1.bf16.msra.mxu0 0
  %1265 = vmatprep.subr.bf16.mxu0 0
  %1266 = vmatpush1.bf16.msra.mxu0 0
  %1267 = vmatprep.mubr.bf16.mxu0 0
  %1268 = vmatmul.mubr.bf16.gmra.mrb[0].mxu0 %v1168
  %v1269 = vpop.f32.mrb[0].mxu0
  %v1270 = vadd.f32 0.0, %v1269
  %v1271 = vpop.f32.mrb[0].mxu0
  %v1272 = vpop.f32.mrb[0].mxu0
  %v1273 = vadd.f32 0.0, %v1272
  %v1274 = vpop.f32.mrb[0].mxu0
  %1275 = vmatprep.mubr.bf16.mxu0 0
  %1276 = vmatmul.mubr.bf16.gmra.mrb[0].mxu0 %v1169
  %v1277 = vpop.f32.mrb[0].mxu0
  %v1278 = vadd.f32 0.0, %v1277
  %v1279 = vpop.f32.mrb[0].mxu0
  %v1280 = vpop.f32.mrb[0].mxu0
  %v1281 = vadd.f32 0.0, %v1280
  %v1282 = vpop.f32.mrb[0].mxu0
  %1283 = vdwg.mxu0
  %v1284 = vadd.f32 %v1088, %v1270
  %v1285 = vadd.f32 %v1091, %v1273
  %v1286 = vadd.f32 %v1096, %v1278
  %v1287 = vadd.f32 %v1099, %v1281
  %s1288 = scalar_lea.vmem %s3, 48
  %v1289 = vld [vmem:[%s1288] sm:$0xf]
  %v1290 = vld [vmem:[%s1288 + $0x4] sm:$0xf]
  %v1291 = vld [vmem:[%s1288 + $0x8] sm:$0xf]
  %v1292 = vld [vmem:[%s1288 + $0xc] sm:$0xf]
  %v1297 = vunpack.c.l.b16 %v1289
  %v1298 = vunpack.c.l.b16 %v1290
  %v1299 = vunpack.c.l.b16 %v1291
  %v1300 = vunpack.c.l.b16 %v1292
  %v1301 = vpack.c.b16 %v1298, %v1297
  %v1302 = vpack.c.b16 %v1300, %v1299
  %1305 = vmatprep.subr.bf16.mxu0 0
  %1306 = vmatpush1.bf16.msra.mxu0 %v732
  %1307 = vmatprep.subr.bf16.mxu0 0
  %1308 = vmatpush1.bf16.msra.mxu0 %v733
  %1309 = vmatprep.subr.bf16.mxu0 0
  %1310 = vmatpush1.bf16.msra.mxu0 %v734
  %1311 = vmatprep.subr.bf16.mxu0 0
  %1312 = vmatpush1.bf16.msra.mxu0 %v735
  %1313 = vmatprep.subr.bf16.mxu0 0
  %1314 = vmatpush1.bf16.msra.mxu0 %v736
  %1315 = vmatprep.subr.bf16.mxu0 0
  %1316 = vmatpush1.bf16.msra.mxu0 %v737
  %1317 = vmatprep.subr.bf16.mxu0 0
  %1318 = vmatpush1.bf16.msra.mxu0 %v738
  %1319 = vmatprep.subr.bf16.mxu0 0
  %1320 = vmatpush1.bf16.msra.mxu0 %v739
  %1321 = vmatprep.subr.bf16.mxu0 0
  %1322 = vmatpush1.bf16.msra.mxu0 0
  %1323 = vmatprep.subr.bf16.mxu0 0
  %1324 = vmatpush1.bf16.msra.mxu0 0
  %1325 = vmatprep.subr.bf16.mxu0 0
  %1326 = vmatpush1.bf16.msra.mxu0 0
  %1327 = vmatprep.subr.bf16.mxu0 0
  %1328 = vmatpush1.bf16.msra.mxu0 0
  %1329 = vmatprep.subr.bf16.mxu0 0
  %1330 = vmatpush1.bf16.msra.mxu0 0
  %1331 = vmatprep.subr.bf16.mxu0 0
  %1332 = vmatpush1.bf16.msra.mxu0 0
  %1333 = vmatprep.subr.bf16.mxu0 0
  %1334 = vmatpush1.bf16.msra.mxu0 0
  %1335 = vmatprep.subr.bf16.mxu0 0
  %1336 = vmatpush1.bf16.msra.mxu0 0
  %1337 = vmatprep.mubr.bf16.mxu0 0
  %1338 = vmatmul.mubr.bf16.gmra.mrb[0].mxu0 %v1301
  %v1339 = vpop.f32.mrb[0].mxu0
  %v1340 = vadd.f32 0.0, %v1339
  %v1341 = vpop.f32.mrb[0].mxu0
  %v1342 = vpop.f32.mrb[0].mxu0
  %v1343 = vadd.f32 0.0, %v1342
  %v1344 = vpop.f32.mrb[0].mxu0
  %1345 = vmatprep.mubr.bf16.mxu0 0
  %1346 = vmatmul.mubr.bf16.gmra.mrb[0].mxu0 %v1302
  %v1347 = vpop.f32.mrb[0].mxu0
  %v1348 = vadd.f32 0.0, %v1347
  %v1349 = vpop.f32.mrb[0].mxu0
  %v1350 = vpop.f32.mrb[0].mxu0
  %v1351 = vadd.f32 0.0, %v1350
  %v1352 = vpop.f32.mrb[0].mxu0
  %1353 = vdwg.mxu0
  %v1354 = vpack.c.bf16 %v1343, %v1340
  %v1355 = vpack.c.bf16 %v1351, %v1348
  %s1356 = scalar_lea.vmem %s4, 192
  %v1357 = vld [vmem:[%s1356] sm:$0xf]
  %v1358 = vld [vmem:[%s1356 + $0x4] sm:$0xf]
  %v1359 = vld [vmem:[%s1356 + $0x8] sm:$0xf]
  %v1360 = vld [vmem:[%s1356 + $0xc] sm:$0xf]
  %v1361 = vld [vmem:[%s1356 + $0x10] sm:$0xf]
  %v1362 = vld [vmem:[%s1356 + $0x14] sm:$0xf]
  %v1363 = vld [vmem:[%s1356 + $0x18] sm:$0xf]
  %v1364 = vld [vmem:[%s1356 + $0x1c] sm:$0xf]
  %v1365 = vld [vmem:[%s1356 + $0x20] sm:$0xf]
  %v1366 = vld [vmem:[%s1356 + $0x24] sm:$0xf]
  %v1367 = vld [vmem:[%s1356 + $0x28] sm:$0xf]
  %v1368 = vld [vmem:[%s1356 + $0x2c] sm:$0xf]
  %v1369 = vld [vmem:[%s1356 + $0x30] sm:$0xf]
  %v1370 = vld [vmem:[%s1356 + $0x34] sm:$0xf]
  %v1371 = vld [vmem:[%s1356 + $0x38] sm:$0xf]
  %v1372 = vld [vmem:[%s1356 + $0x3c] sm:$0xf]
  %v1389 = vunpack.c.l.b16 %v1357
  %v1390 = vunpack.c.l.b16 %v1358
  %v1391 = vunpack.c.l.b16 %v1359
  %v1392 = vunpack.c.l.b16 %v1360
  %v1393 = vunpack.c.l.b16 %v1361
  %v1394 = vunpack.c.l.b16 %v1362
  %v1395 = vunpack.c.l.b16 %v1363
  %v1396 = vunpack.c.l.b16 %v1364
  %v1397 = vunpack.c.l.b16 %v1365
  %v1398 = vunpack.c.l.b16 %v1366
  %v1399 = vunpack.c.l.b16 %v1367
  %v1400 = vunpack.c.l.b16 %v1368
  %v1401 = vunpack.c.l.b16 %v1369
  %v1402 = vunpack.c.l.b16 %v1370
  %v1403 = vunpack.c.l.b16 %v1371
  %v1404 = vunpack.c.l.b16 %v1372
  %v1405 = vpack.c.b16 %v1390, %v1389
  %v1406 = vpack.c.b16 %v1392, %v1391
  %v1407 = vpack.c.b16 %v1394, %v1393
  %v1408 = vpack.c.b16 %v1396, %v1395
  %v1409 = vpack.c.b16 %v1398, %v1397
  %v1410 = vpack.c.b16 %v1400, %v1399
  %v1411 = vpack.c.b16 %v1402, %v1401
  %v1412 = vpack.c.b16 %v1404, %v1403
  %1421 = vmatprep.subr.bf16.mxu0 0
  %1422 = vmatpush1.bf16.msra.mxu0 %v1405
  %1423 = vmatprep.subr.bf16.mxu0 0
  %1424 = vmatpush1.bf16.msra.mxu0 %v1406
  %1425 = vmatprep.subr.bf16.mxu0 0
  %1426 = vmatpush1.bf16.msra.mxu0 %v1407
  %1427 = vmatprep.subr.bf16.mxu0 0
  %1428 = vmatpush1.bf16.msra.mxu0 %v1408
  %1429 = vmatprep.subr.bf16.mxu0 0
  %1430 = vmatpush1.bf16.msra.mxu0 %v1409
  %1431 = vmatprep.subr.bf16.mxu0 0
  %1432 = vmatpush1.bf16.msra.mxu0 %v1410
  %1433 = vmatprep.subr.bf16.mxu0 0
  %1434 = vmatpush1.bf16.msra.mxu0 %v1411
  %1435 = vmatprep.subr.bf16.mxu0 0
  %1436 = vmatpush1.bf16.msra.mxu0 %v1412
  %1437 = vmatprep.subr.bf16.mxu0 0
  %1438 = vmatpush1.bf16.msra.mxu0 0
  %1439 = vmatprep.subr.bf16.mxu0 0
  %1440 = vmatpush1.bf16.msra.mxu0 0
  %1441 = vmatprep.subr.bf16.mxu0 0
  %1442 = vmatpush1.bf16.msra.mxu0 0
  %1443 = vmatprep.subr.bf16.mxu0 0
  %1444 = vmatpush1.bf16.msra.mxu0 0
  %1445 = vmatprep.subr.bf16.mxu0 0
  %1446 = vmatpush1.bf16.msra.mxu0 0
  %1447 = vmatprep.subr.bf16.mxu0 0
  %1448 = vmatpush1.bf16.msra.mxu0 0
  %1449 = vmatprep.subr.bf16.mxu0 0
  %1450 = vmatpush1.bf16.msra.mxu0 0
  %1451 = vmatprep.subr.bf16.mxu0 0
  %1452 = vmatpush1.bf16.msra.mxu0 0
  %1453 = vmatprep.mubr.bf16.mxu0 0
  %1454 = vmatmul.mubr.bf16.gmra.mrb[0].mxu0 %v1354
  %v1455 = vpop.f32.mrb[0].mxu0
  %v1456 = vadd.f32 0.0, %v1455
  %v1457 = vpop.f32.mrb[0].mxu0
  %v1458 = vpop.f32.mrb[0].mxu0
  %v1459 = vadd.f32 0.0, %v1458
  %v1460 = vpop.f32.mrb[0].mxu0
  %1461 = vmatprep.mubr.bf16.mxu0 0
  %1462 = vmatmul.mubr.bf16.gmra.mrb[0].mxu0 %v1355
  %v1463 = vpop.f32.mrb[0].mxu0
  %v1464 = vadd.f32 0.0, %v1463
  %v1465 = vpop.f32.mrb[0].mxu0
  %v1466 = vpop.f32.mrb[0].mxu0
  %v1467 = vadd.f32 0.0, %v1466
  %v1468 = vpop.f32.mrb[0].mxu0
  %1469 = vdwg.mxu0
  %v1470 = vadd.f32 %v1284, %v1456
  %v1471 = vadd.f32 %v1285, %v1459
  %v1472 = vadd.f32 %v1286, %v1464
  %v1473 = vadd.f32 %v1287, %v1467
  %s1474 = scalar_lea.vmem %s3, 64
  %v1475 = vld [vmem:[%s1474] sm:$0xf]
  %v1476 = vld [vmem:[%s1474 + $0x4] sm:$0xf]
  %v1477 = vld [vmem:[%s1474 + $0x8] sm:$0xf]
  %v1478 = vld [vmem:[%s1474 + $0xc] sm:$0xf]
  %v1483 = vunpack.c.l.b16 %v1475
  %v1484 = vunpack.c.l.b16 %v1476
  %v1485 = vunpack.c.l.b16 %v1477
  %v1486 = vunpack.c.l.b16 %v1478
  %v1487 = vpack.c.b16 %v1484, %v1483
  %v1488 = vpack.c.b16 %v1486, %v1485
  %1491 = vmatprep.subr.bf16.mxu0 0
  %1492 = vmatpush1.bf16.msra.mxu0 %v732
  %1493 = vmatprep.subr.bf16.mxu0 0
  %1494 = vmatpush1.bf16.msra.mxu0 %v733
  %1495 = vmatprep.subr.bf16.mxu0 0
  %1496 = vmatpush1.bf16.msra.mxu0 %v734
  %1497 = vmatprep.subr.bf16.mxu0 0
  %1498 = vmatpush1.bf16.msra.mxu0 %v735
  %1499 = vmatprep.subr.bf16.mxu0 0
  %1500 = vmatpush1.bf16.msra.mxu0 %v736
  %1501 = vmatprep.subr.bf16.mxu0 0
  %1502 = vmatpush1.bf16.msra.mxu0 %v737
  %1503 = vmatprep.subr.bf16.mxu0 0
  %1504 = vmatpush1.bf16.msra.mxu0 %v738
  %1505 = vmatprep.subr.bf16.mxu0 0
  %1506 = vmatpush1.bf16.msra.mxu0 %v739
  %1507 = vmatprep.subr.bf16.mxu0 0
  %1508 = vmatpush1.bf16.msra.mxu0 0
  %1509 = vmatprep.subr.bf16.mxu0 0
  %1510 = vmatpush1.bf16.msra.mxu0 0
  %1511 = vmatprep.subr.bf16.mxu0 0
  %1512 = vmatpush1.bf16.msra.mxu0 0
  %1513 = vmatprep.subr.bf16.mxu0 0
  %1514 = vmatpush1.bf16.msra.mxu0 0
  %1515 = vmatprep.subr.bf16.mxu0 0
  %1516 = vmatpush1.bf16.msra.mxu0 0
  %1517 = vmatprep.subr.bf16.mxu0 0
  %1518 = vmatpush1.bf16.msra.mxu0 0
  %1519 = vmatprep.subr.bf16.mxu0 0
  %1520 = vmatpush1.bf16.msra.mxu0 0
  %1521 = vmatprep.subr.bf16.mxu0 0
  %1522 = vmatpush1.bf16.msra.mxu0 0
  %1523 = vmatprep.mubr.bf16.mxu0 0
  %1524 = vmatmul.mubr.bf16.gmra.mrb[0].mxu0 %v1487
  %v1525 = vpop.f32.mrb[0].mxu0
  %v1526 = vadd.f32 0.0, %v1525
  %v1527 = vpop.f32.mrb[0].mxu0
  %v1528 = vpop.f32.mrb[0].mxu0
  %v1529 = vadd.f32 0.0, %v1528
  %v1530 = vpop.f32.mrb[0].mxu0
  %1531 = vmatprep.mubr.bf16.mxu0 0
  %1532 = vmatmul.mubr.bf16.gmra.mrb[0].mxu0 %v1488
  %v1533 = vpop.f32.mrb[0].mxu0
  %v1534 = vadd.f32 0.0, %v1533
  %v1535 = vpop.f32.mrb[0].mxu0
  %v1536 = vpop.f32.mrb[0].mxu0
  %v1537 = vadd.f32 0.0, %v1536
  %v1538 = vpop.f32.mrb[0].mxu0
  %1539 = vdwg.mxu0
  %v1540 = vpack.c.bf16 %v1529, %v1526
  %v1541 = vpack.c.bf16 %v1537, %v1534
  %s1542 = scalar_lea.vmem %s4, 256
  %v1543 = vld [vmem:[%s1542] sm:$0xf]
  %v1544 = vld [vmem:[%s1542 + $0x4] sm:$0xf]
  %v1545 = vld [vmem:[%s1542 + $0x8] sm:$0xf]
  %v1546 = vld [vmem:[%s1542 + $0xc] sm:$0xf]
  %v1547 = vld [vmem:[%s1542 + $0x10] sm:$0xf]
  %v1548 = vld [vmem:[%s1542 + $0x14] sm:$0xf]
  %v1549 = vld [vmem:[%s1542 + $0x18] sm:$0xf]
  %v1550 = vld [vmem:[%s1542 + $0x1c] sm:$0xf]
  %v1551 = vld [vmem:[%s1542 + $0x20] sm:$0xf]
  %v1552 = vld [vmem:[%s1542 + $0x24] sm:$0xf]
  %v1553 = vld [vmem:[%s1542 + $0x28] sm:$0xf]
  %v1554 = vld [vmem:[%s1542 + $0x2c] sm:$0xf]
  %v1555 = vld [vmem:[%s1542 + $0x30] sm:$0xf]
  %v1556 = vld [vmem:[%s1542 + $0x34] sm:$0xf]
  %v1557 = vld [vmem:[%s1542 + $0x38] sm:$0xf]
  %v1558 = vld [vmem:[%s1542 + $0x3c] sm:$0xf]
  %v1575 = vunpack.c.l.b16 %v1543
  %v1576 = vunpack.c.l.b16 %v1544
  %v1577 = vunpack.c.l.b16 %v1545
  %v1578 = vunpack.c.l.b16 %v1546
  %v1579 = vunpack.c.l.b16 %v1547
  %v1580 = vunpack.c.l.b16 %v1548
  %v1581 = vunpack.c.l.b16 %v1549
  %v1582 = vunpack.c.l.b16 %v1550
  %v1583 = vunpack.c.l.b16 %v1551
  %v1584 = vunpack.c.l.b16 %v1552
  %v1585 = vunpack.c.l.b16 %v1553
  %v1586 = vunpack.c.l.b16 %v1554
  %v1587 = vunpack.c.l.b16 %v1555
  %v1588 = vunpack.c.l.b16 %v1556
  %v1589 = vunpack.c.l.b16 %v1557
  %v1590 = vunpack.c.l.b16 %v1558
  %v1591 = vpack.c.b16 %v1576, %v1575
  %v1592 = vpack.c.b16 %v1578, %v1577
  %v1593 = vpack.c.b16 %v1580, %v1579
  %v1594 = vpack.c.b16 %v1582, %v1581
  %v1595 = vpack.c.b16 %v1584, %v1583
  %v1596 = vpack.c.b16 %v1586, %v1585
  %v1597 = vpack.c.b16 %v1588, %v1587
  %v1598 = vpack.c.b16 %v1590, %v1589
  %1607 = vmatprep.subr.bf16.mxu0 0
  %1608 = vmatpush1.bf16.msra.mxu0 %v1591
  %1609 = vmatprep.subr.bf16.mxu0 0
  %1610 = vmatpush1.bf16.msra.mxu0 %v1592
  %1611 = vmatprep.subr.bf16.mxu0 0
  %1612 = vmatpush1.bf16.msra.mxu0 %v1593
  %1613 = vmatprep.subr.bf16.mxu0 0
  %1614 = vmatpush1.bf16.msra.mxu0 %v1594
  %1615 = vmatprep.subr.bf16.mxu0 0
  %1616 = vmatpush1.bf16.msra.mxu0 %v1595
  %1617 = vmatprep.subr.bf16.mxu0 0
  %1618 = vmatpush1.bf16.msra.mxu0 %v1596
  %1619 = vmatprep.subr.bf16.mxu0 0
  %1620 = vmatpush1.bf16.msra.mxu0 %v1597
  %1621 = vmatprep.subr.bf16.mxu0 0
  %1622 = vmatpush1.bf16.msra.mxu0 %v1598
  %1623 = vmatprep.subr.bf16.mxu0 0
  %1624 = vmatpush1.bf16.msra.mxu0 0
  %1625 = vmatprep.subr.bf16.mxu0 0
  %1626 = vmatpush1.bf16.msra.mxu0 0
  %1627 = vmatprep.subr.bf16.mxu0 0
  %1628 = vmatpush1.bf16.msra.mxu0 0
  %1629 = vmatprep.subr.bf16.mxu0 0
  %1630 = vmatpush1.bf16.msra.mxu0 0
  %1631 = vmatprep.subr.bf16.mxu0 0
  %1632 = vmatpush1.bf16.msra.mxu0 0
  %1633 = vmatprep.subr.bf16.mxu0 0
  %1634 = vmatpush1.bf16.msra.mxu0 0
  %1635 = vmatprep.subr.bf16.mxu0 0
  %1636 = vmatpush1.bf16.msra.mxu0 0
  %1637 = vmatprep.subr.bf16.mxu0 0
  %1638 = vmatpush1.bf16.msra.mxu0 0
  %1639 = vmatprep.mubr.bf16.mxu0 0
  %1640 = vmatmul.mubr.bf16.gmra.mrb[0].mxu0 %v1540
  %v1641 = vpop.f32.mrb[0].mxu0
  %v1642 = vadd.f32 0.0, %v1641
  %v1643 = vpop.f32.mrb[0].mxu0
  %v1644 = vpop.f32.mrb[0].mxu0
  %v1645 = vadd.f32 0.0, %v1644
  %v1646 = vpop.f32.mrb[0].mxu0
  %1647 = vmatprep.mubr.bf16.mxu0 0
  %1648 = vmatmul.mubr.bf16.gmra.mrb[0].mxu0 %v1541
  %v1649 = vpop.f32.mrb[0].mxu0
  %v1650 = vadd.f32 0.0, %v1649
  %v1651 = vpop.f32.mrb[0].mxu0
  %v1652 = vpop.f32.mrb[0].mxu0
  %v1653 = vadd.f32 0.0, %v1652
  %v1654 = vpop.f32.mrb[0].mxu0
  %1655 = vdwg.mxu0
  %v1656 = vadd.f32 %v1470, %v1642
  %v1657 = vadd.f32 %v1471, %v1645
  %v1658 = vadd.f32 %v1472, %v1650
  %v1659 = vadd.f32 %v1473, %v1653
  %s1660 = scalar_lea.vmem %s3, 80
  %v1661 = vld [vmem:[%s1660] sm:$0xf]
  %v1662 = vld [vmem:[%s1660 + $0x4] sm:$0xf]
  %v1663 = vld [vmem:[%s1660 + $0x8] sm:$0xf]
  %v1664 = vld [vmem:[%s1660 + $0xc] sm:$0xf]
  %v1669 = vunpack.c.l.b16 %v1661
  %v1670 = vunpack.c.l.b16 %v1662
  %v1671 = vunpack.c.l.b16 %v1663
  %v1672 = vunpack.c.l.b16 %v1664
  %v1673 = vpack.c.b16 %v1670, %v1669
  %v1674 = vpack.c.b16 %v1672, %v1671
  %1677 = vmatprep.subr.bf16.mxu0 0
  %1678 = vmatpush1.bf16.msra.mxu0 %v732
  %1679 = vmatprep.subr.bf16.mxu0 0
  %1680 = vmatpush1.bf16.msra.mxu0 %v733
  %1681 = vmatprep.subr.bf16.mxu0 0
  %1682 = vmatpush1.bf16.msra.mxu0 %v734
  %1683 = vmatprep.subr.bf16.mxu0 0
  %1684 = vmatpush1.bf16.msra.mxu0 %v735
  %1685 = vmatprep.subr.bf16.mxu0 0
  %1686 = vmatpush1.bf16.msra.mxu0 %v736
  %1687 = vmatprep.subr.bf16.mxu0 0
  %1688 = vmatpush1.bf16.msra.mxu0 %v737
  %1689 = vmatprep.subr.bf16.mxu0 0
  %1690 = vmatpush1.bf16.msra.mxu0 %v738
  %1691 = vmatprep.subr.bf16.mxu0 0
  %1692 = vmatpush1.bf16.msra.mxu0 %v739
  %1693 = vmatprep.subr.bf16.mxu0 0
  %1694 = vmatpush1.bf16.msra.mxu0 0
  %1695 = vmatprep.subr.bf16.mxu0 0
  %1696 = vmatpush1.bf16.msra.mxu0 0
  %1697 = vmatprep.subr.bf16.mxu0 0
  %1698 = vmatpush1.bf16.msra.mxu0 0
  %1699 = vmatprep.subr.bf16.mxu0 0
  %1700 = vmatpush1.bf16.msra.mxu0 0
  %1701 = vmatprep.subr.bf16.mxu0 0
  %1702 = vmatpush1.bf16.msra.mxu0 0
  %1703 = vmatprep.subr.bf16.mxu0 0
  %1704 = vmatpush1.bf16.msra.mxu0 0
  %1705 = vmatprep.subr.bf16.mxu0 0
  %1706 = vmatpush1.bf16.msra.mxu0 0
  %1707 = vmatprep.subr.bf16.mxu0 0
  %1708 = vmatpush1.bf16.msra.mxu0 0
  %1709 = vmatprep.mubr.bf16.mxu0 0
  %1710 = vmatmul.mubr.bf16.gmra.mrb[0].mxu0 %v1673
  %v1711 = vpop.f32.mrb[0].mxu0
  %v1712 = vadd.f32 0.0, %v1711
  %v1713 = vpop.f32.mrb[0].mxu0
  %v1714 = vpop.f32.mrb[0].mxu0
  %v1715 = vadd.f32 0.0, %v1714
  %v1716 = vpop.f32.mrb[0].mxu0
  %1717 = vmatprep.mubr.bf16.mxu0 0
  %1718 = vmatmul.mubr.bf16.gmra.mrb[0].mxu0 %v1674
  %v1719 = vpop.f32.mrb[0].mxu0
  %v1720 = vadd.f32 0.0, %v1719
  %v1721 = vpop.f32.mrb[0].mxu0
  %v1722 = vpop.f32.mrb[0].mxu0
  %v1723 = vadd.f32 0.0, %v1722
  %v1724 = vpop.f32.mrb[0].mxu0
  %1725 = vdwg.mxu0
  %v1726 = vpack.c.bf16 %v1715, %v1712
  %v1727 = vpack.c.bf16 %v1723, %v1720
  %s1728 = scalar_lea.vmem %s4, 320
  %v1729 = vld [vmem:[%s1728] sm:$0xf]
  %v1730 = vld [vmem:[%s1728 + $0x4] sm:$0xf]
  %v1731 = vld [vmem:[%s1728 + $0x8] sm:$0xf]
  %v1732 = vld [vmem:[%s1728 + $0xc] sm:$0xf]
  %v1733 = vld [vmem:[%s1728 + $0x10] sm:$0xf]
  %v1734 = vld [vmem:[%s1728 + $0x14] sm:$0xf]
  %v1735 = vld [vmem:[%s1728 + $0x18] sm:$0xf]
  %v1736 = vld [vmem:[%s1728 + $0x1c] sm:$0xf]
  %v1737 = vld [vmem:[%s1728 + $0x20] sm:$0xf]
  %v1738 = vld [vmem:[%s1728 + $0x24] sm:$0xf]
  %v1739 = vld [vmem:[%s1728 + $0x28] sm:$0xf]
  %v1740 = vld [vmem:[%s1728 + $0x2c] sm:$0xf]
  %v1741 = vld [vmem:[%s1728 + $0x30] sm:$0xf]
  %v1742 = vld [vmem:[%s1728 + $0x34] sm:$0xf]
  %v1743 = vld [vmem:[%s1728 + $0x38] sm:$0xf]
  %v1744 = vld [vmem:[%s1728 + $0x3c] sm:$0xf]
  %v1761 = vunpack.c.l.b16 %v1729
  %v1762 = vunpack.c.l.b16 %v1730
  %v1763 = vunpack.c.l.b16 %v1731
  %v1764 = vunpack.c.l.b16 %v1732
  %v1765 = vunpack.c.l.b16 %v1733
  %v1766 = vunpack.c.l.b16 %v1734
  %v1767 = vunpack.c.l.b16 %v1735
  %v1768 = vunpack.c.l.b16 %v1736
  %v1769 = vunpack.c.l.b16 %v1737
  %v1770 = vunpack.c.l.b16 %v1738
  %v1771 = vunpack.c.l.b16 %v1739
  %v1772 = vunpack.c.l.b16 %v1740
  %v1773 = vunpack.c.l.b16 %v1741
  %v1774 = vunpack.c.l.b16 %v1742
  %v1775 = vunpack.c.l.b16 %v1743
  %v1776 = vunpack.c.l.b16 %v1744
  %v1777 = vpack.c.b16 %v1762, %v1761
  %v1778 = vpack.c.b16 %v1764, %v1763
  %v1779 = vpack.c.b16 %v1766, %v1765
  %v1780 = vpack.c.b16 %v1768, %v1767
  %v1781 = vpack.c.b16 %v1770, %v1769
  %v1782 = vpack.c.b16 %v1772, %v1771
  %v1783 = vpack.c.b16 %v1774, %v1773
  %v1784 = vpack.c.b16 %v1776, %v1775
  %1793 = vmatprep.subr.bf16.mxu0 0
  %1794 = vmatpush1.bf16.msra.mxu0 %v1777
  %1795 = vmatprep.subr.bf16.mxu0 0
  %1796 = vmatpush1.bf16.msra.mxu0 %v1778
  %1797 = vmatprep.subr.bf16.mxu0 0
  %1798 = vmatpush1.bf16.msra.mxu0 %v1779
  %1799 = vmatprep.subr.bf16.mxu0 0
  %1800 = vmatpush1.bf16.msra.mxu0 %v1780
  %1801 = vmatprep.subr.bf16.mxu0 0
  %1802 = vmatpush1.bf16.msra.mxu0 %v1781
  %1803 = vmatprep.subr.bf16.mxu0 0
  %1804 = vmatpush1.bf16.msra.mxu0 %v1782
  %1805 = vmatprep.subr.bf16.mxu0 0
  %1806 = vmatpush1.bf16.msra.mxu0 %v1783
  %1807 = vmatprep.subr.bf16.mxu0 0
  %1808 = vmatpush1.bf16.msra.mxu0 %v1784
  %1809 = vmatprep.subr.bf16.mxu0 0
  %1810 = vmatpush1.bf16.msra.mxu0 0
  %1811 = vmatprep.subr.bf16.mxu0 0
  %1812 = vmatpush1.bf16.msra.mxu0 0
  %1813 = vmatprep.subr.bf16.mxu0 0
  %1814 = vmatpush1.bf16.msra.mxu0 0
  %1815 = vmatprep.subr.bf16.mxu0 0
  %1816 = vmatpush1.bf16.msra.mxu0 0
  %1817 = vmatprep.subr.bf16.mxu0 0
  %1818 = vmatpush1.bf16.msra.mxu0 0
  %1819 = vmatprep.subr.bf16.mxu0 0
  %1820 = vmatpush1.bf16.msra.mxu0 0
  %1821 = vmatprep.subr.bf16.mxu0 0
  %1822 = vmatpush1.bf16.msra.mxu0 0
  %1823 = vmatprep.subr.bf16.mxu0 0
  %1824 = vmatpush1.bf16.msra.mxu0 0
  %1825 = vmatprep.mubr.bf16.mxu0 0
  %1826 = vmatmul.mubr.bf16.gmra.mrb[0].mxu0 %v1726
  %v1827 = vpop.f32.mrb[0].mxu0
  %v1828 = vadd.f32 0.0, %v1827
  %v1829 = vpop.f32.mrb[0].mxu0
  %v1830 = vpop.f32.mrb[0].mxu0
  %v1831 = vadd.f32 0.0, %v1830
  %v1832 = vpop.f32.mrb[0].mxu0
  %1833 = vmatprep.mubr.bf16.mxu0 0
  %1834 = vmatmul.mubr.bf16.gmra.mrb[0].mxu0 %v1727
  %v1835 = vpop.f32.mrb[0].mxu0
  %v1836 = vadd.f32 0.0, %v1835
  %v1837 = vpop.f32.mrb[0].mxu0
  %v1838 = vpop.f32.mrb[0].mxu0
  %v1839 = vadd.f32 0.0, %v1838
  %v1840 = vpop.f32.mrb[0].mxu0
  %1841 = vdwg.mxu0
  %v1842 = vadd.f32 %v1656, %v1828
  %v1843 = vadd.f32 %v1657, %v1831
  %v1844 = vadd.f32 %v1658, %v1836
  %v1845 = vadd.f32 %v1659, %v1839
  %s1846 = scalar_lea.vmem %s3, 96
  %v1847 = vld [vmem:[%s1846] sm:$0xf]
  %v1848 = vld [vmem:[%s1846 + $0x4] sm:$0xf]
  %v1849 = vld [vmem:[%s1846 + $0x8] sm:$0xf]
  %v1850 = vld [vmem:[%s1846 + $0xc] sm:$0xf]
  %v1855 = vunpack.c.l.b16 %v1847
  %v1856 = vunpack.c.l.b16 %v1848
  %v1857 = vunpack.c.l.b16 %v1849
  %v1858 = vunpack.c.l.b16 %v1850
  %v1859 = vpack.c.b16 %v1856, %v1855
  %v1860 = vpack.c.b16 %v1858, %v1857
  %1863 = vmatprep.subr.bf16.mxu0 0
  %1864 = vmatpush1.bf16.msra.mxu0 %v732
  %1865 = vmatprep.subr.bf16.mxu0 0
  %1866 = vmatpush1.bf16.msra.mxu0 %v733
  %1867 = vmatprep.subr.bf16.mxu0 0
  %1868 = vmatpush1.bf16.msra.mxu0 %v734
  %1869 = vmatprep.subr.bf16.mxu0 0
  %1870 = vmatpush1.bf16.msra.mxu0 %v735
  %1871 = vmatprep.subr.bf16.mxu0 0
  %1872 = vmatpush1.bf16.msra.mxu0 %v736
  %1873 = vmatprep.subr.bf16.mxu0 0
  %1874 = vmatpush1.bf16.msra.mxu0 %v737
  %1875 = vmatprep.subr.bf16.mxu0 0
  %1876 = vmatpush1.bf16.msra.mxu0 %v738
  %1877 = vmatprep.subr.bf16.mxu0 0
  %1878 = vmatpush1.bf16.msra.mxu0 %v739
  %1879 = vmatprep.subr.bf16.mxu0 0
  %1880 = vmatpush1.bf16.msra.mxu0 0
  %1881 = vmatprep.subr.bf16.mxu0 0
  %1882 = vmatpush1.bf16.msra.mxu0 0
  %1883 = vmatprep.subr.bf16.mxu0 0
  %1884 = vmatpush1.bf16.msra.mxu0 0
  %1885 = vmatprep.subr.bf16.mxu0 0
  %1886 = vmatpush1.bf16.msra.mxu0 0
  %1887 = vmatprep.subr.bf16.mxu0 0
  %1888 = vmatpush1.bf16.msra.mxu0 0
  %1889 = vmatprep.subr.bf16.mxu0 0
  %1890 = vmatpush1.bf16.msra.mxu0 0
  %1891 = vmatprep.subr.bf16.mxu0 0
  %1892 = vmatpush1.bf16.msra.mxu0 0
  %1893 = vmatprep.subr.bf16.mxu0 0
  %1894 = vmatpush1.bf16.msra.mxu0 0
  %1895 = vmatprep.mubr.bf16.mxu0 0
  %1896 = vmatmul.mubr.bf16.gmra.mrb[0].mxu0 %v1859
  %v1897 = vpop.f32.mrb[0].mxu0
  %v1898 = vadd.f32 0.0, %v1897
  %v1899 = vpop.f32.mrb[0].mxu0
  %v1900 = vpop.f32.mrb[0].mxu0
  %v1901 = vadd.f32 0.0, %v1900
  %v1902 = vpop.f32.mrb[0].mxu0
  %1903 = vmatprep.mubr.bf16.mxu0 0
  %1904 = vmatmul.mubr.bf16.gmra.mrb[0].mxu0 %v1860
  %v1905 = vpop.f32.mrb[0].mxu0
  %v1906 = vadd.f32 0.0, %v1905
  %v1907 = vpop.f32.mrb[0].mxu0
  %v1908 = vpop.f32.mrb[0].mxu0
  %v1909 = vadd.f32 0.0, %v1908
  %v1910 = vpop.f32.mrb[0].mxu0
  %1911 = vdwg.mxu0
  %v1912 = vpack.c.bf16 %v1901, %v1898
  %v1913 = vpack.c.bf16 %v1909, %v1906
  %s1914 = scalar_lea.vmem %s4, 384
  %v1915 = vld [vmem:[%s1914] sm:$0xf]
  %v1916 = vld [vmem:[%s1914 + $0x4] sm:$0xf]
  %v1917 = vld [vmem:[%s1914 + $0x8] sm:$0xf]
  %v1918 = vld [vmem:[%s1914 + $0xc] sm:$0xf]
  %v1919 = vld [vmem:[%s1914 + $0x10] sm:$0xf]
  %v1920 = vld [vmem:[%s1914 + $0x14] sm:$0xf]
  %v1921 = vld [vmem:[%s1914 + $0x18] sm:$0xf]
  %v1922 = vld [vmem:[%s1914 + $0x1c] sm:$0xf]
  %v1923 = vld [vmem:[%s1914 + $0x20] sm:$0xf]
  %v1924 = vld [vmem:[%s1914 + $0x24] sm:$0xf]
  %v1925 = vld [vmem:[%s1914 + $0x28] sm:$0xf]
  %v1926 = vld [vmem:[%s1914 + $0x2c] sm:$0xf]
  %v1927 = vld [vmem:[%s1914 + $0x30] sm:$0xf]
  %v1928 = vld [vmem:[%s1914 + $0x34] sm:$0xf]
  %v1929 = vld [vmem:[%s1914 + $0x38] sm:$0xf]
  %v1930 = vld [vmem:[%s1914 + $0x3c] sm:$0xf]
  %v1947 = vunpack.c.l.b16 %v1915
  %v1948 = vunpack.c.l.b16 %v1916
  %v1949 = vunpack.c.l.b16 %v1917
  %v1950 = vunpack.c.l.b16 %v1918
  %v1951 = vunpack.c.l.b16 %v1919
  %v1952 = vunpack.c.l.b16 %v1920
  %v1953 = vunpack.c.l.b16 %v1921
  %v1954 = vunpack.c.l.b16 %v1922
  %v1955 = vunpack.c.l.b16 %v1923
  %v1956 = vunpack.c.l.b16 %v1924
  %v1957 = vunpack.c.l.b16 %v1925
  %v1958 = vunpack.c.l.b16 %v1926
  %v1959 = vunpack.c.l.b16 %v1927
  %v1960 = vunpack.c.l.b16 %v1928
  %v1961 = vunpack.c.l.b16 %v1929
  %v1962 = vunpack.c.l.b16 %v1930
  %v1963 = vpack.c.b16 %v1948, %v1947
  %v1964 = vpack.c.b16 %v1950, %v1949
  %v1965 = vpack.c.b16 %v1952, %v1951
  %v1966 = vpack.c.b16 %v1954, %v1953
  %v1967 = vpack.c.b16 %v1956, %v1955
  %v1968 = vpack.c.b16 %v1958, %v1957
  %v1969 = vpack.c.b16 %v1960, %v1959
  %v1970 = vpack.c.b16 %v1962, %v1961
  %1979 = vmatprep.subr.bf16.mxu0 0
  %1980 = vmatpush1.bf16.msra.mxu0 %v1963
  %1981 = vmatprep.subr.bf16.mxu0 0
  %1982 = vmatpush1.bf16.msra.mxu0 %v1964
  %1983 = vmatprep.subr.bf16.mxu0 0
  %1984 = vmatpush1.bf16.msra.mxu0 %v1965
  %1985 = vmatprep.subr.bf16.mxu0 0
  %1986 = vmatpush1.bf16.msra.mxu0 %v1966
  %1987 = vmatprep.subr.bf16.mxu0 0
  %1988 = vmatpush1.bf16.msra.mxu0 %v1967
  %1989 = vmatprep.subr.bf16.mxu0 0
  %1990 = vmatpush1.bf16.msra.mxu0 %v1968
  %1991 = vmatprep.subr.bf16.mxu0 0
  %1992 = vmatpush1.bf16.msra.mxu0 %v1969
  %1993 = vmatprep.subr.bf16.mxu0 0
  %1994 = vmatpush1.bf16.msra.mxu0 %v1970
  %1995 = vmatprep.subr.bf16.mxu0 0
  %1996 = vmatpush1.bf16.msra.mxu0 0
  %1997 = vmatprep.subr.bf16.mxu0 0
  %1998 = vmatpush1.bf16.msra.mxu0 0
  %1999 = vmatprep.subr.bf16.mxu0 0
  %2000 = vmatpush1.bf16.msra.mxu0 0
  %2001 = vmatprep.subr.bf16.mxu0 0
  %2002 = vmatpush1.bf16.msra.mxu0 0
  %2003 = vmatprep.subr.bf16.mxu0 0
  %2004 = vmatpush1.bf16.msra.mxu0 0
  %2005 = vmatprep.subr.bf16.mxu0 0
  %2006 = vmatpush1.bf16.msra.mxu0 0
  %2007 = vmatprep.subr.bf16.mxu0 0
  %2008 = vmatpush1.bf16.msra.mxu0 0
  %2009 = vmatprep.subr.bf16.mxu0 0
  %2010 = vmatpush1.bf16.msra.mxu0 0
  %2011 = vmatprep.mubr.bf16.mxu0 0
  %2012 = vmatmul.mubr.bf16.gmra.mrb[0].mxu0 %v1912
  %v2013 = vpop.f32.mrb[0].mxu0
  %v2014 = vadd.f32 0.0, %v2013
  %v2015 = vpop.f32.mrb[0].mxu0
  %v2016 = vpop.f32.mrb[0].mxu0
  %v2017 = vadd.f32 0.0, %v2016
  %v2018 = vpop.f32.mrb[0].mxu0
  %2019 = vmatprep.mubr.bf16.mxu0 0
  %2020 = vmatmul.mubr.bf16.gmra.mrb[0].mxu0 %v1913
  %v2021 = vpop.f32.mrb[0].mxu0
  %v2022 = vadd.f32 0.0, %v2021
  %v2023 = vpop.f32.mrb[0].mxu0
  %v2024 = vpop.f32.mrb[0].mxu0
  %v2025 = vadd.f32 0.0, %v2024
  %v2026 = vpop.f32.mrb[0].mxu0
  %2027 = vdwg.mxu0
  %v2028 = vadd.f32 %v1842, %v2014
  %v2029 = vadd.f32 %v1843, %v2017
  %v2030 = vadd.f32 %v1844, %v2022
  %v2031 = vadd.f32 %v1845, %v2025
  %s2032 = scalar_lea.vmem %s3, 112
  %v2033 = vld [vmem:[%s2032] sm:$0xf]
  %v2034 = vld [vmem:[%s2032 + $0x4] sm:$0xf]
  %v2035 = vld [vmem:[%s2032 + $0x8] sm:$0xf]
  %v2036 = vld [vmem:[%s2032 + $0xc] sm:$0xf]
  %v2041 = vunpack.c.l.b16 %v2033
  %v2042 = vunpack.c.l.b16 %v2034
  %v2043 = vunpack.c.l.b16 %v2035
  %v2044 = vunpack.c.l.b16 %v2036
  %v2045 = vpack.c.b16 %v2042, %v2041
  %v2046 = vpack.c.b16 %v2044, %v2043
  %2049 = vmatprep.subr.bf16.mxu0 0
  %2050 = vmatpush1.bf16.msra.mxu0 %v732
  %2051 = vmatprep.subr.bf16.mxu0 0
  %2052 = vmatpush1.bf16.msra.mxu0 %v733
  %2053 = vmatprep.subr.bf16.mxu0 0
  %2054 = vmatpush1.bf16.msra.mxu0 %v734
  %2055 = vmatprep.subr.bf16.mxu0 0
  %2056 = vmatpush1.bf16.msra.mxu0 %v735
  %2057 = vmatprep.subr.bf16.mxu0 0
  %2058 = vmatpush1.bf16.msra.mxu0 %v736
  %2059 = vmatprep.subr.bf16.mxu0 0
  %2060 = vmatpush1.bf16.msra.mxu0 %v737
  %2061 = vmatprep.subr.bf16.mxu0 0
  %2062 = vmatpush1.bf16.msra.mxu0 %v738
  %2063 = vmatprep.subr.bf16.mxu0 0
  %2064 = vmatpush1.bf16.msra.mxu0 %v739
  %2065 = vmatprep.subr.bf16.mxu0 0
  %2066 = vmatpush1.bf16.msra.mxu0 0
  %2067 = vmatprep.subr.bf16.mxu0 0
  %2068 = vmatpush1.bf16.msra.mxu0 0
  %2069 = vmatprep.subr.bf16.mxu0 0
  %2070 = vmatpush1.bf16.msra.mxu0 0
  %2071 = vmatprep.subr.bf16.mxu0 0
  %2072 = vmatpush1.bf16.msra.mxu0 0
  %2073 = vmatprep.subr.bf16.mxu0 0
  %2074 = vmatpush1.bf16.msra.mxu0 0
  %2075 = vmatprep.subr.bf16.mxu0 0
  %2076 = vmatpush1.bf16.msra.mxu0 0
  %2077 = vmatprep.subr.bf16.mxu0 0
  %2078 = vmatpush1.bf16.msra.mxu0 0
  %2079 = vmatprep.subr.bf16.mxu0 0
  %2080 = vmatpush1.bf16.msra.mxu0 0
  %2081 = vmatprep.mubr.bf16.mxu0 0
  %2082 = vmatmul.mubr.bf16.gmra.mrb[0].mxu0 %v2045
  %v2083 = vpop.f32.mrb[0].mxu0
  %v2084 = vadd.f32 0.0, %v2083
  %v2085 = vpop.f32.mrb[0].mxu0
  %v2086 = vpop.f32.mrb[0].mxu0
  %v2087 = vadd.f32 0.0, %v2086
  %v2088 = vpop.f32.mrb[0].mxu0
  %2089 = vmatprep.mubr.bf16.mxu0 0
  %2090 = vmatmul.mubr.bf16.gmra.mrb[0].mxu0 %v2046
  %v2091 = vpop.f32.mrb[0].mxu0
  %v2092 = vadd.f32 0.0, %v2091
  %v2093 = vpop.f32.mrb[0].mxu0
  %v2094 = vpop.f32.mrb[0].mxu0
  %v2095 = vadd.f32 0.0, %v2094
  %v2096 = vpop.f32.mrb[0].mxu0
  %2097 = vdwg.mxu0
  %v2098 = vpack.c.bf16 %v2087, %v2084
  %v2099 = vpack.c.bf16 %v2095, %v2092
  %s2100 = scalar_lea.vmem %s4, 448
  %v2101 = vld [vmem:[%s2100] sm:$0xf]
  %v2102 = vld [vmem:[%s2100 + $0x4] sm:$0xf]
  %v2103 = vld [vmem:[%s2100 + $0x8] sm:$0xf]
  %v2104 = vld [vmem:[%s2100 + $0xc] sm:$0xf]
  %v2105 = vld [vmem:[%s2100 + $0x10] sm:$0xf]
  %v2106 = vld [vmem:[%s2100 + $0x14] sm:$0xf]
  %v2107 = vld [vmem:[%s2100 + $0x18] sm:$0xf]
  %v2108 = vld [vmem:[%s2100 + $0x1c] sm:$0xf]
  %v2109 = vld [vmem:[%s2100 + $0x20] sm:$0xf]
  %v2110 = vld [vmem:[%s2100 + $0x24] sm:$0xf]
  %v2111 = vld [vmem:[%s2100 + $0x28] sm:$0xf]
  %v2112 = vld [vmem:[%s2100 + $0x2c] sm:$0xf]
  %v2113 = vld [vmem:[%s2100 + $0x30] sm:$0xf]
  %v2114 = vld [vmem:[%s2100 + $0x34] sm:$0xf]
  %v2115 = vld [vmem:[%s2100 + $0x38] sm:$0xf]
  %v2116 = vld [vmem:[%s2100 + $0x3c] sm:$0xf]
  %v2133 = vunpack.c.l.b16 %v2101
  %v2134 = vunpack.c.l.b16 %v2102
  %v2135 = vunpack.c.l.b16 %v2103
  %v2136 = vunpack.c.l.b16 %v2104
  %v2137 = vunpack.c.l.b16 %v2105
  %v2138 = vunpack.c.l.b16 %v2106
  %v2139 = vunpack.c.l.b16 %v2107
  %v2140 = vunpack.c.l.b16 %v2108
  %v2141 = vunpack.c.l.b16 %v2109
  %v2142 = vunpack.c.l.b16 %v2110
  %v2143 = vunpack.c.l.b16 %v2111
  %v2144 = vunpack.c.l.b16 %v2112
  %v2145 = vunpack.c.l.b16 %v2113
  %v2146 = vunpack.c.l.b16 %v2114
  %v2147 = vunpack.c.l.b16 %v2115
  %v2148 = vunpack.c.l.b16 %v2116
  %v2149 = vpack.c.b16 %v2134, %v2133
  %v2150 = vpack.c.b16 %v2136, %v2135
  %v2151 = vpack.c.b16 %v2138, %v2137
  %v2152 = vpack.c.b16 %v2140, %v2139
  %v2153 = vpack.c.b16 %v2142, %v2141
  %v2154 = vpack.c.b16 %v2144, %v2143
  %v2155 = vpack.c.b16 %v2146, %v2145
  %v2156 = vpack.c.b16 %v2148, %v2147
  %2165 = vmatprep.subr.bf16.mxu0 0
  %2166 = vmatpush1.bf16.msra.mxu0 %v2149
  %2167 = vmatprep.subr.bf16.mxu0 0
  %2168 = vmatpush1.bf16.msra.mxu0 %v2150
  %2169 = vmatprep.subr.bf16.mxu0 0
  %2170 = vmatpush1.bf16.msra.mxu0 %v2151
  %2171 = vmatprep.subr.bf16.mxu0 0
  %2172 = vmatpush1.bf16.msra.mxu0 %v2152
  %2173 = vmatprep.subr.bf16.mxu0 0
  %2174 = vmatpush1.bf16.msra.mxu0 %v2153
  %2175 = vmatprep.subr.bf16.mxu0 0
  %2176 = vmatpush1.bf16.msra.mxu0 %v2154
  %2177 = vmatprep.subr.bf16.mxu0 0
  %2178 = vmatpush1.bf16.msra.mxu0 %v2155
  %2179 = vmatprep.subr.bf16.mxu0 0
  %2180 = vmatpush1.bf16.msra.mxu0 %v2156
  %2181 = vmatprep.subr.bf16.mxu0 0
  %2182 = vmatpush1.bf16.msra.mxu0 0
  %2183 = vmatprep.subr.bf16.mxu0 0
  %2184 = vmatpush1.bf16.msra.mxu0 0
  %2185 = vmatprep.subr.bf16.mxu0 0
  %2186 = vmatpush1.bf16.msra.mxu0 0
  %2187 = vmatprep.subr.bf16.mxu0 0
  %2188 = vmatpush1.bf16.msra.mxu0 0
  %2189 = vmatprep.subr.bf16.mxu0 0
  %2190 = vmatpush1.bf16.msra.mxu0 0
  %2191 = vmatprep.subr.bf16.mxu0 0
  %2192 = vmatpush1.bf16.msra.mxu0 0
  %2193 = vmatprep.subr.bf16.mxu0 0
  %2194 = vmatpush1.bf16.msra.mxu0 0
  %2195 = vmatprep.subr.bf16.mxu0 0
  %2196 = vmatpush1.bf16.msra.mxu0 0
  %2197 = vmatprep.mubr.bf16.mxu0 0
  %2198 = vmatmul.mubr.bf16.gmra.mrb[0].mxu0 %v2098
  %v2199 = vpop.f32.mrb[0].mxu0
  %v2200 = vadd.f32 0.0, %v2199
  %v2201 = vpop.f32.mrb[0].mxu0
  %v2202 = vpop.f32.mrb[0].mxu0
  %v2203 = vadd.f32 0.0, %v2202
  %v2204 = vpop.f32.mrb[0].mxu0
  %2205 = vmatprep.mubr.bf16.mxu0 0
  %2206 = vmatmul.mubr.bf16.gmra.mrb[0].mxu0 %v2099
  %v2207 = vpop.f32.mrb[0].mxu0
  %v2208 = vadd.f32 0.0, %v2207
  %v2209 = vpop.f32.mrb[0].mxu0
  %v2210 = vpop.f32.mrb[0].mxu0
  %v2211 = vadd.f32 0.0, %v2210
  %v2212 = vpop.f32.mrb[0].mxu0
  %2213 = vdwg.mxu0
  %v2214 = vadd.f32 %v2028, %v2200
  %v2215 = vadd.f32 %v2029, %v2203
  %v2216 = vadd.f32 %v2030, %v2208
  %v2217 = vadd.f32 %v2031, %v2211
  %s2218 = scalar_lea.vmem %s3, 128
  %v2219 = vld [vmem:[%s2218] sm:$0xf]
  %v2220 = vld [vmem:[%s2218 + $0x4] sm:$0xf]
  %v2221 = vld [vmem:[%s2218 + $0x8] sm:$0xf]
  %v2222 = vld [vmem:[%s2218 + $0xc] sm:$0xf]
  %v2227 = vunpack.c.l.b16 %v2219
  %v2228 = vunpack.c.l.b16 %v2220
  %v2229 = vunpack.c.l.b16 %v2221
  %v2230 = vunpack.c.l.b16 %v2222
  %v2231 = vpack.c.b16 %v2228, %v2227
  %v2232 = vpack.c.b16 %v2230, %v2229
  %2235 = vmatprep.subr.bf16.mxu0 0
  %2236 = vmatpush1.bf16.msra.mxu0 %v732
  %2237 = vmatprep.subr.bf16.mxu0 0
  %2238 = vmatpush1.bf16.msra.mxu0 %v733
  %2239 = vmatprep.subr.bf16.mxu0 0
  %2240 = vmatpush1.bf16.msra.mxu0 %v734
  %2241 = vmatprep.subr.bf16.mxu0 0
  %2242 = vmatpush1.bf16.msra.mxu0 %v735
  %2243 = vmatprep.subr.bf16.mxu0 0
  %2244 = vmatpush1.bf16.msra.mxu0 %v736
  %2245 = vmatprep.subr.bf16.mxu0 0
  %2246 = vmatpush1.bf16.msra.mxu0 %v737
  %2247 = vmatprep.subr.bf16.mxu0 0
  %2248 = vmatpush1.bf16.msra.mxu0 %v738
  %2249 = vmatprep.subr.bf16.mxu0 0
  %2250 = vmatpush1.bf16.msra.mxu0 %v739
  %2251 = vmatprep.subr.bf16.mxu0 0
  %2252 = vmatpush1.bf16.msra.mxu0 0
  %2253 = vmatprep.subr.bf16.mxu0 0
  %2254 = vmatpush1.bf16.msra.mxu0 0
  %2255 = vmatprep.subr.bf16.mxu0 0
  %2256 = vmatpush1.bf16.msra.mxu0 0
  %2257 = vmatprep.subr.bf16.mxu0 0
  %2258 = vmatpush1.bf16.msra.mxu0 0
  %2259 = vmatprep.subr.bf16.mxu0 0
  %2260 = vmatpush1.bf16.msra.mxu0 0
  %2261 = vmatprep.subr.bf16.mxu0 0
  %2262 = vmatpush1.bf16.msra.mxu0 0
  %2263 = vmatprep.subr.bf16.mxu0 0
  %2264 = vmatpush1.bf16.msra.mxu0 0
  %2265 = vmatprep.subr.bf16.mxu0 0
  %2266 = vmatpush1.bf16.msra.mxu0 0
  %2267 = vmatprep.mubr.bf16.mxu0 0
  %2268 = vmatmul.mubr.bf16.gmra.mrb[0].mxu0 %v2231
  %v2269 = vpop.f32.mrb[0].mxu0
  %v2270 = vadd.f32 0.0, %v2269
  %v2271 = vpop.f32.mrb[0].mxu0
  %v2272 = vpop.f32.mrb[0].mxu0
  %v2273 = vadd.f32 0.0, %v2272
  %v2274 = vpop.f32.mrb[0].mxu0
  %2275 = vmatprep.mubr.bf16.mxu0 0
  %2276 = vmatmul.mubr.bf16.gmra.mrb[0].mxu0 %v2232
  %v2277 = vpop.f32.mrb[0].mxu0
  %v2278 = vadd.f32 0.0, %v2277
  %v2279 = vpop.f32.mrb[0].mxu0
  %v2280 = vpop.f32.mrb[0].mxu0
  %v2281 = vadd.f32 0.0, %v2280
  %v2282 = vpop.f32.mrb[0].mxu0
  %2283 = vdwg.mxu0
  %v2284 = vpack.c.bf16 %v2273, %v2270
  %v2285 = vpack.c.bf16 %v2281, %v2278
  %s2286 = scalar_lea.vmem %s4, 512
  %v2287 = vld [vmem:[%s2286] sm:$0xf]
  %v2288 = vld [vmem:[%s2286 + $0x4] sm:$0xf]
  %v2289 = vld [vmem:[%s2286 + $0x8] sm:$0xf]
  %v2290 = vld [vmem:[%s2286 + $0xc] sm:$0xf]
  %v2291 = vld [vmem:[%s2286 + $0x10] sm:$0xf]
  %v2292 = vld [vmem:[%s2286 + $0x14] sm:$0xf]
  %v2293 = vld [vmem:[%s2286 + $0x18] sm:$0xf]
  %v2294 = vld [vmem:[%s2286 + $0x1c] sm:$0xf]
  %v2295 = vld [vmem:[%s2286 + $0x20] sm:$0xf]
  %v2296 = vld [vmem:[%s2286 + $0x24] sm:$0xf]
  %v2297 = vld [vmem:[%s2286 + $0x28] sm:$0xf]
  %v2298 = vld [vmem:[%s2286 + $0x2c] sm:$0xf]
  %v2299 = vld [vmem:[%s2286 + $0x30] sm:$0xf]
  %v2300 = vld [vmem:[%s2286 + $0x34] sm:$0xf]
  %v2301 = vld [vmem:[%s2286 + $0x38] sm:$0xf]
  %v2302 = vld [vmem:[%s2286 + $0x3c] sm:$0xf]
  %v2319 = vunpack.c.l.b16 %v2287
  %v2320 = vunpack.c.l.b16 %v2288
  %v2321 = vunpack.c.l.b16 %v2289
  %v2322 = vunpack.c.l.b16 %v2290
  %v2323 = vunpack.c.l.b16 %v2291
  %v2324 = vunpack.c.l.b16 %v2292
  %v2325 = vunpack.c.l.b16 %v2293
  %v2326 = vunpack.c.l.b16 %v2294
  %v2327 = vunpack.c.l.b16 %v2295
  %v2328 = vunpack.c.l.b16 %v2296
  %v2329 = vunpack.c.l.b16 %v2297
  %v2330 = vunpack.c.l.b16 %v2298
  %v2331 = vunpack.c.l.b16 %v2299
  %v2332 = vunpack.c.l.b16 %v2300
  %v2333 = vunpack.c.l.b16 %v2301
  %v2334 = vunpack.c.l.b16 %v2302
  %v2335 = vpack.c.b16 %v2320, %v2319
  %v2336 = vpack.c.b16 %v2322, %v2321
  %v2337 = vpack.c.b16 %v2324, %v2323
  %v2338 = vpack.c.b16 %v2326, %v2325
  %v2339 = vpack.c.b16 %v2328, %v2327
  %v2340 = vpack.c.b16 %v2330, %v2329
  %v2341 = vpack.c.b16 %v2332, %v2331
  %v2342 = vpack.c.b16 %v2334, %v2333
  %2351 = vmatprep.subr.bf16.mxu0 0
  %2352 = vmatpush1.bf16.msra.mxu0 %v2335
  %2353 = vmatprep.subr.bf16.mxu0 0
  %2354 = vmatpush1.bf16.msra.mxu0 %v2336
  %2355 = vmatprep.subr.bf16.mxu0 0
  %2356 = vmatpush1.bf16.msra.mxu0 %v2337
  %2357 = vmatprep.subr.bf16.mxu0 0
  %2358 = vmatpush1.bf16.msra.mxu0 %v2338
  %2359 = vmatprep.subr.bf16.mxu0 0
  %2360 = vmatpush1.bf16.msra.mxu0 %v2339
  %2361 = vmatprep.subr.bf16.mxu0 0
  %2362 = vmatpush1.bf16.msra.mxu0 %v2340
  %2363 = vmatprep.subr.bf16.mxu0 0
  %2364 = vmatpush1.bf16.msra.mxu0 %v2341
  %2365 = vmatprep.subr.bf16.mxu0 0
  %2366 = vmatpush1.bf16.msra.mxu0 %v2342
  %2367 = vmatprep.subr.bf16.mxu0 0
  %2368 = vmatpush1.bf16.msra.mxu0 0
  %2369 = vmatprep.subr.bf16.mxu0 0
  %2370 = vmatpush1.bf16.msra.mxu0 0
  %2371 = vmatprep.subr.bf16.mxu0 0
  %2372 = vmatpush1.bf16.msra.mxu0 0
  %2373 = vmatprep.subr.bf16.mxu0 0
  %2374 = vmatpush1.bf16.msra.mxu0 0
  %2375 = vmatprep.subr.bf16.mxu0 0
  %2376 = vmatpush1.bf16.msra.mxu0 0
  %2377 = vmatprep.subr.bf16.mxu0 0
  %2378 = vmatpush1.bf16.msra.mxu0 0
  %2379 = vmatprep.subr.bf16.mxu0 0
  %2380 = vmatpush1.bf16.msra.mxu0 0
  %2381 = vmatprep.subr.bf16.mxu0 0
  %2382 = vmatpush1.bf16.msra.mxu0 0
  %2383 = vmatprep.mubr.bf16.mxu0 0
  %2384 = vmatmul.mubr.bf16.gmra.mrb[0].mxu0 %v2284
  %v2385 = vpop.f32.mrb[0].mxu0
  %v2386 = vadd.f32 0.0, %v2385
  %v2387 = vpop.f32.mrb[0].mxu0
  %v2388 = vpop.f32.mrb[0].mxu0
  %v2389 = vadd.f32 0.0, %v2388
  %v2390 = vpop.f32.mrb[0].mxu0
  %2391 = vmatprep.mubr.bf16.mxu0 0
  %2392 = vmatmul.mubr.bf16.gmra.mrb[0].mxu0 %v2285
  %v2393 = vpop.f32.mrb[0].mxu0
  %v2394 = vadd.f32 0.0, %v2393
  %v2395 = vpop.f32.mrb[0].mxu0
  %v2396 = vpop.f32.mrb[0].mxu0
  %v2397 = vadd.f32 0.0, %v2396
  %v2398 = vpop.f32.mrb[0].mxu0
  %2399 = vdwg.mxu0
  %v2400 = vadd.f32 %v2214, %v2386
  %v2401 = vadd.f32 %v2215, %v2389
  %v2402 = vadd.f32 %v2216, %v2394
  %v2403 = vadd.f32 %v2217, %v2397
  %s2404 = scalar_lea.vmem %s3, 144
  %v2405 = vld [vmem:[%s2404] sm:$0xf]
  %v2406 = vld [vmem:[%s2404 + $0x4] sm:$0xf]
  %v2407 = vld [vmem:[%s2404 + $0x8] sm:$0xf]
  %v2408 = vld [vmem:[%s2404 + $0xc] sm:$0xf]
  %v2413 = vunpack.c.l.b16 %v2405
  %v2414 = vunpack.c.l.b16 %v2406
  %v2415 = vunpack.c.l.b16 %v2407
  %v2416 = vunpack.c.l.b16 %v2408
  %v2417 = vpack.c.b16 %v2414, %v2413
  %v2418 = vpack.c.b16 %v2416, %v2415
  %2421 = vmatprep.subr.bf16.mxu0 0
  %2422 = vmatpush1.bf16.msra.mxu0 %v732
  %2423 = vmatprep.subr.bf16.mxu0 0
  %2424 = vmatpush1.bf16.msra.mxu0 %v733
  %2425 = vmatprep.subr.bf16.mxu0 0
  %2426 = vmatpush1.bf16.msra.mxu0 %v734
  %2427 = vmatprep.subr.bf16.mxu0 0
  %2428 = vmatpush1.bf16.msra.mxu0 %v735
  %2429 = vmatprep.subr.bf16.mxu0 0
  %2430 = vmatpush1.bf16.msra.mxu0 %v736
  %2431 = vmatprep.subr.bf16.mxu0 0
  %2432 = vmatpush1.bf16.msra.mxu0 %v737
  %2433 = vmatprep.subr.bf16.mxu0 0
  %2434 = vmatpush1.bf16.msra.mxu0 %v738
  %2435 = vmatprep.subr.bf16.mxu0 0
  %2436 = vmatpush1.bf16.msra.mxu0 %v739
  %2437 = vmatprep.subr.bf16.mxu0 0
  %2438 = vmatpush1.bf16.msra.mxu0 0
  %2439 = vmatprep.subr.bf16.mxu0 0
  %2440 = vmatpush1.bf16.msra.mxu0 0
  %2441 = vmatprep.subr.bf16.mxu0 0
  %2442 = vmatpush1.bf16.msra.mxu0 0
  %2443 = vmatprep.subr.bf16.mxu0 0
  %2444 = vmatpush1.bf16.msra.mxu0 0
  %2445 = vmatprep.subr.bf16.mxu0 0
  %2446 = vmatpush1.bf16.msra.mxu0 0
  %2447 = vmatprep.subr.bf16.mxu0 0
  %2448 = vmatpush1.bf16.msra.mxu0 0
  %2449 = vmatprep.subr.bf16.mxu0 0
  %2450 = vmatpush1.bf16.msra.mxu0 0
  %2451 = vmatprep.subr.bf16.mxu0 0
  %2452 = vmatpush1.bf16.msra.mxu0 0
  %2453 = vmatprep.mubr.bf16.mxu0 0
  %2454 = vmatmul.mubr.bf16.gmra.mrb[0].mxu0 %v2417
  %v2455 = vpop.f32.mrb[0].mxu0
  %v2456 = vadd.f32 0.0, %v2455
  %v2457 = vpop.f32.mrb[0].mxu0
  %v2458 = vpop.f32.mrb[0].mxu0
  %v2459 = vadd.f32 0.0, %v2458
  %v2460 = vpop.f32.mrb[0].mxu0
  %2461 = vmatprep.mubr.bf16.mxu0 0
  %2462 = vmatmul.mubr.bf16.gmra.mrb[0].mxu0 %v2418
  %v2463 = vpop.f32.mrb[0].mxu0
  %v2464 = vadd.f32 0.0, %v2463
  %v2465 = vpop.f32.mrb[0].mxu0
  %v2466 = vpop.f32.mrb[0].mxu0
  %v2467 = vadd.f32 0.0, %v2466
  %v2468 = vpop.f32.mrb[0].mxu0
  %2469 = vdwg.mxu0
  %v2470 = vpack.c.bf16 %v2459, %v2456
  %v2471 = vpack.c.bf16 %v2467, %v2464
  %s2472 = scalar_lea.vmem %s4, 576
  %v2473 = vld [vmem:[%s2472] sm:$0xf]
  %v2474 = vld [vmem:[%s2472 + $0x4] sm:$0xf]
  %v2475 = vld [vmem:[%s2472 + $0x8] sm:$0xf]
  %v2476 = vld [vmem:[%s2472 + $0xc] sm:$0xf]
  %v2477 = vld [vmem:[%s2472 + $0x10] sm:$0xf]
  %v2478 = vld [vmem:[%s2472 + $0x14] sm:$0xf]
  %v2479 = vld [vmem:[%s2472 + $0x18] sm:$0xf]
  %v2480 = vld [vmem:[%s2472 + $0x1c] sm:$0xf]
  %v2481 = vld [vmem:[%s2472 + $0x20] sm:$0xf]
  %v2482 = vld [vmem:[%s2472 + $0x24] sm:$0xf]
  %v2483 = vld [vmem:[%s2472 + $0x28] sm:$0xf]
  %v2484 = vld [vmem:[%s2472 + $0x2c] sm:$0xf]
  %v2485 = vld [vmem:[%s2472 + $0x30] sm:$0xf]
  %v2486 = vld [vmem:[%s2472 + $0x34] sm:$0xf]
  %v2487 = vld [vmem:[%s2472 + $0x38] sm:$0xf]
  %v2488 = vld [vmem:[%s2472 + $0x3c] sm:$0xf]
  %v2505 = vunpack.c.l.b16 %v2473
  %v2506 = vunpack.c.l.b16 %v2474
  %v2507 = vunpack.c.l.b16 %v2475
  %v2508 = vunpack.c.l.b16 %v2476
  %v2509 = vunpack.c.l.b16 %v2477
  %v2510 = vunpack.c.l.b16 %v2478
  %v2511 = vunpack.c.l.b16 %v2479
  %v2512 = vunpack.c.l.b16 %v2480
  %v2513 = vunpack.c.l.b16 %v2481
  %v2514 = vunpack.c.l.b16 %v2482
  %v2515 = vunpack.c.l.b16 %v2483
  %v2516 = vunpack.c.l.b16 %v2484
  %v2517 = vunpack.c.l.b16 %v2485
  %v2518 = vunpack.c.l.b16 %v2486
  %v2519 = vunpack.c.l.b16 %v2487
  %v2520 = vunpack.c.l.b16 %v2488
  %v2521 = vpack.c.b16 %v2506, %v2505
  %v2522 = vpack.c.b16 %v2508, %v2507
  %v2523 = vpack.c.b16 %v2510, %v2509
  %v2524 = vpack.c.b16 %v2512, %v2511
  %v2525 = vpack.c.b16 %v2514, %v2513
  %v2526 = vpack.c.b16 %v2516, %v2515
  %v2527 = vpack.c.b16 %v2518, %v2517
  %v2528 = vpack.c.b16 %v2520, %v2519
  %2537 = vmatprep.subr.bf16.mxu0 0
  %2538 = vmatpush1.bf16.msra.mxu0 %v2521
  %2539 = vmatprep.subr.bf16.mxu0 0
  %2540 = vmatpush1.bf16.msra.mxu0 %v2522
  %2541 = vmatprep.subr.bf16.mxu0 0
  %2542 = vmatpush1.bf16.msra.mxu0 %v2523
  %2543 = vmatprep.subr.bf16.mxu0 0
  %2544 = vmatpush1.bf16.msra.mxu0 %v2524
  %2545 = vmatprep.subr.bf16.mxu0 0
  %2546 = vmatpush1.bf16.msra.mxu0 %v2525
  %2547 = vmatprep.subr.bf16.mxu0 0
  %2548 = vmatpush1.bf16.msra.mxu0 %v2526
  %2549 = vmatprep.subr.bf16.mxu0 0
  %2550 = vmatpush1.bf16.msra.mxu0 %v2527
  %2551 = vmatprep.subr.bf16.mxu0 0
  %2552 = vmatpush1.bf16.msra.mxu0 %v2528
  %2553 = vmatprep.subr.bf16.mxu0 0
  %2554 = vmatpush1.bf16.msra.mxu0 0
  %2555 = vmatprep.subr.bf16.mxu0 0
  %2556 = vmatpush1.bf16.msra.mxu0 0
  %2557 = vmatprep.subr.bf16.mxu0 0
  %2558 = vmatpush1.bf16.msra.mxu0 0
  %2559 = vmatprep.subr.bf16.mxu0 0
  %2560 = vmatpush1.bf16.msra.mxu0 0
  %2561 = vmatprep.subr.bf16.mxu0 0
  %2562 = vmatpush1.bf16.msra.mxu0 0
  %2563 = vmatprep.subr.bf16.mxu0 0
  %2564 = vmatpush1.bf16.msra.mxu0 0
  %2565 = vmatprep.subr.bf16.mxu0 0
  %2566 = vmatpush1.bf16.msra.mxu0 0
  %2567 = vmatprep.subr.bf16.mxu0 0
  %2568 = vmatpush1.bf16.msra.mxu0 0
  %2569 = vmatprep.mubr.bf16.mxu0 0
  %2570 = vmatmul.mubr.bf16.gmra.mrb[0].mxu0 %v2470
  %v2571 = vpop.f32.mrb[0].mxu0
  %v2572 = vadd.f32 0.0, %v2571
  %v2573 = vpop.f32.mrb[0].mxu0
  %v2574 = vpop.f32.mrb[0].mxu0
  %v2575 = vadd.f32 0.0, %v2574
  %v2576 = vpop.f32.mrb[0].mxu0
  %2577 = vmatprep.mubr.bf16.mxu0 0
  %2578 = vmatmul.mubr.bf16.gmra.mrb[0].mxu0 %v2471
  %v2579 = vpop.f32.mrb[0].mxu0
  %v2580 = vadd.f32 0.0, %v2579
  %v2581 = vpop.f32.mrb[0].mxu0
  %v2582 = vpop.f32.mrb[0].mxu0
  %v2583 = vadd.f32 0.0, %v2582
  %v2584 = vpop.f32.mrb[0].mxu0
  %2585 = vdwg.mxu0
  %v2586 = vadd.f32 %v2400, %v2572
  %v2587 = vadd.f32 %v2401, %v2575
  %v2588 = vadd.f32 %v2402, %v2580
  %v2589 = vadd.f32 %v2403, %v2583
  %s2590 = scalar_lea.vmem %s3, 160
  %v2591 = vld [vmem:[%s2590] sm:$0xf]
  %v2592 = vld [vmem:[%s2590 + $0x4] sm:$0xf]
  %v2593 = vld [vmem:[%s2590 + $0x8] sm:$0xf]
  %v2594 = vld [vmem:[%s2590 + $0xc] sm:$0xf]
  %v2599 = vunpack.c.l.b16 %v2591
  %v2600 = vunpack.c.l.b16 %v2592
  %v2601 = vunpack.c.l.b16 %v2593
  %v2602 = vunpack.c.l.b16 %v2594
  %v2603 = vpack.c.b16 %v2600, %v2599
  %v2604 = vpack.c.b16 %v2602, %v2601
  %2607 = vmatprep.subr.bf16.mxu0 0
  %2608 = vmatpush1.bf16.msra.mxu0 %v732
  %2609 = vmatprep.subr.bf16.mxu0 0
  %2610 = vmatpush1.bf16.msra.mxu0 %v733
  %2611 = vmatprep.subr.bf16.mxu0 0
  %2612 = vmatpush1.bf16.msra.mxu0 %v734
  %2613 = vmatprep.subr.bf16.mxu0 0
  %2614 = vmatpush1.bf16.msra.mxu0 %v735
  %2615 = vmatprep.subr.bf16.mxu0 0
  %2616 = vmatpush1.bf16.msra.mxu0 %v736
  %2617 = vmatprep.subr.bf16.mxu0 0
  %2618 = vmatpush1.bf16.msra.mxu0 %v737
  %2619 = vmatprep.subr.bf16.mxu0 0
  %2620 = vmatpush1.bf16.msra.mxu0 %v738
  %2621 = vmatprep.subr.bf16.mxu0 0
  %2622 = vmatpush1.bf16.msra.mxu0 %v739
  %2623 = vmatprep.subr.bf16.mxu0 0
  %2624 = vmatpush1.bf16.msra.mxu0 0
  %2625 = vmatprep.subr.bf16.mxu0 0
  %2626 = vmatpush1.bf16.msra.mxu0 0
  %2627 = vmatprep.subr.bf16.mxu0 0
  %2628 = vmatpush1.bf16.msra.mxu0 0
  %2629 = vmatprep.subr.bf16.mxu0 0
  %2630 = vmatpush1.bf16.msra.mxu0 0
  %2631 = vmatprep.subr.bf16.mxu0 0
  %2632 = vmatpush1.bf16.msra.mxu0 0
  %2633 = vmatprep.subr.bf16.mxu0 0
  %2634 = vmatpush1.bf16.msra.mxu0 0
  %2635 = vmatprep.subr.bf16.mxu0 0
  %2636 = vmatpush1.bf16.msra.mxu0 0
  %2637 = vmatprep.subr.bf16.mxu0 0
  %2638 = vmatpush1.bf16.msra.mxu0 0
  %2639 = vmatprep.mubr.bf16.mxu0 0
  %2640 = vmatmul.mubr.bf16.gmra.mrb[0].mxu0 %v2603
  %v2641 = vpop.f32.mrb[0].mxu0
  %v2642 = vadd.f32 0.0, %v2641
  %v2643 = vpop.f32.mrb[0].mxu0
  %v2644 = vpop.f32.mrb[0].mxu0
  %v2645 = vadd.f32 0.0, %v2644
  %v2646 = vpop.f32.mrb[0].mxu0
  %2647 = vmatprep.mubr.bf16.mxu0 0
  %2648 = vmatmul.mubr.bf16.gmra.mrb[0].mxu0 %v2604
  %v2649 = vpop.f32.mrb[0].mxu0
  %v2650 = vadd.f32 0.0, %v2649
  %v2651 = vpop.f32.mrb[0].mxu0
  %v2652 = vpop.f32.mrb[0].mxu0
  %v2653 = vadd.f32 0.0, %v2652
  %v2654 = vpop.f32.mrb[0].mxu0
  %2655 = vdwg.mxu0
  %v2656 = vpack.c.bf16 %v2645, %v2642
  %v2657 = vpack.c.bf16 %v2653, %v2650
  %s2658 = scalar_lea.vmem %s4, 640
  %v2659 = vld [vmem:[%s2658] sm:$0xf]
  %v2660 = vld [vmem:[%s2658 + $0x4] sm:$0xf]
  %v2661 = vld [vmem:[%s2658 + $0x8] sm:$0xf]
  %v2662 = vld [vmem:[%s2658 + $0xc] sm:$0xf]
  %v2663 = vld [vmem:[%s2658 + $0x10] sm:$0xf]
  %v2664 = vld [vmem:[%s2658 + $0x14] sm:$0xf]
  %v2665 = vld [vmem:[%s2658 + $0x18] sm:$0xf]
  %v2666 = vld [vmem:[%s2658 + $0x1c] sm:$0xf]
  %v2667 = vld [vmem:[%s2658 + $0x20] sm:$0xf]
  %v2668 = vld [vmem:[%s2658 + $0x24] sm:$0xf]
  %v2669 = vld [vmem:[%s2658 + $0x28] sm:$0xf]
  %v2670 = vld [vmem:[%s2658 + $0x2c] sm:$0xf]
  %v2671 = vld [vmem:[%s2658 + $0x30] sm:$0xf]
  %v2672 = vld [vmem:[%s2658 + $0x34] sm:$0xf]
  %v2673 = vld [vmem:[%s2658 + $0x38] sm:$0xf]
  %v2674 = vld [vmem:[%s2658 + $0x3c] sm:$0xf]
  %v2691 = vunpack.c.l.b16 %v2659
  %v2692 = vunpack.c.l.b16 %v2660
  %v2693 = vunpack.c.l.b16 %v2661
  %v2694 = vunpack.c.l.b16 %v2662
  %v2695 = vunpack.c.l.b16 %v2663
  %v2696 = vunpack.c.l.b16 %v2664
  %v2697 = vunpack.c.l.b16 %v2665
  %v2698 = vunpack.c.l.b16 %v2666
  %v2699 = vunpack.c.l.b16 %v2667
  %v2700 = vunpack.c.l.b16 %v2668
  %v2701 = vunpack.c.l.b16 %v2669
  %v2702 = vunpack.c.l.b16 %v2670
  %v2703 = vunpack.c.l.b16 %v2671
  %v2704 = vunpack.c.l.b16 %v2672
  %v2705 = vunpack.c.l.b16 %v2673
  %v2706 = vunpack.c.l.b16 %v2674
  %v2707 = vpack.c.b16 %v2692, %v2691
  %v2708 = vpack.c.b16 %v2694, %v2693
  %v2709 = vpack.c.b16 %v2696, %v2695
  %v2710 = vpack.c.b16 %v2698, %v2697
  %v2711 = vpack.c.b16 %v2700, %v2699
  %v2712 = vpack.c.b16 %v2702, %v2701
  %v2713 = vpack.c.b16 %v2704, %v2703
  %v2714 = vpack.c.b16 %v2706, %v2705
  %2723 = vmatprep.subr.bf16.mxu0 0
  %2724 = vmatpush1.bf16.msra.mxu0 %v2707
  %2725 = vmatprep.subr.bf16.mxu0 0
  %2726 = vmatpush1.bf16.msra.mxu0 %v2708
  %2727 = vmatprep.subr.bf16.mxu0 0
  %2728 = vmatpush1.bf16.msra.mxu0 %v2709
  %2729 = vmatprep.subr.bf16.mxu0 0
  %2730 = vmatpush1.bf16.msra.mxu0 %v2710
  %2731 = vmatprep.subr.bf16.mxu0 0
  %2732 = vmatpush1.bf16.msra.mxu0 %v2711
  %2733 = vmatprep.subr.bf16.mxu0 0
  %2734 = vmatpush1.bf16.msra.mxu0 %v2712
  %2735 = vmatprep.subr.bf16.mxu0 0
  %2736 = vmatpush1.bf16.msra.mxu0 %v2713
  %2737 = vmatprep.subr.bf16.mxu0 0
  %2738 = vmatpush1.bf16.msra.mxu0 %v2714
  %2739 = vmatprep.subr.bf16.mxu0 0
  %2740 = vmatpush1.bf16.msra.mxu0 0
  %2741 = vmatprep.subr.bf16.mxu0 0
  %2742 = vmatpush1.bf16.msra.mxu0 0
  %2743 = vmatprep.subr.bf16.mxu0 0
  %2744 = vmatpush1.bf16.msra.mxu0 0
  %2745 = vmatprep.subr.bf16.mxu0 0
  %2746 = vmatpush1.bf16.msra.mxu0 0
  %2747 = vmatprep.subr.bf16.mxu0 0
  %2748 = vmatpush1.bf16.msra.mxu0 0
  %2749 = vmatprep.subr.bf16.mxu0 0
  %2750 = vmatpush1.bf16.msra.mxu0 0
  %2751 = vmatprep.subr.bf16.mxu0 0
  %2752 = vmatpush1.bf16.msra.mxu0 0
  %2753 = vmatprep.subr.bf16.mxu0 0
  %2754 = vmatpush1.bf16.msra.mxu0 0
  %2755 = vmatprep.mubr.bf16.mxu0 0
  %2756 = vmatmul.mubr.bf16.gmra.mrb[0].mxu0 %v2656
  %v2757 = vpop.f32.mrb[0].mxu0
  %v2758 = vadd.f32 0.0, %v2757
  %v2759 = vpop.f32.mrb[0].mxu0
  %v2760 = vpop.f32.mrb[0].mxu0
  %v2761 = vadd.f32 0.0, %v2760
  %v2762 = vpop.f32.mrb[0].mxu0
  %2763 = vmatprep.mubr.bf16.mxu0 0
  %2764 = vmatmul.mubr.bf16.gmra.mrb[0].mxu0 %v2657
  %v2765 = vpop.f32.mrb[0].mxu0
  %v2766 = vadd.f32 0.0, %v2765
  %v2767 = vpop.f32.mrb[0].mxu0
  %v2768 = vpop.f32.mrb[0].mxu0
  %v2769 = vadd.f32 0.0, %v2768
  %v2770 = vpop.f32.mrb[0].mxu0
  %2771 = vdwg.mxu0
  %v2772 = vadd.f32 %v2586, %v2758
  %v2773 = vadd.f32 %v2587, %v2761
  %v2774 = vadd.f32 %v2588, %v2766
  %v2775 = vadd.f32 %v2589, %v2769
  %s2776 = scalar_lea.vmem %s3, 176
  %v2777 = vld [vmem:[%s2776] sm:$0xf]
  %v2778 = vld [vmem:[%s2776 + $0x4] sm:$0xf]
  %v2779 = vld [vmem:[%s2776 + $0x8] sm:$0xf]
  %v2780 = vld [vmem:[%s2776 + $0xc] sm:$0xf]
  %v2785 = vunpack.c.l.b16 %v2777
  %v2786 = vunpack.c.l.b16 %v2778
  %v2787 = vunpack.c.l.b16 %v2779
  %v2788 = vunpack.c.l.b16 %v2780
  %v2789 = vpack.c.b16 %v2786, %v2785
  %v2790 = vpack.c.b16 %v2788, %v2787
  %2793 = vmatprep.subr.bf16.mxu0 0
  %2794 = vmatpush1.bf16.msra.mxu0 %v732
  %2795 = vmatprep.subr.bf16.mxu0 0
  %2796 = vmatpush1.bf16.msra.mxu0 %v733
  %2797 = vmatprep.subr.bf16.mxu0 0
  %2798 = vmatpush1.bf16.msra.mxu0 %v734
  %2799 = vmatprep.subr.bf16.mxu0 0
  %2800 = vmatpush1.bf16.msra.mxu0 %v735
  %2801 = vmatprep.subr.bf16.mxu0 0
  %2802 = vmatpush1.bf16.msra.mxu0 %v736
  %2803 = vmatprep.subr.bf16.mxu0 0
  %2804 = vmatpush1.bf16.msra.mxu0 %v737
  %2805 = vmatprep.subr.bf16.mxu0 0
  %2806 = vmatpush1.bf16.msra.mxu0 %v738
  %2807 = vmatprep.subr.bf16.mxu0 0
  %2808 = vmatpush1.bf16.msra.mxu0 %v739
  %2809 = vmatprep.subr.bf16.mxu0 0
  %2810 = vmatpush1.bf16.msra.mxu0 0
  %2811 = vmatprep.subr.bf16.mxu0 0
  %2812 = vmatpush1.bf16.msra.mxu0 0
  %2813 = vmatprep.subr.bf16.mxu0 0
  %2814 = vmatpush1.bf16.msra.mxu0 0
  %2815 = vmatprep.subr.bf16.mxu0 0
  %2816 = vmatpush1.bf16.msra.mxu0 0
  %2817 = vmatprep.subr.bf16.mxu0 0
  %2818 = vmatpush1.bf16.msra.mxu0 0
  %2819 = vmatprep.subr.bf16.mxu0 0
  %2820 = vmatpush1.bf16.msra.mxu0 0
  %2821 = vmatprep.subr.bf16.mxu0 0
  %2822 = vmatpush1.bf16.msra.mxu0 0
  %2823 = vmatprep.subr.bf16.mxu0 0
  %2824 = vmatpush1.bf16.msra.mxu0 0
  %2825 = vmatprep.mubr.bf16.mxu0 0
  %2826 = vmatmul.mubr.bf16.gmra.mrb[0].mxu0 %v2789
  %v2827 = vpop.f32.mrb[0].mxu0
  %v2828 = vadd.f32 0.0, %v2827
  %v2829 = vpop.f32.mrb[0].mxu0
  %v2830 = vpop.f32.mrb[0].mxu0
  %v2831 = vadd.f32 0.0, %v2830
  %v2832 = vpop.f32.mrb[0].mxu0
  %2833 = vmatprep.mubr.bf16.mxu0 0
  %2834 = vmatmul.mubr.bf16.gmra.mrb[0].mxu0 %v2790
  %v2835 = vpop.f32.mrb[0].mxu0
  %v2836 = vadd.f32 0.0, %v2835
  %v2837 = vpop.f32.mrb[0].mxu0
  %v2838 = vpop.f32.mrb[0].mxu0
  %v2839 = vadd.f32 0.0, %v2838
  %v2840 = vpop.f32.mrb[0].mxu0
  %2841 = vdwg.mxu0
  %v2842 = vpack.c.bf16 %v2831, %v2828
  %v2843 = vpack.c.bf16 %v2839, %v2836
  %s2844 = scalar_lea.vmem %s4, 704
  %v2845 = vld [vmem:[%s2844] sm:$0xf]
  %v2846 = vld [vmem:[%s2844 + $0x4] sm:$0xf]
  %v2847 = vld [vmem:[%s2844 + $0x8] sm:$0xf]
  %v2848 = vld [vmem:[%s2844 + $0xc] sm:$0xf]
  %v2849 = vld [vmem:[%s2844 + $0x10] sm:$0xf]
  %v2850 = vld [vmem:[%s2844 + $0x14] sm:$0xf]
  %v2851 = vld [vmem:[%s2844 + $0x18] sm:$0xf]
  %v2852 = vld [vmem:[%s2844 + $0x1c] sm:$0xf]
  %v2853 = vld [vmem:[%s2844 + $0x20] sm:$0xf]
  %v2854 = vld [vmem:[%s2844 + $0x24] sm:$0xf]
  %v2855 = vld [vmem:[%s2844 + $0x28] sm:$0xf]
  %v2856 = vld [vmem:[%s2844 + $0x2c] sm:$0xf]
  %v2857 = vld [vmem:[%s2844 + $0x30] sm:$0xf]
  %v2858 = vld [vmem:[%s2844 + $0x34] sm:$0xf]
  %v2859 = vld [vmem:[%s2844 + $0x38] sm:$0xf]
  %v2860 = vld [vmem:[%s2844 + $0x3c] sm:$0xf]
  %v2877 = vunpack.c.l.b16 %v2845
  %v2878 = vunpack.c.l.b16 %v2846
  %v2879 = vunpack.c.l.b16 %v2847
  %v2880 = vunpack.c.l.b16 %v2848
  %v2881 = vunpack.c.l.b16 %v2849
  %v2882 = vunpack.c.l.b16 %v2850
  %v2883 = vunpack.c.l.b16 %v2851
  %v2884 = vunpack.c.l.b16 %v2852
  %v2885 = vunpack.c.l.b16 %v2853
  %v2886 = vunpack.c.l.b16 %v2854
  %v2887 = vunpack.c.l.b16 %v2855
  %v2888 = vunpack.c.l.b16 %v2856
  %v2889 = vunpack.c.l.b16 %v2857
  %v2890 = vunpack.c.l.b16 %v2858
  %v2891 = vunpack.c.l.b16 %v2859
  %v2892 = vunpack.c.l.b16 %v2860
  %v2893 = vpack.c.b16 %v2878, %v2877
  %v2894 = vpack.c.b16 %v2880, %v2879
  %v2895 = vpack.c.b16 %v2882, %v2881
  %v2896 = vpack.c.b16 %v2884, %v2883
  %v2897 = vpack.c.b16 %v2886, %v2885
  %v2898 = vpack.c.b16 %v2888, %v2887
  %v2899 = vpack.c.b16 %v2890, %v2889
  %v2900 = vpack.c.b16 %v2892, %v2891
  %2909 = vmatprep.subr.bf16.mxu0 0
  %2910 = vmatpush1.bf16.msra.mxu0 %v2893
  %2911 = vmatprep.subr.bf16.mxu0 0
  %2912 = vmatpush1.bf16.msra.mxu0 %v2894
  %2913 = vmatprep.subr.bf16.mxu0 0
  %2914 = vmatpush1.bf16.msra.mxu0 %v2895
  %2915 = vmatprep.subr.bf16.mxu0 0
  %2916 = vmatpush1.bf16.msra.mxu0 %v2896
  %2917 = vmatprep.subr.bf16.mxu0 0
  %2918 = vmatpush1.bf16.msra.mxu0 %v2897
  %2919 = vmatprep.subr.bf16.mxu0 0
  %2920 = vmatpush1.bf16.msra.mxu0 %v2898
  %2921 = vmatprep.subr.bf16.mxu0 0
  %2922 = vmatpush1.bf16.msra.mxu0 %v2899
  %2923 = vmatprep.subr.bf16.mxu0 0
  %2924 = vmatpush1.bf16.msra.mxu0 %v2900
  %2925 = vmatprep.subr.bf16.mxu0 0
  %2926 = vmatpush1.bf16.msra.mxu0 0
  %2927 = vmatprep.subr.bf16.mxu0 0
  %2928 = vmatpush1.bf16.msra.mxu0 0
  %2929 = vmatprep.subr.bf16.mxu0 0
  %2930 = vmatpush1.bf16.msra.mxu0 0
  %2931 = vmatprep.subr.bf16.mxu0 0
  %2932 = vmatpush1.bf16.msra.mxu0 0
  %2933 = vmatprep.subr.bf16.mxu0 0
  %2934 = vmatpush1.bf16.msra.mxu0 0
  %2935 = vmatprep.subr.bf16.mxu0 0
  %2936 = vmatpush1.bf16.msra.mxu0 0
  %2937 = vmatprep.subr.bf16.mxu0 0
  %2938 = vmatpush1.bf16.msra.mxu0 0
  %2939 = vmatprep.subr.bf16.mxu0 0
  %2940 = vmatpush1.bf16.msra.mxu0 0
  %2941 = vmatprep.mubr.bf16.mxu0 0
  %2942 = vmatmul.mubr.bf16.gmra.mrb[0].mxu0 %v2842
  %v2943 = vpop.f32.mrb[0].mxu0
  %v2944 = vadd.f32 0.0, %v2943
  %v2945 = vpop.f32.mrb[0].mxu0
  %v2946 = vpop.f32.mrb[0].mxu0
  %v2947 = vadd.f32 0.0, %v2946
  %v2948 = vpop.f32.mrb[0].mxu0
  %2949 = vmatprep.mubr.bf16.mxu0 0
  %2950 = vmatmul.mubr.bf16.gmra.mrb[0].mxu0 %v2843
  %v2951 = vpop.f32.mrb[0].mxu0
  %v2952 = vadd.f32 0.0, %v2951
  %v2953 = vpop.f32.mrb[0].mxu0
  %v2954 = vpop.f32.mrb[0].mxu0
  %v2955 = vadd.f32 0.0, %v2954
  %v2956 = vpop.f32.mrb[0].mxu0
  %2957 = vdwg.mxu0
  %v2958 = vadd.f32 %v2772, %v2944
  %v2959 = vadd.f32 %v2773, %v2947
  %v2960 = vadd.f32 %v2774, %v2952
  %v2961 = vadd.f32 %v2775, %v2955
  %s2962 = scalar_lea.vmem %s3, 192
  %v2963 = vld [vmem:[%s2962] sm:$0xf]
  %v2964 = vld [vmem:[%s2962 + $0x4] sm:$0xf]
  %v2965 = vld [vmem:[%s2962 + $0x8] sm:$0xf]
  %v2966 = vld [vmem:[%s2962 + $0xc] sm:$0xf]
  %v2971 = vunpack.c.l.b16 %v2963
  %v2972 = vunpack.c.l.b16 %v2964
  %v2973 = vunpack.c.l.b16 %v2965
  %v2974 = vunpack.c.l.b16 %v2966
  %v2975 = vpack.c.b16 %v2972, %v2971
  %v2976 = vpack.c.b16 %v2974, %v2973
  %2979 = vmatprep.subr.bf16.mxu0 0
  %2980 = vmatpush1.bf16.msra.mxu0 %v732
  %2981 = vmatprep.subr.bf16.mxu0 0
  %2982 = vmatpush1.bf16.msra.mxu0 %v733
  %2983 = vmatprep.subr.bf16.mxu0 0
  %2984 = vmatpush1.bf16.msra.mxu0 %v734
  %2985 = vmatprep.subr.bf16.mxu0 0
  %2986 = vmatpush1.bf16.msra.mxu0 %v735
  %2987 = vmatprep.subr.bf16.mxu0 0
  %2988 = vmatpush1.bf16.msra.mxu0 %v736
  %2989 = vmatprep.subr.bf16.mxu0 0
  %2990 = vmatpush1.bf16.msra.mxu0 %v737
  %2991 = vmatprep.subr.bf16.mxu0 0
  %2992 = vmatpush1.bf16.msra.mxu0 %v738
  %2993 = vmatprep.subr.bf16.mxu0 0
  %2994 = vmatpush1.bf16.msra.mxu0 %v739
  %2995 = vmatprep.subr.bf16.mxu0 0
  %2996 = vmatpush1.bf16.msra.mxu0 0
  %2997 = vmatprep.subr.bf16.mxu0 0
  %2998 = vmatpush1.bf16.msra.mxu0 0
  %2999 = vmatprep.subr.bf16.mxu0 0
  %3000 = vmatpush1.bf16.msra.mxu0 0
  %3001 = vmatprep.subr.bf16.mxu0 0
  %3002 = vmatpush1.bf16.msra.mxu0 0
  %3003 = vmatprep.subr.bf16.mxu0 0
  %3004 = vmatpush1.bf16.msra.mxu0 0
  %3005 = vmatprep.subr.bf16.mxu0 0
  %3006 = vmatpush1.bf16.msra.mxu0 0
  %3007 = vmatprep.subr.bf16.mxu0 0
  %3008 = vmatpush1.bf16.msra.mxu0 0
  %3009 = vmatprep.subr.bf16.mxu0 0
  %3010 = vmatpush1.bf16.msra.mxu0 0
  %3011 = vmatprep.mubr.bf16.mxu0 0
  %3012 = vmatmul.mubr.bf16.gmra.mrb[0].mxu0 %v2975
  %v3013 = vpop.f32.mrb[0].mxu0
  %v3014 = vadd.f32 0.0, %v3013
  %v3015 = vpop.f32.mrb[0].mxu0
  %v3016 = vpop.f32.mrb[0].mxu0
  %v3017 = vadd.f32 0.0, %v3016
  %v3018 = vpop.f32.mrb[0].mxu0
  %3019 = vmatprep.mubr.bf16.mxu0 0
  %3020 = vmatmul.mubr.bf16.gmra.mrb[0].mxu0 %v2976
  %v3021 = vpop.f32.mrb[0].mxu0
  %v3022 = vadd.f32 0.0, %v3021
  %v3023 = vpop.f32.mrb[0].mxu0
  %v3024 = vpop.f32.mrb[0].mxu0
  %v3025 = vadd.f32 0.0, %v3024
  %v3026 = vpop.f32.mrb[0].mxu0
  %3027 = vdwg.mxu0
  %v3028 = vpack.c.bf16 %v3017, %v3014
  %v3029 = vpack.c.bf16 %v3025, %v3022
  %s3030 = scalar_lea.vmem %s4, 768
  %v3031 = vld [vmem:[%s3030] sm:$0xf]
  %v3032 = vld [vmem:[%s3030 + $0x4] sm:$0xf]
  %v3033 = vld [vmem:[%s3030 + $0x8] sm:$0xf]
  %v3034 = vld [vmem:[%s3030 + $0xc] sm:$0xf]
  %v3035 = vld [vmem:[%s3030 + $0x10] sm:$0xf]
  %v3036 = vld [vmem:[%s3030 + $0x14] sm:$0xf]
  %v3037 = vld [vmem:[%s3030 + $0x18] sm:$0xf]
  %v3038 = vld [vmem:[%s3030 + $0x1c] sm:$0xf]
  %v3039 = vld [vmem:[%s3030 + $0x20] sm:$0xf]
  %v3040 = vld [vmem:[%s3030 + $0x24] sm:$0xf]
  %v3041 = vld [vmem:[%s3030 + $0x28] sm:$0xf]
  %v3042 = vld [vmem:[%s3030 + $0x2c] sm:$0xf]
  %v3043 = vld [vmem:[%s3030 + $0x30] sm:$0xf]
  %v3044 = vld [vmem:[%s3030 + $0x34] sm:$0xf]
  %v3045 = vld [vmem:[%s3030 + $0x38] sm:$0xf]
  %v3046 = vld [vmem:[%s3030 + $0x3c] sm:$0xf]
  %v3063 = vunpack.c.l.b16 %v3031
  %v3064 = vunpack.c.l.b16 %v3032
  %v3065 = vunpack.c.l.b16 %v3033
  %v3066 = vunpack.c.l.b16 %v3034
  %v3067 = vunpack.c.l.b16 %v3035
  %v3068 = vunpack.c.l.b16 %v3036
  %v3069 = vunpack.c.l.b16 %v3037
  %v3070 = vunpack.c.l.b16 %v3038
  %v3071 = vunpack.c.l.b16 %v3039
  %v3072 = vunpack.c.l.b16 %v3040
  %v3073 = vunpack.c.l.b16 %v3041
  %v3074 = vunpack.c.l.b16 %v3042
  %v3075 = vunpack.c.l.b16 %v3043
  %v3076 = vunpack.c.l.b16 %v3044
  %v3077 = vunpack.c.l.b16 %v3045
  %v3078 = vunpack.c.l.b16 %v3046
  %v3079 = vpack.c.b16 %v3064, %v3063
  %v3080 = vpack.c.b16 %v3066, %v3065
  %v3081 = vpack.c.b16 %v3068, %v3067
  %v3082 = vpack.c.b16 %v3070, %v3069
  %v3083 = vpack.c.b16 %v3072, %v3071
  %v3084 = vpack.c.b16 %v3074, %v3073
  %v3085 = vpack.c.b16 %v3076, %v3075
  %v3086 = vpack.c.b16 %v3078, %v3077
  %3095 = vmatprep.subr.bf16.mxu0 0
  %3096 = vmatpush1.bf16.msra.mxu0 %v3079
  %3097 = vmatprep.subr.bf16.mxu0 0
  %3098 = vmatpush1.bf16.msra.mxu0 %v3080
  %3099 = vmatprep.subr.bf16.mxu0 0
  %3100 = vmatpush1.bf16.msra.mxu0 %v3081
  %3101 = vmatprep.subr.bf16.mxu0 0
  %3102 = vmatpush1.bf16.msra.mxu0 %v3082
  %3103 = vmatprep.subr.bf16.mxu0 0
  %3104 = vmatpush1.bf16.msra.mxu0 %v3083
  %3105 = vmatprep.subr.bf16.mxu0 0
  %3106 = vmatpush1.bf16.msra.mxu0 %v3084
  %3107 = vmatprep.subr.bf16.mxu0 0
  %3108 = vmatpush1.bf16.msra.mxu0 %v3085
  %3109 = vmatprep.subr.bf16.mxu0 0
  %3110 = vmatpush1.bf16.msra.mxu0 %v3086
  %3111 = vmatprep.subr.bf16.mxu0 0
  %3112 = vmatpush1.bf16.msra.mxu0 0
  %3113 = vmatprep.subr.bf16.mxu0 0
  %3114 = vmatpush1.bf16.msra.mxu0 0
  %3115 = vmatprep.subr.bf16.mxu0 0
  %3116 = vmatpush1.bf16.msra.mxu0 0
  %3117 = vmatprep.subr.bf16.mxu0 0
  %3118 = vmatpush1.bf16.msra.mxu0 0
  %3119 = vmatprep.subr.bf16.mxu0 0
  %3120 = vmatpush1.bf16.msra.mxu0 0
  %3121 = vmatprep.subr.bf16.mxu0 0
  %3122 = vmatpush1.bf16.msra.mxu0 0
  %3123 = vmatprep.subr.bf16.mxu0 0
  %3124 = vmatpush1.bf16.msra.mxu0 0
  %3125 = vmatprep.subr.bf16.mxu0 0
  %3126 = vmatpush1.bf16.msra.mxu0 0
  %3127 = vmatprep.mubr.bf16.mxu0 0
  %3128 = vmatmul.mubr.bf16.gmra.mrb[0].mxu0 %v3028
  %v3129 = vpop.f32.mrb[0].mxu0
  %v3130 = vadd.f32 0.0, %v3129
  %v3131 = vpop.f32.mrb[0].mxu0
  %v3132 = vpop.f32.mrb[0].mxu0
  %v3133 = vadd.f32 0.0, %v3132
  %v3134 = vpop.f32.mrb[0].mxu0
  %3135 = vmatprep.mubr.bf16.mxu0 0
  %3136 = vmatmul.mubr.bf16.gmra.mrb[0].mxu0 %v3029
  %v3137 = vpop.f32.mrb[0].mxu0
  %v3138 = vadd.f32 0.0, %v3137
  %v3139 = vpop.f32.mrb[0].mxu0
  %v3140 = vpop.f32.mrb[0].mxu0
  %v3141 = vadd.f32 0.0, %v3140
  %v3142 = vpop.f32.mrb[0].mxu0
  %3143 = vdwg.mxu0
  %v3144 = vadd.f32 %v2958, %v3130
  %v3145 = vadd.f32 %v2959, %v3133
  %v3146 = vadd.f32 %v2960, %v3138
  %v3147 = vadd.f32 %v2961, %v3141
  %s3148 = scalar_lea.vmem %s3, 208
  %v3149 = vld [vmem:[%s3148] sm:$0xf]
  %v3150 = vld [vmem:[%s3148 + $0x4] sm:$0xf]
  %v3151 = vld [vmem:[%s3148 + $0x8] sm:$0xf]
  %v3152 = vld [vmem:[%s3148 + $0xc] sm:$0xf]
  %v3157 = vunpack.c.l.b16 %v3149
  %v3158 = vunpack.c.l.b16 %v3150
  %v3159 = vunpack.c.l.b16 %v3151
  %v3160 = vunpack.c.l.b16 %v3152
  %v3161 = vpack.c.b16 %v3158, %v3157
  %v3162 = vpack.c.b16 %v3160, %v3159
  %3165 = vmatprep.subr.bf16.mxu0 0
  %3166 = vmatpush1.bf16.msra.mxu0 %v732
  %3167 = vmatprep.subr.bf16.mxu0 0
  %3168 = vmatpush1.bf16.msra.mxu0 %v733
  %3169 = vmatprep.subr.bf16.mxu0 0
  %3170 = vmatpush1.bf16.msra.mxu0 %v734
  %3171 = vmatprep.subr.bf16.mxu0 0
  %3172 = vmatpush1.bf16.msra.mxu0 %v735
  %3173 = vmatprep.subr.bf16.mxu0 0
  %3174 = vmatpush1.bf16.msra.mxu0 %v736
  %3175 = vmatprep.subr.bf16.mxu0 0
  %3176 = vmatpush1.bf16.msra.mxu0 %v737
  %3177 = vmatprep.subr.bf16.mxu0 0
  %3178 = vmatpush1.bf16.msra.mxu0 %v738
  %3179 = vmatprep.subr.bf16.mxu0 0
  %3180 = vmatpush1.bf16.msra.mxu0 %v739
  %3181 = vmatprep.subr.bf16.mxu0 0
  %3182 = vmatpush1.bf16.msra.mxu0 0
  %3183 = vmatprep.subr.bf16.mxu0 0
  %3184 = vmatpush1.bf16.msra.mxu0 0
  %3185 = vmatprep.subr.bf16.mxu0 0
  %3186 = vmatpush1.bf16.msra.mxu0 0
  %3187 = vmatprep.subr.bf16.mxu0 0
  %3188 = vmatpush1.bf16.msra.mxu0 0
  %3189 = vmatprep.subr.bf16.mxu0 0
  %3190 = vmatpush1.bf16.msra.mxu0 0
  %3191 = vmatprep.subr.bf16.mxu0 0
  %3192 = vmatpush1.bf16.msra.mxu0 0
  %3193 = vmatprep.subr.bf16.mxu0 0
  %3194 = vmatpush1.bf16.msra.mxu0 0
  %3195 = vmatprep.subr.bf16.mxu0 0
  %3196 = vmatpush1.bf16.msra.mxu0 0
  %3197 = vmatprep.mubr.bf16.mxu0 0
  %3198 = vmatmul.mubr.bf16.gmra.mrb[0].mxu0 %v3161
  %v3199 = vpop.f32.mrb[0].mxu0
  %v3200 = vadd.f32 0.0, %v3199
  %v3201 = vpop.f32.mrb[0].mxu0
  %v3202 = vpop.f32.mrb[0].mxu0
  %v3203 = vadd.f32 0.0, %v3202
  %v3204 = vpop.f32.mrb[0].mxu0
  %3205 = vmatprep.mubr.bf16.mxu0 0
  %3206 = vmatmul.mubr.bf16.gmra.mrb[0].mxu0 %v3162
  %v3207 = vpop.f32.mrb[0].mxu0
  %v3208 = vadd.f32 0.0, %v3207
  %v3209 = vpop.f32.mrb[0].mxu0
  %v3210 = vpop.f32.mrb[0].mxu0
  %v3211 = vadd.f32 0.0, %v3210
  %v3212 = vpop.f32.mrb[0].mxu0
  %3213 = vdwg.mxu0
  %v3214 = vpack.c.bf16 %v3203, %v3200
  %v3215 = vpack.c.bf16 %v3211, %v3208
  %s3216 = scalar_lea.vmem %s4, 832
  %v3217 = vld [vmem:[%s3216] sm:$0xf]
  %v3218 = vld [vmem:[%s3216 + $0x4] sm:$0xf]
  %v3219 = vld [vmem:[%s3216 + $0x8] sm:$0xf]
  %v3220 = vld [vmem:[%s3216 + $0xc] sm:$0xf]
  %v3221 = vld [vmem:[%s3216 + $0x10] sm:$0xf]
  %v3222 = vld [vmem:[%s3216 + $0x14] sm:$0xf]
  %v3223 = vld [vmem:[%s3216 + $0x18] sm:$0xf]
  %v3224 = vld [vmem:[%s3216 + $0x1c] sm:$0xf]
  %v3225 = vld [vmem:[%s3216 + $0x20] sm:$0xf]
  %v3226 = vld [vmem:[%s3216 + $0x24] sm:$0xf]
  %v3227 = vld [vmem:[%s3216 + $0x28] sm:$0xf]
  %v3228 = vld [vmem:[%s3216 + $0x2c] sm:$0xf]
  %v3229 = vld [vmem:[%s3216 + $0x30] sm:$0xf]
  %v3230 = vld [vmem:[%s3216 + $0x34] sm:$0xf]
  %v3231 = vld [vmem:[%s3216 + $0x38] sm:$0xf]
  %v3232 = vld [vmem:[%s3216 + $0x3c] sm:$0xf]
  %v3249 = vunpack.c.l.b16 %v3217
  %v3250 = vunpack.c.l.b16 %v3218
  %v3251 = vunpack.c.l.b16 %v3219
  %v3252 = vunpack.c.l.b16 %v3220
  %v3253 = vunpack.c.l.b16 %v3221
  %v3254 = vunpack.c.l.b16 %v3222
  %v3255 = vunpack.c.l.b16 %v3223
  %v3256 = vunpack.c.l.b16 %v3224
  %v3257 = vunpack.c.l.b16 %v3225
  %v3258 = vunpack.c.l.b16 %v3226
  %v3259 = vunpack.c.l.b16 %v3227
  %v3260 = vunpack.c.l.b16 %v3228
  %v3261 = vunpack.c.l.b16 %v3229
  %v3262 = vunpack.c.l.b16 %v3230
  %v3263 = vunpack.c.l.b16 %v3231
  %v3264 = vunpack.c.l.b16 %v3232
  %v3265 = vpack.c.b16 %v3250, %v3249
  %v3266 = vpack.c.b16 %v3252, %v3251
  %v3267 = vpack.c.b16 %v3254, %v3253
  %v3268 = vpack.c.b16 %v3256, %v3255
  %v3269 = vpack.c.b16 %v3258, %v3257
  %v3270 = vpack.c.b16 %v3260, %v3259
  %v3271 = vpack.c.b16 %v3262, %v3261
  %v3272 = vpack.c.b16 %v3264, %v3263
  %3281 = vmatprep.subr.bf16.mxu0 0
  %3282 = vmatpush1.bf16.msra.mxu0 %v3265
  %3283 = vmatprep.subr.bf16.mxu0 0
  %3284 = vmatpush1.bf16.msra.mxu0 %v3266
  %3285 = vmatprep.subr.bf16.mxu0 0
  %3286 = vmatpush1.bf16.msra.mxu0 %v3267
  %3287 = vmatprep.subr.bf16.mxu0 0
  %3288 = vmatpush1.bf16.msra.mxu0 %v3268
  %3289 = vmatprep.subr.bf16.mxu0 0
  %3290 = vmatpush1.bf16.msra.mxu0 %v3269
  %3291 = vmatprep.subr.bf16.mxu0 0
  %3292 = vmatpush1.bf16.msra.mxu0 %v3270
  %3293 = vmatprep.subr.bf16.mxu0 0
  %3294 = vmatpush1.bf16.msra.mxu0 %v3271
  %3295 = vmatprep.subr.bf16.mxu0 0
  %3296 = vmatpush1.bf16.msra.mxu0 %v3272
  %3297 = vmatprep.subr.bf16.mxu0 0
  %3298 = vmatpush1.bf16.msra.mxu0 0
  %3299 = vmatprep.subr.bf16.mxu0 0
  %3300 = vmatpush1.bf16.msra.mxu0 0
  %3301 = vmatprep.subr.bf16.mxu0 0
  %3302 = vmatpush1.bf16.msra.mxu0 0
  %3303 = vmatprep.subr.bf16.mxu0 0
  %3304 = vmatpush1.bf16.msra.mxu0 0
  %3305 = vmatprep.subr.bf16.mxu0 0
  %3306 = vmatpush1.bf16.msra.mxu0 0
  %3307 = vmatprep.subr.bf16.mxu0 0
  %3308 = vmatpush1.bf16.msra.mxu0 0
  %3309 = vmatprep.subr.bf16.mxu0 0
  %3310 = vmatpush1.bf16.msra.mxu0 0
  %3311 = vmatprep.subr.bf16.mxu0 0
  %3312 = vmatpush1.bf16.msra.mxu0 0
  %3313 = vmatprep.mubr.bf16.mxu0 0
  %3314 = vmatmul.mubr.bf16.gmra.mrb[0].mxu0 %v3214
  %v3315 = vpop.f32.mrb[0].mxu0
  %v3316 = vadd.f32 0.0, %v3315
  %v3317 = vpop.f32.mrb[0].mxu0
  %v3318 = vpop.f32.mrb[0].mxu0
  %v3319 = vadd.f32 0.0, %v3318
  %v3320 = vpop.f32.mrb[0].mxu0
  %3321 = vmatprep.mubr.bf16.mxu0 0
  %3322 = vmatmul.mubr.bf16.gmra.mrb[0].mxu0 %v3215
  %v3323 = vpop.f32.mrb[0].mxu0
  %v3324 = vadd.f32 0.0, %v3323
  %v3325 = vpop.f32.mrb[0].mxu0
  %v3326 = vpop.f32.mrb[0].mxu0
  %v3327 = vadd.f32 0.0, %v3326
  %v3328 = vpop.f32.mrb[0].mxu0
  %3329 = vdwg.mxu0
  %v3330 = vadd.f32 %v3144, %v3316
  %v3331 = vadd.f32 %v3145, %v3319
  %v3332 = vadd.f32 %v3146, %v3324
  %v3333 = vadd.f32 %v3147, %v3327
  %s3334 = scalar_lea.vmem %s3, 224
  %v3335 = vld [vmem:[%s3334] sm:$0xf]
  %v3336 = vld [vmem:[%s3334 + $0x4] sm:$0xf]
  %v3337 = vld [vmem:[%s3334 + $0x8] sm:$0xf]
  %v3338 = vld [vmem:[%s3334 + $0xc] sm:$0xf]
  %v3343 = vunpack.c.l.b16 %v3335
  %v3344 = vunpack.c.l.b16 %v3336
  %v3345 = vunpack.c.l.b16 %v3337
  %v3346 = vunpack.c.l.b16 %v3338
  %v3347 = vpack.c.b16 %v3344, %v3343
  %v3348 = vpack.c.b16 %v3346, %v3345
  %3351 = vmatprep.subr.bf16.mxu0 0
  %3352 = vmatpush1.bf16.msra.mxu0 %v732
  %3353 = vmatprep.subr.bf16.mxu0 0
  %3354 = vmatpush1.bf16.msra.mxu0 %v733
  %3355 = vmatprep.subr.bf16.mxu0 0
  %3356 = vmatpush1.bf16.msra.mxu0 %v734
  %3357 = vmatprep.subr.bf16.mxu0 0
  %3358 = vmatpush1.bf16.msra.mxu0 %v735
  %3359 = vmatprep.subr.bf16.mxu0 0
  %3360 = vmatpush1.bf16.msra.mxu0 %v736
  %3361 = vmatprep.subr.bf16.mxu0 0
  %3362 = vmatpush1.bf16.msra.mxu0 %v737
  %3363 = vmatprep.subr.bf16.mxu0 0
  %3364 = vmatpush1.bf16.msra.mxu0 %v738
  %3365 = vmatprep.subr.bf16.mxu0 0
  %3366 = vmatpush1.bf16.msra.mxu0 %v739
  %3367 = vmatprep.subr.bf16.mxu0 0
  %3368 = vmatpush1.bf16.msra.mxu0 0
  %3369 = vmatprep.subr.bf16.mxu0 0
  %3370 = vmatpush1.bf16.msra.mxu0 0
  %3371 = vmatprep.subr.bf16.mxu0 0
  %3372 = vmatpush1.bf16.msra.mxu0 0
  %3373 = vmatprep.subr.bf16.mxu0 0
  %3374 = vmatpush1.bf16.msra.mxu0 0
  %3375 = vmatprep.subr.bf16.mxu0 0
  %3376 = vmatpush1.bf16.msra.mxu0 0
  %3377 = vmatprep.subr.bf16.mxu0 0
  %3378 = vmatpush1.bf16.msra.mxu0 0
  %3379 = vmatprep.subr.bf16.mxu0 0
  %3380 = vmatpush1.bf16.msra.mxu0 0
  %3381 = vmatprep.subr.bf16.mxu0 0
  %3382 = vmatpush1.bf16.msra.mxu0 0
  %3383 = vmatprep.mubr.bf16.mxu0 0
  %3384 = vmatmul.mubr.bf16.gmra.mrb[0].mxu0 %v3347
  %v3385 = vpop.f32.mrb[0].mxu0
  %v3386 = vadd.f32 0.0, %v3385
  %v3387 = vpop.f32.mrb[0].mxu0
  %v3388 = vpop.f32.mrb[0].mxu0
  %v3389 = vadd.f32 0.0, %v3388
  %v3390 = vpop.f32.mrb[0].mxu0
  %3391 = vmatprep.mubr.bf16.mxu0 0
  %3392 = vmatmul.mubr.bf16.gmra.mrb[0].mxu0 %v3348
  %v3393 = vpop.f32.mrb[0].mxu0
  %v3394 = vadd.f32 0.0, %v3393
  %v3395 = vpop.f32.mrb[0].mxu0
  %v3396 = vpop.f32.mrb[0].mxu0
  %v3397 = vadd.f32 0.0, %v3396
  %v3398 = vpop.f32.mrb[0].mxu0
  %3399 = vdwg.mxu0
  %v3400 = vpack.c.bf16 %v3389, %v3386
  %v3401 = vpack.c.bf16 %v3397, %v3394
  %s3402 = scalar_lea.vmem %s4, 896
  %v3403 = vld [vmem:[%s3402] sm:$0xf]
  %v3404 = vld [vmem:[%s3402 + $0x4] sm:$0xf]
  %v3405 = vld [vmem:[%s3402 + $0x8] sm:$0xf]
  %v3406 = vld [vmem:[%s3402 + $0xc] sm:$0xf]
  %v3407 = vld [vmem:[%s3402 + $0x10] sm:$0xf]
  %v3408 = vld [vmem:[%s3402 + $0x14] sm:$0xf]
  %v3409 = vld [vmem:[%s3402 + $0x18] sm:$0xf]
  %v3410 = vld [vmem:[%s3402 + $0x1c] sm:$0xf]
  %v3411 = vld [vmem:[%s3402 + $0x20] sm:$0xf]
  %v3412 = vld [vmem:[%s3402 + $0x24] sm:$0xf]
  %v3413 = vld [vmem:[%s3402 + $0x28] sm:$0xf]
  %v3414 = vld [vmem:[%s3402 + $0x2c] sm:$0xf]
  %v3415 = vld [vmem:[%s3402 + $0x30] sm:$0xf]
  %v3416 = vld [vmem:[%s3402 + $0x34] sm:$0xf]
  %v3417 = vld [vmem:[%s3402 + $0x38] sm:$0xf]
  %v3418 = vld [vmem:[%s3402 + $0x3c] sm:$0xf]
  %v3435 = vunpack.c.l.b16 %v3403
  %v3436 = vunpack.c.l.b16 %v3404
  %v3437 = vunpack.c.l.b16 %v3405
  %v3438 = vunpack.c.l.b16 %v3406
  %v3439 = vunpack.c.l.b16 %v3407
  %v3440 = vunpack.c.l.b16 %v3408
  %v3441 = vunpack.c.l.b16 %v3409
  %v3442 = vunpack.c.l.b16 %v3410
  %v3443 = vunpack.c.l.b16 %v3411
  %v3444 = vunpack.c.l.b16 %v3412
  %v3445 = vunpack.c.l.b16 %v3413
  %v3446 = vunpack.c.l.b16 %v3414
  %v3447 = vunpack.c.l.b16 %v3415
  %v3448 = vunpack.c.l.b16 %v3416
  %v3449 = vunpack.c.l.b16 %v3417
  %v3450 = vunpack.c.l.b16 %v3418
  %v3451 = vpack.c.b16 %v3436, %v3435
  %v3452 = vpack.c.b16 %v3438, %v3437
  %v3453 = vpack.c.b16 %v3440, %v3439
  %v3454 = vpack.c.b16 %v3442, %v3441
  %v3455 = vpack.c.b16 %v3444, %v3443
  %v3456 = vpack.c.b16 %v3446, %v3445
  %v3457 = vpack.c.b16 %v3448, %v3447
  %v3458 = vpack.c.b16 %v3450, %v3449
  %3467 = vmatprep.subr.bf16.mxu0 0
  %3468 = vmatpush1.bf16.msra.mxu0 %v3451
  %3469 = vmatprep.subr.bf16.mxu0 0
  %3470 = vmatpush1.bf16.msra.mxu0 %v3452
  %3471 = vmatprep.subr.bf16.mxu0 0
  %3472 = vmatpush1.bf16.msra.mxu0 %v3453
  %3473 = vmatprep.subr.bf16.mxu0 0
  %3474 = vmatpush1.bf16.msra.mxu0 %v3454
  %3475 = vmatprep.subr.bf16.mxu0 0
  %3476 = vmatpush1.bf16.msra.mxu0 %v3455
  %3477 = vmatprep.subr.bf16.mxu0 0
  %3478 = vmatpush1.bf16.msra.mxu0 %v3456
  %3479 = vmatprep.subr.bf16.mxu0 0
  %3480 = vmatpush1.bf16.msra.mxu0 %v3457
  %3481 = vmatprep.subr.bf16.mxu0 0
  %3482 = vmatpush1.bf16.msra.mxu0 %v3458
  %3483 = vmatprep.subr.bf16.mxu0 0
  %3484 = vmatpush1.bf16.msra.mxu0 0
  %3485 = vmatprep.subr.bf16.mxu0 0
  %3486 = vmatpush1.bf16.msra.mxu0 0
  %3487 = vmatprep.subr.bf16.mxu0 0
  %3488 = vmatpush1.bf16.msra.mxu0 0
  %3489 = vmatprep.subr.bf16.mxu0 0
  %3490 = vmatpush1.bf16.msra.mxu0 0
  %3491 = vmatprep.subr.bf16.mxu0 0
  %3492 = vmatpush1.bf16.msra.mxu0 0
  %3493 = vmatprep.subr.bf16.mxu0 0
  %3494 = vmatpush1.bf16.msra.mxu0 0
  %3495 = vmatprep.subr.bf16.mxu0 0
  %3496 = vmatpush1.bf16.msra.mxu0 0
  %3497 = vmatprep.subr.bf16.mxu0 0
  %3498 = vmatpush1.bf16.msra.mxu0 0
  %3499 = vmatprep.mubr.bf16.mxu0 0
  %3500 = vmatmul.mubr.bf16.gmra.mrb[0].mxu0 %v3400
  %v3501 = vpop.f32.mrb[0].mxu0
  %v3502 = vadd.f32 0.0, %v3501
  %v3503 = vpop.f32.mrb[0].mxu0
  %v3504 = vpop.f32.mrb[0].mxu0
  %v3505 = vadd.f32 0.0, %v3504
  %v3506 = vpop.f32.mrb[0].mxu0
  %3507 = vmatprep.mubr.bf16.mxu0 0
  %3508 = vmatmul.mubr.bf16.gmra.mrb[0].mxu0 %v3401
  %v3509 = vpop.f32.mrb[0].mxu0
  %v3510 = vadd.f32 0.0, %v3509
  %v3511 = vpop.f32.mrb[0].mxu0
  %v3512 = vpop.f32.mrb[0].mxu0
  %v3513 = vadd.f32 0.0, %v3512
  %v3514 = vpop.f32.mrb[0].mxu0
  %3515 = vdwg.mxu0
  %v3516 = vadd.f32 %v3330, %v3502
  %v3517 = vadd.f32 %v3331, %v3505
  %v3518 = vadd.f32 %v3332, %v3510
  %v3519 = vadd.f32 %v3333, %v3513
  %s3520 = scalar_lea.vmem %s3, 240
  %v3521 = vld [vmem:[%s3520] sm:$0xf]
  %v3522 = vld [vmem:[%s3520 + $0x4] sm:$0xf]
  %v3523 = vld [vmem:[%s3520 + $0x8] sm:$0xf]
  %v3524 = vld [vmem:[%s3520 + $0xc] sm:$0xf]
  %v3529 = vunpack.c.l.b16 %v3521
  %v3530 = vunpack.c.l.b16 %v3522
  %v3531 = vunpack.c.l.b16 %v3523
  %v3532 = vunpack.c.l.b16 %v3524
  %v3533 = vpack.c.b16 %v3530, %v3529
  %v3534 = vpack.c.b16 %v3532, %v3531
  %3537 = vmatprep.subr.bf16.mxu0 0
  %3538 = vmatpush1.bf16.msra.mxu0 %v732
  %3539 = vmatprep.subr.bf16.mxu0 0
  %3540 = vmatpush1.bf16.msra.mxu0 %v733
  %3541 = vmatprep.subr.bf16.mxu0 0
  %3542 = vmatpush1.bf16.msra.mxu0 %v734
  %3543 = vmatprep.subr.bf16.mxu0 0
  %3544 = vmatpush1.bf16.msra.mxu0 %v735
  %3545 = vmatprep.subr.bf16.mxu0 0
  %3546 = vmatpush1.bf16.msra.mxu0 %v736
  %3547 = vmatprep.subr.bf16.mxu0 0
  %3548 = vmatpush1.bf16.msra.mxu0 %v737
  %3549 = vmatprep.subr.bf16.mxu0 0
  %3550 = vmatpush1.bf16.msra.mxu0 %v738
  %3551 = vmatprep.subr.bf16.mxu0 0
  %3552 = vmatpush1.bf16.msra.mxu0 %v739
  %3553 = vmatprep.subr.bf16.mxu0 0
  %3554 = vmatpush1.bf16.msra.mxu0 0
  %3555 = vmatprep.subr.bf16.mxu0 0
  %3556 = vmatpush1.bf16.msra.mxu0 0
  %3557 = vmatprep.subr.bf16.mxu0 0
  %3558 = vmatpush1.bf16.msra.mxu0 0
  %3559 = vmatprep.subr.bf16.mxu0 0
  %3560 = vmatpush1.bf16.msra.mxu0 0
  %3561 = vmatprep.subr.bf16.mxu0 0
  %3562 = vmatpush1.bf16.msra.mxu0 0
  %3563 = vmatprep.subr.bf16.mxu0 0
  %3564 = vmatpush1.bf16.msra.mxu0 0
  %3565 = vmatprep.subr.bf16.mxu0 0
  %3566 = vmatpush1.bf16.msra.mxu0 0
  %3567 = vmatprep.subr.bf16.mxu0 0
  %3568 = vmatpush1.bf16.msra.mxu0 0
  %3569 = vmatprep.mubr.bf16.mxu0 0
  %3570 = vmatmul.mubr.bf16.gmra.mrb[0].mxu0 %v3533
  %v3571 = vpop.f32.mrb[0].mxu0
  %v3572 = vadd.f32 0.0, %v3571
  %v3573 = vpop.f32.mrb[0].mxu0
  %v3574 = vpop.f32.mrb[0].mxu0
  %v3575 = vadd.f32 0.0, %v3574
  %v3576 = vpop.f32.mrb[0].mxu0
  %3577 = vmatprep.mubr.bf16.mxu0 0
  %3578 = vmatmul.mubr.bf16.gmra.mrb[0].mxu0 %v3534
  %v3579 = vpop.f32.mrb[0].mxu0
  %v3580 = vadd.f32 0.0, %v3579
  %v3581 = vpop.f32.mrb[0].mxu0
  %v3582 = vpop.f32.mrb[0].mxu0
  %v3583 = vadd.f32 0.0, %v3582
  %v3584 = vpop.f32.mrb[0].mxu0
  %3585 = vdwg.mxu0
  %v3586 = vpack.c.bf16 %v3575, %v3572
  %v3587 = vpack.c.bf16 %v3583, %v3580
  %s3588 = scalar_lea.vmem %s4, 960
  %v3589 = vld [vmem:[%s3588] sm:$0xf]
  %v3590 = vld [vmem:[%s3588 + $0x4] sm:$0xf]
  %v3591 = vld [vmem:[%s3588 + $0x8] sm:$0xf]
  %v3592 = vld [vmem:[%s3588 + $0xc] sm:$0xf]
  %v3593 = vld [vmem:[%s3588 + $0x10] sm:$0xf]
  %v3594 = vld [vmem:[%s3588 + $0x14] sm:$0xf]
  %v3595 = vld [vmem:[%s3588 + $0x18] sm:$0xf]
  %v3596 = vld [vmem:[%s3588 + $0x1c] sm:$0xf]
  %v3597 = vld [vmem:[%s3588 + $0x20] sm:$0xf]
  %v3598 = vld [vmem:[%s3588 + $0x24] sm:$0xf]
  %v3599 = vld [vmem:[%s3588 + $0x28] sm:$0xf]
  %v3600 = vld [vmem:[%s3588 + $0x2c] sm:$0xf]
  %v3601 = vld [vmem:[%s3588 + $0x30] sm:$0xf]
  %v3602 = vld [vmem:[%s3588 + $0x34] sm:$0xf]
  %v3603 = vld [vmem:[%s3588 + $0x38] sm:$0xf]
  %v3604 = vld [vmem:[%s3588 + $0x3c] sm:$0xf]
  %v3621 = vunpack.c.l.b16 %v3589
  %v3622 = vunpack.c.l.b16 %v3590
  %v3623 = vunpack.c.l.b16 %v3591
  %v3624 = vunpack.c.l.b16 %v3592
  %v3625 = vunpack.c.l.b16 %v3593
  %v3626 = vunpack.c.l.b16 %v3594
  %v3627 = vunpack.c.l.b16 %v3595
  %v3628 = vunpack.c.l.b16 %v3596
  %v3629 = vunpack.c.l.b16 %v3597
  %v3630 = vunpack.c.l.b16 %v3598
  %v3631 = vunpack.c.l.b16 %v3599
  %v3632 = vunpack.c.l.b16 %v3600
  %v3633 = vunpack.c.l.b16 %v3601
  %v3634 = vunpack.c.l.b16 %v3602
  %v3635 = vunpack.c.l.b16 %v3603
  %v3636 = vunpack.c.l.b16 %v3604
  %v3637 = vpack.c.b16 %v3622, %v3621
  %v3638 = vpack.c.b16 %v3624, %v3623
  %v3639 = vpack.c.b16 %v3626, %v3625
  %v3640 = vpack.c.b16 %v3628, %v3627
  %v3641 = vpack.c.b16 %v3630, %v3629
  %v3642 = vpack.c.b16 %v3632, %v3631
  %v3643 = vpack.c.b16 %v3634, %v3633
  %v3644 = vpack.c.b16 %v3636, %v3635
  %3653 = vmatprep.subr.bf16.mxu0 0
  %3654 = vmatpush1.bf16.msra.mxu0 %v3637
  %3655 = vmatprep.subr.bf16.mxu0 0
  %3656 = vmatpush1.bf16.msra.mxu0 %v3638
  %3657 = vmatprep.subr.bf16.mxu0 0
  %3658 = vmatpush1.bf16.msra.mxu0 %v3639
  %3659 = vmatprep.subr.bf16.mxu0 0
  %3660 = vmatpush1.bf16.msra.mxu0 %v3640
  %3661 = vmatprep.subr.bf16.mxu0 0
  %3662 = vmatpush1.bf16.msra.mxu0 %v3641
  %3663 = vmatprep.subr.bf16.mxu0 0
  %3664 = vmatpush1.bf16.msra.mxu0 %v3642
  %3665 = vmatprep.subr.bf16.mxu0 0
  %3666 = vmatpush1.bf16.msra.mxu0 %v3643
  %3667 = vmatprep.subr.bf16.mxu0 0
  %3668 = vmatpush1.bf16.msra.mxu0 %v3644
  %3669 = vmatprep.subr.bf16.mxu0 0
  %3670 = vmatpush1.bf16.msra.mxu0 0
  %3671 = vmatprep.subr.bf16.mxu0 0
  %3672 = vmatpush1.bf16.msra.mxu0 0
  %3673 = vmatprep.subr.bf16.mxu0 0
  %3674 = vmatpush1.bf16.msra.mxu0 0
  %3675 = vmatprep.subr.bf16.mxu0 0
  %3676 = vmatpush1.bf16.msra.mxu0 0
  %3677 = vmatprep.subr.bf16.mxu0 0
  %3678 = vmatpush1.bf16.msra.mxu0 0
  %3679 = vmatprep.subr.bf16.mxu0 0
  %3680 = vmatpush1.bf16.msra.mxu0 0
  %3681 = vmatprep.subr.bf16.mxu0 0
  %3682 = vmatpush1.bf16.msra.mxu0 0
  %3683 = vmatprep.subr.bf16.mxu0 0
  %3684 = vmatpush1.bf16.msra.mxu0 0
  %3685 = vmatprep.mubr.bf16.mxu0 0
  %3686 = vmatmul.mubr.bf16.gmra.mrb[0].mxu0 %v3586
  %v3687 = vpop.f32.mrb[0].mxu0
  %v3688 = vadd.f32 0.0, %v3687
  %v3689 = vpop.f32.mrb[0].mxu0
  %v3690 = vpop.f32.mrb[0].mxu0
  %v3691 = vadd.f32 0.0, %v3690
  %v3692 = vpop.f32.mrb[0].mxu0
  %3693 = vmatprep.mubr.bf16.mxu0 0
  %3694 = vmatmul.mubr.bf16.gmra.mrb[0].mxu0 %v3587
  %v3695 = vpop.f32.mrb[0].mxu0
  %v3696 = vadd.f32 0.0, %v3695
  %v3697 = vpop.f32.mrb[0].mxu0
  %v3698 = vpop.f32.mrb[0].mxu0
  %v3699 = vadd.f32 0.0, %v3698
  %v3700 = vpop.f32.mrb[0].mxu0
  %3701 = vdwg.mxu0
  %v3702 = vadd.f32 %v3516, %v3688
  %v3703 = vadd.f32 %v3517, %v3691
  %v3704 = vadd.f32 %v3518, %v3696
  %v3705 = vadd.f32 %v3519, %v3699
  %v3706 = vld [vmem:[%s5] sm:$0x1]
  %v3708 = vlaneseq
  %v3709 = vshrl.u32 %v3708, 7
  %v3710 = vsub.s32 0, %v3709
  %v3711 = vrot.slane %v3706, %v3710
  %v3713 = vadd.f32 %v3702, %v3711
  %v3714 = vadd.f32 %v3703, %v3711
  %v3715 = vadd.f32 %v3704, %v3711
  %v3716 = vadd.f32 %v3705, %v3711
  %vm3717 = vcmp.ge.f32.partialorder %v3713, 0.0
  %vm3718 = vcmp.ge.f32.partialorder %v3714, 0.0
  %vm3719 = vcmp.ge.f32.partialorder %v3715, 0.0
  %vm3720 = vcmp.ge.f32.partialorder %v3716, 0.0
  %v3721 = vmul.f32 %v3713, 0.2
  %v3722 = vmul.f32 %v3714, 0.2
  %v3723 = vmul.f32 %v3715, 0.2
  %v3724 = vmul.f32 %v3716, 0.2
  %v3725 = vsel %vm3717, %v3713, %v3721
  %v3726 = vsel %vm3718, %v3714, %v3722
  %v3727 = vsel %vm3719, %v3715, %v3723
  %v3728 = vsel %vm3720, %v3716, %v3724
  %v3729 = vld [vmem:[%s6] sm:$0xff]
  %v3730 = vld [vmem:[%s6 + $0x8] sm:$0xff]
  %v3731 = vld [vmem:[%s6 + $0x10] sm:$0xff]
  %v3732 = vld [vmem:[%s6 + $0x18] sm:$0xff]
  %v3733 = vmul.f32 %v3725, %v3729
  %v3734 = vmul.f32 %v3726, %v3730
  %v3735 = vmul.f32 %v3727, %v3731
  %v3736 = vmul.f32 %v3728, %v3732
  %v3737 = vld [vmem:[%s7] sm:$0x3]
  %vm3738 = vcmask 261120
  %v3740 = vsel %vm3738, %v3737, 0
  %3742 = vmatprep.subr.mxu0 0.0
  %3743 = vmatpush1.msra.mxu0 %v3733
  %3744 = vmatprep.subr.mxu0 0.0
  %3745 = vmatpush1.msra.mxu0 %v3734
  %3746 = vmatprep.subr.mxu0 0.0
  %3747 = vmatpush1.msra.mxu0 %v3735
  %3748 = vmatprep.subr.mxu0 0.0
  %3749 = vmatpush1.msra.mxu0 %v3736
  %3750 = vmatprep.subr.mxu0 0.0
  %3751 = vmatpush1.msra.mxu0 0.0
  %3752 = vmatprep.subr.mxu0 0.0
  %3753 = vmatpush1.msra.mxu0 0.0
  %3754 = vmatprep.subr.mxu0 0.0
  %3755 = vmatpush1.msra.mxu0 0.0
  %3756 = vmatprep.subr.mxu0 0.0
  %3757 = vmatpush1.msra.mxu0 0.0
  %3758 = vmatprep.subr.mxu0 0.0
  %3759 = vmatpush1.msra.mxu0 0.0
  %3760 = vmatprep.subr.mxu0 0.0
  %3761 = vmatpush1.msra.mxu0 0.0
  %3762 = vmatprep.subr.mxu0 0.0
  %3763 = vmatpush1.msra.mxu0 0.0
  %3764 = vmatprep.subr.mxu0 0.0
  %3765 = vmatpush1.msra.mxu0 0.0
  %3766 = vmatprep.subr.mxu0 0.0
  %3767 = vmatpush1.msra.mxu0 0.0
  %3768 = vmatprep.subr.mxu0 0.0
  %3769 = vmatpush1.msra.mxu0 0.0
  %3770 = vmatprep.subr.mxu0 0.0
  %3771 = vmatpush1.msra.mxu0 0.0
  %3772 = vmatprep.subr.mxu0 0.0
  %3773 = vmatpush1.msra.mxu0 0.0
  %3774 = vmatprep.subr.mxu0 0.0
  %3775 = vmatpush1.msra.mxu0 0.0
  %3776 = vmatprep.subr.mxu0 0.0
  %3777 = vmatpush1.msra.mxu0 0.0
  %3778 = vmatprep.subr.mxu0 0.0
  %3779 = vmatpush1.msra.mxu0 0.0
  %3780 = vmatprep.subr.mxu0 0.0
  %3781 = vmatpush1.msra.mxu0 0.0
  %3782 = vmatprep.subr.mxu0 0.0
  %3783 = vmatpush1.msra.mxu0 0.0
  %3784 = vmatprep.subr.mxu0 0.0
  %3785 = vmatpush1.msra.mxu0 0.0
  %3786 = vmatprep.subr.mxu0 0.0
  %3787 = vmatpush1.msra.mxu0 0.0
  %3788 = vmatprep.subr.mxu0 0.0
  %3789 = vmatpush1.msra.mxu0 0.0
  %3790 = vmatprep.subr.mxu0 0.0
  %3791 = vmatpush1.msra.mxu0 0.0
  %3792 = vmatprep.subr.mxu0 0.0
  %3793 = vmatpush1.msra.mxu0 0.0
  %3794 = vmatprep.subr.mxu0 0.0
  %3795 = vmatpush1.msra.mxu0 0.0
  %3796 = vmatprep.subr.mxu0 0.0
  %3797 = vmatpush1.msra.mxu0 0.0
  %3798 = vmatprep.subr.mxu0 0.0
  %3799 = vmatpush1.msra.mxu0 0.0
  %3800 = vmatprep.subr.mxu0 0.0
  %3801 = vmatpush1.msra.mxu0 0.0
  %3802 = vmatprep.subr.mxu0 0.0
  %3803 = vmatpush1.msra.mxu0 0.0
  %3804 = vmatprep.subr.mxu0 0.0
  %3805 = vmatpush1.msra.mxu0 0.0
  %3806 = vmatprep.mubr.f32.mxu0 0.0
  %3807 = vmatmul.mubr.f32.gmra.mrb[0].mxu0 %v3740
  %v3808 = vpop.f32.mrb[0].mxu0
  %v3809 = vadd.f32 0.0, %v3808
  %v3810 = vpop.f32.mrb[0].mxu0
  %3811 = vdwg.mxu0
  %vm3812 = vcmask 1041408
  %v3813 = vsel %vm3812, %v3809, 0.0
  %3814 = vadd.xlane.f32.xlu0 %v3813
  %v3815 = vpop.xlane.xlu0 %3814
  %v3816 = vld [vmem:[#allocation2] sm:$0x1]
  %v3818 = vlaneseq
  %v3819 = vshrl.u32 %v3818, 7
  %v3820 = vsub.s32 0, %v3819
  %v3821 = vrot.slane %v3816, %v3820
  %v3823 = vadd.f32 %v3815, %v3821
  %vm3824 = vcmask 1024
  %3825 = vst.msk [vmem:[%s9] sm:$0x3] %vm3824, %v3823
  // Predicated region
  $region38: #{_lambda_.5} parent=0 // pred_check
    _
  $region39: #{_lambda_.5} parent=0 // pred_check_branch
    %3827 = sbr.rel (0) target = $region41
  $region40: #{_lambda_.5} parent=0 // pred_region
    _
  $region41: #{_lambda_.5} parent=0 // pred_fallthru
    _
  // Predicated region
  $region42: #{_lambda_.5} parent=0 // pred_check
    _
  $region43: #{_lambda_.5} parent=0 // pred_check_branch
    %3829 = sbr.rel (0) target = $region45
  $region44: #{_lambda_.5} parent=0 // pred_region
    _
  $region45: #{_lambda_.5} parent=0 // pred_fallthru
    _

</llo_original>
